<compile_context>
chip_gen: v7x
topology: tpu7x:2x2x1
jax: 0.10.0
libtpu: 0.0.40
codegen_flags: <defaults>
</compile_context>

<pallas_src>
import functools

import jax
import jax.numpy as jnp
from jax.experimental import pallas as pl
from jax.experimental.pallas import tpu as pltpu

D1, D2, D3, D4 = 2048, 1024, 512, 1  # layer widths


def _leaky_relu(x, slope=0.2):
    # max-form: mul + max (2 VALU issues per vreg) instead of cmp + mul + select (3).
    return jnp.maximum(x, slope * x)


def _default_bf16_act():
    """bf16 VPU/EUP is native on v6e/v7x; keep elementwise math f32 on v5e and older."""
    try:
        kind = jax.devices()[0].device_kind.lower()
    except Exception:
        return False
    return not any(tag in kind for tag in ("v2", "v3", "v4", "v5"))


def disc_kernel(x_ref,
                w1_ref, b1_ref,
                w2_ref, b2_ref,
                w3_ref, b3_ref,
                w4t_ref, b4_ref,
                o_ref, *, act_dtype):
    """Fused 4-layer MLP forward for one batch tile.

    All weights stay resident in VMEM (bf16 for the big layers), so the two real
    matmuls run on the MXU back-to-back while the K=3 / N=1 layers and the
    activations use VPU/XLU/EUP slots, with no HBM round-trips for intermediates.
    """
    x = x_ref[...].astype(act_dtype)   # (bt, 3) — tiny cast
    w1 = w1_ref[...]                   # (3, 2048) in act_dtype

    # Layer 1 (K=3): three VPU broadcast multiply-adds in the native VPU dtype.
    h = (x[:, 0:1] * w1[0:1, :]
         + x[:, 1:2] * w1[1:2, :]
         + x[:, 2:3] * w1[2:3, :]
         + b1_ref[...])
    h = _leaky_relu(h)                 # (bt, 2048) act_dtype — feeds MXU directly when bf16

    # Layer 2: bf16 MXU matmul, f32 accumulation.
    h = jnp.dot(h.astype(jnp.bfloat16), w2_ref[...],
                preferred_element_type=jnp.float32) + b2_ref[...]
    h = _leaky_relu(h.astype(act_dtype))   # (bt, 1024) — cast needed anyway for layer 3

    # Layer 3: bf16 MXU matmul, f32 accumulation.
    h = jnp.dot(h.astype(jnp.bfloat16), w3_ref[...],
                preferred_element_type=jnp.float32) + b3_ref[...]
    h = _leaky_relu(h)                     # (bt, 512) f32

    # Layer 4 (N=1): VPU multiply + lane reduction instead of a 1-column matmul.
    logits = (jnp.sum(h.astype(jnp.float32) * w4t_ref[...], axis=-1, keepdims=True)
              + b4_ref[...])
    o_ref[...] = jax.nn.sigmoid(logits).astype(o_ref.dtype)


@functools.partial(jax.jit, static_argnames=("batch_tile", "bf16_act"))
def _discriminator_forward_impl(x, params, batch_tile, bf16_act):
    w1, b1, w2, b2, w3, b3, w4, b4 = params
    B, in_dim = x.shape
    assert in_dim == 3
    assert batch_tile % 8 == 0, "batch_tile must be a multiple of 8 (sublane constraint)"
    x = x.astype(jnp.float32)

    act_dtype = jnp.bfloat16 if bf16_act else jnp.float32

    # Weight prep: big layers streamed as bf16; layer-1/bias in the VPU-native dtype.
    w1_a = w1.astype(act_dtype)
    b1_a = b1.astype(act_dtype)
    w2_bf = w2.astype(jnp.bfloat16)
    w3_bf = w3.astype(jnp.bfloat16)
    b2_f = b2.astype(jnp.float32)
    b3_f = b3.astype(jnp.float32)
    w4_t = w4.reshape(1, w4.shape[0]).astype(jnp.float32)   # (512,1) -> (1,512)
    b4_f = b4.astype(jnp.float32)

    # Clamp the tile to the (8-rounded) batch so small batches don't over-pad, then pad.
    bt = min(batch_tile, max(8, ((B + 7) // 8) * 8))
    pad_b = (-B) % bt
    x_p = jnp.pad(x, ((0, pad_b), (0, 0)))
    Bp = B + pad_b
    grid = (Bp // bt,)

    full = lambda i: (0, 0)  # weights/biases: same (whole) block for every tile

    def _const_spec(shape):
        # Grid-invariant blocks are DMA'd once; single-buffer them to free ~5 MB of VMEM.
        try:
            return pl.BlockSpec(shape, full, pipeline_mode=pl.Buffered(buffer_count=1))
        except TypeError:  # older BlockSpec without pipeline_mode kwarg
            return pl.BlockSpec(shape, full)

    w_bytes = (w1_a.size * w1_a.dtype.itemsize + b1_a.size * b1_a.dtype.itemsize
               + w2_bf.size * 2 + b2_f.size * 4
               + w3_bf.size * 2 + b3_f.size * 4
               + w4_t.size * 4 + b4_f.size * 4)
    flops = 2 * Bp * (3 * D1 + D1 * D2 + D2 * D3 + D3 * D4)
    bytes_accessed = w_bytes + Bp * 3 * 4 + Bp * 1 * 4

    out = pl.pallas_call(
        functools.partial(disc_kernel, act_dtype=act_dtype),
        out_shape=jax.ShapeDtypeStruct((Bp, 1), jnp.float32),
        grid_spec=pltpu.PrefetchScalarGridSpec(
            num_scalar_prefetch=0,
            grid=grid,
            in_specs=[
                pl.BlockSpec((bt, 3), lambda i: (i, 0)),  # x tile (double-buffered)
                _const_spec((3, D1)),                      # w1 (act dtype, VPU path)
                _const_spec((1, D1)),                      # b1
                _const_spec((D1, D2)),                     # w2 (bf16, MXU)
                _const_spec((1, D2)),                      # b2
                _const_spec((D2, D3)),                     # w3 (bf16, MXU)
                _const_spec((1, D3)),                      # b3
                _const_spec((1, D3)),                      # w4^T (f32, VPU reduce)
                _const_spec((1, 1)),                       # b4
            ],
            out_specs=pl.BlockSpec((bt, 1), lambda i: (i, 0)),
        ),
        compiler_params=pltpu.CompilerParams(
            dimension_semantics=("parallel",),   # v7x: batch tiles shard across both TCs
            vmem_limit_bytes=32 << 20,           # fits v7x's 64 MiB physical VMEM
        ),
        cost_estimate=pl.CostEstimate(
            flops=flops,
            transcendentals=Bp,                  # one sigmoid per row
            bytes_accessed=bytes_accessed,
        ),
    )(x_p, w1_a, b1_a, w2_bf, b2_f, w3_bf, b3_f, w4_t, b4_f)

    return out[:B]


def discriminator_forward(x, params, batch_tile=512, bf16_act=None):
    """x: [B, 3] float32 -> [B, 1] float32 (sigmoid probabilities)."""
    if bf16_act is None:
        bf16_act = _default_bf16_act()
    return _discriminator_forward_impl(x, params, batch_tile, bool(bf16_act))


def init_params(key):
    """Deterministic parameter init matching nn.Linear shapes.

    PyTorch nn.Linear(in, out) stores weight [out, in]; we store the transpose
    [in, out] so the hot path is plain x @ W + b.
    """
    dims = [(3, D1), (D1, D2), (D2, D3), (D3, D4)]
    params = []
    keys = jax.random.split(key, len(dims))
    for k, (fan_in, fan_out) in zip(keys, dims):
        kw, kb = jax.random.split(k)
        bound = 1.0 / jnp.sqrt(fan_in)  # PyTorch default uniform(-1/sqrt(in), 1/sqrt(in))
        w = jax.random.uniform(kw, (fan_in, fan_out), jnp.float32, -bound, bound)
        b = jax.random.uniform(kb, (1, fan_out), jnp.float32, -bound, bound)
        params.extend([w, b])
    return tuple(params)


def reference_forward_f32(x, params):
    w1, b1, w2, b2, w3, b3, w4, b4 = params
    h = jax.nn.leaky_relu(x @ w1 + b1, 0.2)
    h = jax.nn.leaky_relu(h @ w2 + b2, 0.2)
    h = jax.nn.leaky_relu(h @ w3 + b3, 0.2)
    return jax.nn.sigmoid(h @ w4 + b4)


def reference_forward_matched(x, params, bf16_act):
    """Mirrors the kernel's numerics (bf16 MXU inputs, f32 accumulation, act dtype)."""
    act = jnp.bfloat16 if bf16_act else jnp.float32
    w1, b1, w2, b2, w3, b3, w4, b4 = params
    xa, w1a, b1a = x.astype(act), w1.astype(act), b1.astype(act)
    h = _leaky_relu(xa[:, 0:1] * w1a[0:1, :] + xa[:, 1:2] * w1a[1:2, :]
                    + xa[:, 2:3] * w1a[2:3, :] + b1a)
    h = jnp.dot(h.astype(jnp.bfloat16), w2.astype(jnp.bfloat16),
                preferred_element_type=jnp.float32) + b2
    h = _leaky_relu(h.astype(act))
    h = jnp.dot(h.astype(jnp.bfloat16), w3.astype(jnp.bfloat16),
                preferred_element_type=jnp.float32) + b3
    h = _leaky_relu(h)
    logits = jnp.sum(h.astype(jnp.float32) * w4.reshape(1, -1),
                     axis=-1, keepdims=True) + b4
    return jax.nn.sigmoid(logits)


if __name__ == "__main__":
    key = jax.random.PRNGKey(0)
    kp, kx = jax.random.split(key)

    params = init_params(kp)
    # Small batch of 100 with batch_tile=64 -> padded to 128 -> a 2-step parallel grid
    # (exercises padding and the multi-tile pipeline at small shapes).
    B = 100
    x = jax.random.normal(kx, (B, 3), jnp.float32)

    out = jax.block_until_ready(discriminator_forward(x, params, batch_tile=64))
    assert out.shape == (B, 1)

    bf16_act = _default_bf16_act()
    ref_matched = reference_forward_matched(x, params, bf16_act)
    ref_f32 = reference_forward_f32(x, params)
    assert jnp.allclose(out, ref_matched, atol=5e-3, rtol=0), "mismatch vs numerics-matched reference"
    assert jnp.allclose(out, ref_f32, atol=5e-2, rtol=0), "mismatch vs f32 reference"

    print("KERNEL_OK")
</pallas_src>

<mosaic_0001>
module attributes {stable_mosaic.version = 11 : i64} {
  func.func @disc_kernel(%arg0: i32, %arg1: memref<64x3xf32, #tpu.memory_space<vmem>>, %arg2: memref<3x2048xbf16, #tpu.memory_space<vmem>>, %arg3: memref<1x2048xbf16, #tpu.memory_space<vmem>>, %arg4: memref<2048x1024xbf16, #tpu.memory_space<vmem>>, %arg5: memref<1x1024xf32, #tpu.memory_space<vmem>>, %arg6: memref<1024x512xbf16, #tpu.memory_space<vmem>>, %arg7: memref<1x512xf32, #tpu.memory_space<vmem>>, %arg8: memref<1x512xf32, #tpu.memory_space<vmem>>, %arg9: memref<1x1xf32, #tpu.memory_space<vmem>>, %arg10: memref<64x1xf32, #tpu.memory_space<vmem>>) attributes {dimension_semantics = [#tpu.dimension_semantics<parallel>], iteration_bounds = array<i64: 2>, scalar_prefetch = 0 : i64, scratch_operands = 0 : i64, tpu.core_type = #tpu.core_type<tc>, window_params = [{transform_indices = @transform_0, window_bounds = array<i64: 64, 3>}, {pipeline_mode = #tpu.pipeline_mode<synchronous>, transform_indices = @transform_1, window_bounds = array<i64: 3, 2048>}, {pipeline_mode = #tpu.pipeline_mode<synchronous>, transform_indices = @transform_2, window_bounds = array<i64: 1, 2048>}, {pipeline_mode = #tpu.pipeline_mode<synchronous>, transform_indices = @transform_3, window_bounds = array<i64: 2048, 1024>}, {pipeline_mode = #tpu.pipeline_mode<synchronous>, transform_indices = @transform_4, window_bounds = array<i64: 1, 1024>}, {pipeline_mode = #tpu.pipeline_mode<synchronous>, transform_indices = @transform_5, window_bounds = array<i64: 1024, 512>}, {pipeline_mode = #tpu.pipeline_mode<synchronous>, transform_indices = @transform_6, window_bounds = array<i64: 1, 512>}, {pipeline_mode = #tpu.pipeline_mode<synchronous>, transform_indices = @transform_7, window_bounds = array<i64: 1, 512>}, {pipeline_mode = #tpu.pipeline_mode<synchronous>, transform_indices = @transform_8, window_bounds = array<i64: 1, 1>}, {transform_indices = @transform_9, window_bounds = array<i64: 64, 1>}]} {
    %c0 = arith.constant 0 : index
    %c0_0 = arith.constant 0 : index
    %0 = vector.load %arg1[%c0, %c0_0] : memref<64x3xf32, #tpu.memory_space<vmem>>, vector<64x3xf32>
    %1 = arith.truncf %0 : vector<64x3xf32> to vector<64x3xbf16>
    %c0_1 = arith.constant 0 : index
    %c0_2 = arith.constant 0 : index
    %2 = vector.load %arg2[%c0_1, %c0_2] : memref<3x2048xbf16, #tpu.memory_space<vmem>>, vector<3x2048xbf16>
    %3 = vector.extract_strided_slice %1 {offsets = [0, 0], sizes = [64, 1], strides = [1, 1]} : vector<64x3xbf16> to vector<64x1xbf16>
    %4 = vector.extract_strided_slice %2 {offsets = [0, 0], sizes = [1, 2048], strides = [1, 1]} : vector<3x2048xbf16> to vector<1x2048xbf16>
    %5 = vector.broadcast %3 : vector<64x1xbf16> to vector<64x2048xbf16>
    %6 = vector.broadcast %4 : vector<1x2048xbf16> to vector<64x2048xbf16>
    %7 = arith.mulf %5, %6 : vector<64x2048xbf16>
    %8 = vector.extract_strided_slice %1 {offsets = [0, 1], sizes = [64, 1], strides = [1, 1]} : vector<64x3xbf16> to vector<64x1xbf16>
    %9 = vector.extract_strided_slice %2 {offsets = [1, 0], sizes = [1, 2048], strides = [1, 1]} : vector<3x2048xbf16> to vector<1x2048xbf16>
    %10 = vector.broadcast %8 : vector<64x1xbf16> to vector<64x2048xbf16>
    %11 = vector.broadcast %9 : vector<1x2048xbf16> to vector<64x2048xbf16>
    %12 = arith.mulf %10, %11 : vector<64x2048xbf16>
    %13 = arith.addf %7, %12 : vector<64x2048xbf16>
    %14 = vector.extract_strided_slice %1 {offsets = [0, 2], sizes = [64, 1], strides = [1, 1]} : vector<64x3xbf16> to vector<64x1xbf16>
    %15 = vector.extract_strided_slice %2 {offsets = [2, 0], sizes = [1, 2048], strides = [1, 1]} : vector<3x2048xbf16> to vector<1x2048xbf16>
    %16 = vector.broadcast %14 : vector<64x1xbf16> to vector<64x2048xbf16>
    %17 = vector.broadcast %15 : vector<1x2048xbf16> to vector<64x2048xbf16>
    %18 = arith.mulf %16, %17 : vector<64x2048xbf16>
    %19 = arith.addf %13, %18 : vector<64x2048xbf16>
    %c0_3 = arith.constant 0 : index
    %c0_4 = arith.constant 0 : index
    %20 = vector.load %arg3[%c0_3, %c0_4] : memref<1x2048xbf16, #tpu.memory_space<vmem>>, vector<1x2048xbf16>
    %21 = vector.broadcast %20 : vector<1x2048xbf16> to vector<64x2048xbf16>
    %22 = arith.addf %19, %21 : vector<64x2048xbf16>
    %cst = arith.constant 2.001950e-01 : bf16
    %23 = vector.broadcast %cst : bf16 to vector<64x2048xbf16>
    %24 = arith.mulf %23, %22 : vector<64x2048xbf16>
    %25 = arith.maximumf %22, %24 : vector<64x2048xbf16>
    %c0_5 = arith.constant 0 : index
    %c0_6 = arith.constant 0 : index
    %26 = vector.load %arg4[%c0_5, %c0_6] : memref<2048x1024xbf16, #tpu.memory_space<vmem>>, vector<2048x1024xbf16>
    %cst_7 = arith.constant dense<0.000000e+00> : vector<64x1024xf32>
    %27 = tpu.matmul %25, %26, %cst_7 {dimension_numbers = #tpu.dot_dimension_numbers<[1], [0], [0], [1], [0, 0, 1, 1], [], []>} : vector<64x2048xbf16>, vector<2048x1024xbf16>, vector<64x1024xf32> -> vector<64x1024xf32>
    %c0_8 = arith.constant 0 : index
    %c0_9 = arith.constant 0 : index
    %28 = vector.load %arg5[%c0_8, %c0_9] : memref<1x1024xf32, #tpu.memory_space<vmem>>, vector<1x1024xf32>
    %29 = vector.broadcast %28 : vector<1x1024xf32> to vector<64x1024xf32>
    %30 = arith.addf %27, %29 : vector<64x1024xf32>
    %31 = arith.truncf %30 : vector<64x1024xf32> to vector<64x1024xbf16>
    %cst_10 = arith.constant 2.001950e-01 : bf16
    %32 = vector.broadcast %cst_10 : bf16 to vector<64x1024xbf16>
    %33 = arith.mulf %32, %31 : vector<64x1024xbf16>
    %34 = arith.maximumf %31, %33 : vector<64x1024xbf16>
    %c0_11 = arith.constant 0 : index
    %c0_12 = arith.constant 0 : index
    %35 = vector.load %arg6[%c0_11, %c0_12] : memref<1024x512xbf16, #tpu.memory_space<vmem>>, vector<1024x512xbf16>
    %cst_13 = arith.constant dense<0.000000e+00> : vector<64x512xf32>
    %36 = tpu.matmul %34, %35, %cst_13 {dimension_numbers = #tpu.dot_dimension_numbers<[1], [0], [0], [1], [0, 0, 1, 1], [], []>} : vector<64x1024xbf16>, vector<1024x512xbf16>, vector<64x512xf32> -> vector<64x512xf32>
    %c0_14 = arith.constant 0 : index
    %c0_15 = arith.constant 0 : index
    %37 = vector.load %arg7[%c0_14, %c0_15] : memref<1x512xf32, #tpu.memory_space<vmem>>, vector<1x512xf32>
    %38 = vector.broadcast %37 : vector<1x512xf32> to vector<64x512xf32>
    %39 = arith.addf %36, %38 : vector<64x512xf32>
    %cst_16 = arith.constant 2.000000e-01 : f32
    %40 = vector.broadcast %cst_16 : f32 to vector<64x512xf32>
    %41 = arith.mulf %40, %39 : vector<64x512xf32>
    %42 = arith.maximumf %39, %41 : vector<64x512xf32>
    %c0_17 = arith.constant 0 : index
    %c0_18 = arith.constant 0 : index
    %43 = vector.load %arg8[%c0_17, %c0_18] : memref<1x512xf32, #tpu.memory_space<vmem>>, vector<1x512xf32>
    %44 = vector.broadcast %43 : vector<1x512xf32> to vector<64x512xf32>
    %45 = arith.mulf %42, %44 : vector<64x512xf32>
    %cst_19 = arith.constant dense<0.000000e+00> : vector<64xf32>
    %46 = vector.multi_reduction <add>, %45, %cst_19 [1] : vector<64x512xf32> to vector<64xf32>
    %47 = vector.shape_cast %46 : vector<64xf32> to vector<64x1xf32>
    %c0_20 = arith.constant 0 : index
    %c0_21 = arith.constant 0 : index
    %48 = vector.load %arg9[%c0_20, %c0_21] : memref<1x1xf32, #tpu.memory_space<vmem>>, vector<1x1xf32>
    %49 = vector.broadcast %48 : vector<1x1xf32> to vector<64x1xf32>
    %50 = arith.addf %47, %49 : vector<64x1xf32>
    %51 = arith.negf %50 : vector<64x1xf32>
    %52 = math.exp %51 : vector<64x1xf32>
    %cst_22 = arith.constant 1.000000e+00 : f32
    %53 = vector.broadcast %cst_22 : f32 to vector<64x1xf32>
    %54 = arith.addf %53, %52 : vector<64x1xf32>
    %55 = arith.divf %53, %54 : vector<64x1xf32>
    %c0_23 = arith.constant 0 : index
    %c0_24 = arith.constant 0 : index
    %56 = vector.load %arg10[%c0_23, %c0_24] : memref<64x1xf32, #tpu.memory_space<vmem>>, vector<64x1xf32>
    tpu.vector_store %arg10[%c0_23, %c0_24], %55 {strides = array<i32>} : memref<64x1xf32, #tpu.memory_space<vmem>>, vector<64x1xf32>,
    return
  }
  func.func @transform_0(%arg0: i32) -> (i32, i32) {
    %c0_i32 = arith.constant 0 : i32
    %c0_i32_0 = arith.constant 0 : i32
    return %arg0, %c0_i32 : i32, i32
  }
  func.func @transform_1(%arg0: i32) -> (i32, i32) {
    %c0_i32 = arith.constant 0 : i32
    %c0_i32_0 = arith.constant 0 : i32
    %c0_i32_1 = arith.constant 0 : i32
    return %c0_i32, %c0_i32_0 : i32, i32
  }
  func.func @transform_2(%arg0: i32) -> (i32, i32) {
    %c0_i32 = arith.constant 0 : i32
    %c0_i32_0 = arith.constant 0 : i32
    %c0_i32_1 = arith.constant 0 : i32
    return %c0_i32, %c0_i32_0 : i32, i32
  }
  func.func @transform_3(%arg0: i32) -> (i32, i32) {
    %c0_i32 = arith.constant 0 : i32
    %c0_i32_0 = arith.constant 0 : i32
    %c0_i32_1 = arith.constant 0 : i32
    return %c0_i32, %c0_i32_0 : i32, i32
  }
  func.func @transform_4(%arg0: i32) -> (i32, i32) {
    %c0_i32 = arith.constant 0 : i32
    %c0_i32_0 = arith.constant 0 : i32
    %c0_i32_1 = arith.constant 0 : i32
    return %c0_i32, %c0_i32_0 : i32, i32
  }
  func.func @transform_5(%arg0: i32) -> (i32, i32) {
    %c0_i32 = arith.constant 0 : i32
    %c0_i32_0 = arith.constant 0 : i32
    %c0_i32_1 = arith.constant 0 : i32
    return %c0_i32, %c0_i32_0 : i32, i32
  }
  func.func @transform_6(%arg0: i32) -> (i32, i32) {
    %c0_i32 = arith.constant 0 : i32
    %c0_i32_0 = arith.constant 0 : i32
    %c0_i32_1 = arith.constant 0 : i32
    return %c0_i32, %c0_i32_0 : i32, i32
  }
  func.func @transform_7(%arg0: i32) -> (i32, i32) {
    %c0_i32 = arith.constant 0 : i32
    %c0_i32_0 = arith.constant 0 : i32
    %c0_i32_1 = arith.constant 0 : i32
    return %c0_i32, %c0_i32_0 : i32, i32
  }
  func.func @transform_8(%arg0: i32) -> (i32, i32) {
    %c0_i32 = arith.constant 0 : i32
    %c0_i32_0 = arith.constant 0 : i32
    %c0_i32_1 = arith.constant 0 : i32
    return %c0_i32, %c0_i32_0 : i32, i32
  }
  func.func @transform_9(%arg0: i32) -> (i32, i32) {
    %c0_i32 = arith.constant 0 : i32
    %c0_i32_0 = arith.constant 0 : i32
    return %arg0, %c0_i32 : i32, i32
  }
}

</mosaic_0001>

<llo_original>
// kernel: _discriminator_forward_impl.1
$region0: #{_discriminator_forward_impl.1}
  #allocation0 [shape = 'u32[]', space=smem, size = 0x4, offset = 0x4, fixed_abs, tag = 'smem constant byte address 0x4 - core index']
  #allocation1 [shape = 'u32[144,128]{1,0:T(1,128)}', space=vmem, size = 0x12000, scoped, tag = 'internal scratch']
  #allocation2 [shape = 'f32[1,1]{1,0:T(1,128)S(1)}', space=vmem, size = 0x200, scoped, tag = 'scoped memory for _discriminator_forward_impl.1']
  %s0 = inlined_call_operand.vmem [shape: f32[128,3], index: 0, kind: input, shape index: {}]
  %s1 = inlined_call_operand.vmem [shape: bf16[3,2048], index: 1, kind: input, shape index: {}]
  %s2 = inlined_call_operand.vmem [shape: bf16[1,2048], index: 2, kind: input, shape index: {}]
  %s3 = inlined_call_operand.vmem [shape: bf16[2048,1024], index: 3, kind: input, shape index: {}]
  %s4 = inlined_call_operand.vmem [shape: f32[1,1024], index: 4, kind: input, shape index: {}]
  %s5 = inlined_call_operand.vmem [shape: bf16[1024,512], index: 5, kind: input, shape index: {}]
  %s6 = inlined_call_operand.vmem [shape: f32[1,512], index: 6, kind: input, shape index: {}]
  %s7 = inlined_call_operand.vmem [shape: f32[1,512], index: 7, kind: input, shape index: {}]
  %s8 = inlined_call_operand.<no memory space> [shape: f32[1,1], index: 8, kind: input, shape index: {}]
  %s9 = inlined_call_operand.vmem [shape: f32[128,1], index: 9, kind: output, shape index: {}]
  %s10 = sld [smem:[#allocation0]]
  $region69: #{_discriminator_forward_impl.1} parent=0
    _
  %s12 = ssub.s32 1, %s10
  %s13 = scalar_select 0, %s12, %s10
  %v14 = vstv %s8
  %15 = vst [vmem:[#allocation2] sm:$0x1] %v14
  loop: start=0, step=1, limit=4
  $region2: #{_discriminator_forward_impl.1} parent=0 // loop_pre_header
    _
  $region3: #{_discriminator_forward_impl.1} parent=0 // loop_header
    %s17 = sphi 0, %s21
    %p18 = scmp.ge.s32.totalorder %s17, 4
    %s27 = sphi 0, %s29
    %s30 = sphi 0, %s27
    %s31 = sphi 0, %s30
    %s47 = sphi 0, %s31
    %s51 = sphi 0, %s51
    %s53 = sphi 0, %s51
    %s54 = sphi 0, %s53
    %s68 = sphi 0, %s54
    %s72 = sphi 0, %s72
    %s74 = sphi 0, %s72
    %s75 = sphi 0, %s74
    %s89 = sphi 0, %s75
    %s93 = sphi 0, %s93
    %s95 = sphi 0, %s93
    %s96 = sphi 0, %s95
    %s110 = sphi 0, %s96
    %s114 = sphi 0, %s114
    %s116 = sphi 0, %s114
    %s117 = sphi 0, %s116
    %s131 = sphi 0, %s117
    %s135 = sphi 0, %s135
    %s137 = sphi 0, %s135
    %s138 = sphi 0, %s137
    %s152 = sphi 0, %s138
    %s156 = sphi 0, %s156
    %s158 = sphi 0, %s156
    %s159 = sphi 0, %s158
    %s173 = sphi 0, %s159
    %s177 = sphi 0, %s177
    %s179 = sphi 0, %s177
    %s180 = sphi 0, %s179
    %s194 = sphi 0, %s180
    %s198 = sphi 0, %s198
    %s200 = sphi 0, %s198
    %s201 = sphi 0, %s200
    %s215 = sphi 0, %s201
    %s221 = sphi 0, %s223
    %s224 = sphi 0, %s221
    %s225 = sphi 0, %s224
    %s241 = sphi 0, %s225
  $region4: #{_discriminator_forward_impl.1} parent=0 // loop_header_branch
    %20 = sbr.rel (%p18) target = $region8
  $region5: #{_discriminator_forward_impl.1} parent=0 // loop_body
    %s22 = ssub.s32 %s17, 1
    %s23 = ssub.s32 %s17, 2
    %s24 = sadd.s32 %s17, 1
    %s25 = ssub.s32 %s17, %s24
    %p26 = scmp.eq.s32.totalorder %s25, 0
    %s28 = sadd.s32 %s27, 1
    %s29 = scalar_select %p26, %s27, %s28
    %p32 = pneg %p26
    %p33 = scmp.eq.s32.totalorder %s17, 1
    %p34 = por %p32, %p33
    %p35 = scmp.ne.s32.totalorder %s27, %s30
    %p36 = scmp.eq.s32.totalorder %s17, 0
    %p37 = por %p35, %p36
    %p38 = scmp.ne.s32.totalorder %s27, %s30
    %p39 = scmp.eq.s32.totalorder %s22, 1
    %p40 = por %p38, %p39
    %p41 = scmp.ne.s32.totalorder %s30, %s31
    %p42 = scmp.eq.s32.totalorder %s22, 0
    %p43 = por %p41, %p42
    %p44 = scmp.ne.s32.totalorder %s30, %s31
    %p45 = scmp.eq.s32.totalorder %s23, 1
    %p46 = por %p44, %p45
    %p48 = scmp.ne.s32.totalorder %s31, %s47
    %p49 = scmp.eq.s32.totalorder %s23, 0
    %p50 = por %p48, %p49
    %s52 = sadd.s32 %s51, 1
    %p55 = scmp.eq.s32.totalorder %s17, 1
    %p56 = scmp.ne.s32.totalorder %s51, %s53
    %p57 = scmp.eq.s32.totalorder %s17, 0
    %p58 = por %p56, %p57
    %p59 = scmp.ne.s32.totalorder %s51, %s53
    %p60 = scmp.eq.s32.totalorder %s22, 1
    %p61 = por %p59, %p60
    %p62 = scmp.ne.s32.totalorder %s53, %s54
    %p63 = scmp.eq.s32.totalorder %s22, 0
    %p64 = por %p62, %p63
    %p65 = scmp.ne.s32.totalorder %s53, %s54
    %p66 = scmp.eq.s32.totalorder %s23, 1
    %p67 = por %p65, %p66
    %p69 = scmp.ne.s32.totalorder %s54, %s68
    %p70 = scmp.eq.s32.totalorder %s23, 0
    %p71 = por %p69, %p70
    %s73 = sadd.s32 %s72, 1
    %p76 = scmp.eq.s32.totalorder %s17, 1
    %p77 = scmp.ne.s32.totalorder %s72, %s74
    %p78 = scmp.eq.s32.totalorder %s17, 0
    %p79 = por %p77, %p78
    %p80 = scmp.ne.s32.totalorder %s72, %s74
    %p81 = scmp.eq.s32.totalorder %s22, 1
    %p82 = por %p80, %p81
    %p83 = scmp.ne.s32.totalorder %s74, %s75
    %p84 = scmp.eq.s32.totalorder %s22, 0
    %p85 = por %p83, %p84
    %p86 = scmp.ne.s32.totalorder %s74, %s75
    %p87 = scmp.eq.s32.totalorder %s23, 1
    %p88 = por %p86, %p87
    %p90 = scmp.ne.s32.totalorder %s75, %s89
    %p91 = scmp.eq.s32.totalorder %s23, 0
    %p92 = por %p90, %p91
    %s94 = sadd.s32 %s93, 1
    %p97 = scmp.eq.s32.totalorder %s17, 1
    %p98 = scmp.ne.s32.totalorder %s93, %s95
    %p99 = scmp.eq.s32.totalorder %s17, 0
    %p100 = por %p98, %p99
    %p101 = scmp.ne.s32.totalorder %s93, %s95
    %p102 = scmp.eq.s32.totalorder %s22, 1
    %p103 = por %p101, %p102
    %p104 = scmp.ne.s32.totalorder %s95, %s96
    %p105 = scmp.eq.s32.totalorder %s22, 0
    %p106 = por %p104, %p105
    %p107 = scmp.ne.s32.totalorder %s95, %s96
    %p108 = scmp.eq.s32.totalorder %s23, 1
    %p109 = por %p107, %p108
    %p111 = scmp.ne.s32.totalorder %s96, %s110
    %p112 = scmp.eq.s32.totalorder %s23, 0
    %p113 = por %p111, %p112
    %s115 = sadd.s32 %s114, 1
    %p118 = scmp.eq.s32.totalorder %s17, 1
    %p119 = scmp.ne.s32.totalorder %s114, %s116
    %p120 = scmp.eq.s32.totalorder %s17, 0
    %p121 = por %p119, %p120
    %p122 = scmp.ne.s32.totalorder %s114, %s116
    %p123 = scmp.eq.s32.totalorder %s22, 1
    %p124 = por %p122, %p123
    %p125 = scmp.ne.s32.totalorder %s116, %s117
    %p126 = scmp.eq.s32.totalorder %s22, 0
    %p127 = por %p125, %p126
    %p128 = scmp.ne.s32.totalorder %s116, %s117
    %p129 = scmp.eq.s32.totalorder %s23, 1
    %p130 = por %p128, %p129
    %p132 = scmp.ne.s32.totalorder %s117, %s131
    %p133 = scmp.eq.s32.totalorder %s23, 0
    %p134 = por %p132, %p133
    %s136 = sadd.s32 %s135, 1
    %p139 = scmp.eq.s32.totalorder %s17, 1
    %p140 = scmp.ne.s32.totalorder %s135, %s137
    %p141 = scmp.eq.s32.totalorder %s17, 0
    %p142 = por %p140, %p141
    %p143 = scmp.ne.s32.totalorder %s135, %s137
    %p144 = scmp.eq.s32.totalorder %s22, 1
    %p145 = por %p143, %p144
    %p146 = scmp.ne.s32.totalorder %s137, %s138
    %p147 = scmp.eq.s32.totalorder %s22, 0
    %p148 = por %p146, %p147
    %p149 = scmp.ne.s32.totalorder %s137, %s138
    %p150 = scmp.eq.s32.totalorder %s23, 1
    %p151 = por %p149, %p150
    %p153 = scmp.ne.s32.totalorder %s138, %s152
    %p154 = scmp.eq.s32.totalorder %s23, 0
    %p155 = por %p153, %p154
    %s157 = sadd.s32 %s156, 1
    %p160 = scmp.eq.s32.totalorder %s17, 1
    %p161 = scmp.ne.s32.totalorder %s156, %s158
    %p162 = scmp.eq.s32.totalorder %s17, 0
    %p163 = por %p161, %p162
    %p164 = scmp.ne.s32.totalorder %s156, %s158
    %p165 = scmp.eq.s32.totalorder %s22, 1
    %p166 = por %p164, %p165
    %p167 = scmp.ne.s32.totalorder %s158, %s159
    %p168 = scmp.eq.s32.totalorder %s22, 0
    %p169 = por %p167, %p168
    %p170 = scmp.ne.s32.totalorder %s158, %s159
    %p171 = scmp.eq.s32.totalorder %s23, 1
    %p172 = por %p170, %p171
    %p174 = scmp.ne.s32.totalorder %s159, %s173
    %p175 = scmp.eq.s32.totalorder %s23, 0
    %p176 = por %p174, %p175
    %s178 = sadd.s32 %s177, 1
    %p181 = scmp.eq.s32.totalorder %s17, 1
    %p182 = scmp.ne.s32.totalorder %s177, %s179
    %p183 = scmp.eq.s32.totalorder %s17, 0
    %p184 = por %p182, %p183
    %p185 = scmp.ne.s32.totalorder %s177, %s179
    %p186 = scmp.eq.s32.totalorder %s22, 1
    %p187 = por %p185, %p186
    %p188 = scmp.ne.s32.totalorder %s179, %s180
    %p189 = scmp.eq.s32.totalorder %s22, 0
    %p190 = por %p188, %p189
    %p191 = scmp.ne.s32.totalorder %s179, %s180
    %p192 = scmp.eq.s32.totalorder %s23, 1
    %p193 = por %p191, %p192
    %p195 = scmp.ne.s32.totalorder %s180, %s194
    %p196 = scmp.eq.s32.totalorder %s23, 0
    %p197 = por %p195, %p196
    %s199 = sadd.s32 %s198, 1
    %p202 = scmp.eq.s32.totalorder %s17, 1
    %p203 = scmp.ne.s32.totalorder %s198, %s200
    %p204 = scmp.eq.s32.totalorder %s17, 0
    %p205 = por %p203, %p204
    %p206 = scmp.ne.s32.totalorder %s198, %s200
    %p207 = scmp.eq.s32.totalorder %s22, 1
    %p208 = por %p206, %p207
    %p209 = scmp.ne.s32.totalorder %s200, %s201
    %p210 = scmp.eq.s32.totalorder %s22, 0
    %p211 = por %p209, %p210
    %p212 = scmp.ne.s32.totalorder %s200, %s201
    %p213 = scmp.eq.s32.totalorder %s23, 1
    %p214 = por %p212, %p213
    %p216 = scmp.ne.s32.totalorder %s201, %s215
    %p217 = scmp.eq.s32.totalorder %s23, 0
    %p218 = por %p216, %p217
    %s219 = ssub.s32 %s17, %s24
    %p220 = scmp.eq.s32.totalorder %s219, 0
    %s222 = sadd.s32 %s221, 1
    %s223 = scalar_select %p220, %s221, %s222
    %p226 = pneg %p220
    %p227 = scmp.eq.s32.totalorder %s17, 1
    %p228 = por %p226, %p227
    %p229 = scmp.ne.s32.totalorder %s221, %s224
    %p230 = scmp.eq.s32.totalorder %s17, 0
    %p231 = por %p229, %p230
    %p232 = scmp.ne.s32.totalorder %s221, %s224
    %p233 = scmp.eq.s32.totalorder %s22, 1
    %p234 = por %p232, %p233
    %p235 = scmp.ne.s32.totalorder %s224, %s225
    %p236 = scmp.eq.s32.totalorder %s22, 0
    %p237 = por %p235, %p236
    %p238 = scmp.ne.s32.totalorder %s224, %s225
    %p239 = scmp.eq.s32.totalorder %s23, 1
    %p240 = por %p238, %p239
    %p242 = scmp.ne.s32.totalorder %s225, %s241
    %p243 = scmp.eq.s32.totalorder %s23, 0
    %p244 = por %p242, %p243
    %p245 = scmp.le.s32.totalorder 1, %s17
    %p246 = scmp.lt.s32.totalorder %s17, 3
    %p247 = pnand %p245, %p246
    %p248 = pneg %p247
    // Predicated region
    $region9: #{_discriminator_forward_impl.1} parent=5 // pred_check
      _
    $region10: #{_discriminator_forward_impl.1} parent=5 // pred_check_branch
      %250 = sbr.rel (%p247) target = $region12
    $region11: #{_discriminator_forward_impl.1} parent=5 // pred_region
      %s251 = ssub.s32 %s17, 1
      // Predicated region
      $region13: #{_discriminator_forward_impl.1} parent=11 // pred_check
        %p252 = pneg %p64
      $region14: #{_discriminator_forward_impl.1} parent=11 // pred_check_branch
        %254 = sbr.rel (%p252) target = $region16
      $region15: #{_discriminator_forward_impl.1} parent=11 // pred_region
        _
      $region16: #{_discriminator_forward_impl.1} parent=11 // pred_fallthru
        _
      // Predicated region
      $region17: #{_discriminator_forward_impl.1} parent=11 // pred_check
        %p255 = pneg %p85
      $region18: #{_discriminator_forward_impl.1} parent=11 // pred_check_branch
        %257 = sbr.rel (%p255) target = $region20
      $region19: #{_discriminator_forward_impl.1} parent=11 // pred_region
        _
      $region20: #{_discriminator_forward_impl.1} parent=11 // pred_fallthru
        _
      // Predicated region
      $region21: #{_discriminator_forward_impl.1} parent=11 // pred_check
        %p258 = pneg %p106
      $region22: #{_discriminator_forward_impl.1} parent=11 // pred_check_branch
        %260 = sbr.rel (%p258) target = $region24
      $region23: #{_discriminator_forward_impl.1} parent=11 // pred_region
        _
      $region24: #{_discriminator_forward_impl.1} parent=11 // pred_fallthru
        _
      // Predicated region
      $region25: #{_discriminator_forward_impl.1} parent=11 // pred_check
        %p261 = pneg %p127
      $region26: #{_discriminator_forward_impl.1} parent=11 // pred_check_branch
        %263 = sbr.rel (%p261) target = $region28
      $region27: #{_discriminator_forward_impl.1} parent=11 // pred_region
        _
      $region28: #{_discriminator_forward_impl.1} parent=11 // pred_fallthru
        _
      // Predicated region
      $region29: #{_discriminator_forward_impl.1} parent=11 // pred_check
        %p264 = pneg %p148
      $region30: #{_discriminator_forward_impl.1} parent=11 // pred_check_branch
        %266 = sbr.rel (%p264) target = $region32
      $region31: #{_discriminator_forward_impl.1} parent=11 // pred_region
        _
      $region32: #{_discriminator_forward_impl.1} parent=11 // pred_fallthru
        _
      // Predicated region
      $region33: #{_discriminator_forward_impl.1} parent=11 // pred_check
        %p267 = pneg %p169
      $region34: #{_discriminator_forward_impl.1} parent=11 // pred_check_branch
        %269 = sbr.rel (%p267) target = $region36
      $region35: #{_discriminator_forward_impl.1} parent=11 // pred_region
        _
      $region36: #{_discriminator_forward_impl.1} parent=11 // pred_fallthru
        _
      // Predicated region
      $region37: #{_discriminator_forward_impl.1} parent=11 // pred_check
        %p270 = pneg %p190
      $region38: #{_discriminator_forward_impl.1} parent=11 // pred_check_branch
        %272 = sbr.rel (%p270) target = $region40
      $region39: #{_discriminator_forward_impl.1} parent=11 // pred_region
        _
      $region40: #{_discriminator_forward_impl.1} parent=11 // pred_fallthru
        _
      // Predicated region
      $region41: #{_discriminator_forward_impl.1} parent=11 // pred_check
        %p273 = pneg %p211
      $region42: #{_discriminator_forward_impl.1} parent=11 // pred_check_branch
        %275 = sbr.rel (%p273) target = $region44
      $region43: #{_discriminator_forward_impl.1} parent=11 // pred_region
        _
      $region44: #{_discriminator_forward_impl.1} parent=11 // pred_fallthru
        _
    $region12: #{_discriminator_forward_impl.1} parent=5 // pred_fallthru
      _
    %p276 = scmp.lt.s32.totalorder %s17, 2
    // Predicated region
    $region45: #{_discriminator_forward_impl.1} parent=5 // pred_check
      %p277 = pneg %p276
    $region46: #{_discriminator_forward_impl.1} parent=5 // pred_check_branch
      %279 = sbr.rel (%p277) target = $region48
    $region47: #{_discriminator_forward_impl.1} parent=5 // pred_region
      // Predicated region
      $region49: #{_discriminator_forward_impl.1} parent=47 // pred_check
        %p280 = pneg %p37
      $region50: #{_discriminator_forward_impl.1} parent=47 // pred_check_branch
        %282 = sbr.rel (%p280) target = $region52
      $region51: #{_discriminator_forward_impl.1} parent=47 // pred_region
        %s283 = smul.u32 8, %s17
        %p284 = scmp.lt.s32.totalorder %s283, 15
        %s285 = scalar_select %p284, %s283, 15
        %s286 = smul.addr %s285, 8
        %s287 = scalar_lea.vmem %s0, %s286
        %s288 = smul.u32 8, %s17
      $region52: #{_discriminator_forward_impl.1} parent=47 // pred_fallthru
        _
    $region48: #{_discriminator_forward_impl.1} parent=5 // pred_fallthru
      _
    %p289 = scmp.le.s32.totalorder 1, %s17
    %p290 = scmp.lt.s32.totalorder %s17, 3
    %p291 = pnand %p289, %p290
    %p292 = pneg %p291
    // Predicated region
    $region53: #{_discriminator_forward_impl.1} parent=5 // pred_check
      _
    $region54: #{_discriminator_forward_impl.1} parent=5 // pred_check_branch
      %294 = sbr.rel (%p291) target = $region56
    $region55: #{_discriminator_forward_impl.1} parent=5 // pred_region
      %s295 = ssub.s32 %s17, 1
      %s296 = smul.u32 8, %s22
      %p297 = scmp.lt.s32.totalorder %s296, 15
      %s298 = scalar_select %p297, %s296, 15
      %s299 = smul.addr %s298, 8
      %s300 = scalar_lea.vmem %s0, %s299
      %p301 = pneg %p43
      %p302 = pneg %p40
      %p303 = pneg %p64
      %p304 = pneg %p61
      %p305 = pneg %p85
      %p306 = pneg %p82
      %p307 = pneg %p106
      %p308 = pneg %p103
      %p309 = pneg %p127
      %p310 = pneg %p124
      %p311 = pneg %p148
      %p312 = pneg %p145
      %p313 = pneg %p169
      %p314 = pneg %p166
      %p315 = pneg %p190
      %p316 = pneg %p187
      %p317 = pneg %p211
      %p318 = pneg %p208
      %p319 = pneg %p237
      %p320 = pneg %p234
      %s321 = smul.u32 8, %s22
      %p322 = scmp.lt.s32.totalorder %s321, 15
      %s323 = scalar_select %p322, %s321, 15
      %s324 = smul.addr %s323, 8
      %s325 = scalar_lea.vmem %s9, %s324
      %s326 = smul.u32 8, %s22
      %p327 = scmp.lt.s32.totalorder %s326, 15
      %s328 = scalar_select %p327, %s326, 15
      %s329 = smul.addr %s328, 8
      %s330 = scalar_lea.vmem %s0, %s329
      %s331 = smul.u32 8, %s22
      %s332 = smul.u32 8, %s22
      %p333 = scmp.lt.s32.totalorder %s332, 15
      %s334 = scalar_select %p333, %s332, 15
      %s335 = smul.addr %s334, 8
      %s336 = scalar_lea.vmem %s9, %s335
      %s337 = smul.u32 8, %s22
      %v339 = vld [vmem:[%s330] sm:$0xff]
      %v340 = vld [vmem:[%s330 + $0x8] sm:$0xff]
      %v341 = vld [vmem:[%s330 + $0x10] sm:$0xff]
      %v342 = vld [vmem:[%s330 + $0x18] sm:$0xff]
      %v343 = vld [vmem:[%s330 + $0x20] sm:$0xff]
      %v344 = vld [vmem:[%s330 + $0x28] sm:$0xff]
      %v345 = vld [vmem:[%s330 + $0x30] sm:$0xff]
      %v346 = vld [vmem:[%s330 + $0x38] sm:$0xff]
      %v347 = vpack.c.bf16 %v340, %v339
      %v348 = vpack.c.bf16 %v342, %v341
      %v349 = vpack.c.bf16 %v344, %v343
      %v350 = vpack.c.bf16 %v346, %v345
      %v351 = vld [vmem:[%s1] sm:$0xff]
      %v352 = vld [vmem:[%s1 + $0x8] sm:$0xff]
      %v353 = vld [vmem:[%s1 + $0x10] sm:$0xff]
      %v354 = vld [vmem:[%s1 + $0x18] sm:$0xff]
      %356 = vset.pattern.permute.xlu0 0
      %357 = vperm.xlu0 %356, %v347
      %v358 = vpop.permute.xlu0 %357
      %361 = vset.pattern.permute.xlu0 0
      %362 = vperm.xlu0 %361, %v348
      %v363 = vpop.permute.xlu0 %362
      %366 = vset.pattern.permute.xlu0 0
      %367 = vperm.xlu0 %366, %v349
      %v368 = vpop.permute.xlu0 %367
      %371 = vset.pattern.permute.xlu0 0
      %372 = vperm.xlu0 %371, %v350
      %v373 = vpop.permute.xlu0 %372
      %v379 = vcombine.high %v351, %v351
      %v381 = vunpack.c.l.s4 1983009808
      %v382 = vunpack.c.0.s8 %v381
      %v383 = vlaneseq
      %v384 = vshrl.u32 %v383, 7
      %v385 = vsub.s32 %v382, %v384
      %v386 = vrot.slane %v351, %v385
      %v388 = vunpack.c.l.s4 1983009808
      %v389 = vunpack.c.0.s8 %v388
      %v390 = vlaneseq
      %v391 = vshrl.u32 %v390, 7
      %v392 = vsub.s32 %v389, %v391
      %v393 = vrot.slane %v379, %v392
      %v394 = vcombine.high %v386, %v386
      %v395 = vcombine.high %v393, %v393
      %v396 = vcombine.high %v352, %v352
      %v398 = vunpack.c.l.s4 1983009808
      %v399 = vunpack.c.0.s8 %v398
      %v400 = vlaneseq
      %v401 = vshrl.u32 %v400, 7
      %v402 = vsub.s32 %v399, %v401
      %v403 = vrot.slane %v352, %v402
      %v405 = vunpack.c.l.s4 1983009808
      %v406 = vunpack.c.0.s8 %v405
      %v407 = vlaneseq
      %v408 = vshrl.u32 %v407, 7
      %v409 = vsub.s32 %v406, %v408
      %v410 = vrot.slane %v396, %v409
      %v411 = vcombine.high %v403, %v403
      %v412 = vcombine.high %v410, %v410
      %v413 = vcombine.high %v353, %v353
      %v415 = vunpack.c.l.s4 1983009808
      %v416 = vunpack.c.0.s8 %v415
      %v417 = vlaneseq
      %v418 = vshrl.u32 %v417, 7
      %v419 = vsub.s32 %v416, %v418
      %v420 = vrot.slane %v353, %v419
      %v422 = vunpack.c.l.s4 1983009808
      %v423 = vunpack.c.0.s8 %v422
      %v424 = vlaneseq
      %v425 = vshrl.u32 %v424, 7
      %v426 = vsub.s32 %v423, %v425
      %v427 = vrot.slane %v413, %v426
      %v428 = vcombine.high %v420, %v420
      %v429 = vcombine.high %v427, %v427
      %v430 = vcombine.high %v354, %v354
      %v432 = vunpack.c.l.s4 1983009808
      %v433 = vunpack.c.0.s8 %v432
      %v434 = vlaneseq
      %v435 = vshrl.u32 %v434, 7
      %v436 = vsub.s32 %v433, %v435
      %v437 = vrot.slane %v354, %v436
      %v439 = vunpack.c.l.s4 1983009808
      %v440 = vunpack.c.0.s8 %v439
      %v441 = vlaneseq
      %v442 = vshrl.u32 %v441, 7
      %v443 = vsub.s32 %v440, %v442
      %v444 = vrot.slane %v430, %v443
      %v445 = vcombine.high %v437, %v437
      %v446 = vcombine.high %v444, %v444
      %v448 = vpack.i.b16 %v386, %v386
      %v450 = vlaneseq
      %v451 = vshrl.u32 %v450, 7
      %v452 = vsub.s32 0, %v451
      %v453 = vrot.slane %v448, %v452
      %v455 = vpack.i.b16 %v394, %v394
      %v457 = vlaneseq
      %v458 = vshrl.u32 %v457, 7
      %v459 = vsub.s32 0, %v458
      %v460 = vrot.slane %v455, %v459
      %v462 = vpack.i.b16 %v393, %v393
      %v464 = vlaneseq
      %v465 = vshrl.u32 %v464, 7
      %v466 = vsub.s32 0, %v465
      %v467 = vrot.slane %v462, %v466
      %v469 = vpack.i.b16 %v395, %v395
      %v471 = vlaneseq
      %v472 = vshrl.u32 %v471, 7
      %v473 = vsub.s32 0, %v472
      %v474 = vrot.slane %v469, %v473
      %v476 = vpack.i.b16 %v403, %v403
      %v478 = vlaneseq
      %v479 = vshrl.u32 %v478, 7
      %v480 = vsub.s32 0, %v479
      %v481 = vrot.slane %v476, %v480
      %v483 = vpack.i.b16 %v411, %v411
      %v485 = vlaneseq
      %v486 = vshrl.u32 %v485, 7
      %v487 = vsub.s32 0, %v486
      %v488 = vrot.slane %v483, %v487
      %v490 = vpack.i.b16 %v410, %v410
      %v492 = vlaneseq
      %v493 = vshrl.u32 %v492, 7
      %v494 = vsub.s32 0, %v493
      %v495 = vrot.slane %v490, %v494
      %v497 = vpack.i.b16 %v412, %v412
      %v499 = vlaneseq
      %v500 = vshrl.u32 %v499, 7
      %v501 = vsub.s32 0, %v500
      %v502 = vrot.slane %v497, %v501
      %v504 = vpack.i.b16 %v420, %v420
      %v506 = vlaneseq
      %v507 = vshrl.u32 %v506, 7
      %v508 = vsub.s32 0, %v507
      %v509 = vrot.slane %v504, %v508
      %v511 = vpack.i.b16 %v428, %v428
      %v513 = vlaneseq
      %v514 = vshrl.u32 %v513, 7
      %v515 = vsub.s32 0, %v514
      %v516 = vrot.slane %v511, %v515
      %v518 = vpack.i.b16 %v427, %v427
      %v520 = vlaneseq
      %v521 = vshrl.u32 %v520, 7
      %v522 = vsub.s32 0, %v521
      %v523 = vrot.slane %v518, %v522
      %v525 = vpack.i.b16 %v429, %v429
      %v527 = vlaneseq
      %v528 = vshrl.u32 %v527, 7
      %v529 = vsub.s32 0, %v528
      %v530 = vrot.slane %v525, %v529
      %v532 = vpack.i.b16 %v437, %v437
      %v534 = vlaneseq
      %v535 = vshrl.u32 %v534, 7
      %v536 = vsub.s32 0, %v535
      %v537 = vrot.slane %v532, %v536
      %v539 = vpack.i.b16 %v445, %v445
      %v541 = vlaneseq
      %v542 = vshrl.u32 %v541, 7
      %v543 = vsub.s32 0, %v542
      %v544 = vrot.slane %v539, %v543
      %v546 = vpack.i.b16 %v444, %v444
      %v548 = vlaneseq
      %v549 = vshrl.u32 %v548, 7
      %v550 = vsub.s32 0, %v549
      %v551 = vrot.slane %v546, %v550
      %v553 = vpack.i.b16 %v446, %v446
      %v555 = vlaneseq
      %v556 = vshrl.u32 %v555, 7
      %v557 = vsub.s32 0, %v556
      %v558 = vrot.slane %v553, %v557
      %v559 = vmul.bf16 %v358, %v453
      %v560 = vmul.bf16 %v358, %v460
      %v561 = vmul.bf16 %v358, %v467
      %v562 = vmul.bf16 %v358, %v474
      %v563 = vmul.bf16 %v358, %v481
      %v564 = vmul.bf16 %v358, %v488
      %v565 = vmul.bf16 %v358, %v495
      %v566 = vmul.bf16 %v358, %v502
      %v567 = vmul.bf16 %v358, %v509
      %v568 = vmul.bf16 %v358, %v516
      %v569 = vmul.bf16 %v358, %v523
      %v570 = vmul.bf16 %v358, %v530
      %v571 = vmul.bf16 %v358, %v537
      %v572 = vmul.bf16 %v358, %v544
      %v573 = vmul.bf16 %v358, %v551
      %v574 = vmul.bf16 %v358, %v558
      %v575 = vmul.bf16 %v363, %v453
      %v576 = vmul.bf16 %v363, %v460
      %v577 = vmul.bf16 %v363, %v467
      %v578 = vmul.bf16 %v363, %v474
      %v579 = vmul.bf16 %v363, %v481
      %v580 = vmul.bf16 %v363, %v488
      %v581 = vmul.bf16 %v363, %v495
      %v582 = vmul.bf16 %v363, %v502
      %v583 = vmul.bf16 %v363, %v509
      %v584 = vmul.bf16 %v363, %v516
      %v585 = vmul.bf16 %v363, %v523
      %v586 = vmul.bf16 %v363, %v530
      %v587 = vmul.bf16 %v363, %v537
      %v588 = vmul.bf16 %v363, %v544
      %v589 = vmul.bf16 %v363, %v551
      %v590 = vmul.bf16 %v363, %v558
      %v591 = vmul.bf16 %v368, %v453
      %v592 = vmul.bf16 %v368, %v460
      %v593 = vmul.bf16 %v368, %v467
      %v594 = vmul.bf16 %v368, %v474
      %v595 = vmul.bf16 %v368, %v481
      %v596 = vmul.bf16 %v368, %v488
      %v597 = vmul.bf16 %v368, %v495
      %v598 = vmul.bf16 %v368, %v502
      %v599 = vmul.bf16 %v368, %v509
      %v600 = vmul.bf16 %v368, %v516
      %v601 = vmul.bf16 %v368, %v523
      %v602 = vmul.bf16 %v368, %v530
      %v603 = vmul.bf16 %v368, %v537
      %v604 = vmul.bf16 %v368, %v544
      %v605 = vmul.bf16 %v368, %v551
      %v606 = vmul.bf16 %v368, %v558
      %v607 = vmul.bf16 %v373, %v453
      %v608 = vmul.bf16 %v373, %v460
      %v609 = vmul.bf16 %v373, %v467
      %v610 = vmul.bf16 %v373, %v474
      %v611 = vmul.bf16 %v373, %v481
      %v612 = vmul.bf16 %v373, %v488
      %v613 = vmul.bf16 %v373, %v495
      %v614 = vmul.bf16 %v373, %v502
      %v615 = vmul.bf16 %v373, %v509
      %v616 = vmul.bf16 %v373, %v516
      %v617 = vmul.bf16 %v373, %v523
      %v618 = vmul.bf16 %v373, %v530
      %v619 = vmul.bf16 %v373, %v537
      %v620 = vmul.bf16 %v373, %v544
      %v621 = vmul.bf16 %v373, %v551
      %v622 = vmul.bf16 %v373, %v558
      %623 = vset.pattern.permute.xlu0 1
      %624 = vperm.xlu0 %623, %v347
      %v625 = vpop.permute.xlu0 %624
      %627 = vset.pattern.permute.xlu0 1
      %628 = vperm.xlu0 %627, %v348
      %v629 = vpop.permute.xlu0 %628
      %631 = vset.pattern.permute.xlu0 1
      %632 = vperm.xlu0 %631, %v349
      %v633 = vpop.permute.xlu0 %632
      %635 = vset.pattern.permute.xlu0 1
      %636 = vperm.xlu0 %635, %v350
      %v637 = vpop.permute.xlu0 %636
      %v639 = vshrl.u32 %v386, 16
      %v640 = vpack.i.b16 %v639, %v639
      %v642 = vlaneseq
      %v643 = vshrl.u32 %v642, 7
      %v644 = vsub.s32 0, %v643
      %v645 = vrot.slane %v640, %v644
      %v646 = vshrl.u32 %v394, 16
      %v647 = vpack.i.b16 %v646, %v646
      %v649 = vlaneseq
      %v650 = vshrl.u32 %v649, 7
      %v651 = vsub.s32 0, %v650
      %v652 = vrot.slane %v647, %v651
      %v653 = vshrl.u32 %v393, 16
      %v654 = vpack.i.b16 %v653, %v653
      %v656 = vlaneseq
      %v657 = vshrl.u32 %v656, 7
      %v658 = vsub.s32 0, %v657
      %v659 = vrot.slane %v654, %v658
      %v660 = vshrl.u32 %v395, 16
      %v661 = vpack.i.b16 %v660, %v660
      %v663 = vlaneseq
      %v664 = vshrl.u32 %v663, 7
      %v665 = vsub.s32 0, %v664
      %v666 = vrot.slane %v661, %v665
      %v667 = vshrl.u32 %v403, 16
      %v668 = vpack.i.b16 %v667, %v667
      %v670 = vlaneseq
      %v671 = vshrl.u32 %v670, 7
      %v672 = vsub.s32 0, %v671
      %v673 = vrot.slane %v668, %v672
      %v674 = vshrl.u32 %v411, 16
      %v675 = vpack.i.b16 %v674, %v674
      %v677 = vlaneseq
      %v678 = vshrl.u32 %v677, 7
      %v679 = vsub.s32 0, %v678
      %v680 = vrot.slane %v675, %v679
      %v681 = vshrl.u32 %v410, 16
      %v682 = vpack.i.b16 %v681, %v681
      %v684 = vlaneseq
      %v685 = vshrl.u32 %v684, 7
      %v686 = vsub.s32 0, %v685
      %v687 = vrot.slane %v682, %v686
      %v688 = vshrl.u32 %v412, 16
      %v689 = vpack.i.b16 %v688, %v688
      %v691 = vlaneseq
      %v692 = vshrl.u32 %v691, 7
      %v693 = vsub.s32 0, %v692
      %v694 = vrot.slane %v689, %v693
      %v695 = vshrl.u32 %v420, 16
      %v696 = vpack.i.b16 %v695, %v695
      %v698 = vlaneseq
      %v699 = vshrl.u32 %v698, 7
      %v700 = vsub.s32 0, %v699
      %v701 = vrot.slane %v696, %v700
      %v702 = vshrl.u32 %v428, 16
      %v703 = vpack.i.b16 %v702, %v702
      %v705 = vlaneseq
      %v706 = vshrl.u32 %v705, 7
      %v707 = vsub.s32 0, %v706
      %v708 = vrot.slane %v703, %v707
      %v709 = vshrl.u32 %v427, 16
      %v710 = vpack.i.b16 %v709, %v709
      %v712 = vlaneseq
      %v713 = vshrl.u32 %v712, 7
      %v714 = vsub.s32 0, %v713
      %v715 = vrot.slane %v710, %v714
      %v716 = vshrl.u32 %v429, 16
      %v717 = vpack.i.b16 %v716, %v716
      %v719 = vlaneseq
      %v720 = vshrl.u32 %v719, 7
      %v721 = vsub.s32 0, %v720
      %v722 = vrot.slane %v717, %v721
      %v723 = vshrl.u32 %v437, 16
      %v724 = vpack.i.b16 %v723, %v723
      %v726 = vlaneseq
      %v727 = vshrl.u32 %v726, 7
      %v728 = vsub.s32 0, %v727
      %v729 = vrot.slane %v724, %v728
      %v730 = vshrl.u32 %v445, 16
      %v731 = vpack.i.b16 %v730, %v730
      %v733 = vlaneseq
      %v734 = vshrl.u32 %v733, 7
      %v735 = vsub.s32 0, %v734
      %v736 = vrot.slane %v731, %v735
      %v737 = vshrl.u32 %v444, 16
      %v738 = vpack.i.b16 %v737, %v737
      %v740 = vlaneseq
      %v741 = vshrl.u32 %v740, 7
      %v742 = vsub.s32 0, %v741
      %v743 = vrot.slane %v738, %v742
      %v744 = vshrl.u32 %v446, 16
      %v745 = vpack.i.b16 %v744, %v744
      %v747 = vlaneseq
      %v748 = vshrl.u32 %v747, 7
      %v749 = vsub.s32 0, %v748
      %v750 = vrot.slane %v745, %v749
      %v751 = vmul.bf16 %v625, %v645
      %v752 = vmul.bf16 %v625, %v652
      %v753 = vmul.bf16 %v625, %v659
      %v754 = vmul.bf16 %v625, %v666
      %v755 = vmul.bf16 %v625, %v673
      %v756 = vmul.bf16 %v625, %v680
      %v757 = vmul.bf16 %v625, %v687
      %v758 = vmul.bf16 %v625, %v694
      %v759 = vmul.bf16 %v625, %v701
      %v760 = vmul.bf16 %v625, %v708
      %v761 = vmul.bf16 %v625, %v715
      %v762 = vmul.bf16 %v625, %v722
      %v763 = vmul.bf16 %v625, %v729
      %v764 = vmul.bf16 %v625, %v736
      %v765 = vmul.bf16 %v625, %v743
      %v766 = vmul.bf16 %v625, %v750
      %v767 = vmul.bf16 %v629, %v645
      %v768 = vmul.bf16 %v629, %v652
      %v769 = vmul.bf16 %v629, %v659
      %v770 = vmul.bf16 %v629, %v666
      %v771 = vmul.bf16 %v629, %v673
      %v772 = vmul.bf16 %v629, %v680
      %v773 = vmul.bf16 %v629, %v687
      %v774 = vmul.bf16 %v629, %v694
      %v775 = vmul.bf16 %v629, %v701
      %v776 = vmul.bf16 %v629, %v708
      %v777 = vmul.bf16 %v629, %v715
      %v778 = vmul.bf16 %v629, %v722
      %v779 = vmul.bf16 %v629, %v729
      %v780 = vmul.bf16 %v629, %v736
      %v781 = vmul.bf16 %v629, %v743
      %v782 = vmul.bf16 %v629, %v750
      %v783 = vmul.bf16 %v633, %v645
      %v784 = vmul.bf16 %v633, %v652
      %v785 = vmul.bf16 %v633, %v659
      %v786 = vmul.bf16 %v633, %v666
      %v787 = vmul.bf16 %v633, %v673
      %v788 = vmul.bf16 %v633, %v680
      %v789 = vmul.bf16 %v633, %v687
      %v790 = vmul.bf16 %v633, %v694
      %v791 = vmul.bf16 %v633, %v701
      %v792 = vmul.bf16 %v633, %v708
      %v793 = vmul.bf16 %v633, %v715
      %v794 = vmul.bf16 %v633, %v722
      %v795 = vmul.bf16 %v633, %v729
      %v796 = vmul.bf16 %v633, %v736
      %v797 = vmul.bf16 %v633, %v743
      %v798 = vmul.bf16 %v633, %v750
      %v799 = vmul.bf16 %v637, %v645
      %v800 = vmul.bf16 %v637, %v652
      %v801 = vmul.bf16 %v637, %v659
      %v802 = vmul.bf16 %v637, %v666
      %v803 = vmul.bf16 %v637, %v673
      %v804 = vmul.bf16 %v637, %v680
      %v805 = vmul.bf16 %v637, %v687
      %v806 = vmul.bf16 %v637, %v694
      %v807 = vmul.bf16 %v637, %v701
      %v808 = vmul.bf16 %v637, %v708
      %v809 = vmul.bf16 %v637, %v715
      %v810 = vmul.bf16 %v637, %v722
      %v811 = vmul.bf16 %v637, %v729
      %v812 = vmul.bf16 %v637, %v736
      %v813 = vmul.bf16 %v637, %v743
      %v814 = vmul.bf16 %v637, %v750
      %v815 = vadd.bf16 %v559, %v751
      %v816 = vadd.bf16 %v560, %v752
      %v817 = vadd.bf16 %v561, %v753
      %v818 = vadd.bf16 %v562, %v754
      %v819 = vadd.bf16 %v563, %v755
      %v820 = vadd.bf16 %v564, %v756
      %v821 = vadd.bf16 %v565, %v757
      %v822 = vadd.bf16 %v566, %v758
      %v823 = vadd.bf16 %v567, %v759
      %v824 = vadd.bf16 %v568, %v760
      %v825 = vadd.bf16 %v569, %v761
      %v826 = vadd.bf16 %v570, %v762
      %v827 = vadd.bf16 %v571, %v763
      %v828 = vadd.bf16 %v572, %v764
      %v829 = vadd.bf16 %v573, %v765
      %v830 = vadd.bf16 %v574, %v766
      %v831 = vadd.bf16 %v575, %v767
      %v832 = vadd.bf16 %v576, %v768
      %v833 = vadd.bf16 %v577, %v769
      %v834 = vadd.bf16 %v578, %v770
      %v835 = vadd.bf16 %v579, %v771
      %v836 = vadd.bf16 %v580, %v772
      %v837 = vadd.bf16 %v581, %v773
      %v838 = vadd.bf16 %v582, %v774
      %v839 = vadd.bf16 %v583, %v775
      %v840 = vadd.bf16 %v584, %v776
      %v841 = vadd.bf16 %v585, %v777
      %v842 = vadd.bf16 %v586, %v778
      %v843 = vadd.bf16 %v587, %v779
      %v844 = vadd.bf16 %v588, %v780
      %v845 = vadd.bf16 %v589, %v781
      %v846 = vadd.bf16 %v590, %v782
      %v847 = vadd.bf16 %v591, %v783
      %v848 = vadd.bf16 %v592, %v784
      %v849 = vadd.bf16 %v593, %v785
      %v850 = vadd.bf16 %v594, %v786
      %v851 = vadd.bf16 %v595, %v787
      %v852 = vadd.bf16 %v596, %v788
      %v853 = vadd.bf16 %v597, %v789
      %v854 = vadd.bf16 %v598, %v790
      %v855 = vadd.bf16 %v599, %v791
      %v856 = vadd.bf16 %v600, %v792
      %v857 = vadd.bf16 %v601, %v793
      %v858 = vadd.bf16 %v602, %v794
      %v859 = vadd.bf16 %v603, %v795
      %v860 = vadd.bf16 %v604, %v796
      %v861 = vadd.bf16 %v605, %v797
      %v862 = vadd.bf16 %v606, %v798
      %v863 = vadd.bf16 %v607, %v799
      %v864 = vadd.bf16 %v608, %v800
      %v865 = vadd.bf16 %v609, %v801
      %v866 = vadd.bf16 %v610, %v802
      %v867 = vadd.bf16 %v611, %v803
      %v868 = vadd.bf16 %v612, %v804
      %v869 = vadd.bf16 %v613, %v805
      %v870 = vadd.bf16 %v614, %v806
      %v871 = vadd.bf16 %v615, %v807
      %v872 = vadd.bf16 %v616, %v808
      %v873 = vadd.bf16 %v617, %v809
      %v874 = vadd.bf16 %v618, %v810
      %v875 = vadd.bf16 %v619, %v811
      %v876 = vadd.bf16 %v620, %v812
      %v877 = vadd.bf16 %v621, %v813
      %v878 = vadd.bf16 %v622, %v814
      %879 = vset.pattern.permute.xlu0 2
      %880 = vperm.xlu0 %879, %v347
      %v881 = vpop.permute.xlu0 %880
      %883 = vset.pattern.permute.xlu0 2
      %884 = vperm.xlu0 %883, %v348
      %v885 = vpop.permute.xlu0 %884
      %887 = vset.pattern.permute.xlu0 2
      %888 = vperm.xlu0 %887, %v349
      %v889 = vpop.permute.xlu0 %888
      %891 = vset.pattern.permute.xlu0 2
      %892 = vperm.xlu0 %891, %v350
      %v893 = vpop.permute.xlu0 %892
      %v895 = vlaneseq
      %v896 = vshrl.u32 %v895, 7
      %v897 = vsub.s32 1, %v896
      %v898 = vrot.slane %v448, %v897
      %v899 = vlaneseq
      %v900 = vshrl.u32 %v899, 7
      %v901 = vsub.s32 1, %v900
      %v902 = vrot.slane %v455, %v901
      %v903 = vlaneseq
      %v904 = vshrl.u32 %v903, 7
      %v905 = vsub.s32 1, %v904
      %v906 = vrot.slane %v462, %v905
      %v907 = vlaneseq
      %v908 = vshrl.u32 %v907, 7
      %v909 = vsub.s32 1, %v908
      %v910 = vrot.slane %v469, %v909
      %v911 = vlaneseq
      %v912 = vshrl.u32 %v911, 7
      %v913 = vsub.s32 1, %v912
      %v914 = vrot.slane %v476, %v913
      %v915 = vlaneseq
      %v916 = vshrl.u32 %v915, 7
      %v917 = vsub.s32 1, %v916
      %v918 = vrot.slane %v483, %v917
      %v919 = vlaneseq
      %v920 = vshrl.u32 %v919, 7
      %v921 = vsub.s32 1, %v920
      %v922 = vrot.slane %v490, %v921
      %v923 = vlaneseq
      %v924 = vshrl.u32 %v923, 7
      %v925 = vsub.s32 1, %v924
      %v926 = vrot.slane %v497, %v925
      %v927 = vlaneseq
      %v928 = vshrl.u32 %v927, 7
      %v929 = vsub.s32 1, %v928
      %v930 = vrot.slane %v504, %v929
      %v931 = vlaneseq
      %v932 = vshrl.u32 %v931, 7
      %v933 = vsub.s32 1, %v932
      %v934 = vrot.slane %v511, %v933
      %v935 = vlaneseq
      %v936 = vshrl.u32 %v935, 7
      %v937 = vsub.s32 1, %v936
      %v938 = vrot.slane %v518, %v937
      %v939 = vlaneseq
      %v940 = vshrl.u32 %v939, 7
      %v941 = vsub.s32 1, %v940
      %v942 = vrot.slane %v525, %v941
      %v943 = vlaneseq
      %v944 = vshrl.u32 %v943, 7
      %v945 = vsub.s32 1, %v944
      %v946 = vrot.slane %v532, %v945
      %v947 = vlaneseq
      %v948 = vshrl.u32 %v947, 7
      %v949 = vsub.s32 1, %v948
      %v950 = vrot.slane %v539, %v949
      %v951 = vlaneseq
      %v952 = vshrl.u32 %v951, 7
      %v953 = vsub.s32 1, %v952
      %v954 = vrot.slane %v546, %v953
      %v955 = vlaneseq
      %v956 = vshrl.u32 %v955, 7
      %v957 = vsub.s32 1, %v956
      %v958 = vrot.slane %v553, %v957
      %v959 = vmul.bf16 %v881, %v898
      %v960 = vmul.bf16 %v881, %v902
      %v961 = vmul.bf16 %v881, %v906
      %v962 = vmul.bf16 %v881, %v910
      %v963 = vmul.bf16 %v881, %v914
      %v964 = vmul.bf16 %v881, %v918
      %v965 = vmul.bf16 %v881, %v922
      %v966 = vmul.bf16 %v881, %v926
      %v967 = vmul.bf16 %v881, %v930
      %v968 = vmul.bf16 %v881, %v934
      %v969 = vmul.bf16 %v881, %v938
      %v970 = vmul.bf16 %v881, %v942
      %v971 = vmul.bf16 %v881, %v946
      %v972 = vmul.bf16 %v881, %v950
      %v973 = vmul.bf16 %v881, %v954
      %v974 = vmul.bf16 %v881, %v958
      %v975 = vmul.bf16 %v885, %v898
      %v976 = vmul.bf16 %v885, %v902
      %v977 = vmul.bf16 %v885, %v906
      %v978 = vmul.bf16 %v885, %v910
      %v979 = vmul.bf16 %v885, %v914
      %v980 = vmul.bf16 %v885, %v918
      %v981 = vmul.bf16 %v885, %v922
      %v982 = vmul.bf16 %v885, %v926
      %v983 = vmul.bf16 %v885, %v930
      %v984 = vmul.bf16 %v885, %v934
      %v985 = vmul.bf16 %v885, %v938
      %v986 = vmul.bf16 %v885, %v942
      %v987 = vmul.bf16 %v885, %v946
      %v988 = vmul.bf16 %v885, %v950
      %v989 = vmul.bf16 %v885, %v954
      %v990 = vmul.bf16 %v885, %v958
      %v991 = vmul.bf16 %v889, %v898
      %v992 = vmul.bf16 %v889, %v902
      %v993 = vmul.bf16 %v889, %v906
      %v994 = vmul.bf16 %v889, %v910
      %v995 = vmul.bf16 %v889, %v914
      %v996 = vmul.bf16 %v889, %v918
      %v997 = vmul.bf16 %v889, %v922
      %v998 = vmul.bf16 %v889, %v926
      %v999 = vmul.bf16 %v889, %v930
      %v1000 = vmul.bf16 %v889, %v934
      %v1001 = vmul.bf16 %v889, %v938
      %v1002 = vmul.bf16 %v889, %v942
      %v1003 = vmul.bf16 %v889, %v946
      %v1004 = vmul.bf16 %v889, %v950
      %v1005 = vmul.bf16 %v889, %v954
      %v1006 = vmul.bf16 %v889, %v958
      %v1007 = vmul.bf16 %v893, %v898
      %v1008 = vmul.bf16 %v893, %v902
      %v1009 = vmul.bf16 %v893, %v906
      %v1010 = vmul.bf16 %v893, %v910
      %v1011 = vmul.bf16 %v893, %v914
      %v1012 = vmul.bf16 %v893, %v918
      %v1013 = vmul.bf16 %v893, %v922
      %v1014 = vmul.bf16 %v893, %v926
      %v1015 = vmul.bf16 %v893, %v930
      %v1016 = vmul.bf16 %v893, %v934
      %v1017 = vmul.bf16 %v893, %v938
      %v1018 = vmul.bf16 %v893, %v942
      %v1019 = vmul.bf16 %v893, %v946
      %v1020 = vmul.bf16 %v893, %v950
      %v1021 = vmul.bf16 %v893, %v954
      %v1022 = vmul.bf16 %v893, %v958
      %v1023 = vadd.bf16 %v815, %v959
      %v1024 = vadd.bf16 %v816, %v960
      %v1025 = vadd.bf16 %v817, %v961
      %v1026 = vadd.bf16 %v818, %v962
      %v1027 = vadd.bf16 %v819, %v963
      %v1028 = vadd.bf16 %v820, %v964
      %v1029 = vadd.bf16 %v821, %v965
      %v1030 = vadd.bf16 %v822, %v966
      %v1031 = vadd.bf16 %v823, %v967
      %v1032 = vadd.bf16 %v824, %v968
      %v1033 = vadd.bf16 %v825, %v969
      %v1034 = vadd.bf16 %v826, %v970
      %v1035 = vadd.bf16 %v827, %v971
      %v1036 = vadd.bf16 %v828, %v972
      %v1037 = vadd.bf16 %v829, %v973
      %v1038 = vadd.bf16 %v830, %v974
      %v1039 = vadd.bf16 %v831, %v975
      %v1040 = vadd.bf16 %v832, %v976
      %v1041 = vadd.bf16 %v833, %v977
      %v1042 = vadd.bf16 %v834, %v978
      %v1043 = vadd.bf16 %v835, %v979
      %v1044 = vadd.bf16 %v836, %v980
      %v1045 = vadd.bf16 %v837, %v981
      %v1046 = vadd.bf16 %v838, %v982
      %v1047 = vadd.bf16 %v839, %v983
      %v1048 = vadd.bf16 %v840, %v984
      %v1049 = vadd.bf16 %v841, %v985
      %v1050 = vadd.bf16 %v842, %v986
      %v1051 = vadd.bf16 %v843, %v987
      %v1052 = vadd.bf16 %v844, %v988
      %v1053 = vadd.bf16 %v845, %v989
      %v1054 = vadd.bf16 %v846, %v990
      %v1055 = vadd.bf16 %v847, %v991
      %v1056 = vadd.bf16 %v848, %v992
      %v1057 = vadd.bf16 %v849, %v993
      %v1058 = vadd.bf16 %v850, %v994
      %v1059 = vadd.bf16 %v851, %v995
      %v1060 = vadd.bf16 %v852, %v996
      %v1061 = vadd.bf16 %v853, %v997
      %v1062 = vadd.bf16 %v854, %v998
      %v1063 = vadd.bf16 %v855, %v999
      %v1064 = vadd.bf16 %v856, %v1000
      %v1065 = vadd.bf16 %v857, %v1001
      %v1066 = vadd.bf16 %v858, %v1002
      %v1067 = vadd.bf16 %v859, %v1003
      %v1068 = vadd.bf16 %v860, %v1004
      %v1069 = vadd.bf16 %v861, %v1005
      %v1070 = vadd.bf16 %v862, %v1006
      %v1071 = vadd.bf16 %v863, %v1007
      %v1072 = vadd.bf16 %v864, %v1008
      %v1073 = vadd.bf16 %v865, %v1009
      %v1074 = vadd.bf16 %v866, %v1010
      %v1075 = vadd.bf16 %v867, %v1011
      %v1076 = vadd.bf16 %v868, %v1012
      %v1077 = vadd.bf16 %v869, %v1013
      %v1078 = vadd.bf16 %v870, %v1014
      %v1079 = vadd.bf16 %v871, %v1015
      %v1080 = vadd.bf16 %v872, %v1016
      %v1081 = vadd.bf16 %v873, %v1017
      %v1082 = vadd.bf16 %v874, %v1018
      %v1083 = vadd.bf16 %v875, %v1019
      %v1084 = vadd.bf16 %v876, %v1020
      %v1085 = vadd.bf16 %v877, %v1021
      %v1086 = vadd.bf16 %v878, %v1022
      %v1087 = vld [vmem:[%s2] sm:$0xff]
      %v1088 = vld [vmem:[%s2 + $0x8] sm:$0xff]
      %v1091 = vcombine.high %v1087, %v1087
      %v1093 = vunpack.c.l.s4 1966171168
      %v1094 = vunpack.c.0.s8 %v1093
      %v1095 = vlaneseq
      %v1096 = vshrl.u32 %v1095, 7
      %v1097 = vsub.s32 %v1094, %v1096
      %v1098 = vrot.slane %v1087, %v1097
      %v1100 = vunpack.c.l.s4 1966171168
      %v1101 = vunpack.c.0.s8 %v1100
      %v1102 = vlaneseq
      %v1103 = vshrl.u32 %v1102, 7
      %v1104 = vsub.s32 %v1101, %v1103
      %v1105 = vrot.slane %v1091, %v1104
      %v1106 = vcombine.high %v1098, %v1098
      %v1107 = vcombine.high %v1105, %v1105
      %v1109 = vunpack.c.l.s4 1966171168
      %v1110 = vunpack.c.0.s8 %v1109
      %v1111 = vlaneseq
      %v1112 = vshrl.u32 %v1111, 7
      %v1113 = vsub.s32 %v1110, %v1112
      %v1114 = vrot.slane %v1098, %v1113
      %v1116 = vunpack.c.l.s4 1966171168
      %v1117 = vunpack.c.0.s8 %v1116
      %v1118 = vlaneseq
      %v1119 = vshrl.u32 %v1118, 7
      %v1120 = vsub.s32 %v1117, %v1119
      %v1121 = vrot.slane %v1105, %v1120
      %v1123 = vunpack.c.l.s4 1966171168
      %v1124 = vunpack.c.0.s8 %v1123
      %v1125 = vlaneseq
      %v1126 = vshrl.u32 %v1125, 7
      %v1127 = vsub.s32 %v1124, %v1126
      %v1128 = vrot.slane %v1106, %v1127
      %v1130 = vunpack.c.l.s4 1966171168
      %v1131 = vunpack.c.0.s8 %v1130
      %v1132 = vlaneseq
      %v1133 = vshrl.u32 %v1132, 7
      %v1134 = vsub.s32 %v1131, %v1133
      %v1135 = vrot.slane %v1107, %v1134
      %v1136 = vcombine.high %v1114, %v1114
      %v1137 = vcombine.high %v1121, %v1121
      %v1138 = vcombine.high %v1128, %v1128
      %v1139 = vcombine.high %v1135, %v1135
      %v1140 = vcombine.high %v1088, %v1088
      %v1142 = vunpack.c.l.s4 1966171168
      %v1143 = vunpack.c.0.s8 %v1142
      %v1144 = vlaneseq
      %v1145 = vshrl.u32 %v1144, 7
      %v1146 = vsub.s32 %v1143, %v1145
      %v1147 = vrot.slane %v1088, %v1146
      %v1149 = vunpack.c.l.s4 1966171168
      %v1150 = vunpack.c.0.s8 %v1149
      %v1151 = vlaneseq
      %v1152 = vshrl.u32 %v1151, 7
      %v1153 = vsub.s32 %v1150, %v1152
      %v1154 = vrot.slane %v1140, %v1153
      %v1155 = vcombine.high %v1147, %v1147
      %v1156 = vcombine.high %v1154, %v1154
      %v1158 = vunpack.c.l.s4 1966171168
      %v1159 = vunpack.c.0.s8 %v1158
      %v1160 = vlaneseq
      %v1161 = vshrl.u32 %v1160, 7
      %v1162 = vsub.s32 %v1159, %v1161
      %v1163 = vrot.slane %v1147, %v1162
      %v1165 = vunpack.c.l.s4 1966171168
      %v1166 = vunpack.c.0.s8 %v1165
      %v1167 = vlaneseq
      %v1168 = vshrl.u32 %v1167, 7
      %v1169 = vsub.s32 %v1166, %v1168
      %v1170 = vrot.slane %v1154, %v1169
      %v1172 = vunpack.c.l.s4 1966171168
      %v1173 = vunpack.c.0.s8 %v1172
      %v1174 = vlaneseq
      %v1175 = vshrl.u32 %v1174, 7
      %v1176 = vsub.s32 %v1173, %v1175
      %v1177 = vrot.slane %v1155, %v1176
      %v1179 = vunpack.c.l.s4 1966171168
      %v1180 = vunpack.c.0.s8 %v1179
      %v1181 = vlaneseq
      %v1182 = vshrl.u32 %v1181, 7
      %v1183 = vsub.s32 %v1180, %v1182
      %v1184 = vrot.slane %v1156, %v1183
      %v1185 = vcombine.high %v1163, %v1163
      %v1186 = vcombine.high %v1170, %v1170
      %v1187 = vcombine.high %v1177, %v1177
      %v1188 = vcombine.high %v1184, %v1184
      %v1190 = vpack.i.b16 %v1114, %v1114
      %v1192 = vlaneseq
      %v1193 = vshrl.u32 %v1192, 7
      %v1194 = vsub.s32 0, %v1193
      %v1195 = vrot.slane %v1190, %v1194
      %v1197 = vpack.i.b16 %v1128, %v1128
      %v1199 = vlaneseq
      %v1200 = vshrl.u32 %v1199, 7
      %v1201 = vsub.s32 0, %v1200
      %v1202 = vrot.slane %v1197, %v1201
      %v1204 = vpack.i.b16 %v1136, %v1136
      %v1206 = vlaneseq
      %v1207 = vshrl.u32 %v1206, 7
      %v1208 = vsub.s32 0, %v1207
      %v1209 = vrot.slane %v1204, %v1208
      %v1211 = vpack.i.b16 %v1138, %v1138
      %v1213 = vlaneseq
      %v1214 = vshrl.u32 %v1213, 7
      %v1215 = vsub.s32 0, %v1214
      %v1216 = vrot.slane %v1211, %v1215
      %v1218 = vpack.i.b16 %v1121, %v1121
      %v1220 = vlaneseq
      %v1221 = vshrl.u32 %v1220, 7
      %v1222 = vsub.s32 0, %v1221
      %v1223 = vrot.slane %v1218, %v1222
      %v1225 = vpack.i.b16 %v1135, %v1135
      %v1227 = vlaneseq
      %v1228 = vshrl.u32 %v1227, 7
      %v1229 = vsub.s32 0, %v1228
      %v1230 = vrot.slane %v1225, %v1229
      %v1232 = vpack.i.b16 %v1137, %v1137
      %v1234 = vlaneseq
      %v1235 = vshrl.u32 %v1234, 7
      %v1236 = vsub.s32 0, %v1235
      %v1237 = vrot.slane %v1232, %v1236
      %v1239 = vpack.i.b16 %v1139, %v1139
      %v1241 = vlaneseq
      %v1242 = vshrl.u32 %v1241, 7
      %v1243 = vsub.s32 0, %v1242
      %v1244 = vrot.slane %v1239, %v1243
      %v1246 = vpack.i.b16 %v1163, %v1163
      %v1248 = vlaneseq
      %v1249 = vshrl.u32 %v1248, 7
      %v1250 = vsub.s32 0, %v1249
      %v1251 = vrot.slane %v1246, %v1250
      %v1253 = vpack.i.b16 %v1177, %v1177
      %v1255 = vlaneseq
      %v1256 = vshrl.u32 %v1255, 7
      %v1257 = vsub.s32 0, %v1256
      %v1258 = vrot.slane %v1253, %v1257
      %v1260 = vpack.i.b16 %v1185, %v1185
      %v1262 = vlaneseq
      %v1263 = vshrl.u32 %v1262, 7
      %v1264 = vsub.s32 0, %v1263
      %v1265 = vrot.slane %v1260, %v1264
      %v1267 = vpack.i.b16 %v1187, %v1187
      %v1269 = vlaneseq
      %v1270 = vshrl.u32 %v1269, 7
      %v1271 = vsub.s32 0, %v1270
      %v1272 = vrot.slane %v1267, %v1271
      %v1274 = vpack.i.b16 %v1170, %v1170
      %v1276 = vlaneseq
      %v1277 = vshrl.u32 %v1276, 7
      %v1278 = vsub.s32 0, %v1277
      %v1279 = vrot.slane %v1274, %v1278
      %v1281 = vpack.i.b16 %v1184, %v1184
      %v1283 = vlaneseq
      %v1284 = vshrl.u32 %v1283, 7
      %v1285 = vsub.s32 0, %v1284
      %v1286 = vrot.slane %v1281, %v1285
      %v1288 = vpack.i.b16 %v1186, %v1186
      %v1290 = vlaneseq
      %v1291 = vshrl.u32 %v1290, 7
      %v1292 = vsub.s32 0, %v1291
      %v1293 = vrot.slane %v1288, %v1292
      %v1295 = vpack.i.b16 %v1188, %v1188
      %v1297 = vlaneseq
      %v1298 = vshrl.u32 %v1297, 7
      %v1299 = vsub.s32 0, %v1298
      %v1300 = vrot.slane %v1295, %v1299
      %v1301 = vadd.bf16 %v1023, %v1195
      %v1302 = vadd.bf16 %v1024, %v1202
      %v1303 = vadd.bf16 %v1025, %v1209
      %v1304 = vadd.bf16 %v1026, %v1216
      %v1305 = vadd.bf16 %v1027, %v1223
      %v1306 = vadd.bf16 %v1028, %v1230
      %v1307 = vadd.bf16 %v1029, %v1237
      %v1308 = vadd.bf16 %v1030, %v1244
      %v1309 = vadd.bf16 %v1031, %v1251
      %v1310 = vadd.bf16 %v1032, %v1258
      %v1311 = vadd.bf16 %v1033, %v1265
      %v1312 = vadd.bf16 %v1034, %v1272
      %v1313 = vadd.bf16 %v1035, %v1279
      %v1314 = vadd.bf16 %v1036, %v1286
      %v1315 = vadd.bf16 %v1037, %v1293
      %v1316 = vadd.bf16 %v1038, %v1300
      %v1317 = vadd.bf16 %v1039, %v1195
      %v1318 = vadd.bf16 %v1040, %v1202
      %v1319 = vadd.bf16 %v1041, %v1209
      %v1320 = vadd.bf16 %v1042, %v1216
      %v1321 = vadd.bf16 %v1043, %v1223
      %v1322 = vadd.bf16 %v1044, %v1230
      %v1323 = vadd.bf16 %v1045, %v1237
      %v1324 = vadd.bf16 %v1046, %v1244
      %v1325 = vadd.bf16 %v1047, %v1251
      %v1326 = vadd.bf16 %v1048, %v1258
      %v1327 = vadd.bf16 %v1049, %v1265
      %v1328 = vadd.bf16 %v1050, %v1272
      %v1329 = vadd.bf16 %v1051, %v1279
      %v1330 = vadd.bf16 %v1052, %v1286
      %v1331 = vadd.bf16 %v1053, %v1293
      %v1332 = vadd.bf16 %v1054, %v1300
      %v1333 = vadd.bf16 %v1055, %v1195
      %v1334 = vadd.bf16 %v1056, %v1202
      %v1335 = vadd.bf16 %v1057, %v1209
      %v1336 = vadd.bf16 %v1058, %v1216
      %v1337 = vadd.bf16 %v1059, %v1223
      %v1338 = vadd.bf16 %v1060, %v1230
      %v1339 = vadd.bf16 %v1061, %v1237
      %v1340 = vadd.bf16 %v1062, %v1244
      %v1341 = vadd.bf16 %v1063, %v1251
      %v1342 = vadd.bf16 %v1064, %v1258
      %v1343 = vadd.bf16 %v1065, %v1265
      %v1344 = vadd.bf16 %v1066, %v1272
      %v1345 = vadd.bf16 %v1067, %v1279
      %v1346 = vadd.bf16 %v1068, %v1286
      %v1347 = vadd.bf16 %v1069, %v1293
      %v1348 = vadd.bf16 %v1070, %v1300
      %v1349 = vadd.bf16 %v1071, %v1195
      %v1350 = vadd.bf16 %v1072, %v1202
      %v1351 = vadd.bf16 %v1073, %v1209
      %v1352 = vadd.bf16 %v1074, %v1216
      %v1353 = vadd.bf16 %v1075, %v1223
      %v1354 = vadd.bf16 %v1076, %v1230
      %v1355 = vadd.bf16 %v1077, %v1237
      %v1356 = vadd.bf16 %v1078, %v1244
      %v1357 = vadd.bf16 %v1079, %v1251
      %v1358 = vadd.bf16 %v1080, %v1258
      %v1359 = vadd.bf16 %v1081, %v1265
      %v1360 = vadd.bf16 %v1082, %v1272
      %v1361 = vadd.bf16 %v1083, %v1279
      %v1362 = vadd.bf16 %v1084, %v1286
      %v1363 = vadd.bf16 %v1085, %v1293
      %v1364 = vadd.bf16 %v1086, %v1300
      %v1365 = vmul.bf16 %v1301, 1045249613
      %v1366 = vmul.bf16 %v1302, 1045249613
      %v1367 = vmul.bf16 %v1303, 1045249613
      %v1368 = vmul.bf16 %v1304, 1045249613
      %v1369 = vmul.bf16 %v1305, 1045249613
      %v1370 = vmul.bf16 %v1306, 1045249613
      %v1371 = vmul.bf16 %v1307, 1045249613
      %v1372 = vmul.bf16 %v1308, 1045249613
      %v1373 = vmul.bf16 %v1309, 1045249613
      %v1374 = vmul.bf16 %v1310, 1045249613
      %v1375 = vmul.bf16 %v1311, 1045249613
      %v1376 = vmul.bf16 %v1312, 1045249613
      %v1377 = vmul.bf16 %v1313, 1045249613
      %v1378 = vmul.bf16 %v1314, 1045249613
      %v1379 = vmul.bf16 %v1315, 1045249613
      %v1380 = vmul.bf16 %v1316, 1045249613
      %v1381 = vmul.bf16 %v1317, 1045249613
      %v1382 = vmul.bf16 %v1318, 1045249613
      %v1383 = vmul.bf16 %v1319, 1045249613
      %v1384 = vmul.bf16 %v1320, 1045249613
      %v1385 = vmul.bf16 %v1321, 1045249613
      %v1386 = vmul.bf16 %v1322, 1045249613
      %v1387 = vmul.bf16 %v1323, 1045249613
      %v1388 = vmul.bf16 %v1324, 1045249613
      %v1389 = vmul.bf16 %v1325, 1045249613
      %v1390 = vmul.bf16 %v1326, 1045249613
      %v1391 = vmul.bf16 %v1327, 1045249613
      %v1392 = vmul.bf16 %v1328, 1045249613
      %v1393 = vmul.bf16 %v1329, 1045249613
      %v1394 = vmul.bf16 %v1330, 1045249613
      %v1395 = vmul.bf16 %v1331, 1045249613
      %v1396 = vmul.bf16 %v1332, 1045249613
      %v1397 = vmul.bf16 %v1333, 1045249613
      %v1398 = vmul.bf16 %v1334, 1045249613
      %v1399 = vmul.bf16 %v1335, 1045249613
      %v1400 = vmul.bf16 %v1336, 1045249613
      %v1401 = vmul.bf16 %v1337, 1045249613
      %v1402 = vmul.bf16 %v1338, 1045249613
      %v1403 = vmul.bf16 %v1339, 1045249613
      %v1404 = vmul.bf16 %v1340, 1045249613
      %v1405 = vmul.bf16 %v1341, 1045249613
      %v1406 = vmul.bf16 %v1342, 1045249613
      %v1407 = vmul.bf16 %v1343, 1045249613
      %v1408 = vmul.bf16 %v1344, 1045249613
      %v1409 = vmul.bf16 %v1345, 1045249613
      %v1410 = vmul.bf16 %v1346, 1045249613
      %v1411 = vmul.bf16 %v1347, 1045249613
      %v1412 = vmul.bf16 %v1348, 1045249613
      %v1413 = vmul.bf16 %v1349, 1045249613
      %v1414 = vmul.bf16 %v1350, 1045249613
      %v1415 = vmul.bf16 %v1351, 1045249613
      %v1416 = vmul.bf16 %v1352, 1045249613
      %v1417 = vmul.bf16 %v1353, 1045249613
      %v1418 = vmul.bf16 %v1354, 1045249613
      %v1419 = vmul.bf16 %v1355, 1045249613
      %v1420 = vmul.bf16 %v1356, 1045249613
      %v1421 = vmul.bf16 %v1357, 1045249613
      %v1422 = vmul.bf16 %v1358, 1045249613
      %v1423 = vmul.bf16 %v1359, 1045249613
      %v1424 = vmul.bf16 %v1360, 1045249613
      %v1425 = vmul.bf16 %v1361, 1045249613
      %v1426 = vmul.bf16 %v1362, 1045249613
      %v1427 = vmul.bf16 %v1363, 1045249613
      %v1428 = vmul.bf16 %v1364, 1045249613
      %v1429 = vmax.bf16 %v1301, %v1365
      %v1430 = vmax.bf16 %v1302, %v1366
      %v1431 = vmax.bf16 %v1303, %v1367
      %v1432 = vmax.bf16 %v1304, %v1368
      %v1433 = vmax.bf16 %v1305, %v1369
      %v1434 = vmax.bf16 %v1306, %v1370
      %v1435 = vmax.bf16 %v1307, %v1371
      %v1436 = vmax.bf16 %v1308, %v1372
      %v1437 = vmax.bf16 %v1309, %v1373
      %v1438 = vmax.bf16 %v1310, %v1374
      %v1439 = vmax.bf16 %v1311, %v1375
      %v1440 = vmax.bf16 %v1312, %v1376
      %v1441 = vmax.bf16 %v1313, %v1377
      %v1442 = vmax.bf16 %v1314, %v1378
      %v1443 = vmax.bf16 %v1315, %v1379
      %v1444 = vmax.bf16 %v1316, %v1380
      %v1445 = vmax.bf16 %v1317, %v1381
      %v1446 = vmax.bf16 %v1318, %v1382
      %v1447 = vmax.bf16 %v1319, %v1383
      %v1448 = vmax.bf16 %v1320, %v1384
      %v1449 = vmax.bf16 %v1321, %v1385
      %v1450 = vmax.bf16 %v1322, %v1386
      %v1451 = vmax.bf16 %v1323, %v1387
      %v1452 = vmax.bf16 %v1324, %v1388
      %v1453 = vmax.bf16 %v1325, %v1389
      %v1454 = vmax.bf16 %v1326, %v1390
      %v1455 = vmax.bf16 %v1327, %v1391
      %v1456 = vmax.bf16 %v1328, %v1392
      %v1457 = vmax.bf16 %v1329, %v1393
      %v1458 = vmax.bf16 %v1330, %v1394
      %v1459 = vmax.bf16 %v1331, %v1395
      %v1460 = vmax.bf16 %v1332, %v1396
      %v1461 = vmax.bf16 %v1333, %v1397
      %v1462 = vmax.bf16 %v1334, %v1398
      %v1463 = vmax.bf16 %v1335, %v1399
      %v1464 = vmax.bf16 %v1336, %v1400
      %v1465 = vmax.bf16 %v1337, %v1401
      %v1466 = vmax.bf16 %v1338, %v1402
      %v1467 = vmax.bf16 %v1339, %v1403
      %v1468 = vmax.bf16 %v1340, %v1404
      %v1469 = vmax.bf16 %v1341, %v1405
      %v1470 = vmax.bf16 %v1342, %v1406
      %v1471 = vmax.bf16 %v1343, %v1407
      %v1472 = vmax.bf16 %v1344, %v1408
      %v1473 = vmax.bf16 %v1345, %v1409
      %v1474 = vmax.bf16 %v1346, %v1410
      %v1475 = vmax.bf16 %v1347, %v1411
      %v1476 = vmax.bf16 %v1348, %v1412
      %v1477 = vmax.bf16 %v1349, %v1413
      %v1478 = vmax.bf16 %v1350, %v1414
      %v1479 = vmax.bf16 %v1351, %v1415
      %v1480 = vmax.bf16 %v1352, %v1416
      %v1481 = vmax.bf16 %v1353, %v1417
      %v1482 = vmax.bf16 %v1354, %v1418
      %v1483 = vmax.bf16 %v1355, %v1419
      %v1484 = vmax.bf16 %v1356, %v1420
      %v1485 = vmax.bf16 %v1357, %v1421
      %v1486 = vmax.bf16 %v1358, %v1422
      %v1487 = vmax.bf16 %v1359, %v1423
      %v1488 = vmax.bf16 %v1360, %v1424
      %v1489 = vmax.bf16 %v1361, %v1425
      %v1490 = vmax.bf16 %v1362, %v1426
      %v1491 = vmax.bf16 %v1363, %v1427
      %v1492 = vmax.bf16 %v1364, %v1428
      %v1493 = vld [vmem:[%s3] sm:$0xff]
      %v1494 = vld [vmem:[%s3 + $0x8] sm:$0xff]
      %v1495 = vld [vmem:[%s3 + $0x10] sm:$0xff]
      %v1496 = vld [vmem:[%s3 + $0x18] sm:$0xff]
      %v1497 = vld [vmem:[%s3 + $0x20] sm:$0xff]
      %v1498 = vld [vmem:[%s3 + $0x28] sm:$0xff]
      %v1499 = vld [vmem:[%s3 + $0x30] sm:$0xff]
      %v1500 = vld [vmem:[%s3 + $0x38] sm:$0xff]
      %v1501 = vld [vmem:[%s3 + $0x40] sm:$0xff]
      %v1502 = vld [vmem:[%s3 + $0x48] sm:$0xff]
      %v1503 = vld [vmem:[%s3 + $0x50] sm:$0xff]
      %v1504 = vld [vmem:[%s3 + $0x58] sm:$0xff]
      %v1505 = vld [vmem:[%s3 + $0x60] sm:$0xff]
      %v1506 = vld [vmem:[%s3 + $0x68] sm:$0xff]
      %v1507 = vld [vmem:[%s3 + $0x70] sm:$0xff]
      %v1508 = vld [vmem:[%s3 + $0x78] sm:$0xff]
      %v1509 = vld [vmem:[%s3 + $0x80] sm:$0xff]
      %v1510 = vld [vmem:[%s3 + $0x88] sm:$0xff]
      %v1511 = vld [vmem:[%s3 + $0x90] sm:$0xff]
      %v1512 = vld [vmem:[%s3 + $0x98] sm:$0xff]
      %v1513 = vld [vmem:[%s3 + $0xa0] sm:$0xff]
      %v1514 = vld [vmem:[%s3 + $0xa8] sm:$0xff]
      %v1515 = vld [vmem:[%s3 + $0xb0] sm:$0xff]
      %v1516 = vld [vmem:[%s3 + $0xb8] sm:$0xff]
      %v1517 = vld [vmem:[%s3 + $0xc0] sm:$0xff]
      %v1518 = vld [vmem:[%s3 + $0xc8] sm:$0xff]
      %v1519 = vld [vmem:[%s3 + $0xd0] sm:$0xff]
      %v1520 = vld [vmem:[%s3 + $0xd8] sm:$0xff]
      %v1521 = vld [vmem:[%s3 + $0xe0] sm:$0xff]
      %v1522 = vld [vmem:[%s3 + $0xe8] sm:$0xff]
      %v1523 = vld [vmem:[%s3 + $0xf0] sm:$0xff]
      %v1524 = vld [vmem:[%s3 + $0xf8] sm:$0xff]
      %v1525 = vld [vmem:[%s3 + $0x100] sm:$0xff]
      %v1526 = vld [vmem:[%s3 + $0x108] sm:$0xff]
      %v1527 = vld [vmem:[%s3 + $0x110] sm:$0xff]
      %v1528 = vld [vmem:[%s3 + $0x118] sm:$0xff]
      %v1529 = vld [vmem:[%s3 + $0x120] sm:$0xff]
      %v1530 = vld [vmem:[%s3 + $0x128] sm:$0xff]
      %v1531 = vld [vmem:[%s3 + $0x130] sm:$0xff]
      %v1532 = vld [vmem:[%s3 + $0x138] sm:$0xff]
      %v1533 = vld [vmem:[%s3 + $0x140] sm:$0xff]
      %v1534 = vld [vmem:[%s3 + $0x148] sm:$0xff]
      %v1535 = vld [vmem:[%s3 + $0x150] sm:$0xff]
      %v1536 = vld [vmem:[%s3 + $0x158] sm:$0xff]
      %v1537 = vld [vmem:[%s3 + $0x160] sm:$0xff]
      %v1538 = vld [vmem:[%s3 + $0x168] sm:$0xff]
      %v1539 = vld [vmem:[%s3 + $0x170] sm:$0xff]
      %v1540 = vld [vmem:[%s3 + $0x178] sm:$0xff]
      %v1541 = vld [vmem:[%s3 + $0x180] sm:$0xff]
      %v1542 = vld [vmem:[%s3 + $0x188] sm:$0xff]
      %v1543 = vld [vmem:[%s3 + $0x190] sm:$0xff]
      %v1544 = vld [vmem:[%s3 + $0x198] sm:$0xff]
      %v1545 = vld [vmem:[%s3 + $0x1a0] sm:$0xff]
      %v1546 = vld [vmem:[%s3 + $0x1a8] sm:$0xff]
      %v1547 = vld [vmem:[%s3 + $0x1b0] sm:$0xff]
      %v1548 = vld [vmem:[%s3 + $0x1b8] sm:$0xff]
      %v1549 = vld [vmem:[%s3 + $0x1c0] sm:$0xff]
      %v1550 = vld [vmem:[%s3 + $0x1c8] sm:$0xff]
      %v1551 = vld [vmem:[%s3 + $0x1d0] sm:$0xff]
      %v1552 = vld [vmem:[%s3 + $0x1d8] sm:$0xff]
      %v1553 = vld [vmem:[%s3 + $0x1e0] sm:$0xff]
      %v1554 = vld [vmem:[%s3 + $0x1e8] sm:$0xff]
      %v1555 = vld [vmem:[%s3 + $0x1f0] sm:$0xff]
      %v1556 = vld [vmem:[%s3 + $0x1f8] sm:$0xff]
      %v1557 = vld [vmem:[%s3 + $0x200] sm:$0xff]
      %v1558 = vld [vmem:[%s3 + $0x208] sm:$0xff]
      %v1559 = vld [vmem:[%s3 + $0x210] sm:$0xff]
      %v1560 = vld [vmem:[%s3 + $0x218] sm:$0xff]
      %v1561 = vld [vmem:[%s3 + $0x220] sm:$0xff]
      %v1562 = vld [vmem:[%s3 + $0x228] sm:$0xff]
      %v1563 = vld [vmem:[%s3 + $0x230] sm:$0xff]
      %v1564 = vld [vmem:[%s3 + $0x238] sm:$0xff]
      %v1565 = vld [vmem:[%s3 + $0x240] sm:$0xff]
      %v1566 = vld [vmem:[%s3 + $0x248] sm:$0xff]
      %v1567 = vld [vmem:[%s3 + $0x250] sm:$0xff]
      %v1568 = vld [vmem:[%s3 + $0x258] sm:$0xff]
      %v1569 = vld [vmem:[%s3 + $0x260] sm:$0xff]
      %v1570 = vld [vmem:[%s3 + $0x268] sm:$0xff]
      %v1571 = vld [vmem:[%s3 + $0x270] sm:$0xff]
      %v1572 = vld [vmem:[%s3 + $0x278] sm:$0xff]
      %v1573 = vld [vmem:[%s3 + $0x280] sm:$0xff]
      %v1574 = vld [vmem:[%s3 + $0x288] sm:$0xff]
      %v1575 = vld [vmem:[%s3 + $0x290] sm:$0xff]
      %v1576 = vld [vmem:[%s3 + $0x298] sm:$0xff]
      %v1577 = vld [vmem:[%s3 + $0x2a0] sm:$0xff]
      %v1578 = vld [vmem:[%s3 + $0x2a8] sm:$0xff]
      %v1579 = vld [vmem:[%s3 + $0x2b0] sm:$0xff]
      %v1580 = vld [vmem:[%s3 + $0x2b8] sm:$0xff]
      %v1581 = vld [vmem:[%s3 + $0x2c0] sm:$0xff]
      %v1582 = vld [vmem:[%s3 + $0x2c8] sm:$0xff]
      %v1583 = vld [vmem:[%s3 + $0x2d0] sm:$0xff]
      %v1584 = vld [vmem:[%s3 + $0x2d8] sm:$0xff]
      %v1585 = vld [vmem:[%s3 + $0x2e0] sm:$0xff]
      %v1586 = vld [vmem:[%s3 + $0x2e8] sm:$0xff]
      %v1587 = vld [vmem:[%s3 + $0x2f0] sm:$0xff]
      %v1588 = vld [vmem:[%s3 + $0x2f8] sm:$0xff]
      %v1589 = vld [vmem:[%s3 + $0x300] sm:$0xff]
      %v1590 = vld [vmem:[%s3 + $0x308] sm:$0xff]
      %v1591 = vld [vmem:[%s3 + $0x310] sm:$0xff]
      %v1592 = vld [vmem:[%s3 + $0x318] sm:$0xff]
      %v1593 = vld [vmem:[%s3 + $0x320] sm:$0xff]
      %v1594 = vld [vmem:[%s3 + $0x328] sm:$0xff]
      %v1595 = vld [vmem:[%s3 + $0x330] sm:$0xff]
      %v1596 = vld [vmem:[%s3 + $0x338] sm:$0xff]
      %v1597 = vld [vmem:[%s3 + $0x340] sm:$0xff]
      %v1598 = vld [vmem:[%s3 + $0x348] sm:$0xff]
      %v1599 = vld [vmem:[%s3 + $0x350] sm:$0xff]
      %v1600 = vld [vmem:[%s3 + $0x358] sm:$0xff]
      %v1601 = vld [vmem:[%s3 + $0x360] sm:$0xff]
      %v1602 = vld [vmem:[%s3 + $0x368] sm:$0xff]
      %v1603 = vld [vmem:[%s3 + $0x370] sm:$0xff]
      %v1604 = vld [vmem:[%s3 + $0x378] sm:$0xff]
      %v1605 = vld [vmem:[%s3 + $0x380] sm:$0xff]
      %v1606 = vld [vmem:[%s3 + $0x388] sm:$0xff]
      %v1607 = vld [vmem:[%s3 + $0x390] sm:$0xff]
      %v1608 = vld [vmem:[%s3 + $0x398] sm:$0xff]
      %v1609 = vld [vmem:[%s3 + $0x3a0] sm:$0xff]
      %v1610 = vld [vmem:[%s3 + $0x3a8] sm:$0xff]
      %v1611 = vld [vmem:[%s3 + $0x3b0] sm:$0xff]
      %v1612 = vld [vmem:[%s3 + $0x3b8] sm:$0xff]
      %v1613 = vld [vmem:[%s3 + $0x3c0] sm:$0xff]
      %v1614 = vld [vmem:[%s3 + $0x3c8] sm:$0xff]
      %v1615 = vld [vmem:[%s3 + $0x3d0] sm:$0xff]
      %v1616 = vld [vmem:[%s3 + $0x3d8] sm:$0xff]
      %v1617 = vld [vmem:[%s3 + $0x3e0] sm:$0xff]
      %v1618 = vld [vmem:[%s3 + $0x3e8] sm:$0xff]
      %v1619 = vld [vmem:[%s3 + $0x3f0] sm:$0xff]
      %v1620 = vld [vmem:[%s3 + $0x3f8] sm:$0xff]
      %v1621 = vld [vmem:[%s3 + $0x400] sm:$0xff]
      %v1622 = vld [vmem:[%s3 + $0x408] sm:$0xff]
      %v1623 = vld [vmem:[%s3 + $0x410] sm:$0xff]
      %v1624 = vld [vmem:[%s3 + $0x418] sm:$0xff]
      %v1625 = vld [vmem:[%s3 + $0x420] sm:$0xff]
      %v1626 = vld [vmem:[%s3 + $0x428] sm:$0xff]
      %v1627 = vld [vmem:[%s3 + $0x430] sm:$0xff]
      %v1628 = vld [vmem:[%s3 + $0x438] sm:$0xff]
      %v1629 = vld [vmem:[%s3 + $0x440] sm:$0xff]
      %v1630 = vld [vmem:[%s3 + $0x448] sm:$0xff]
      %v1631 = vld [vmem:[%s3 + $0x450] sm:$0xff]
      %v1632 = vld [vmem:[%s3 + $0x458] sm:$0xff]
      %v1633 = vld [vmem:[%s3 + $0x460] sm:$0xff]
      %v1634 = vld [vmem:[%s3 + $0x468] sm:$0xff]
      %v1635 = vld [vmem:[%s3 + $0x470] sm:$0xff]
      %v1636 = vld [vmem:[%s3 + $0x478] sm:$0xff]
      %v1637 = vld [vmem:[%s3 + $0x480] sm:$0xff]
      %v1638 = vld [vmem:[%s3 + $0x488] sm:$0xff]
      %v1639 = vld [vmem:[%s3 + $0x490] sm:$0xff]
      %v1640 = vld [vmem:[%s3 + $0x498] sm:$0xff]
      %v1641 = vld [vmem:[%s3 + $0x4a0] sm:$0xff]
      %v1642 = vld [vmem:[%s3 + $0x4a8] sm:$0xff]
      %v1643 = vld [vmem:[%s3 + $0x4b0] sm:$0xff]
      %v1644 = vld [vmem:[%s3 + $0x4b8] sm:$0xff]
      %v1645 = vld [vmem:[%s3 + $0x4c0] sm:$0xff]
      %v1646 = vld [vmem:[%s3 + $0x4c8] sm:$0xff]
      %v1647 = vld [vmem:[%s3 + $0x4d0] sm:$0xff]
      %v1648 = vld [vmem:[%s3 + $0x4d8] sm:$0xff]
      %v1649 = vld [vmem:[%s3 + $0x4e0] sm:$0xff]
      %v1650 = vld [vmem:[%s3 + $0x4e8] sm:$0xff]
      %v1651 = vld [vmem:[%s3 + $0x4f0] sm:$0xff]
      %v1652 = vld [vmem:[%s3 + $0x4f8] sm:$0xff]
      %v1653 = vld [vmem:[%s3 + $0x500] sm:$0xff]
      %v1654 = vld [vmem:[%s3 + $0x508] sm:$0xff]
      %v1655 = vld [vmem:[%s3 + $0x510] sm:$0xff]
      %v1656 = vld [vmem:[%s3 + $0x518] sm:$0xff]
      %v1657 = vld [vmem:[%s3 + $0x520] sm:$0xff]
      %v1658 = vld [vmem:[%s3 + $0x528] sm:$0xff]
      %v1659 = vld [vmem:[%s3 + $0x530] sm:$0xff]
      %v1660 = vld [vmem:[%s3 + $0x538] sm:$0xff]
      %v1661 = vld [vmem:[%s3 + $0x540] sm:$0xff]
      %v1662 = vld [vmem:[%s3 + $0x548] sm:$0xff]
      %v1663 = vld [vmem:[%s3 + $0x550] sm:$0xff]
      %v1664 = vld [vmem:[%s3 + $0x558] sm:$0xff]
      %v1665 = vld [vmem:[%s3 + $0x560] sm:$0xff]
      %v1666 = vld [vmem:[%s3 + $0x568] sm:$0xff]
      %v1667 = vld [vmem:[%s3 + $0x570] sm:$0xff]
      %v1668 = vld [vmem:[%s3 + $0x578] sm:$0xff]
      %v1669 = vld [vmem:[%s3 + $0x580] sm:$0xff]
      %v1670 = vld [vmem:[%s3 + $0x588] sm:$0xff]
      %v1671 = vld [vmem:[%s3 + $0x590] sm:$0xff]
      %v1672 = vld [vmem:[%s3 + $0x598] sm:$0xff]
      %v1673 = vld [vmem:[%s3 + $0x5a0] sm:$0xff]
      %v1674 = vld [vmem:[%s3 + $0x5a8] sm:$0xff]
      %v1675 = vld [vmem:[%s3 + $0x5b0] sm:$0xff]
      %v1676 = vld [vmem:[%s3 + $0x5b8] sm:$0xff]
      %v1677 = vld [vmem:[%s3 + $0x5c0] sm:$0xff]
      %v1678 = vld [vmem:[%s3 + $0x5c8] sm:$0xff]
      %v1679 = vld [vmem:[%s3 + $0x5d0] sm:$0xff]
      %v1680 = vld [vmem:[%s3 + $0x5d8] sm:$0xff]
      %v1681 = vld [vmem:[%s3 + $0x5e0] sm:$0xff]
      %v1682 = vld [vmem:[%s3 + $0x5e8] sm:$0xff]
      %v1683 = vld [vmem:[%s3 + $0x5f0] sm:$0xff]
      %v1684 = vld [vmem:[%s3 + $0x5f8] sm:$0xff]
      %v1685 = vld [vmem:[%s3 + $0x600] sm:$0xff]
      %v1686 = vld [vmem:[%s3 + $0x608] sm:$0xff]
      %v1687 = vld [vmem:[%s3 + $0x610] sm:$0xff]
      %v1688 = vld [vmem:[%s3 + $0x618] sm:$0xff]
      %v1689 = vld [vmem:[%s3 + $0x620] sm:$0xff]
      %v1690 = vld [vmem:[%s3 + $0x628] sm:$0xff]
      %v1691 = vld [vmem:[%s3 + $0x630] sm:$0xff]
      %v1692 = vld [vmem:[%s3 + $0x638] sm:$0xff]
      %v1693 = vld [vmem:[%s3 + $0x640] sm:$0xff]
      %v1694 = vld [vmem:[%s3 + $0x648] sm:$0xff]
      %v1695 = vld [vmem:[%s3 + $0x650] sm:$0xff]
      %v1696 = vld [vmem:[%s3 + $0x658] sm:$0xff]
      %v1697 = vld [vmem:[%s3 + $0x660] sm:$0xff]
      %v1698 = vld [vmem:[%s3 + $0x668] sm:$0xff]
      %v1699 = vld [vmem:[%s3 + $0x670] sm:$0xff]
      %v1700 = vld [vmem:[%s3 + $0x678] sm:$0xff]
      %v1701 = vld [vmem:[%s3 + $0x680] sm:$0xff]
      %v1702 = vld [vmem:[%s3 + $0x688] sm:$0xff]
      %v1703 = vld [vmem:[%s3 + $0x690] sm:$0xff]
      %v1704 = vld [vmem:[%s3 + $0x698] sm:$0xff]
      %v1705 = vld [vmem:[%s3 + $0x6a0] sm:$0xff]
      %v1706 = vld [vmem:[%s3 + $0x6a8] sm:$0xff]
      %v1707 = vld [vmem:[%s3 + $0x6b0] sm:$0xff]
      %v1708 = vld [vmem:[%s3 + $0x6b8] sm:$0xff]
      %v1709 = vld [vmem:[%s3 + $0x6c0] sm:$0xff]
      %v1710 = vld [vmem:[%s3 + $0x6c8] sm:$0xff]
      %v1711 = vld [vmem:[%s3 + $0x6d0] sm:$0xff]
      %v1712 = vld [vmem:[%s3 + $0x6d8] sm:$0xff]
      %v1713 = vld [vmem:[%s3 + $0x6e0] sm:$0xff]
      %v1714 = vld [vmem:[%s3 + $0x6e8] sm:$0xff]
      %v1715 = vld [vmem:[%s3 + $0x6f0] sm:$0xff]
      %v1716 = vld [vmem:[%s3 + $0x6f8] sm:$0xff]
      %v1717 = vld [vmem:[%s3 + $0x700] sm:$0xff]
      %v1718 = vld [vmem:[%s3 + $0x708] sm:$0xff]
      %v1719 = vld [vmem:[%s3 + $0x710] sm:$0xff]
      %v1720 = vld [vmem:[%s3 + $0x718] sm:$0xff]
      %v1721 = vld [vmem:[%s3 + $0x720] sm:$0xff]
      %v1722 = vld [vmem:[%s3 + $0x728] sm:$0xff]
      %v1723 = vld [vmem:[%s3 + $0x730] sm:$0xff]
      %v1724 = vld [vmem:[%s3 + $0x738] sm:$0xff]
      %v1725 = vld [vmem:[%s3 + $0x740] sm:$0xff]
      %v1726 = vld [vmem:[%s3 + $0x748] sm:$0xff]
      %v1727 = vld [vmem:[%s3 + $0x750] sm:$0xff]
      %v1728 = vld [vmem:[%s3 + $0x758] sm:$0xff]
      %v1729 = vld [vmem:[%s3 + $0x760] sm:$0xff]
      %v1730 = vld [vmem:[%s3 + $0x768] sm:$0xff]
      %v1731 = vld [vmem:[%s3 + $0x770] sm:$0xff]
      %v1732 = vld [vmem:[%s3 + $0x778] sm:$0xff]
      %v1733 = vld [vmem:[%s3 + $0x780] sm:$0xff]
      %v1734 = vld [vmem:[%s3 + $0x788] sm:$0xff]
      %v1735 = vld [vmem:[%s3 + $0x790] sm:$0xff]
      %v1736 = vld [vmem:[%s3 + $0x798] sm:$0xff]
      %v1737 = vld [vmem:[%s3 + $0x7a0] sm:$0xff]
      %v1738 = vld [vmem:[%s3 + $0x7a8] sm:$0xff]
      %v1739 = vld [vmem:[%s3 + $0x7b0] sm:$0xff]
      %v1740 = vld [vmem:[%s3 + $0x7b8] sm:$0xff]
      %v1741 = vld [vmem:[%s3 + $0x7c0] sm:$0xff]
      %v1742 = vld [vmem:[%s3 + $0x7c8] sm:$0xff]
      %v1743 = vld [vmem:[%s3 + $0x7d0] sm:$0xff]
      %v1744 = vld [vmem:[%s3 + $0x7d8] sm:$0xff]
      %v1745 = vld [vmem:[%s3 + $0x7e0] sm:$0xff]
      %v1746 = vld [vmem:[%s3 + $0x7e8] sm:$0xff]
      %v1747 = vld [vmem:[%s3 + $0x7f0] sm:$0xff]
      %v1748 = vld [vmem:[%s3 + $0x7f8] sm:$0xff]
      %v1749 = vld [vmem:[%s3 + $0x800] sm:$0xff]
      %v1750 = vld [vmem:[%s3 + $0x808] sm:$0xff]
      %v1751 = vld [vmem:[%s3 + $0x810] sm:$0xff]
      %v1752 = vld [vmem:[%s3 + $0x818] sm:$0xff]
      %v1753 = vld [vmem:[%s3 + $0x820] sm:$0xff]
      %v1754 = vld [vmem:[%s3 + $0x828] sm:$0xff]
      %v1755 = vld [vmem:[%s3 + $0x830] sm:$0xff]
      %v1756 = vld [vmem:[%s3 + $0x838] sm:$0xff]
      %v1757 = vld [vmem:[%s3 + $0x840] sm:$0xff]
      %v1758 = vld [vmem:[%s3 + $0x848] sm:$0xff]
      %v1759 = vld [vmem:[%s3 + $0x850] sm:$0xff]
      %v1760 = vld [vmem:[%s3 + $0x858] sm:$0xff]
      %v1761 = vld [vmem:[%s3 + $0x860] sm:$0xff]
      %v1762 = vld [vmem:[%s3 + $0x868] sm:$0xff]
      %v1763 = vld [vmem:[%s3 + $0x870] sm:$0xff]
      %v1764 = vld [vmem:[%s3 + $0x878] sm:$0xff]
      %v1765 = vld [vmem:[%s3 + $0x880] sm:$0xff]
      %v1766 = vld [vmem:[%s3 + $0x888] sm:$0xff]
      %v1767 = vld [vmem:[%s3 + $0x890] sm:$0xff]
      %v1768 = vld [vmem:[%s3 + $0x898] sm:$0xff]
      %v1769 = vld [vmem:[%s3 + $0x8a0] sm:$0xff]
      %v1770 = vld [vmem:[%s3 + $0x8a8] sm:$0xff]
      %v1771 = vld [vmem:[%s3 + $0x8b0] sm:$0xff]
      %v1772 = vld [vmem:[%s3 + $0x8b8] sm:$0xff]
      %v1773 = vld [vmem:[%s3 + $0x8c0] sm:$0xff]
      %v1774 = vld [vmem:[%s3 + $0x8c8] sm:$0xff]
      %v1775 = vld [vmem:[%s3 + $0x8d0] sm:$0xff]
      %v1776 = vld [vmem:[%s3 + $0x8d8] sm:$0xff]
      %v1777 = vld [vmem:[%s3 + $0x8e0] sm:$0xff]
      %v1778 = vld [vmem:[%s3 + $0x8e8] sm:$0xff]
      %v1779 = vld [vmem:[%s3 + $0x8f0] sm:$0xff]
      %v1780 = vld [vmem:[%s3 + $0x8f8] sm:$0xff]
      %v1781 = vld [vmem:[%s3 + $0x900] sm:$0xff]
      %v1782 = vld [vmem:[%s3 + $0x908] sm:$0xff]
      %v1783 = vld [vmem:[%s3 + $0x910] sm:$0xff]
      %v1784 = vld [vmem:[%s3 + $0x918] sm:$0xff]
      %v1785 = vld [vmem:[%s3 + $0x920] sm:$0xff]
      %v1786 = vld [vmem:[%s3 + $0x928] sm:$0xff]
      %v1787 = vld [vmem:[%s3 + $0x930] sm:$0xff]
      %v1788 = vld [vmem:[%s3 + $0x938] sm:$0xff]
      %v1789 = vld [vmem:[%s3 + $0x940] sm:$0xff]
      %v1790 = vld [vmem:[%s3 + $0x948] sm:$0xff]
      %v1791 = vld [vmem:[%s3 + $0x950] sm:$0xff]
      %v1792 = vld [vmem:[%s3 + $0x958] sm:$0xff]
      %v1793 = vld [vmem:[%s3 + $0x960] sm:$0xff]
      %v1794 = vld [vmem:[%s3 + $0x968] sm:$0xff]
      %v1795 = vld [vmem:[%s3 + $0x970] sm:$0xff]
      %v1796 = vld [vmem:[%s3 + $0x978] sm:$0xff]
      %v1797 = vld [vmem:[%s3 + $0x980] sm:$0xff]
      %v1798 = vld [vmem:[%s3 + $0x988] sm:$0xff]
      %v1799 = vld [vmem:[%s3 + $0x990] sm:$0xff]
      %v1800 = vld [vmem:[%s3 + $0x998] sm:$0xff]
      %v1801 = vld [vmem:[%s3 + $0x9a0] sm:$0xff]
      %v1802 = vld [vmem:[%s3 + $0x9a8] sm:$0xff]
      %v1803 = vld [vmem:[%s3 + $0x9b0] sm:$0xff]
      %v1804 = vld [vmem:[%s3 + $0x9b8] sm:$0xff]
      %v1805 = vld [vmem:[%s3 + $0x9c0] sm:$0xff]
      %v1806 = vld [vmem:[%s3 + $0x9c8] sm:$0xff]
      %v1807 = vld [vmem:[%s3 + $0x9d0] sm:$0xff]
      %v1808 = vld [vmem:[%s3 + $0x9d8] sm:$0xff]
      %v1809 = vld [vmem:[%s3 + $0x9e0] sm:$0xff]
      %v1810 = vld [vmem:[%s3 + $0x9e8] sm:$0xff]
      %v1811 = vld [vmem:[%s3 + $0x9f0] sm:$0xff]
      %v1812 = vld [vmem:[%s3 + $0x9f8] sm:$0xff]
      %v1813 = vld [vmem:[%s3 + $0xa00] sm:$0xff]
      %v1814 = vld [vmem:[%s3 + $0xa08] sm:$0xff]
      %v1815 = vld [vmem:[%s3 + $0xa10] sm:$0xff]
      %v1816 = vld [vmem:[%s3 + $0xa18] sm:$0xff]
      %v1817 = vld [vmem:[%s3 + $0xa20] sm:$0xff]
      %v1818 = vld [vmem:[%s3 + $0xa28] sm:$0xff]
      %v1819 = vld [vmem:[%s3 + $0xa30] sm:$0xff]
      %v1820 = vld [vmem:[%s3 + $0xa38] sm:$0xff]
      %v1821 = vld [vmem:[%s3 + $0xa40] sm:$0xff]
      %v1822 = vld [vmem:[%s3 + $0xa48] sm:$0xff]
      %v1823 = vld [vmem:[%s3 + $0xa50] sm:$0xff]
      %v1824 = vld [vmem:[%s3 + $0xa58] sm:$0xff]
      %v1825 = vld [vmem:[%s3 + $0xa60] sm:$0xff]
      %v1826 = vld [vmem:[%s3 + $0xa68] sm:$0xff]
      %v1827 = vld [vmem:[%s3 + $0xa70] sm:$0xff]
      %v1828 = vld [vmem:[%s3 + $0xa78] sm:$0xff]
      %v1829 = vld [vmem:[%s3 + $0xa80] sm:$0xff]
      %v1830 = vld [vmem:[%s3 + $0xa88] sm:$0xff]
      %v1831 = vld [vmem:[%s3 + $0xa90] sm:$0xff]
      %v1832 = vld [vmem:[%s3 + $0xa98] sm:$0xff]
      %v1833 = vld [vmem:[%s3 + $0xaa0] sm:$0xff]
      %v1834 = vld [vmem:[%s3 + $0xaa8] sm:$0xff]
      %v1835 = vld [vmem:[%s3 + $0xab0] sm:$0xff]
      %v1836 = vld [vmem:[%s3 + $0xab8] sm:$0xff]
      %v1837 = vld [vmem:[%s3 + $0xac0] sm:$0xff]
      %v1838 = vld [vmem:[%s3 + $0xac8] sm:$0xff]
      %v1839 = vld [vmem:[%s3 + $0xad0] sm:$0xff]
      %v1840 = vld [vmem:[%s3 + $0xad8] sm:$0xff]
      %v1841 = vld [vmem:[%s3 + $0xae0] sm:$0xff]
      %v1842 = vld [vmem:[%s3 + $0xae8] sm:$0xff]
      %v1843 = vld [vmem:[%s3 + $0xaf0] sm:$0xff]
      %v1844 = vld [vmem:[%s3 + $0xaf8] sm:$0xff]
      %v1845 = vld [vmem:[%s3 + $0xb00] sm:$0xff]
      %v1846 = vld [vmem:[%s3 + $0xb08] sm:$0xff]
      %v1847 = vld [vmem:[%s3 + $0xb10] sm:$0xff]
      %v1848 = vld [vmem:[%s3 + $0xb18] sm:$0xff]
      %v1849 = vld [vmem:[%s3 + $0xb20] sm:$0xff]
      %v1850 = vld [vmem:[%s3 + $0xb28] sm:$0xff]
      %v1851 = vld [vmem:[%s3 + $0xb30] sm:$0xff]
      %v1852 = vld [vmem:[%s3 + $0xb38] sm:$0xff]
      %v1853 = vld [vmem:[%s3 + $0xb40] sm:$0xff]
      %v1854 = vld [vmem:[%s3 + $0xb48] sm:$0xff]
      %v1855 = vld [vmem:[%s3 + $0xb50] sm:$0xff]
      %v1856 = vld [vmem:[%s3 + $0xb58] sm:$0xff]
      %v1857 = vld [vmem:[%s3 + $0xb60] sm:$0xff]
      %v1858 = vld [vmem:[%s3 + $0xb68] sm:$0xff]
      %v1859 = vld [vmem:[%s3 + $0xb70] sm:$0xff]
      %v1860 = vld [vmem:[%s3 + $0xb78] sm:$0xff]
      %v1861 = vld [vmem:[%s3 + $0xb80] sm:$0xff]
      %v1862 = vld [vmem:[%s3 + $0xb88] sm:$0xff]
      %v1863 = vld [vmem:[%s3 + $0xb90] sm:$0xff]
      %v1864 = vld [vmem:[%s3 + $0xb98] sm:$0xff]
      %v1865 = vld [vmem:[%s3 + $0xba0] sm:$0xff]
      %v1866 = vld [vmem:[%s3 + $0xba8] sm:$0xff]
      %v1867 = vld [vmem:[%s3 + $0xbb0] sm:$0xff]
      %v1868 = vld [vmem:[%s3 + $0xbb8] sm:$0xff]
      %v1869 = vld [vmem:[%s3 + $0xbc0] sm:$0xff]
      %v1870 = vld [vmem:[%s3 + $0xbc8] sm:$0xff]
      %v1871 = vld [vmem:[%s3 + $0xbd0] sm:$0xff]
      %v1872 = vld [vmem:[%s3 + $0xbd8] sm:$0xff]
      %v1873 = vld [vmem:[%s3 + $0xbe0] sm:$0xff]
      %v1874 = vld [vmem:[%s3 + $0xbe8] sm:$0xff]
      %v1875 = vld [vmem:[%s3 + $0xbf0] sm:$0xff]
      %v1876 = vld [vmem:[%s3 + $0xbf8] sm:$0xff]
      %v1877 = vld [vmem:[%s3 + $0xc00] sm:$0xff]
      %v1878 = vld [vmem:[%s3 + $0xc08] sm:$0xff]
      %v1879 = vld [vmem:[%s3 + $0xc10] sm:$0xff]
      %v1880 = vld [vmem:[%s3 + $0xc18] sm:$0xff]
      %v1881 = vld [vmem:[%s3 + $0xc20] sm:$0xff]
      %v1882 = vld [vmem:[%s3 + $0xc28] sm:$0xff]
      %v1883 = vld [vmem:[%s3 + $0xc30] sm:$0xff]
      %v1884 = vld [vmem:[%s3 + $0xc38] sm:$0xff]
      %v1885 = vld [vmem:[%s3 + $0xc40] sm:$0xff]
      %v1886 = vld [vmem:[%s3 + $0xc48] sm:$0xff]
      %v1887 = vld [vmem:[%s3 + $0xc50] sm:$0xff]
      %v1888 = vld [vmem:[%s3 + $0xc58] sm:$0xff]
      %v1889 = vld [vmem:[%s3 + $0xc60] sm:$0xff]
      %v1890 = vld [vmem:[%s3 + $0xc68] sm:$0xff]
      %v1891 = vld [vmem:[%s3 + $0xc70] sm:$0xff]
      %v1892 = vld [vmem:[%s3 + $0xc78] sm:$0xff]
      %v1893 = vld [vmem:[%s3 + $0xc80] sm:$0xff]
      %v1894 = vld [vmem:[%s3 + $0xc88] sm:$0xff]
      %v1895 = vld [vmem:[%s3 + $0xc90] sm:$0xff]
      %v1896 = vld [vmem:[%s3 + $0xc98] sm:$0xff]
      %v1897 = vld [vmem:[%s3 + $0xca0] sm:$0xff]
      %v1898 = vld [vmem:[%s3 + $0xca8] sm:$0xff]
      %v1899 = vld [vmem:[%s3 + $0xcb0] sm:$0xff]
      %v1900 = vld [vmem:[%s3 + $0xcb8] sm:$0xff]
      %v1901 = vld [vmem:[%s3 + $0xcc0] sm:$0xff]
      %v1902 = vld [vmem:[%s3 + $0xcc8] sm:$0xff]
      %v1903 = vld [vmem:[%s3 + $0xcd0] sm:$0xff]
      %v1904 = vld [vmem:[%s3 + $0xcd8] sm:$0xff]
      %v1905 = vld [vmem:[%s3 + $0xce0] sm:$0xff]
      %v1906 = vld [vmem:[%s3 + $0xce8] sm:$0xff]
      %v1907 = vld [vmem:[%s3 + $0xcf0] sm:$0xff]
      %v1908 = vld [vmem:[%s3 + $0xcf8] sm:$0xff]
      %v1909 = vld [vmem:[%s3 + $0xd00] sm:$0xff]
      %v1910 = vld [vmem:[%s3 + $0xd08] sm:$0xff]
      %v1911 = vld [vmem:[%s3 + $0xd10] sm:$0xff]
      %v1912 = vld [vmem:[%s3 + $0xd18] sm:$0xff]
      %v1913 = vld [vmem:[%s3 + $0xd20] sm:$0xff]
      %v1914 = vld [vmem:[%s3 + $0xd28] sm:$0xff]
      %v1915 = vld [vmem:[%s3 + $0xd30] sm:$0xff]
      %v1916 = vld [vmem:[%s3 + $0xd38] sm:$0xff]
      %v1917 = vld [vmem:[%s3 + $0xd40] sm:$0xff]
      %v1918 = vld [vmem:[%s3 + $0xd48] sm:$0xff]
      %v1919 = vld [vmem:[%s3 + $0xd50] sm:$0xff]
      %v1920 = vld [vmem:[%s3 + $0xd58] sm:$0xff]
      %v1921 = vld [vmem:[%s3 + $0xd60] sm:$0xff]
      %v1922 = vld [vmem:[%s3 + $0xd68] sm:$0xff]
      %v1923 = vld [vmem:[%s3 + $0xd70] sm:$0xff]
      %v1924 = vld [vmem:[%s3 + $0xd78] sm:$0xff]
      %v1925 = vld [vmem:[%s3 + $0xd80] sm:$0xff]
      %v1926 = vld [vmem:[%s3 + $0xd88] sm:$0xff]
      %v1927 = vld [vmem:[%s3 + $0xd90] sm:$0xff]
      %v1928 = vld [vmem:[%s3 + $0xd98] sm:$0xff]
      %v1929 = vld [vmem:[%s3 + $0xda0] sm:$0xff]
      %v1930 = vld [vmem:[%s3 + $0xda8] sm:$0xff]
      %v1931 = vld [vmem:[%s3 + $0xdb0] sm:$0xff]
      %v1932 = vld [vmem:[%s3 + $0xdb8] sm:$0xff]
      %v1933 = vld [vmem:[%s3 + $0xdc0] sm:$0xff]
      %v1934 = vld [vmem:[%s3 + $0xdc8] sm:$0xff]
      %v1935 = vld [vmem:[%s3 + $0xdd0] sm:$0xff]
      %v1936 = vld [vmem:[%s3 + $0xdd8] sm:$0xff]
      %v1937 = vld [vmem:[%s3 + $0xde0] sm:$0xff]
      %v1938 = vld [vmem:[%s3 + $0xde8] sm:$0xff]
      %v1939 = vld [vmem:[%s3 + $0xdf0] sm:$0xff]
      %v1940 = vld [vmem:[%s3 + $0xdf8] sm:$0xff]
      %v1941 = vld [vmem:[%s3 + $0xe00] sm:$0xff]
      %v1942 = vld [vmem:[%s3 + $0xe08] sm:$0xff]
      %v1943 = vld [vmem:[%s3 + $0xe10] sm:$0xff]
      %v1944 = vld [vmem:[%s3 + $0xe18] sm:$0xff]
      %v1945 = vld [vmem:[%s3 + $0xe20] sm:$0xff]
      %v1946 = vld [vmem:[%s3 + $0xe28] sm:$0xff]
      %v1947 = vld [vmem:[%s3 + $0xe30] sm:$0xff]
      %v1948 = vld [vmem:[%s3 + $0xe38] sm:$0xff]
      %v1949 = vld [vmem:[%s3 + $0xe40] sm:$0xff]
      %v1950 = vld [vmem:[%s3 + $0xe48] sm:$0xff]
      %v1951 = vld [vmem:[%s3 + $0xe50] sm:$0xff]
      %v1952 = vld [vmem:[%s3 + $0xe58] sm:$0xff]
      %v1953 = vld [vmem:[%s3 + $0xe60] sm:$0xff]
      %v1954 = vld [vmem:[%s3 + $0xe68] sm:$0xff]
      %v1955 = vld [vmem:[%s3 + $0xe70] sm:$0xff]
      %v1956 = vld [vmem:[%s3 + $0xe78] sm:$0xff]
      %v1957 = vld [vmem:[%s3 + $0xe80] sm:$0xff]
      %v1958 = vld [vmem:[%s3 + $0xe88] sm:$0xff]
      %v1959 = vld [vmem:[%s3 + $0xe90] sm:$0xff]
      %v1960 = vld [vmem:[%s3 + $0xe98] sm:$0xff]
      %v1961 = vld [vmem:[%s3 + $0xea0] sm:$0xff]
      %v1962 = vld [vmem:[%s3 + $0xea8] sm:$0xff]
      %v1963 = vld [vmem:[%s3 + $0xeb0] sm:$0xff]
      %v1964 = vld [vmem:[%s3 + $0xeb8] sm:$0xff]
      %v1965 = vld [vmem:[%s3 + $0xec0] sm:$0xff]
      %v1966 = vld [vmem:[%s3 + $0xec8] sm:$0xff]
      %v1967 = vld [vmem:[%s3 + $0xed0] sm:$0xff]
      %v1968 = vld [vmem:[%s3 + $0xed8] sm:$0xff]
      %v1969 = vld [vmem:[%s3 + $0xee0] sm:$0xff]
      %v1970 = vld [vmem:[%s3 + $0xee8] sm:$0xff]
      %v1971 = vld [vmem:[%s3 + $0xef0] sm:$0xff]
      %v1972 = vld [vmem:[%s3 + $0xef8] sm:$0xff]
      %v1973 = vld [vmem:[%s3 + $0xf00] sm:$0xff]
      %v1974 = vld [vmem:[%s3 + $0xf08] sm:$0xff]
      %v1975 = vld [vmem:[%s3 + $0xf10] sm:$0xff]
      %v1976 = vld [vmem:[%s3 + $0xf18] sm:$0xff]
      %v1977 = vld [vmem:[%s3 + $0xf20] sm:$0xff]
      %v1978 = vld [vmem:[%s3 + $0xf28] sm:$0xff]
      %v1979 = vld [vmem:[%s3 + $0xf30] sm:$0xff]
      %v1980 = vld [vmem:[%s3 + $0xf38] sm:$0xff]
      %v1981 = vld [vmem:[%s3 + $0xf40] sm:$0xff]
      %v1982 = vld [vmem:[%s3 + $0xf48] sm:$0xff]
      %v1983 = vld [vmem:[%s3 + $0xf50] sm:$0xff]
      %v1984 = vld [vmem:[%s3 + $0xf58] sm:$0xff]
      %v1985 = vld [vmem:[%s3 + $0xf60] sm:$0xff]
      %v1986 = vld [vmem:[%s3 + $0xf68] sm:$0xff]
      %v1987 = vld [vmem:[%s3 + $0xf70] sm:$0xff]
      %v1988 = vld [vmem:[%s3 + $0xf78] sm:$0xff]
      %v1989 = vld [vmem:[%s3 + $0xf80] sm:$0xff]
      %v1990 = vld [vmem:[%s3 + $0xf88] sm:$0xff]
      %v1991 = vld [vmem:[%s3 + $0xf90] sm:$0xff]
      %v1992 = vld [vmem:[%s3 + $0xf98] sm:$0xff]
      %v1993 = vld [vmem:[%s3 + $0xfa0] sm:$0xff]
      %v1994 = vld [vmem:[%s3 + $0xfa8] sm:$0xff]
      %v1995 = vld [vmem:[%s3 + $0xfb0] sm:$0xff]
      %v1996 = vld [vmem:[%s3 + $0xfb8] sm:$0xff]
      %v1997 = vld [vmem:[%s3 + $0xfc0] sm:$0xff]
      %v1998 = vld [vmem:[%s3 + $0xfc8] sm:$0xff]
      %v1999 = vld [vmem:[%s3 + $0xfd0] sm:$0xff]
      %v2000 = vld [vmem:[%s3 + $0xfd8] sm:$0xff]
      %v2001 = vld [vmem:[%s3 + $0xfe0] sm:$0xff]
      %v2002 = vld [vmem:[%s3 + $0xfe8] sm:$0xff]
      %v2003 = vld [vmem:[%s3 + $0xff0] sm:$0xff]
      %v2004 = vld [vmem:[%s3 + $0xff8] sm:$0xff]
      %v2005 = vld [vmem:[%s3 + $0x1000] sm:$0xff]
      %v2006 = vld [vmem:[%s3 + $0x1008] sm:$0xff]
      %v2007 = vld [vmem:[%s3 + $0x1010] sm:$0xff]
      %v2008 = vld [vmem:[%s3 + $0x1018] sm:$0xff]
      %v2009 = vld [vmem:[%s3 + $0x1020] sm:$0xff]
      %v2010 = vld [vmem:[%s3 + $0x1028] sm:$0xff]
      %v2011 = vld [vmem:[%s3 + $0x1030] sm:$0xff]
      %v2012 = vld [vmem:[%s3 + $0x1038] sm:$0xff]
      %v2013 = vld [vmem:[%s3 + $0x1040] sm:$0xff]
      %v2014 = vld [vmem:[%s3 + $0x1048] sm:$0xff]
      %v2015 = vld [vmem:[%s3 + $0x1050] sm:$0xff]
      %v2016 = vld [vmem:[%s3 + $0x1058] sm:$0xff]
      %v2017 = vld [vmem:[%s3 + $0x1060] sm:$0xff]
      %v2018 = vld [vmem:[%s3 + $0x1068] sm:$0xff]
      %v2019 = vld [vmem:[%s3 + $0x1070] sm:$0xff]
      %v2020 = vld [vmem:[%s3 + $0x1078] sm:$0xff]
      %v2021 = vld [vmem:[%s3 + $0x1080] sm:$0xff]
      %v2022 = vld [vmem:[%s3 + $0x1088] sm:$0xff]
      %v2023 = vld [vmem:[%s3 + $0x1090] sm:$0xff]
      %v2024 = vld [vmem:[%s3 + $0x1098] sm:$0xff]
      %v2025 = vld [vmem:[%s3 + $0x10a0] sm:$0xff]
      %v2026 = vld [vmem:[%s3 + $0x10a8] sm:$0xff]
      %v2027 = vld [vmem:[%s3 + $0x10b0] sm:$0xff]
      %v2028 = vld [vmem:[%s3 + $0x10b8] sm:$0xff]
      %v2029 = vld [vmem:[%s3 + $0x10c0] sm:$0xff]
      %v2030 = vld [vmem:[%s3 + $0x10c8] sm:$0xff]
      %v2031 = vld [vmem:[%s3 + $0x10d0] sm:$0xff]
      %v2032 = vld [vmem:[%s3 + $0x10d8] sm:$0xff]
      %v2033 = vld [vmem:[%s3 + $0x10e0] sm:$0xff]
      %v2034 = vld [vmem:[%s3 + $0x10e8] sm:$0xff]
      %v2035 = vld [vmem:[%s3 + $0x10f0] sm:$0xff]
      %v2036 = vld [vmem:[%s3 + $0x10f8] sm:$0xff]
      %v2037 = vld [vmem:[%s3 + $0x1100] sm:$0xff]
      %v2038 = vld [vmem:[%s3 + $0x1108] sm:$0xff]
      %v2039 = vld [vmem:[%s3 + $0x1110] sm:$0xff]
      %v2040 = vld [vmem:[%s3 + $0x1118] sm:$0xff]
      %v2041 = vld [vmem:[%s3 + $0x1120] sm:$0xff]
      %v2042 = vld [vmem:[%s3 + $0x1128] sm:$0xff]
      %v2043 = vld [vmem:[%s3 + $0x1130] sm:$0xff]
      %v2044 = vld [vmem:[%s3 + $0x1138] sm:$0xff]
      %v2045 = vld [vmem:[%s3 + $0x1140] sm:$0xff]
      %v2046 = vld [vmem:[%s3 + $0x1148] sm:$0xff]
      %v2047 = vld [vmem:[%s3 + $0x1150] sm:$0xff]
      %v2048 = vld [vmem:[%s3 + $0x1158] sm:$0xff]
      %v2049 = vld [vmem:[%s3 + $0x1160] sm:$0xff]
      %v2050 = vld [vmem:[%s3 + $0x1168] sm:$0xff]
      %v2051 = vld [vmem:[%s3 + $0x1170] sm:$0xff]
      %v2052 = vld [vmem:[%s3 + $0x1178] sm:$0xff]
      %v2053 = vld [vmem:[%s3 + $0x1180] sm:$0xff]
      %v2054 = vld [vmem:[%s3 + $0x1188] sm:$0xff]
      %v2055 = vld [vmem:[%s3 + $0x1190] sm:$0xff]
      %v2056 = vld [vmem:[%s3 + $0x1198] sm:$0xff]
      %v2057 = vld [vmem:[%s3 + $0x11a0] sm:$0xff]
      %v2058 = vld [vmem:[%s3 + $0x11a8] sm:$0xff]
      %v2059 = vld [vmem:[%s3 + $0x11b0] sm:$0xff]
      %v2060 = vld [vmem:[%s3 + $0x11b8] sm:$0xff]
      %v2061 = vld [vmem:[%s3 + $0x11c0] sm:$0xff]
      %v2062 = vld [vmem:[%s3 + $0x11c8] sm:$0xff]
      %v2063 = vld [vmem:[%s3 + $0x11d0] sm:$0xff]
      %v2064 = vld [vmem:[%s3 + $0x11d8] sm:$0xff]
      %v2065 = vld [vmem:[%s3 + $0x11e0] sm:$0xff]
      %v2066 = vld [vmem:[%s3 + $0x11e8] sm:$0xff]
      %v2067 = vld [vmem:[%s3 + $0x11f0] sm:$0xff]
      %v2068 = vld [vmem:[%s3 + $0x11f8] sm:$0xff]
      %v2069 = vld [vmem:[%s3 + $0x1200] sm:$0xff]
      %v2070 = vld [vmem:[%s3 + $0x1208] sm:$0xff]
      %v2071 = vld [vmem:[%s3 + $0x1210] sm:$0xff]
      %v2072 = vld [vmem:[%s3 + $0x1218] sm:$0xff]
      %v2073 = vld [vmem:[%s3 + $0x1220] sm:$0xff]
      %v2074 = vld [vmem:[%s3 + $0x1228] sm:$0xff]
      %v2075 = vld [vmem:[%s3 + $0x1230] sm:$0xff]
      %v2076 = vld [vmem:[%s3 + $0x1238] sm:$0xff]
      %v2077 = vld [vmem:[%s3 + $0x1240] sm:$0xff]
      %v2078 = vld [vmem:[%s3 + $0x1248] sm:$0xff]
      %v2079 = vld [vmem:[%s3 + $0x1250] sm:$0xff]
      %v2080 = vld [vmem:[%s3 + $0x1258] sm:$0xff]
      %v2081 = vld [vmem:[%s3 + $0x1260] sm:$0xff]
      %v2082 = vld [vmem:[%s3 + $0x1268] sm:$0xff]
      %v2083 = vld [vmem:[%s3 + $0x1270] sm:$0xff]
      %v2084 = vld [vmem:[%s3 + $0x1278] sm:$0xff]
      %v2085 = vld [vmem:[%s3 + $0x1280] sm:$0xff]
      %v2086 = vld [vmem:[%s3 + $0x1288] sm:$0xff]
      %v2087 = vld [vmem:[%s3 + $0x1290] sm:$0xff]
      %v2088 = vld [vmem:[%s3 + $0x1298] sm:$0xff]
      %v2089 = vld [vmem:[%s3 + $0x12a0] sm:$0xff]
      %v2090 = vld [vmem:[%s3 + $0x12a8] sm:$0xff]
      %v2091 = vld [vmem:[%s3 + $0x12b0] sm:$0xff]
      %v2092 = vld [vmem:[%s3 + $0x12b8] sm:$0xff]
      %v2093 = vld [vmem:[%s3 + $0x12c0] sm:$0xff]
      %v2094 = vld [vmem:[%s3 + $0x12c8] sm:$0xff]
      %v2095 = vld [vmem:[%s3 + $0x12d0] sm:$0xff]
      %v2096 = vld [vmem:[%s3 + $0x12d8] sm:$0xff]
      %v2097 = vld [vmem:[%s3 + $0x12e0] sm:$0xff]
      %v2098 = vld [vmem:[%s3 + $0x12e8] sm:$0xff]
      %v2099 = vld [vmem:[%s3 + $0x12f0] sm:$0xff]
      %v2100 = vld [vmem:[%s3 + $0x12f8] sm:$0xff]
      %v2101 = vld [vmem:[%s3 + $0x1300] sm:$0xff]
      %v2102 = vld [vmem:[%s3 + $0x1308] sm:$0xff]
      %v2103 = vld [vmem:[%s3 + $0x1310] sm:$0xff]
      %v2104 = vld [vmem:[%s3 + $0x1318] sm:$0xff]
      %v2105 = vld [vmem:[%s3 + $0x1320] sm:$0xff]
      %v2106 = vld [vmem:[%s3 + $0x1328] sm:$0xff]
      %v2107 = vld [vmem:[%s3 + $0x1330] sm:$0xff]
      %v2108 = vld [vmem:[%s3 + $0x1338] sm:$0xff]
      %v2109 = vld [vmem:[%s3 + $0x1340] sm:$0xff]
      %v2110 = vld [vmem:[%s3 + $0x1348] sm:$0xff]
      %v2111 = vld [vmem:[%s3 + $0x1350] sm:$0xff]
      %v2112 = vld [vmem:[%s3 + $0x1358] sm:$0xff]
      %v2113 = vld [vmem:[%s3 + $0x1360] sm:$0xff]
      %v2114 = vld [vmem:[%s3 + $0x1368] sm:$0xff]
      %v2115 = vld [vmem:[%s3 + $0x1370] sm:$0xff]
      %v2116 = vld [vmem:[%s3 + $0x1378] sm:$0xff]
      %v2117 = vld [vmem:[%s3 + $0x1380] sm:$0xff]
      %v2118 = vld [vmem:[%s3 + $0x1388] sm:$0xff]
      %v2119 = vld [vmem:[%s3 + $0x1390] sm:$0xff]
      %v2120 = vld [vmem:[%s3 + $0x1398] sm:$0xff]
      %v2121 = vld [vmem:[%s3 + $0x13a0] sm:$0xff]
      %v2122 = vld [vmem:[%s3 + $0x13a8] sm:$0xff]
      %v2123 = vld [vmem:[%s3 + $0x13b0] sm:$0xff]
      %v2124 = vld [vmem:[%s3 + $0x13b8] sm:$0xff]
      %v2125 = vld [vmem:[%s3 + $0x13c0] sm:$0xff]
      %v2126 = vld [vmem:[%s3 + $0x13c8] sm:$0xff]
      %v2127 = vld [vmem:[%s3 + $0x13d0] sm:$0xff]
      %v2128 = vld [vmem:[%s3 + $0x13d8] sm:$0xff]
      %v2129 = vld [vmem:[%s3 + $0x13e0] sm:$0xff]
      %v2130 = vld [vmem:[%s3 + $0x13e8] sm:$0xff]
      %v2131 = vld [vmem:[%s3 + $0x13f0] sm:$0xff]
      %v2132 = vld [vmem:[%s3 + $0x13f8] sm:$0xff]
      %v2133 = vld [vmem:[%s3 + $0x1400] sm:$0xff]
      %v2134 = vld [vmem:[%s3 + $0x1408] sm:$0xff]
      %v2135 = vld [vmem:[%s3 + $0x1410] sm:$0xff]
      %v2136 = vld [vmem:[%s3 + $0x1418] sm:$0xff]
      %v2137 = vld [vmem:[%s3 + $0x1420] sm:$0xff]
      %v2138 = vld [vmem:[%s3 + $0x1428] sm:$0xff]
      %v2139 = vld [vmem:[%s3 + $0x1430] sm:$0xff]
      %v2140 = vld [vmem:[%s3 + $0x1438] sm:$0xff]
      %v2141 = vld [vmem:[%s3 + $0x1440] sm:$0xff]
      %v2142 = vld [vmem:[%s3 + $0x1448] sm:$0xff]
      %v2143 = vld [vmem:[%s3 + $0x1450] sm:$0xff]
      %v2144 = vld [vmem:[%s3 + $0x1458] sm:$0xff]
      %v2145 = vld [vmem:[%s3 + $0x1460] sm:$0xff]
      %v2146 = vld [vmem:[%s3 + $0x1468] sm:$0xff]
      %v2147 = vld [vmem:[%s3 + $0x1470] sm:$0xff]
      %v2148 = vld [vmem:[%s3 + $0x1478] sm:$0xff]
      %v2149 = vld [vmem:[%s3 + $0x1480] sm:$0xff]
      %v2150 = vld [vmem:[%s3 + $0x1488] sm:$0xff]
      %v2151 = vld [vmem:[%s3 + $0x1490] sm:$0xff]
      %v2152 = vld [vmem:[%s3 + $0x1498] sm:$0xff]
      %v2153 = vld [vmem:[%s3 + $0x14a0] sm:$0xff]
      %v2154 = vld [vmem:[%s3 + $0x14a8] sm:$0xff]
      %v2155 = vld [vmem:[%s3 + $0x14b0] sm:$0xff]
      %v2156 = vld [vmem:[%s3 + $0x14b8] sm:$0xff]
      %v2157 = vld [vmem:[%s3 + $0x14c0] sm:$0xff]
      %v2158 = vld [vmem:[%s3 + $0x14c8] sm:$0xff]
      %v2159 = vld [vmem:[%s3 + $0x14d0] sm:$0xff]
      %v2160 = vld [vmem:[%s3 + $0x14d8] sm:$0xff]
      %v2161 = vld [vmem:[%s3 + $0x14e0] sm:$0xff]
      %v2162 = vld [vmem:[%s3 + $0x14e8] sm:$0xff]
      %v2163 = vld [vmem:[%s3 + $0x14f0] sm:$0xff]
      %v2164 = vld [vmem:[%s3 + $0x14f8] sm:$0xff]
      %v2165 = vld [vmem:[%s3 + $0x1500] sm:$0xff]
      %v2166 = vld [vmem:[%s3 + $0x1508] sm:$0xff]
      %v2167 = vld [vmem:[%s3 + $0x1510] sm:$0xff]
      %v2168 = vld [vmem:[%s3 + $0x1518] sm:$0xff]
      %v2169 = vld [vmem:[%s3 + $0x1520] sm:$0xff]
      %v2170 = vld [vmem:[%s3 + $0x1528] sm:$0xff]
      %v2171 = vld [vmem:[%s3 + $0x1530] sm:$0xff]
      %v2172 = vld [vmem:[%s3 + $0x1538] sm:$0xff]
      %v2173 = vld [vmem:[%s3 + $0x1540] sm:$0xff]
      %v2174 = vld [vmem:[%s3 + $0x1548] sm:$0xff]
      %v2175 = vld [vmem:[%s3 + $0x1550] sm:$0xff]
      %v2176 = vld [vmem:[%s3 + $0x1558] sm:$0xff]
      %v2177 = vld [vmem:[%s3 + $0x1560] sm:$0xff]
      %v2178 = vld [vmem:[%s3 + $0x1568] sm:$0xff]
      %v2179 = vld [vmem:[%s3 + $0x1570] sm:$0xff]
      %v2180 = vld [vmem:[%s3 + $0x1578] sm:$0xff]
      %v2181 = vld [vmem:[%s3 + $0x1580] sm:$0xff]
      %v2182 = vld [vmem:[%s3 + $0x1588] sm:$0xff]
      %v2183 = vld [vmem:[%s3 + $0x1590] sm:$0xff]
      %v2184 = vld [vmem:[%s3 + $0x1598] sm:$0xff]
      %v2185 = vld [vmem:[%s3 + $0x15a0] sm:$0xff]
      %v2186 = vld [vmem:[%s3 + $0x15a8] sm:$0xff]
      %v2187 = vld [vmem:[%s3 + $0x15b0] sm:$0xff]
      %v2188 = vld [vmem:[%s3 + $0x15b8] sm:$0xff]
      %v2189 = vld [vmem:[%s3 + $0x15c0] sm:$0xff]
      %v2190 = vld [vmem:[%s3 + $0x15c8] sm:$0xff]
      %v2191 = vld [vmem:[%s3 + $0x15d0] sm:$0xff]
      %v2192 = vld [vmem:[%s3 + $0x15d8] sm:$0xff]
      %v2193 = vld [vmem:[%s3 + $0x15e0] sm:$0xff]
      %v2194 = vld [vmem:[%s3 + $0x15e8] sm:$0xff]
      %v2195 = vld [vmem:[%s3 + $0x15f0] sm:$0xff]
      %v2196 = vld [vmem:[%s3 + $0x15f8] sm:$0xff]
      %v2197 = vld [vmem:[%s3 + $0x1600] sm:$0xff]
      %v2198 = vld [vmem:[%s3 + $0x1608] sm:$0xff]
      %v2199 = vld [vmem:[%s3 + $0x1610] sm:$0xff]
      %v2200 = vld [vmem:[%s3 + $0x1618] sm:$0xff]
      %v2201 = vld [vmem:[%s3 + $0x1620] sm:$0xff]
      %v2202 = vld [vmem:[%s3 + $0x1628] sm:$0xff]
      %v2203 = vld [vmem:[%s3 + $0x1630] sm:$0xff]
      %v2204 = vld [vmem:[%s3 + $0x1638] sm:$0xff]
      %v2205 = vld [vmem:[%s3 + $0x1640] sm:$0xff]
      %v2206 = vld [vmem:[%s3 + $0x1648] sm:$0xff]
      %v2207 = vld [vmem:[%s3 + $0x1650] sm:$0xff]
      %v2208 = vld [vmem:[%s3 + $0x1658] sm:$0xff]
      %v2209 = vld [vmem:[%s3 + $0x1660] sm:$0xff]
      %v2210 = vld [vmem:[%s3 + $0x1668] sm:$0xff]
      %v2211 = vld [vmem:[%s3 + $0x1670] sm:$0xff]
      %v2212 = vld [vmem:[%s3 + $0x1678] sm:$0xff]
      %v2213 = vld [vmem:[%s3 + $0x1680] sm:$0xff]
      %v2214 = vld [vmem:[%s3 + $0x1688] sm:$0xff]
      %v2215 = vld [vmem:[%s3 + $0x1690] sm:$0xff]
      %v2216 = vld [vmem:[%s3 + $0x1698] sm:$0xff]
      %v2217 = vld [vmem:[%s3 + $0x16a0] sm:$0xff]
      %v2218 = vld [vmem:[%s3 + $0x16a8] sm:$0xff]
      %v2219 = vld [vmem:[%s3 + $0x16b0] sm:$0xff]
      %v2220 = vld [vmem:[%s3 + $0x16b8] sm:$0xff]
      %v2221 = vld [vmem:[%s3 + $0x16c0] sm:$0xff]
      %v2222 = vld [vmem:[%s3 + $0x16c8] sm:$0xff]
      %v2223 = vld [vmem:[%s3 + $0x16d0] sm:$0xff]
      %v2224 = vld [vmem:[%s3 + $0x16d8] sm:$0xff]
      %v2225 = vld [vmem:[%s3 + $0x16e0] sm:$0xff]
      %v2226 = vld [vmem:[%s3 + $0x16e8] sm:$0xff]
      %v2227 = vld [vmem:[%s3 + $0x16f0] sm:$0xff]
      %v2228 = vld [vmem:[%s3 + $0x16f8] sm:$0xff]
      %v2229 = vld [vmem:[%s3 + $0x1700] sm:$0xff]
      %v2230 = vld [vmem:[%s3 + $0x1708] sm:$0xff]
      %v2231 = vld [vmem:[%s3 + $0x1710] sm:$0xff]
      %v2232 = vld [vmem:[%s3 + $0x1718] sm:$0xff]
      %v2233 = vld [vmem:[%s3 + $0x1720] sm:$0xff]
      %v2234 = vld [vmem:[%s3 + $0x1728] sm:$0xff]
      %v2235 = vld [vmem:[%s3 + $0x1730] sm:$0xff]
      %v2236 = vld [vmem:[%s3 + $0x1738] sm:$0xff]
      %v2237 = vld [vmem:[%s3 + $0x1740] sm:$0xff]
      %v2238 = vld [vmem:[%s3 + $0x1748] sm:$0xff]
      %v2239 = vld [vmem:[%s3 + $0x1750] sm:$0xff]
      %v2240 = vld [vmem:[%s3 + $0x1758] sm:$0xff]
      %v2241 = vld [vmem:[%s3 + $0x1760] sm:$0xff]
      %v2242 = vld [vmem:[%s3 + $0x1768] sm:$0xff]
      %v2243 = vld [vmem:[%s3 + $0x1770] sm:$0xff]
      %v2244 = vld [vmem:[%s3 + $0x1778] sm:$0xff]
      %v2245 = vld [vmem:[%s3 + $0x1780] sm:$0xff]
      %v2246 = vld [vmem:[%s3 + $0x1788] sm:$0xff]
      %v2247 = vld [vmem:[%s3 + $0x1790] sm:$0xff]
      %v2248 = vld [vmem:[%s3 + $0x1798] sm:$0xff]
      %v2249 = vld [vmem:[%s3 + $0x17a0] sm:$0xff]
      %v2250 = vld [vmem:[%s3 + $0x17a8] sm:$0xff]
      %v2251 = vld [vmem:[%s3 + $0x17b0] sm:$0xff]
      %v2252 = vld [vmem:[%s3 + $0x17b8] sm:$0xff]
      %v2253 = vld [vmem:[%s3 + $0x17c0] sm:$0xff]
      %v2254 = vld [vmem:[%s3 + $0x17c8] sm:$0xff]
      %v2255 = vld [vmem:[%s3 + $0x17d0] sm:$0xff]
      %v2256 = vld [vmem:[%s3 + $0x17d8] sm:$0xff]
      %v2257 = vld [vmem:[%s3 + $0x17e0] sm:$0xff]
      %v2258 = vld [vmem:[%s3 + $0x17e8] sm:$0xff]
      %v2259 = vld [vmem:[%s3 + $0x17f0] sm:$0xff]
      %v2260 = vld [vmem:[%s3 + $0x17f8] sm:$0xff]
      %v2261 = vld [vmem:[%s3 + $0x1800] sm:$0xff]
      %v2262 = vld [vmem:[%s3 + $0x1808] sm:$0xff]
      %v2263 = vld [vmem:[%s3 + $0x1810] sm:$0xff]
      %v2264 = vld [vmem:[%s3 + $0x1818] sm:$0xff]
      %v2265 = vld [vmem:[%s3 + $0x1820] sm:$0xff]
      %v2266 = vld [vmem:[%s3 + $0x1828] sm:$0xff]
      %v2267 = vld [vmem:[%s3 + $0x1830] sm:$0xff]
      %v2268 = vld [vmem:[%s3 + $0x1838] sm:$0xff]
      %v2269 = vld [vmem:[%s3 + $0x1840] sm:$0xff]
      %v2270 = vld [vmem:[%s3 + $0x1848] sm:$0xff]
      %v2271 = vld [vmem:[%s3 + $0x1850] sm:$0xff]
      %v2272 = vld [vmem:[%s3 + $0x1858] sm:$0xff]
      %v2273 = vld [vmem:[%s3 + $0x1860] sm:$0xff]
      %v2274 = vld [vmem:[%s3 + $0x1868] sm:$0xff]
      %v2275 = vld [vmem:[%s3 + $0x1870] sm:$0xff]
      %v2276 = vld [vmem:[%s3 + $0x1878] sm:$0xff]
      %v2277 = vld [vmem:[%s3 + $0x1880] sm:$0xff]
      %v2278 = vld [vmem:[%s3 + $0x1888] sm:$0xff]
      %v2279 = vld [vmem:[%s3 + $0x1890] sm:$0xff]
      %v2280 = vld [vmem:[%s3 + $0x1898] sm:$0xff]
      %v2281 = vld [vmem:[%s3 + $0x18a0] sm:$0xff]
      %v2282 = vld [vmem:[%s3 + $0x18a8] sm:$0xff]
      %v2283 = vld [vmem:[%s3 + $0x18b0] sm:$0xff]
      %v2284 = vld [vmem:[%s3 + $0x18b8] sm:$0xff]
      %v2285 = vld [vmem:[%s3 + $0x18c0] sm:$0xff]
      %v2286 = vld [vmem:[%s3 + $0x18c8] sm:$0xff]
      %v2287 = vld [vmem:[%s3 + $0x18d0] sm:$0xff]
      %v2288 = vld [vmem:[%s3 + $0x18d8] sm:$0xff]
      %v2289 = vld [vmem:[%s3 + $0x18e0] sm:$0xff]
      %v2290 = vld [vmem:[%s3 + $0x18e8] sm:$0xff]
      %v2291 = vld [vmem:[%s3 + $0x18f0] sm:$0xff]
      %v2292 = vld [vmem:[%s3 + $0x18f8] sm:$0xff]
      %v2293 = vld [vmem:[%s3 + $0x1900] sm:$0xff]
      %v2294 = vld [vmem:[%s3 + $0x1908] sm:$0xff]
      %v2295 = vld [vmem:[%s3 + $0x1910] sm:$0xff]
      %v2296 = vld [vmem:[%s3 + $0x1918] sm:$0xff]
      %v2297 = vld [vmem:[%s3 + $0x1920] sm:$0xff]
      %v2298 = vld [vmem:[%s3 + $0x1928] sm:$0xff]
      %v2299 = vld [vmem:[%s3 + $0x1930] sm:$0xff]
      %v2300 = vld [vmem:[%s3 + $0x1938] sm:$0xff]
      %v2301 = vld [vmem:[%s3 + $0x1940] sm:$0xff]
      %v2302 = vld [vmem:[%s3 + $0x1948] sm:$0xff]
      %v2303 = vld [vmem:[%s3 + $0x1950] sm:$0xff]
      %v2304 = vld [vmem:[%s3 + $0x1958] sm:$0xff]
      %v2305 = vld [vmem:[%s3 + $0x1960] sm:$0xff]
      %v2306 = vld [vmem:[%s3 + $0x1968] sm:$0xff]
      %v2307 = vld [vmem:[%s3 + $0x1970] sm:$0xff]
      %v2308 = vld [vmem:[%s3 + $0x1978] sm:$0xff]
      %v2309 = vld [vmem:[%s3 + $0x1980] sm:$0xff]
      %v2310 = vld [vmem:[%s3 + $0x1988] sm:$0xff]
      %v2311 = vld [vmem:[%s3 + $0x1990] sm:$0xff]
      %v2312 = vld [vmem:[%s3 + $0x1998] sm:$0xff]
      %v2313 = vld [vmem:[%s3 + $0x19a0] sm:$0xff]
      %v2314 = vld [vmem:[%s3 + $0x19a8] sm:$0xff]
      %v2315 = vld [vmem:[%s3 + $0x19b0] sm:$0xff]
      %v2316 = vld [vmem:[%s3 + $0x19b8] sm:$0xff]
      %v2317 = vld [vmem:[%s3 + $0x19c0] sm:$0xff]
      %v2318 = vld [vmem:[%s3 + $0x19c8] sm:$0xff]
      %v2319 = vld [vmem:[%s3 + $0x19d0] sm:$0xff]
      %v2320 = vld [vmem:[%s3 + $0x19d8] sm:$0xff]
      %v2321 = vld [vmem:[%s3 + $0x19e0] sm:$0xff]
      %v2322 = vld [vmem:[%s3 + $0x19e8] sm:$0xff]
      %v2323 = vld [vmem:[%s3 + $0x19f0] sm:$0xff]
      %v2324 = vld [vmem:[%s3 + $0x19f8] sm:$0xff]
      %v2325 = vld [vmem:[%s3 + $0x1a00] sm:$0xff]
      %v2326 = vld [vmem:[%s3 + $0x1a08] sm:$0xff]
      %v2327 = vld [vmem:[%s3 + $0x1a10] sm:$0xff]
      %v2328 = vld [vmem:[%s3 + $0x1a18] sm:$0xff]
      %v2329 = vld [vmem:[%s3 + $0x1a20] sm:$0xff]
      %v2330 = vld [vmem:[%s3 + $0x1a28] sm:$0xff]
      %v2331 = vld [vmem:[%s3 + $0x1a30] sm:$0xff]
      %v2332 = vld [vmem:[%s3 + $0x1a38] sm:$0xff]
      %v2333 = vld [vmem:[%s3 + $0x1a40] sm:$0xff]
      %v2334 = vld [vmem:[%s3 + $0x1a48] sm:$0xff]
      %v2335 = vld [vmem:[%s3 + $0x1a50] sm:$0xff]
      %v2336 = vld [vmem:[%s3 + $0x1a58] sm:$0xff]
      %v2337 = vld [vmem:[%s3 + $0x1a60] sm:$0xff]
      %v2338 = vld [vmem:[%s3 + $0x1a68] sm:$0xff]
      %v2339 = vld [vmem:[%s3 + $0x1a70] sm:$0xff]
      %v2340 = vld [vmem:[%s3 + $0x1a78] sm:$0xff]
      %v2341 = vld [vmem:[%s3 + $0x1a80] sm:$0xff]
      %v2342 = vld [vmem:[%s3 + $0x1a88] sm:$0xff]
      %v2343 = vld [vmem:[%s3 + $0x1a90] sm:$0xff]
      %v2344 = vld [vmem:[%s3 + $0x1a98] sm:$0xff]
      %v2345 = vld [vmem:[%s3 + $0x1aa0] sm:$0xff]
      %v2346 = vld [vmem:[%s3 + $0x1aa8] sm:$0xff]
      %v2347 = vld [vmem:[%s3 + $0x1ab0] sm:$0xff]
      %v2348 = vld [vmem:[%s3 + $0x1ab8] sm:$0xff]
      %v2349 = vld [vmem:[%s3 + $0x1ac0] sm:$0xff]
      %v2350 = vld [vmem:[%s3 + $0x1ac8] sm:$0xff]
      %v2351 = vld [vmem:[%s3 + $0x1ad0] sm:$0xff]
      %v2352 = vld [vmem:[%s3 + $0x1ad8] sm:$0xff]
      %v2353 = vld [vmem:[%s3 + $0x1ae0] sm:$0xff]
      %v2354 = vld [vmem:[%s3 + $0x1ae8] sm:$0xff]
      %v2355 = vld [vmem:[%s3 + $0x1af0] sm:$0xff]
      %v2356 = vld [vmem:[%s3 + $0x1af8] sm:$0xff]
      %v2357 = vld [vmem:[%s3 + $0x1b00] sm:$0xff]
      %v2358 = vld [vmem:[%s3 + $0x1b08] sm:$0xff]
      %v2359 = vld [vmem:[%s3 + $0x1b10] sm:$0xff]
      %v2360 = vld [vmem:[%s3 + $0x1b18] sm:$0xff]
      %v2361 = vld [vmem:[%s3 + $0x1b20] sm:$0xff]
      %v2362 = vld [vmem:[%s3 + $0x1b28] sm:$0xff]
      %v2363 = vld [vmem:[%s3 + $0x1b30] sm:$0xff]
      %v2364 = vld [vmem:[%s3 + $0x1b38] sm:$0xff]
      %v2365 = vld [vmem:[%s3 + $0x1b40] sm:$0xff]
      %v2366 = vld [vmem:[%s3 + $0x1b48] sm:$0xff]
      %v2367 = vld [vmem:[%s3 + $0x1b50] sm:$0xff]
      %v2368 = vld [vmem:[%s3 + $0x1b58] sm:$0xff]
      %v2369 = vld [vmem:[%s3 + $0x1b60] sm:$0xff]
      %v2370 = vld [vmem:[%s3 + $0x1b68] sm:$0xff]
      %v2371 = vld [vmem:[%s3 + $0x1b70] sm:$0xff]
      %v2372 = vld [vmem:[%s3 + $0x1b78] sm:$0xff]
      %v2373 = vld [vmem:[%s3 + $0x1b80] sm:$0xff]
      %v2374 = vld [vmem:[%s3 + $0x1b88] sm:$0xff]
      %v2375 = vld [vmem:[%s3 + $0x1b90] sm:$0xff]
      %v2376 = vld [vmem:[%s3 + $0x1b98] sm:$0xff]
      %v2377 = vld [vmem:[%s3 + $0x1ba0] sm:$0xff]
      %v2378 = vld [vmem:[%s3 + $0x1ba8] sm:$0xff]
      %v2379 = vld [vmem:[%s3 + $0x1bb0] sm:$0xff]
      %v2380 = vld [vmem:[%s3 + $0x1bb8] sm:$0xff]
      %v2381 = vld [vmem:[%s3 + $0x1bc0] sm:$0xff]
      %v2382 = vld [vmem:[%s3 + $0x1bc8] sm:$0xff]
      %v2383 = vld [vmem:[%s3 + $0x1bd0] sm:$0xff]
      %v2384 = vld [vmem:[%s3 + $0x1bd8] sm:$0xff]
      %v2385 = vld [vmem:[%s3 + $0x1be0] sm:$0xff]
      %v2386 = vld [vmem:[%s3 + $0x1be8] sm:$0xff]
      %v2387 = vld [vmem:[%s3 + $0x1bf0] sm:$0xff]
      %v2388 = vld [vmem:[%s3 + $0x1bf8] sm:$0xff]
      %v2389 = vld [vmem:[%s3 + $0x1c00] sm:$0xff]
      %v2390 = vld [vmem:[%s3 + $0x1c08] sm:$0xff]
      %v2391 = vld [vmem:[%s3 + $0x1c10] sm:$0xff]
      %v2392 = vld [vmem:[%s3 + $0x1c18] sm:$0xff]
      %v2393 = vld [vmem:[%s3 + $0x1c20] sm:$0xff]
      %v2394 = vld [vmem:[%s3 + $0x1c28] sm:$0xff]
      %v2395 = vld [vmem:[%s3 + $0x1c30] sm:$0xff]
      %v2396 = vld [vmem:[%s3 + $0x1c38] sm:$0xff]
      %v2397 = vld [vmem:[%s3 + $0x1c40] sm:$0xff]
      %v2398 = vld [vmem:[%s3 + $0x1c48] sm:$0xff]
      %v2399 = vld [vmem:[%s3 + $0x1c50] sm:$0xff]
      %v2400 = vld [vmem:[%s3 + $0x1c58] sm:$0xff]
      %v2401 = vld [vmem:[%s3 + $0x1c60] sm:$0xff]
      %v2402 = vld [vmem:[%s3 + $0x1c68] sm:$0xff]
      %v2403 = vld [vmem:[%s3 + $0x1c70] sm:$0xff]
      %v2404 = vld [vmem:[%s3 + $0x1c78] sm:$0xff]
      %v2405 = vld [vmem:[%s3 + $0x1c80] sm:$0xff]
      %v2406 = vld [vmem:[%s3 + $0x1c88] sm:$0xff]
      %v2407 = vld [vmem:[%s3 + $0x1c90] sm:$0xff]
      %v2408 = vld [vmem:[%s3 + $0x1c98] sm:$0xff]
      %v2409 = vld [vmem:[%s3 + $0x1ca0] sm:$0xff]
      %v2410 = vld [vmem:[%s3 + $0x1ca8] sm:$0xff]
      %v2411 = vld [vmem:[%s3 + $0x1cb0] sm:$0xff]
      %v2412 = vld [vmem:[%s3 + $0x1cb8] sm:$0xff]
      %v2413 = vld [vmem:[%s3 + $0x1cc0] sm:$0xff]
      %v2414 = vld [vmem:[%s3 + $0x1cc8] sm:$0xff]
      %v2415 = vld [vmem:[%s3 + $0x1cd0] sm:$0xff]
      %v2416 = vld [vmem:[%s3 + $0x1cd8] sm:$0xff]
      %v2417 = vld [vmem:[%s3 + $0x1ce0] sm:$0xff]
      %v2418 = vld [vmem:[%s3 + $0x1ce8] sm:$0xff]
      %v2419 = vld [vmem:[%s3 + $0x1cf0] sm:$0xff]
      %v2420 = vld [vmem:[%s3 + $0x1cf8] sm:$0xff]
      %v2421 = vld [vmem:[%s3 + $0x1d00] sm:$0xff]
      %v2422 = vld [vmem:[%s3 + $0x1d08] sm:$0xff]
      %v2423 = vld [vmem:[%s3 + $0x1d10] sm:$0xff]
      %v2424 = vld [vmem:[%s3 + $0x1d18] sm:$0xff]
      %v2425 = vld [vmem:[%s3 + $0x1d20] sm:$0xff]
      %v2426 = vld [vmem:[%s3 + $0x1d28] sm:$0xff]
      %v2427 = vld [vmem:[%s3 + $0x1d30] sm:$0xff]
      %v2428 = vld [vmem:[%s3 + $0x1d38] sm:$0xff]
      %v2429 = vld [vmem:[%s3 + $0x1d40] sm:$0xff]
      %v2430 = vld [vmem:[%s3 + $0x1d48] sm:$0xff]
      %v2431 = vld [vmem:[%s3 + $0x1d50] sm:$0xff]
      %v2432 = vld [vmem:[%s3 + $0x1d58] sm:$0xff]
      %v2433 = vld [vmem:[%s3 + $0x1d60] sm:$0xff]
      %v2434 = vld [vmem:[%s3 + $0x1d68] sm:$0xff]
      %v2435 = vld [vmem:[%s3 + $0x1d70] sm:$0xff]
      %v2436 = vld [vmem:[%s3 + $0x1d78] sm:$0xff]
      %v2437 = vld [vmem:[%s3 + $0x1d80] sm:$0xff]
      %v2438 = vld [vmem:[%s3 + $0x1d88] sm:$0xff]
      %v2439 = vld [vmem:[%s3 + $0x1d90] sm:$0xff]
      %v2440 = vld [vmem:[%s3 + $0x1d98] sm:$0xff]
      %v2441 = vld [vmem:[%s3 + $0x1da0] sm:$0xff]
      %v2442 = vld [vmem:[%s3 + $0x1da8] sm:$0xff]
      %v2443 = vld [vmem:[%s3 + $0x1db0] sm:$0xff]
      %v2444 = vld [vmem:[%s3 + $0x1db8] sm:$0xff]
      %v2445 = vld [vmem:[%s3 + $0x1dc0] sm:$0xff]
      %v2446 = vld [vmem:[%s3 + $0x1dc8] sm:$0xff]
      %v2447 = vld [vmem:[%s3 + $0x1dd0] sm:$0xff]
      %v2448 = vld [vmem:[%s3 + $0x1dd8] sm:$0xff]
      %v2449 = vld [vmem:[%s3 + $0x1de0] sm:$0xff]
      %v2450 = vld [vmem:[%s3 + $0x1de8] sm:$0xff]
      %v2451 = vld [vmem:[%s3 + $0x1df0] sm:$0xff]
      %v2452 = vld [vmem:[%s3 + $0x1df8] sm:$0xff]
      %v2453 = vld [vmem:[%s3 + $0x1e00] sm:$0xff]
      %v2454 = vld [vmem:[%s3 + $0x1e08] sm:$0xff]
      %v2455 = vld [vmem:[%s3 + $0x1e10] sm:$0xff]
      %v2456 = vld [vmem:[%s3 + $0x1e18] sm:$0xff]
      %v2457 = vld [vmem:[%s3 + $0x1e20] sm:$0xff]
      %v2458 = vld [vmem:[%s3 + $0x1e28] sm:$0xff]
      %v2459 = vld [vmem:[%s3 + $0x1e30] sm:$0xff]
      %v2460 = vld [vmem:[%s3 + $0x1e38] sm:$0xff]
      %v2461 = vld [vmem:[%s3 + $0x1e40] sm:$0xff]
      %v2462 = vld [vmem:[%s3 + $0x1e48] sm:$0xff]
      %v2463 = vld [vmem:[%s3 + $0x1e50] sm:$0xff]
      %v2464 = vld [vmem:[%s3 + $0x1e58] sm:$0xff]
      %v2465 = vld [vmem:[%s3 + $0x1e60] sm:$0xff]
      %v2466 = vld [vmem:[%s3 + $0x1e68] sm:$0xff]
      %v2467 = vld [vmem:[%s3 + $0x1e70] sm:$0xff]
      %v2468 = vld [vmem:[%s3 + $0x1e78] sm:$0xff]
      %v2469 = vld [vmem:[%s3 + $0x1e80] sm:$0xff]
      %v2470 = vld [vmem:[%s3 + $0x1e88] sm:$0xff]
      %v2471 = vld [vmem:[%s3 + $0x1e90] sm:$0xff]
      %v2472 = vld [vmem:[%s3 + $0x1e98] sm:$0xff]
      %v2473 = vld [vmem:[%s3 + $0x1ea0] sm:$0xff]
      %v2474 = vld [vmem:[%s3 + $0x1ea8] sm:$0xff]
      %v2475 = vld [vmem:[%s3 + $0x1eb0] sm:$0xff]
      %v2476 = vld [vmem:[%s3 + $0x1eb8] sm:$0xff]
      %v2477 = vld [vmem:[%s3 + $0x1ec0] sm:$0xff]
      %v2478 = vld [vmem:[%s3 + $0x1ec8] sm:$0xff]
      %v2479 = vld [vmem:[%s3 + $0x1ed0] sm:$0xff]
      %v2480 = vld [vmem:[%s3 + $0x1ed8] sm:$0xff]
      %v2481 = vld [vmem:[%s3 + $0x1ee0] sm:$0xff]
      %v2482 = vld [vmem:[%s3 + $0x1ee8] sm:$0xff]
      %v2483 = vld [vmem:[%s3 + $0x1ef0] sm:$0xff]
      %v2484 = vld [vmem:[%s3 + $0x1ef8] sm:$0xff]
      %v2485 = vld [vmem:[%s3 + $0x1f00] sm:$0xff]
      %v2486 = vld [vmem:[%s3 + $0x1f08] sm:$0xff]
      %v2487 = vld [vmem:[%s3 + $0x1f10] sm:$0xff]
      %v2488 = vld [vmem:[%s3 + $0x1f18] sm:$0xff]
      %v2489 = vld [vmem:[%s3 + $0x1f20] sm:$0xff]
      %v2490 = vld [vmem:[%s3 + $0x1f28] sm:$0xff]
      %v2491 = vld [vmem:[%s3 + $0x1f30] sm:$0xff]
      %v2492 = vld [vmem:[%s3 + $0x1f38] sm:$0xff]
      %v2493 = vld [vmem:[%s3 + $0x1f40] sm:$0xff]
      %v2494 = vld [vmem:[%s3 + $0x1f48] sm:$0xff]
      %v2495 = vld [vmem:[%s3 + $0x1f50] sm:$0xff]
      %v2496 = vld [vmem:[%s3 + $0x1f58] sm:$0xff]
      %v2497 = vld [vmem:[%s3 + $0x1f60] sm:$0xff]
      %v2498 = vld [vmem:[%s3 + $0x1f68] sm:$0xff]
      %v2499 = vld [vmem:[%s3 + $0x1f70] sm:$0xff]
      %v2500 = vld [vmem:[%s3 + $0x1f78] sm:$0xff]
      %v2501 = vld [vmem:[%s3 + $0x1f80] sm:$0xff]
      %v2502 = vld [vmem:[%s3 + $0x1f88] sm:$0xff]
      %v2503 = vld [vmem:[%s3 + $0x1f90] sm:$0xff]
      %v2504 = vld [vmem:[%s3 + $0x1f98] sm:$0xff]
      %v2505 = vld [vmem:[%s3 + $0x1fa0] sm:$0xff]
      %v2506 = vld [vmem:[%s3 + $0x1fa8] sm:$0xff]
      %v2507 = vld [vmem:[%s3 + $0x1fb0] sm:$0xff]
      %v2508 = vld [vmem:[%s3 + $0x1fb8] sm:$0xff]
      %v2509 = vld [vmem:[%s3 + $0x1fc0] sm:$0xff]
      %v2510 = vld [vmem:[%s3 + $0x1fc8] sm:$0xff]
      %v2511 = vld [vmem:[%s3 + $0x1fd0] sm:$0xff]
      %v2512 = vld [vmem:[%s3 + $0x1fd8] sm:$0xff]
      %v2513 = vld [vmem:[%s3 + $0x1fe0] sm:$0xff]
      %v2514 = vld [vmem:[%s3 + $0x1fe8] sm:$0xff]
      %v2515 = vld [vmem:[%s3 + $0x1ff0] sm:$0xff]
      %v2516 = vld [vmem:[%s3 + $0x1ff8] sm:$0xff]
      %v2517 = vld [vmem:[%s4] sm:$0xff]
      %v2519 = vlaneseq
      %v2520 = vshrl.u32 %v2519, 7
      %v2521 = vsub.s32 0, %v2520
      %v2522 = vrot.slane %v2517, %v2521
      %v2523 = vlaneseq
      %v2524 = vshrl.u32 %v2523, 7
      %v2525 = vsub.s32 1, %v2524
      %v2526 = vrot.slane %v2517, %v2525
      %v2527 = vlaneseq
      %v2528 = vshrl.u32 %v2527, 7
      %v2529 = vsub.s32 2, %v2528
      %v2530 = vrot.slane %v2517, %v2529
      %v2531 = vlaneseq
      %v2532 = vshrl.u32 %v2531, 7
      %v2533 = vsub.s32 3, %v2532
      %v2534 = vrot.slane %v2517, %v2533
      %v2535 = vlaneseq
      %v2536 = vshrl.u32 %v2535, 7
      %v2537 = vsub.s32 4, %v2536
      %v2538 = vrot.slane %v2517, %v2537
      %v2539 = vlaneseq
      %v2540 = vshrl.u32 %v2539, 7
      %v2541 = vsub.s32 5, %v2540
      %v2542 = vrot.slane %v2517, %v2541
      %v2543 = vlaneseq
      %v2544 = vshrl.u32 %v2543, 7
      %v2545 = vsub.s32 6, %v2544
      %v2546 = vrot.slane %v2517, %v2545
      %v2547 = vlaneseq
      %v2548 = vshrl.u32 %v2547, 7
      %v2549 = vsub.s32 7, %v2548
      %v2550 = vrot.slane %v2517, %v2549
      %v3583 = vunpack.c.l.b16 %v1493
      %v3584 = vunpack.c.h.b16 %v1493
      %v3585 = vunpack.c.l.b16 %v1494
      %v3586 = vunpack.c.h.b16 %v1494
      %v3587 = vunpack.c.l.b16 %v1495
      %v3588 = vunpack.c.h.b16 %v1495
      %v3589 = vunpack.c.l.b16 %v1496
      %v3590 = vunpack.c.h.b16 %v1496
      %v3591 = vunpack.c.l.b16 %v1497
      %v3592 = vunpack.c.h.b16 %v1497
      %v3593 = vunpack.c.l.b16 %v1498
      %v3594 = vunpack.c.h.b16 %v1498
      %v3595 = vunpack.c.l.b16 %v1499
      %v3596 = vunpack.c.h.b16 %v1499
      %v3597 = vunpack.c.l.b16 %v1500
      %v3598 = vunpack.c.h.b16 %v1500
      %v3599 = vunpack.c.l.b16 %v1501
      %v3600 = vunpack.c.h.b16 %v1501
      %v3601 = vunpack.c.l.b16 %v1502
      %v3602 = vunpack.c.h.b16 %v1502
      %v3603 = vunpack.c.l.b16 %v1503
      %v3604 = vunpack.c.h.b16 %v1503
      %v3605 = vunpack.c.l.b16 %v1504
      %v3606 = vunpack.c.h.b16 %v1504
      %v3607 = vunpack.c.l.b16 %v1505
      %v3608 = vunpack.c.h.b16 %v1505
      %v3609 = vunpack.c.l.b16 %v1506
      %v3610 = vunpack.c.h.b16 %v1506
      %v3611 = vunpack.c.l.b16 %v1507
      %v3612 = vunpack.c.h.b16 %v1507
      %v3613 = vunpack.c.l.b16 %v1508
      %v3614 = vunpack.c.h.b16 %v1508
      %v3615 = vunpack.c.l.b16 %v1509
      %v3616 = vunpack.c.h.b16 %v1509
      %v3617 = vunpack.c.l.b16 %v1510
      %v3618 = vunpack.c.h.b16 %v1510
      %v3619 = vunpack.c.l.b16 %v1511
      %v3620 = vunpack.c.h.b16 %v1511
      %v3621 = vunpack.c.l.b16 %v1512
      %v3622 = vunpack.c.h.b16 %v1512
      %v3623 = vunpack.c.l.b16 %v1513
      %v3624 = vunpack.c.h.b16 %v1513
      %v3625 = vunpack.c.l.b16 %v1514
      %v3626 = vunpack.c.h.b16 %v1514
      %v3627 = vunpack.c.l.b16 %v1515
      %v3628 = vunpack.c.h.b16 %v1515
      %v3629 = vunpack.c.l.b16 %v1516
      %v3630 = vunpack.c.h.b16 %v1516
      %v3631 = vunpack.c.l.b16 %v1517
      %v3632 = vunpack.c.h.b16 %v1517
      %v3633 = vunpack.c.l.b16 %v1518
      %v3634 = vunpack.c.h.b16 %v1518
      %v3635 = vunpack.c.l.b16 %v1519
      %v3636 = vunpack.c.h.b16 %v1519
      %v3637 = vunpack.c.l.b16 %v1520
      %v3638 = vunpack.c.h.b16 %v1520
      %v3639 = vunpack.c.l.b16 %v1521
      %v3640 = vunpack.c.h.b16 %v1521
      %v3641 = vunpack.c.l.b16 %v1522
      %v3642 = vunpack.c.h.b16 %v1522
      %v3643 = vunpack.c.l.b16 %v1523
      %v3644 = vunpack.c.h.b16 %v1523
      %v3645 = vunpack.c.l.b16 %v1524
      %v3646 = vunpack.c.h.b16 %v1524
      %v3647 = vunpack.c.l.b16 %v1525
      %v3648 = vunpack.c.h.b16 %v1525
      %v3649 = vunpack.c.l.b16 %v1526
      %v3650 = vunpack.c.h.b16 %v1526
      %v3651 = vunpack.c.l.b16 %v1527
      %v3652 = vunpack.c.h.b16 %v1527
      %v3653 = vunpack.c.l.b16 %v1528
      %v3654 = vunpack.c.h.b16 %v1528
      %v3655 = vunpack.c.l.b16 %v1529
      %v3656 = vunpack.c.h.b16 %v1529
      %v3657 = vunpack.c.l.b16 %v1530
      %v3658 = vunpack.c.h.b16 %v1530
      %v3659 = vunpack.c.l.b16 %v1531
      %v3660 = vunpack.c.h.b16 %v1531
      %v3661 = vunpack.c.l.b16 %v1532
      %v3662 = vunpack.c.h.b16 %v1532
      %v3663 = vunpack.c.l.b16 %v1533
      %v3664 = vunpack.c.h.b16 %v1533
      %v3665 = vunpack.c.l.b16 %v1534
      %v3666 = vunpack.c.h.b16 %v1534
      %v3667 = vunpack.c.l.b16 %v1535
      %v3668 = vunpack.c.h.b16 %v1535
      %v3669 = vunpack.c.l.b16 %v1536
      %v3670 = vunpack.c.h.b16 %v1536
      %v3671 = vunpack.c.l.b16 %v1537
      %v3672 = vunpack.c.h.b16 %v1537
      %v3673 = vunpack.c.l.b16 %v1538
      %v3674 = vunpack.c.h.b16 %v1538
      %v3675 = vunpack.c.l.b16 %v1539
      %v3676 = vunpack.c.h.b16 %v1539
      %v3677 = vunpack.c.l.b16 %v1540
      %v3678 = vunpack.c.h.b16 %v1540
      %v3679 = vunpack.c.l.b16 %v1541
      %v3680 = vunpack.c.h.b16 %v1541
      %v3681 = vunpack.c.l.b16 %v1542
      %v3682 = vunpack.c.h.b16 %v1542
      %v3683 = vunpack.c.l.b16 %v1543
      %v3684 = vunpack.c.h.b16 %v1543
      %v3685 = vunpack.c.l.b16 %v1544
      %v3686 = vunpack.c.h.b16 %v1544
      %v3687 = vunpack.c.l.b16 %v1545
      %v3688 = vunpack.c.h.b16 %v1545
      %v3689 = vunpack.c.l.b16 %v1546
      %v3690 = vunpack.c.h.b16 %v1546
      %v3691 = vunpack.c.l.b16 %v1547
      %v3692 = vunpack.c.h.b16 %v1547
      %v3693 = vunpack.c.l.b16 %v1548
      %v3694 = vunpack.c.h.b16 %v1548
      %v3695 = vunpack.c.l.b16 %v1549
      %v3696 = vunpack.c.h.b16 %v1549
      %v3697 = vunpack.c.l.b16 %v1550
      %v3698 = vunpack.c.h.b16 %v1550
      %v3699 = vunpack.c.l.b16 %v1551
      %v3700 = vunpack.c.h.b16 %v1551
      %v3701 = vunpack.c.l.b16 %v1552
      %v3702 = vunpack.c.h.b16 %v1552
      %v3703 = vunpack.c.l.b16 %v1553
      %v3704 = vunpack.c.h.b16 %v1553
      %v3705 = vunpack.c.l.b16 %v1554
      %v3706 = vunpack.c.h.b16 %v1554
      %v3707 = vunpack.c.l.b16 %v1555
      %v3708 = vunpack.c.h.b16 %v1555
      %v3709 = vunpack.c.l.b16 %v1556
      %v3710 = vunpack.c.h.b16 %v1556
      %v3711 = vunpack.c.l.b16 %v1557
      %v3712 = vunpack.c.h.b16 %v1557
      %v3713 = vunpack.c.l.b16 %v1558
      %v3714 = vunpack.c.h.b16 %v1558
      %v3715 = vunpack.c.l.b16 %v1559
      %v3716 = vunpack.c.h.b16 %v1559
      %v3717 = vunpack.c.l.b16 %v1560
      %v3718 = vunpack.c.h.b16 %v1560
      %v3719 = vunpack.c.l.b16 %v1561
      %v3720 = vunpack.c.h.b16 %v1561
      %v3721 = vunpack.c.l.b16 %v1562
      %v3722 = vunpack.c.h.b16 %v1562
      %v3723 = vunpack.c.l.b16 %v1563
      %v3724 = vunpack.c.h.b16 %v1563
      %v3725 = vunpack.c.l.b16 %v1564
      %v3726 = vunpack.c.h.b16 %v1564
      %v3727 = vunpack.c.l.b16 %v1565
      %v3728 = vunpack.c.h.b16 %v1565
      %v3729 = vunpack.c.l.b16 %v1566
      %v3730 = vunpack.c.h.b16 %v1566
      %v3731 = vunpack.c.l.b16 %v1567
      %v3732 = vunpack.c.h.b16 %v1567
      %v3733 = vunpack.c.l.b16 %v1568
      %v3734 = vunpack.c.h.b16 %v1568
      %v3735 = vunpack.c.l.b16 %v1569
      %v3736 = vunpack.c.h.b16 %v1569
      %v3737 = vunpack.c.l.b16 %v1570
      %v3738 = vunpack.c.h.b16 %v1570
      %v3739 = vunpack.c.l.b16 %v1571
      %v3740 = vunpack.c.h.b16 %v1571
      %v3741 = vunpack.c.l.b16 %v1572
      %v3742 = vunpack.c.h.b16 %v1572
      %v3743 = vunpack.c.l.b16 %v1573
      %v3744 = vunpack.c.h.b16 %v1573
      %v3745 = vunpack.c.l.b16 %v1574
      %v3746 = vunpack.c.h.b16 %v1574
      %v3747 = vunpack.c.l.b16 %v1575
      %v3748 = vunpack.c.h.b16 %v1575
      %v3749 = vunpack.c.l.b16 %v1576
      %v3750 = vunpack.c.h.b16 %v1576
      %v3751 = vunpack.c.l.b16 %v1577
      %v3752 = vunpack.c.h.b16 %v1577
      %v3753 = vunpack.c.l.b16 %v1578
      %v3754 = vunpack.c.h.b16 %v1578
      %v3755 = vunpack.c.l.b16 %v1579
      %v3756 = vunpack.c.h.b16 %v1579
      %v3757 = vunpack.c.l.b16 %v1580
      %v3758 = vunpack.c.h.b16 %v1580
      %v3759 = vunpack.c.l.b16 %v1581
      %v3760 = vunpack.c.h.b16 %v1581
      %v3761 = vunpack.c.l.b16 %v1582
      %v3762 = vunpack.c.h.b16 %v1582
      %v3763 = vunpack.c.l.b16 %v1583
      %v3764 = vunpack.c.h.b16 %v1583
      %v3765 = vunpack.c.l.b16 %v1584
      %v3766 = vunpack.c.h.b16 %v1584
      %v3767 = vunpack.c.l.b16 %v1585
      %v3768 = vunpack.c.h.b16 %v1585
      %v3769 = vunpack.c.l.b16 %v1586
      %v3770 = vunpack.c.h.b16 %v1586
      %v3771 = vunpack.c.l.b16 %v1587
      %v3772 = vunpack.c.h.b16 %v1587
      %v3773 = vunpack.c.l.b16 %v1588
      %v3774 = vunpack.c.h.b16 %v1588
      %v3775 = vunpack.c.l.b16 %v1589
      %v3776 = vunpack.c.h.b16 %v1589
      %v3777 = vunpack.c.l.b16 %v1590
      %v3778 = vunpack.c.h.b16 %v1590
      %v3779 = vunpack.c.l.b16 %v1591
      %v3780 = vunpack.c.h.b16 %v1591
      %v3781 = vunpack.c.l.b16 %v1592
      %v3782 = vunpack.c.h.b16 %v1592
      %v3783 = vunpack.c.l.b16 %v1593
      %v3784 = vunpack.c.h.b16 %v1593
      %v3785 = vunpack.c.l.b16 %v1594
      %v3786 = vunpack.c.h.b16 %v1594
      %v3787 = vunpack.c.l.b16 %v1595
      %v3788 = vunpack.c.h.b16 %v1595
      %v3789 = vunpack.c.l.b16 %v1596
      %v3790 = vunpack.c.h.b16 %v1596
      %v3791 = vunpack.c.l.b16 %v1597
      %v3792 = vunpack.c.h.b16 %v1597
      %v3793 = vunpack.c.l.b16 %v1598
      %v3794 = vunpack.c.h.b16 %v1598
      %v3795 = vunpack.c.l.b16 %v1599
      %v3796 = vunpack.c.h.b16 %v1599
      %v3797 = vunpack.c.l.b16 %v1600
      %v3798 = vunpack.c.h.b16 %v1600
      %v3799 = vunpack.c.l.b16 %v1601
      %v3800 = vunpack.c.h.b16 %v1601
      %v3801 = vunpack.c.l.b16 %v1602
      %v3802 = vunpack.c.h.b16 %v1602
      %v3803 = vunpack.c.l.b16 %v1603
      %v3804 = vunpack.c.h.b16 %v1603
      %v3805 = vunpack.c.l.b16 %v1604
      %v3806 = vunpack.c.h.b16 %v1604
      %v3807 = vunpack.c.l.b16 %v1605
      %v3808 = vunpack.c.h.b16 %v1605
      %v3809 = vunpack.c.l.b16 %v1606
      %v3810 = vunpack.c.h.b16 %v1606
      %v3811 = vunpack.c.l.b16 %v1607
      %v3812 = vunpack.c.h.b16 %v1607
      %v3813 = vunpack.c.l.b16 %v1608
      %v3814 = vunpack.c.h.b16 %v1608
      %v3815 = vunpack.c.l.b16 %v1609
      %v3816 = vunpack.c.h.b16 %v1609
      %v3817 = vunpack.c.l.b16 %v1610
      %v3818 = vunpack.c.h.b16 %v1610
      %v3819 = vunpack.c.l.b16 %v1611
      %v3820 = vunpack.c.h.b16 %v1611
      %v3821 = vunpack.c.l.b16 %v1612
      %v3822 = vunpack.c.h.b16 %v1612
      %v3823 = vunpack.c.l.b16 %v1613
      %v3824 = vunpack.c.h.b16 %v1613
      %v3825 = vunpack.c.l.b16 %v1614
      %v3826 = vunpack.c.h.b16 %v1614
      %v3827 = vunpack.c.l.b16 %v1615
      %v3828 = vunpack.c.h.b16 %v1615
      %v3829 = vunpack.c.l.b16 %v1616
      %v3830 = vunpack.c.h.b16 %v1616
      %v3831 = vunpack.c.l.b16 %v1617
      %v3832 = vunpack.c.h.b16 %v1617
      %v3833 = vunpack.c.l.b16 %v1618
      %v3834 = vunpack.c.h.b16 %v1618
      %v3835 = vunpack.c.l.b16 %v1619
      %v3836 = vunpack.c.h.b16 %v1619
      %v3837 = vunpack.c.l.b16 %v1620
      %v3838 = vunpack.c.h.b16 %v1620
      %v3839 = vunpack.c.l.b16 %v1621
      %v3840 = vunpack.c.h.b16 %v1621
      %v3841 = vunpack.c.l.b16 %v1622
      %v3842 = vunpack.c.h.b16 %v1622
      %v3843 = vunpack.c.l.b16 %v1623
      %v3844 = vunpack.c.h.b16 %v1623
      %v3845 = vunpack.c.l.b16 %v1624
      %v3846 = vunpack.c.h.b16 %v1624
      %v3847 = vunpack.c.l.b16 %v1625
      %v3848 = vunpack.c.h.b16 %v1625
      %v3849 = vunpack.c.l.b16 %v1626
      %v3850 = vunpack.c.h.b16 %v1626
      %v3851 = vunpack.c.l.b16 %v1627
      %v3852 = vunpack.c.h.b16 %v1627
      %v3853 = vunpack.c.l.b16 %v1628
      %v3854 = vunpack.c.h.b16 %v1628
      %v3855 = vunpack.c.l.b16 %v1629
      %v3856 = vunpack.c.h.b16 %v1629
      %v3857 = vunpack.c.l.b16 %v1630
      %v3858 = vunpack.c.h.b16 %v1630
      %v3859 = vunpack.c.l.b16 %v1631
      %v3860 = vunpack.c.h.b16 %v1631
      %v3861 = vunpack.c.l.b16 %v1632
      %v3862 = vunpack.c.h.b16 %v1632
      %v3863 = vunpack.c.l.b16 %v1633
      %v3864 = vunpack.c.h.b16 %v1633
      %v3865 = vunpack.c.l.b16 %v1634
      %v3866 = vunpack.c.h.b16 %v1634
      %v3867 = vunpack.c.l.b16 %v1635
      %v3868 = vunpack.c.h.b16 %v1635
      %v3869 = vunpack.c.l.b16 %v1636
      %v3870 = vunpack.c.h.b16 %v1636
      %v3871 = vunpack.c.l.b16 %v1637
      %v3872 = vunpack.c.h.b16 %v1637
      %v3873 = vunpack.c.l.b16 %v1638
      %v3874 = vunpack.c.h.b16 %v1638
      %v3875 = vunpack.c.l.b16 %v1639
      %v3876 = vunpack.c.h.b16 %v1639
      %v3877 = vunpack.c.l.b16 %v1640
      %v3878 = vunpack.c.h.b16 %v1640
      %v3879 = vunpack.c.l.b16 %v1641
      %v3880 = vunpack.c.h.b16 %v1641
      %v3881 = vunpack.c.l.b16 %v1642
      %v3882 = vunpack.c.h.b16 %v1642
      %v3883 = vunpack.c.l.b16 %v1643
      %v3884 = vunpack.c.h.b16 %v1643
      %v3885 = vunpack.c.l.b16 %v1644
      %v3886 = vunpack.c.h.b16 %v1644
      %v3887 = vunpack.c.l.b16 %v1645
      %v3888 = vunpack.c.h.b16 %v1645
      %v3889 = vunpack.c.l.b16 %v1646
      %v3890 = vunpack.c.h.b16 %v1646
      %v3891 = vunpack.c.l.b16 %v1647
      %v3892 = vunpack.c.h.b16 %v1647
      %v3893 = vunpack.c.l.b16 %v1648
      %v3894 = vunpack.c.h.b16 %v1648
      %v3895 = vunpack.c.l.b16 %v1649
      %v3896 = vunpack.c.h.b16 %v1649
      %v3897 = vunpack.c.l.b16 %v1650
      %v3898 = vunpack.c.h.b16 %v1650
      %v3899 = vunpack.c.l.b16 %v1651
      %v3900 = vunpack.c.h.b16 %v1651
      %v3901 = vunpack.c.l.b16 %v1652
      %v3902 = vunpack.c.h.b16 %v1652
      %v3903 = vunpack.c.l.b16 %v1653
      %v3904 = vunpack.c.h.b16 %v1653
      %v3905 = vunpack.c.l.b16 %v1654
      %v3906 = vunpack.c.h.b16 %v1654
      %v3907 = vunpack.c.l.b16 %v1655
      %v3908 = vunpack.c.h.b16 %v1655
      %v3909 = vunpack.c.l.b16 %v1656
      %v3910 = vunpack.c.h.b16 %v1656
      %v3911 = vunpack.c.l.b16 %v1657
      %v3912 = vunpack.c.h.b16 %v1657
      %v3913 = vunpack.c.l.b16 %v1658
      %v3914 = vunpack.c.h.b16 %v1658
      %v3915 = vunpack.c.l.b16 %v1659
      %v3916 = vunpack.c.h.b16 %v1659
      %v3917 = vunpack.c.l.b16 %v1660
      %v3918 = vunpack.c.h.b16 %v1660
      %v3919 = vunpack.c.l.b16 %v1661
      %v3920 = vunpack.c.h.b16 %v1661
      %v3921 = vunpack.c.l.b16 %v1662
      %v3922 = vunpack.c.h.b16 %v1662
      %v3923 = vunpack.c.l.b16 %v1663
      %v3924 = vunpack.c.h.b16 %v1663
      %v3925 = vunpack.c.l.b16 %v1664
      %v3926 = vunpack.c.h.b16 %v1664
      %v3927 = vunpack.c.l.b16 %v1665
      %v3928 = vunpack.c.h.b16 %v1665
      %v3929 = vunpack.c.l.b16 %v1666
      %v3930 = vunpack.c.h.b16 %v1666
      %v3931 = vunpack.c.l.b16 %v1667
      %v3932 = vunpack.c.h.b16 %v1667
      %v3933 = vunpack.c.l.b16 %v1668
      %v3934 = vunpack.c.h.b16 %v1668
      %v3935 = vunpack.c.l.b16 %v1669
      %v3936 = vunpack.c.h.b16 %v1669
      %v3937 = vunpack.c.l.b16 %v1670
      %v3938 = vunpack.c.h.b16 %v1670
      %v3939 = vunpack.c.l.b16 %v1671
      %v3940 = vunpack.c.h.b16 %v1671
      %v3941 = vunpack.c.l.b16 %v1672
      %v3942 = vunpack.c.h.b16 %v1672
      %v3943 = vunpack.c.l.b16 %v1673
      %v3944 = vunpack.c.h.b16 %v1673
      %v3945 = vunpack.c.l.b16 %v1674
      %v3946 = vunpack.c.h.b16 %v1674
      %v3947 = vunpack.c.l.b16 %v1675
      %v3948 = vunpack.c.h.b16 %v1675
      %v3949 = vunpack.c.l.b16 %v1676
      %v3950 = vunpack.c.h.b16 %v1676
      %v3951 = vunpack.c.l.b16 %v1677
      %v3952 = vunpack.c.h.b16 %v1677
      %v3953 = vunpack.c.l.b16 %v1678
      %v3954 = vunpack.c.h.b16 %v1678
      %v3955 = vunpack.c.l.b16 %v1679
      %v3956 = vunpack.c.h.b16 %v1679
      %v3957 = vunpack.c.l.b16 %v1680
      %v3958 = vunpack.c.h.b16 %v1680
      %v3959 = vunpack.c.l.b16 %v1681
      %v3960 = vunpack.c.h.b16 %v1681
      %v3961 = vunpack.c.l.b16 %v1682
      %v3962 = vunpack.c.h.b16 %v1682
      %v3963 = vunpack.c.l.b16 %v1683
      %v3964 = vunpack.c.h.b16 %v1683
      %v3965 = vunpack.c.l.b16 %v1684
      %v3966 = vunpack.c.h.b16 %v1684
      %v3967 = vunpack.c.l.b16 %v1685
      %v3968 = vunpack.c.h.b16 %v1685
      %v3969 = vunpack.c.l.b16 %v1686
      %v3970 = vunpack.c.h.b16 %v1686
      %v3971 = vunpack.c.l.b16 %v1687
      %v3972 = vunpack.c.h.b16 %v1687
      %v3973 = vunpack.c.l.b16 %v1688
      %v3974 = vunpack.c.h.b16 %v1688
      %v3975 = vunpack.c.l.b16 %v1689
      %v3976 = vunpack.c.h.b16 %v1689
      %v3977 = vunpack.c.l.b16 %v1690
      %v3978 = vunpack.c.h.b16 %v1690
      %v3979 = vunpack.c.l.b16 %v1691
      %v3980 = vunpack.c.h.b16 %v1691
      %v3981 = vunpack.c.l.b16 %v1692
      %v3982 = vunpack.c.h.b16 %v1692
      %v3983 = vunpack.c.l.b16 %v1693
      %v3984 = vunpack.c.h.b16 %v1693
      %v3985 = vunpack.c.l.b16 %v1694
      %v3986 = vunpack.c.h.b16 %v1694
      %v3987 = vunpack.c.l.b16 %v1695
      %v3988 = vunpack.c.h.b16 %v1695
      %v3989 = vunpack.c.l.b16 %v1696
      %v3990 = vunpack.c.h.b16 %v1696
      %v3991 = vunpack.c.l.b16 %v1697
      %v3992 = vunpack.c.h.b16 %v1697
      %v3993 = vunpack.c.l.b16 %v1698
      %v3994 = vunpack.c.h.b16 %v1698
      %v3995 = vunpack.c.l.b16 %v1699
      %v3996 = vunpack.c.h.b16 %v1699
      %v3997 = vunpack.c.l.b16 %v1700
      %v3998 = vunpack.c.h.b16 %v1700
      %v3999 = vunpack.c.l.b16 %v1701
      %v4000 = vunpack.c.h.b16 %v1701
      %v4001 = vunpack.c.l.b16 %v1702
      %v4002 = vunpack.c.h.b16 %v1702
      %v4003 = vunpack.c.l.b16 %v1703
      %v4004 = vunpack.c.h.b16 %v1703
      %v4005 = vunpack.c.l.b16 %v1704
      %v4006 = vunpack.c.h.b16 %v1704
      %v4007 = vunpack.c.l.b16 %v1705
      %v4008 = vunpack.c.h.b16 %v1705
      %v4009 = vunpack.c.l.b16 %v1706
      %v4010 = vunpack.c.h.b16 %v1706
      %v4011 = vunpack.c.l.b16 %v1707
      %v4012 = vunpack.c.h.b16 %v1707
      %v4013 = vunpack.c.l.b16 %v1708
      %v4014 = vunpack.c.h.b16 %v1708
      %v4015 = vunpack.c.l.b16 %v1709
      %v4016 = vunpack.c.h.b16 %v1709
      %v4017 = vunpack.c.l.b16 %v1710
      %v4018 = vunpack.c.h.b16 %v1710
      %v4019 = vunpack.c.l.b16 %v1711
      %v4020 = vunpack.c.h.b16 %v1711
      %v4021 = vunpack.c.l.b16 %v1712
      %v4022 = vunpack.c.h.b16 %v1712
      %v4023 = vunpack.c.l.b16 %v1713
      %v4024 = vunpack.c.h.b16 %v1713
      %v4025 = vunpack.c.l.b16 %v1714
      %v4026 = vunpack.c.h.b16 %v1714
      %v4027 = vunpack.c.l.b16 %v1715
      %v4028 = vunpack.c.h.b16 %v1715
      %v4029 = vunpack.c.l.b16 %v1716
      %v4030 = vunpack.c.h.b16 %v1716
      %v4031 = vunpack.c.l.b16 %v1717
      %v4032 = vunpack.c.h.b16 %v1717
      %v4033 = vunpack.c.l.b16 %v1718
      %v4034 = vunpack.c.h.b16 %v1718
      %v4035 = vunpack.c.l.b16 %v1719
      %v4036 = vunpack.c.h.b16 %v1719
      %v4037 = vunpack.c.l.b16 %v1720
      %v4038 = vunpack.c.h.b16 %v1720
      %v4039 = vunpack.c.l.b16 %v1721
      %v4040 = vunpack.c.h.b16 %v1721
      %v4041 = vunpack.c.l.b16 %v1722
      %v4042 = vunpack.c.h.b16 %v1722
      %v4043 = vunpack.c.l.b16 %v1723
      %v4044 = vunpack.c.h.b16 %v1723
      %v4045 = vunpack.c.l.b16 %v1724
      %v4046 = vunpack.c.h.b16 %v1724
      %v4047 = vunpack.c.l.b16 %v1725
      %v4048 = vunpack.c.h.b16 %v1725
      %v4049 = vunpack.c.l.b16 %v1726
      %v4050 = vunpack.c.h.b16 %v1726
      %v4051 = vunpack.c.l.b16 %v1727
      %v4052 = vunpack.c.h.b16 %v1727
      %v4053 = vunpack.c.l.b16 %v1728
      %v4054 = vunpack.c.h.b16 %v1728
      %v4055 = vunpack.c.l.b16 %v1729
      %v4056 = vunpack.c.h.b16 %v1729
      %v4057 = vunpack.c.l.b16 %v1730
      %v4058 = vunpack.c.h.b16 %v1730
      %v4059 = vunpack.c.l.b16 %v1731
      %v4060 = vunpack.c.h.b16 %v1731
      %v4061 = vunpack.c.l.b16 %v1732
      %v4062 = vunpack.c.h.b16 %v1732
      %v4063 = vunpack.c.l.b16 %v1733
      %v4064 = vunpack.c.h.b16 %v1733
      %v4065 = vunpack.c.l.b16 %v1734
      %v4066 = vunpack.c.h.b16 %v1734
      %v4067 = vunpack.c.l.b16 %v1735
      %v4068 = vunpack.c.h.b16 %v1735
      %v4069 = vunpack.c.l.b16 %v1736
      %v4070 = vunpack.c.h.b16 %v1736
      %v4071 = vunpack.c.l.b16 %v1737
      %v4072 = vunpack.c.h.b16 %v1737
      %v4073 = vunpack.c.l.b16 %v1738
      %v4074 = vunpack.c.h.b16 %v1738
      %v4075 = vunpack.c.l.b16 %v1739
      %v4076 = vunpack.c.h.b16 %v1739
      %v4077 = vunpack.c.l.b16 %v1740
      %v4078 = vunpack.c.h.b16 %v1740
      %v4079 = vunpack.c.l.b16 %v1741
      %v4080 = vunpack.c.h.b16 %v1741
      %v4081 = vunpack.c.l.b16 %v1742
      %v4082 = vunpack.c.h.b16 %v1742
      %v4083 = vunpack.c.l.b16 %v1743
      %v4084 = vunpack.c.h.b16 %v1743
      %v4085 = vunpack.c.l.b16 %v1744
      %v4086 = vunpack.c.h.b16 %v1744
      %v4087 = vunpack.c.l.b16 %v1745
      %v4088 = vunpack.c.h.b16 %v1745
      %v4089 = vunpack.c.l.b16 %v1746
      %v4090 = vunpack.c.h.b16 %v1746
      %v4091 = vunpack.c.l.b16 %v1747
      %v4092 = vunpack.c.h.b16 %v1747
      %v4093 = vunpack.c.l.b16 %v1748
      %v4094 = vunpack.c.h.b16 %v1748
      %v4095 = vunpack.c.l.b16 %v1749
      %v4096 = vunpack.c.h.b16 %v1749
      %v4097 = vunpack.c.l.b16 %v1750
      %v4098 = vunpack.c.h.b16 %v1750
      %v4099 = vunpack.c.l.b16 %v1751
      %v4100 = vunpack.c.h.b16 %v1751
      %v4101 = vunpack.c.l.b16 %v1752
      %v4102 = vunpack.c.h.b16 %v1752
      %v4103 = vunpack.c.l.b16 %v1753
      %v4104 = vunpack.c.h.b16 %v1753
      %v4105 = vunpack.c.l.b16 %v1754
      %v4106 = vunpack.c.h.b16 %v1754
      %v4107 = vunpack.c.l.b16 %v1755
      %v4108 = vunpack.c.h.b16 %v1755
      %v4109 = vunpack.c.l.b16 %v1756
      %v4110 = vunpack.c.h.b16 %v1756
      %v4111 = vunpack.c.l.b16 %v1757
      %v4112 = vunpack.c.h.b16 %v1757
      %v4113 = vunpack.c.l.b16 %v1758
      %v4114 = vunpack.c.h.b16 %v1758
      %v4115 = vunpack.c.l.b16 %v1759
      %v4116 = vunpack.c.h.b16 %v1759
      %v4117 = vunpack.c.l.b16 %v1760
      %v4118 = vunpack.c.h.b16 %v1760
      %v4119 = vunpack.c.l.b16 %v1761
      %v4120 = vunpack.c.h.b16 %v1761
      %v4121 = vunpack.c.l.b16 %v1762
      %v4122 = vunpack.c.h.b16 %v1762
      %v4123 = vunpack.c.l.b16 %v1763
      %v4124 = vunpack.c.h.b16 %v1763
      %v4125 = vunpack.c.l.b16 %v1764
      %v4126 = vunpack.c.h.b16 %v1764
      %v4127 = vunpack.c.l.b16 %v1765
      %v4128 = vunpack.c.h.b16 %v1765
      %v4129 = vunpack.c.l.b16 %v1766
      %v4130 = vunpack.c.h.b16 %v1766
      %v4131 = vunpack.c.l.b16 %v1767
      %v4132 = vunpack.c.h.b16 %v1767
      %v4133 = vunpack.c.l.b16 %v1768
      %v4134 = vunpack.c.h.b16 %v1768
      %v4135 = vunpack.c.l.b16 %v1769
      %v4136 = vunpack.c.h.b16 %v1769
      %v4137 = vunpack.c.l.b16 %v1770
      %v4138 = vunpack.c.h.b16 %v1770
      %v4139 = vunpack.c.l.b16 %v1771
      %v4140 = vunpack.c.h.b16 %v1771
      %v4141 = vunpack.c.l.b16 %v1772
      %v4142 = vunpack.c.h.b16 %v1772
      %v4143 = vunpack.c.l.b16 %v1773
      %v4144 = vunpack.c.h.b16 %v1773
      %v4145 = vunpack.c.l.b16 %v1774
      %v4146 = vunpack.c.h.b16 %v1774
      %v4147 = vunpack.c.l.b16 %v1775
      %v4148 = vunpack.c.h.b16 %v1775
      %v4149 = vunpack.c.l.b16 %v1776
      %v4150 = vunpack.c.h.b16 %v1776
      %v4151 = vunpack.c.l.b16 %v1777
      %v4152 = vunpack.c.h.b16 %v1777
      %v4153 = vunpack.c.l.b16 %v1778
      %v4154 = vunpack.c.h.b16 %v1778
      %v4155 = vunpack.c.l.b16 %v1779
      %v4156 = vunpack.c.h.b16 %v1779
      %v4157 = vunpack.c.l.b16 %v1780
      %v4158 = vunpack.c.h.b16 %v1780
      %v4159 = vunpack.c.l.b16 %v1781
      %v4160 = vunpack.c.h.b16 %v1781
      %v4161 = vunpack.c.l.b16 %v1782
      %v4162 = vunpack.c.h.b16 %v1782
      %v4163 = vunpack.c.l.b16 %v1783
      %v4164 = vunpack.c.h.b16 %v1783
      %v4165 = vunpack.c.l.b16 %v1784
      %v4166 = vunpack.c.h.b16 %v1784
      %v4167 = vunpack.c.l.b16 %v1785
      %v4168 = vunpack.c.h.b16 %v1785
      %v4169 = vunpack.c.l.b16 %v1786
      %v4170 = vunpack.c.h.b16 %v1786
      %v4171 = vunpack.c.l.b16 %v1787
      %v4172 = vunpack.c.h.b16 %v1787
      %v4173 = vunpack.c.l.b16 %v1788
      %v4174 = vunpack.c.h.b16 %v1788
      %v4175 = vunpack.c.l.b16 %v1789
      %v4176 = vunpack.c.h.b16 %v1789
      %v4177 = vunpack.c.l.b16 %v1790
      %v4178 = vunpack.c.h.b16 %v1790
      %v4179 = vunpack.c.l.b16 %v1791
      %v4180 = vunpack.c.h.b16 %v1791
      %v4181 = vunpack.c.l.b16 %v1792
      %v4182 = vunpack.c.h.b16 %v1792
      %v4183 = vunpack.c.l.b16 %v1793
      %v4184 = vunpack.c.h.b16 %v1793
      %v4185 = vunpack.c.l.b16 %v1794
      %v4186 = vunpack.c.h.b16 %v1794
      %v4187 = vunpack.c.l.b16 %v1795
      %v4188 = vunpack.c.h.b16 %v1795
      %v4189 = vunpack.c.l.b16 %v1796
      %v4190 = vunpack.c.h.b16 %v1796
      %v4191 = vunpack.c.l.b16 %v1797
      %v4192 = vunpack.c.h.b16 %v1797
      %v4193 = vunpack.c.l.b16 %v1798
      %v4194 = vunpack.c.h.b16 %v1798
      %v4195 = vunpack.c.l.b16 %v1799
      %v4196 = vunpack.c.h.b16 %v1799
      %v4197 = vunpack.c.l.b16 %v1800
      %v4198 = vunpack.c.h.b16 %v1800
      %v4199 = vunpack.c.l.b16 %v1801
      %v4200 = vunpack.c.h.b16 %v1801
      %v4201 = vunpack.c.l.b16 %v1802
      %v4202 = vunpack.c.h.b16 %v1802
      %v4203 = vunpack.c.l.b16 %v1803
      %v4204 = vunpack.c.h.b16 %v1803
      %v4205 = vunpack.c.l.b16 %v1804
      %v4206 = vunpack.c.h.b16 %v1804
      %v4207 = vunpack.c.l.b16 %v1805
      %v4208 = vunpack.c.h.b16 %v1805
      %v4209 = vunpack.c.l.b16 %v1806
      %v4210 = vunpack.c.h.b16 %v1806
      %v4211 = vunpack.c.l.b16 %v1807
      %v4212 = vunpack.c.h.b16 %v1807
      %v4213 = vunpack.c.l.b16 %v1808
      %v4214 = vunpack.c.h.b16 %v1808
      %v4215 = vunpack.c.l.b16 %v1809
      %v4216 = vunpack.c.h.b16 %v1809
      %v4217 = vunpack.c.l.b16 %v1810
      %v4218 = vunpack.c.h.b16 %v1810
      %v4219 = vunpack.c.l.b16 %v1811
      %v4220 = vunpack.c.h.b16 %v1811
      %v4221 = vunpack.c.l.b16 %v1812
      %v4222 = vunpack.c.h.b16 %v1812
      %v4223 = vunpack.c.l.b16 %v1813
      %v4224 = vunpack.c.h.b16 %v1813
      %v4225 = vunpack.c.l.b16 %v1814
      %v4226 = vunpack.c.h.b16 %v1814
      %v4227 = vunpack.c.l.b16 %v1815
      %v4228 = vunpack.c.h.b16 %v1815
      %v4229 = vunpack.c.l.b16 %v1816
      %v4230 = vunpack.c.h.b16 %v1816
      %v4231 = vunpack.c.l.b16 %v1817
      %v4232 = vunpack.c.h.b16 %v1817
      %v4233 = vunpack.c.l.b16 %v1818
      %v4234 = vunpack.c.h.b16 %v1818
      %v4235 = vunpack.c.l.b16 %v1819
      %v4236 = vunpack.c.h.b16 %v1819
      %v4237 = vunpack.c.l.b16 %v1820
      %v4238 = vunpack.c.h.b16 %v1820
      %v4239 = vunpack.c.l.b16 %v1821
      %v4240 = vunpack.c.h.b16 %v1821
      %v4241 = vunpack.c.l.b16 %v1822
      %v4242 = vunpack.c.h.b16 %v1822
      %v4243 = vunpack.c.l.b16 %v1823
      %v4244 = vunpack.c.h.b16 %v1823
      %v4245 = vunpack.c.l.b16 %v1824
      %v4246 = vunpack.c.h.b16 %v1824
      %v4247 = vunpack.c.l.b16 %v1825
      %v4248 = vunpack.c.h.b16 %v1825
      %v4249 = vunpack.c.l.b16 %v1826
      %v4250 = vunpack.c.h.b16 %v1826
      %v4251 = vunpack.c.l.b16 %v1827
      %v4252 = vunpack.c.h.b16 %v1827
      %v4253 = vunpack.c.l.b16 %v1828
      %v4254 = vunpack.c.h.b16 %v1828
      %v4255 = vunpack.c.l.b16 %v1829
      %v4256 = vunpack.c.h.b16 %v1829
      %v4257 = vunpack.c.l.b16 %v1830
      %v4258 = vunpack.c.h.b16 %v1830
      %v4259 = vunpack.c.l.b16 %v1831
      %v4260 = vunpack.c.h.b16 %v1831
      %v4261 = vunpack.c.l.b16 %v1832
      %v4262 = vunpack.c.h.b16 %v1832
      %v4263 = vunpack.c.l.b16 %v1833
      %v4264 = vunpack.c.h.b16 %v1833
      %v4265 = vunpack.c.l.b16 %v1834
      %v4266 = vunpack.c.h.b16 %v1834
      %v4267 = vunpack.c.l.b16 %v1835
      %v4268 = vunpack.c.h.b16 %v1835
      %v4269 = vunpack.c.l.b16 %v1836
      %v4270 = vunpack.c.h.b16 %v1836
      %v4271 = vunpack.c.l.b16 %v1837
      %v4272 = vunpack.c.h.b16 %v1837
      %v4273 = vunpack.c.l.b16 %v1838
      %v4274 = vunpack.c.h.b16 %v1838
      %v4275 = vunpack.c.l.b16 %v1839
      %v4276 = vunpack.c.h.b16 %v1839
      %v4277 = vunpack.c.l.b16 %v1840
      %v4278 = vunpack.c.h.b16 %v1840
      %v4279 = vunpack.c.l.b16 %v1841
      %v4280 = vunpack.c.h.b16 %v1841
      %v4281 = vunpack.c.l.b16 %v1842
      %v4282 = vunpack.c.h.b16 %v1842
      %v4283 = vunpack.c.l.b16 %v1843
      %v4284 = vunpack.c.h.b16 %v1843
      %v4285 = vunpack.c.l.b16 %v1844
      %v4286 = vunpack.c.h.b16 %v1844
      %v4287 = vunpack.c.l.b16 %v1845
      %v4288 = vunpack.c.h.b16 %v1845
      %v4289 = vunpack.c.l.b16 %v1846
      %v4290 = vunpack.c.h.b16 %v1846
      %v4291 = vunpack.c.l.b16 %v1847
      %v4292 = vunpack.c.h.b16 %v1847
      %v4293 = vunpack.c.l.b16 %v1848
      %v4294 = vunpack.c.h.b16 %v1848
      %v4295 = vunpack.c.l.b16 %v1849
      %v4296 = vunpack.c.h.b16 %v1849
      %v4297 = vunpack.c.l.b16 %v1850
      %v4298 = vunpack.c.h.b16 %v1850
      %v4299 = vunpack.c.l.b16 %v1851
      %v4300 = vunpack.c.h.b16 %v1851
      %v4301 = vunpack.c.l.b16 %v1852
      %v4302 = vunpack.c.h.b16 %v1852
      %v4303 = vunpack.c.l.b16 %v1853
      %v4304 = vunpack.c.h.b16 %v1853
      %v4305 = vunpack.c.l.b16 %v1854
      %v4306 = vunpack.c.h.b16 %v1854
      %v4307 = vunpack.c.l.b16 %v1855
      %v4308 = vunpack.c.h.b16 %v1855
      %v4309 = vunpack.c.l.b16 %v1856
      %v4310 = vunpack.c.h.b16 %v1856
      %v4311 = vunpack.c.l.b16 %v1857
      %v4312 = vunpack.c.h.b16 %v1857
      %v4313 = vunpack.c.l.b16 %v1858
      %v4314 = vunpack.c.h.b16 %v1858
      %v4315 = vunpack.c.l.b16 %v1859
      %v4316 = vunpack.c.h.b16 %v1859
      %v4317 = vunpack.c.l.b16 %v1860
      %v4318 = vunpack.c.h.b16 %v1860
      %v4319 = vunpack.c.l.b16 %v1861
      %v4320 = vunpack.c.h.b16 %v1861
      %v4321 = vunpack.c.l.b16 %v1862
      %v4322 = vunpack.c.h.b16 %v1862
      %v4323 = vunpack.c.l.b16 %v1863
      %v4324 = vunpack.c.h.b16 %v1863
      %v4325 = vunpack.c.l.b16 %v1864
      %v4326 = vunpack.c.h.b16 %v1864
      %v4327 = vunpack.c.l.b16 %v1865
      %v4328 = vunpack.c.h.b16 %v1865
      %v4329 = vunpack.c.l.b16 %v1866
      %v4330 = vunpack.c.h.b16 %v1866
      %v4331 = vunpack.c.l.b16 %v1867
      %v4332 = vunpack.c.h.b16 %v1867
      %v4333 = vunpack.c.l.b16 %v1868
      %v4334 = vunpack.c.h.b16 %v1868
      %v4335 = vunpack.c.l.b16 %v1869
      %v4336 = vunpack.c.h.b16 %v1869
      %v4337 = vunpack.c.l.b16 %v1870
      %v4338 = vunpack.c.h.b16 %v1870
      %v4339 = vunpack.c.l.b16 %v1871
      %v4340 = vunpack.c.h.b16 %v1871
      %v4341 = vunpack.c.l.b16 %v1872
      %v4342 = vunpack.c.h.b16 %v1872
      %v4343 = vunpack.c.l.b16 %v1873
      %v4344 = vunpack.c.h.b16 %v1873
      %v4345 = vunpack.c.l.b16 %v1874
      %v4346 = vunpack.c.h.b16 %v1874
      %v4347 = vunpack.c.l.b16 %v1875
      %v4348 = vunpack.c.h.b16 %v1875
      %v4349 = vunpack.c.l.b16 %v1876
      %v4350 = vunpack.c.h.b16 %v1876
      %v4351 = vunpack.c.l.b16 %v1877
      %v4352 = vunpack.c.h.b16 %v1877
      %v4353 = vunpack.c.l.b16 %v1878
      %v4354 = vunpack.c.h.b16 %v1878
      %v4355 = vunpack.c.l.b16 %v1879
      %v4356 = vunpack.c.h.b16 %v1879
      %v4357 = vunpack.c.l.b16 %v1880
      %v4358 = vunpack.c.h.b16 %v1880
      %v4359 = vunpack.c.l.b16 %v1881
      %v4360 = vunpack.c.h.b16 %v1881
      %v4361 = vunpack.c.l.b16 %v1882
      %v4362 = vunpack.c.h.b16 %v1882
      %v4363 = vunpack.c.l.b16 %v1883
      %v4364 = vunpack.c.h.b16 %v1883
      %v4365 = vunpack.c.l.b16 %v1884
      %v4366 = vunpack.c.h.b16 %v1884
      %v4367 = vunpack.c.l.b16 %v1885
      %v4368 = vunpack.c.h.b16 %v1885
      %v4369 = vunpack.c.l.b16 %v1886
      %v4370 = vunpack.c.h.b16 %v1886
      %v4371 = vunpack.c.l.b16 %v1887
      %v4372 = vunpack.c.h.b16 %v1887
      %v4373 = vunpack.c.l.b16 %v1888
      %v4374 = vunpack.c.h.b16 %v1888
      %v4375 = vunpack.c.l.b16 %v1889
      %v4376 = vunpack.c.h.b16 %v1889
      %v4377 = vunpack.c.l.b16 %v1890
      %v4378 = vunpack.c.h.b16 %v1890
      %v4379 = vunpack.c.l.b16 %v1891
      %v4380 = vunpack.c.h.b16 %v1891
      %v4381 = vunpack.c.l.b16 %v1892
      %v4382 = vunpack.c.h.b16 %v1892
      %v4383 = vunpack.c.l.b16 %v1893
      %v4384 = vunpack.c.h.b16 %v1893
      %v4385 = vunpack.c.l.b16 %v1894
      %v4386 = vunpack.c.h.b16 %v1894
      %v4387 = vunpack.c.l.b16 %v1895
      %v4388 = vunpack.c.h.b16 %v1895
      %v4389 = vunpack.c.l.b16 %v1896
      %v4390 = vunpack.c.h.b16 %v1896
      %v4391 = vunpack.c.l.b16 %v1897
      %v4392 = vunpack.c.h.b16 %v1897
      %v4393 = vunpack.c.l.b16 %v1898
      %v4394 = vunpack.c.h.b16 %v1898
      %v4395 = vunpack.c.l.b16 %v1899
      %v4396 = vunpack.c.h.b16 %v1899
      %v4397 = vunpack.c.l.b16 %v1900
      %v4398 = vunpack.c.h.b16 %v1900
      %v4399 = vunpack.c.l.b16 %v1901
      %v4400 = vunpack.c.h.b16 %v1901
      %v4401 = vunpack.c.l.b16 %v1902
      %v4402 = vunpack.c.h.b16 %v1902
      %v4403 = vunpack.c.l.b16 %v1903
      %v4404 = vunpack.c.h.b16 %v1903
      %v4405 = vunpack.c.l.b16 %v1904
      %v4406 = vunpack.c.h.b16 %v1904
      %v4407 = vunpack.c.l.b16 %v1905
      %v4408 = vunpack.c.h.b16 %v1905
      %v4409 = vunpack.c.l.b16 %v1906
      %v4410 = vunpack.c.h.b16 %v1906
      %v4411 = vunpack.c.l.b16 %v1907
      %v4412 = vunpack.c.h.b16 %v1907
      %v4413 = vunpack.c.l.b16 %v1908
      %v4414 = vunpack.c.h.b16 %v1908
      %v4415 = vunpack.c.l.b16 %v1909
      %v4416 = vunpack.c.h.b16 %v1909
      %v4417 = vunpack.c.l.b16 %v1910
      %v4418 = vunpack.c.h.b16 %v1910
      %v4419 = vunpack.c.l.b16 %v1911
      %v4420 = vunpack.c.h.b16 %v1911
      %v4421 = vunpack.c.l.b16 %v1912
      %v4422 = vunpack.c.h.b16 %v1912
      %v4423 = vunpack.c.l.b16 %v1913
      %v4424 = vunpack.c.h.b16 %v1913
      %v4425 = vunpack.c.l.b16 %v1914
      %v4426 = vunpack.c.h.b16 %v1914
      %v4427 = vunpack.c.l.b16 %v1915
      %v4428 = vunpack.c.h.b16 %v1915
      %v4429 = vunpack.c.l.b16 %v1916
      %v4430 = vunpack.c.h.b16 %v1916
      %v4431 = vunpack.c.l.b16 %v1917
      %v4432 = vunpack.c.h.b16 %v1917
      %v4433 = vunpack.c.l.b16 %v1918
      %v4434 = vunpack.c.h.b16 %v1918
      %v4435 = vunpack.c.l.b16 %v1919
      %v4436 = vunpack.c.h.b16 %v1919
      %v4437 = vunpack.c.l.b16 %v1920
      %v4438 = vunpack.c.h.b16 %v1920
      %v4439 = vunpack.c.l.b16 %v1921
      %v4440 = vunpack.c.h.b16 %v1921
      %v4441 = vunpack.c.l.b16 %v1922
      %v4442 = vunpack.c.h.b16 %v1922
      %v4443 = vunpack.c.l.b16 %v1923
      %v4444 = vunpack.c.h.b16 %v1923
      %v4445 = vunpack.c.l.b16 %v1924
      %v4446 = vunpack.c.h.b16 %v1924
      %v4447 = vunpack.c.l.b16 %v1925
      %v4448 = vunpack.c.h.b16 %v1925
      %v4449 = vunpack.c.l.b16 %v1926
      %v4450 = vunpack.c.h.b16 %v1926
      %v4451 = vunpack.c.l.b16 %v1927
      %v4452 = vunpack.c.h.b16 %v1927
      %v4453 = vunpack.c.l.b16 %v1928
      %v4454 = vunpack.c.h.b16 %v1928
      %v4455 = vunpack.c.l.b16 %v1929
      %v4456 = vunpack.c.h.b16 %v1929
      %v4457 = vunpack.c.l.b16 %v1930
      %v4458 = vunpack.c.h.b16 %v1930
      %v4459 = vunpack.c.l.b16 %v1931
      %v4460 = vunpack.c.h.b16 %v1931
      %v4461 = vunpack.c.l.b16 %v1932
      %v4462 = vunpack.c.h.b16 %v1932
      %v4463 = vunpack.c.l.b16 %v1933
      %v4464 = vunpack.c.h.b16 %v1933
      %v4465 = vunpack.c.l.b16 %v1934
      %v4466 = vunpack.c.h.b16 %v1934
      %v4467 = vunpack.c.l.b16 %v1935
      %v4468 = vunpack.c.h.b16 %v1935
      %v4469 = vunpack.c.l.b16 %v1936
      %v4470 = vunpack.c.h.b16 %v1936
      %v4471 = vunpack.c.l.b16 %v1937
      %v4472 = vunpack.c.h.b16 %v1937
      %v4473 = vunpack.c.l.b16 %v1938
      %v4474 = vunpack.c.h.b16 %v1938
      %v4475 = vunpack.c.l.b16 %v1939
      %v4476 = vunpack.c.h.b16 %v1939
      %v4477 = vunpack.c.l.b16 %v1940
      %v4478 = vunpack.c.h.b16 %v1940
      %v4479 = vunpack.c.l.b16 %v1941
      %v4480 = vunpack.c.h.b16 %v1941
      %v4481 = vunpack.c.l.b16 %v1942
      %v4482 = vunpack.c.h.b16 %v1942
      %v4483 = vunpack.c.l.b16 %v1943
      %v4484 = vunpack.c.h.b16 %v1943
      %v4485 = vunpack.c.l.b16 %v1944
      %v4486 = vunpack.c.h.b16 %v1944
      %v4487 = vunpack.c.l.b16 %v1945
      %v4488 = vunpack.c.h.b16 %v1945
      %v4489 = vunpack.c.l.b16 %v1946
      %v4490 = vunpack.c.h.b16 %v1946
      %v4491 = vunpack.c.l.b16 %v1947
      %v4492 = vunpack.c.h.b16 %v1947
      %v4493 = vunpack.c.l.b16 %v1948
      %v4494 = vunpack.c.h.b16 %v1948
      %v4495 = vunpack.c.l.b16 %v1949
      %v4496 = vunpack.c.h.b16 %v1949
      %v4497 = vunpack.c.l.b16 %v1950
      %v4498 = vunpack.c.h.b16 %v1950
      %v4499 = vunpack.c.l.b16 %v1951
      %v4500 = vunpack.c.h.b16 %v1951
      %v4501 = vunpack.c.l.b16 %v1952
      %v4502 = vunpack.c.h.b16 %v1952
      %v4503 = vunpack.c.l.b16 %v1953
      %v4504 = vunpack.c.h.b16 %v1953
      %v4505 = vunpack.c.l.b16 %v1954
      %v4506 = vunpack.c.h.b16 %v1954
      %v4507 = vunpack.c.l.b16 %v1955
      %v4508 = vunpack.c.h.b16 %v1955
      %v4509 = vunpack.c.l.b16 %v1956
      %v4510 = vunpack.c.h.b16 %v1956
      %v4511 = vunpack.c.l.b16 %v1957
      %v4512 = vunpack.c.h.b16 %v1957
      %v4513 = vunpack.c.l.b16 %v1958
      %v4514 = vunpack.c.h.b16 %v1958
      %v4515 = vunpack.c.l.b16 %v1959
      %v4516 = vunpack.c.h.b16 %v1959
      %v4517 = vunpack.c.l.b16 %v1960
      %v4518 = vunpack.c.h.b16 %v1960
      %v4519 = vunpack.c.l.b16 %v1961
      %v4520 = vunpack.c.h.b16 %v1961
      %v4521 = vunpack.c.l.b16 %v1962
      %v4522 = vunpack.c.h.b16 %v1962
      %v4523 = vunpack.c.l.b16 %v1963
      %v4524 = vunpack.c.h.b16 %v1963
      %v4525 = vunpack.c.l.b16 %v1964
      %v4526 = vunpack.c.h.b16 %v1964
      %v4527 = vunpack.c.l.b16 %v1965
      %v4528 = vunpack.c.h.b16 %v1965
      %v4529 = vunpack.c.l.b16 %v1966
      %v4530 = vunpack.c.h.b16 %v1966
      %v4531 = vunpack.c.l.b16 %v1967
      %v4532 = vunpack.c.h.b16 %v1967
      %v4533 = vunpack.c.l.b16 %v1968
      %v4534 = vunpack.c.h.b16 %v1968
      %v4535 = vunpack.c.l.b16 %v1969
      %v4536 = vunpack.c.h.b16 %v1969
      %v4537 = vunpack.c.l.b16 %v1970
      %v4538 = vunpack.c.h.b16 %v1970
      %v4539 = vunpack.c.l.b16 %v1971
      %v4540 = vunpack.c.h.b16 %v1971
      %v4541 = vunpack.c.l.b16 %v1972
      %v4542 = vunpack.c.h.b16 %v1972
      %v4543 = vunpack.c.l.b16 %v1973
      %v4544 = vunpack.c.h.b16 %v1973
      %v4545 = vunpack.c.l.b16 %v1974
      %v4546 = vunpack.c.h.b16 %v1974
      %v4547 = vunpack.c.l.b16 %v1975
      %v4548 = vunpack.c.h.b16 %v1975
      %v4549 = vunpack.c.l.b16 %v1976
      %v4550 = vunpack.c.h.b16 %v1976
      %v4551 = vunpack.c.l.b16 %v1977
      %v4552 = vunpack.c.h.b16 %v1977
      %v4553 = vunpack.c.l.b16 %v1978
      %v4554 = vunpack.c.h.b16 %v1978
      %v4555 = vunpack.c.l.b16 %v1979
      %v4556 = vunpack.c.h.b16 %v1979
      %v4557 = vunpack.c.l.b16 %v1980
      %v4558 = vunpack.c.h.b16 %v1980
      %v4559 = vunpack.c.l.b16 %v1981
      %v4560 = vunpack.c.h.b16 %v1981
      %v4561 = vunpack.c.l.b16 %v1982
      %v4562 = vunpack.c.h.b16 %v1982
      %v4563 = vunpack.c.l.b16 %v1983
      %v4564 = vunpack.c.h.b16 %v1983
      %v4565 = vunpack.c.l.b16 %v1984
      %v4566 = vunpack.c.h.b16 %v1984
      %v4567 = vunpack.c.l.b16 %v1985
      %v4568 = vunpack.c.h.b16 %v1985
      %v4569 = vunpack.c.l.b16 %v1986
      %v4570 = vunpack.c.h.b16 %v1986
      %v4571 = vunpack.c.l.b16 %v1987
      %v4572 = vunpack.c.h.b16 %v1987
      %v4573 = vunpack.c.l.b16 %v1988
      %v4574 = vunpack.c.h.b16 %v1988
      %v4575 = vunpack.c.l.b16 %v1989
      %v4576 = vunpack.c.h.b16 %v1989
      %v4577 = vunpack.c.l.b16 %v1990
      %v4578 = vunpack.c.h.b16 %v1990
      %v4579 = vunpack.c.l.b16 %v1991
      %v4580 = vunpack.c.h.b16 %v1991
      %v4581 = vunpack.c.l.b16 %v1992
      %v4582 = vunpack.c.h.b16 %v1992
      %v4583 = vunpack.c.l.b16 %v1993
      %v4584 = vunpack.c.h.b16 %v1993
      %v4585 = vunpack.c.l.b16 %v1994
      %v4586 = vunpack.c.h.b16 %v1994
      %v4587 = vunpack.c.l.b16 %v1995
      %v4588 = vunpack.c.h.b16 %v1995
      %v4589 = vunpack.c.l.b16 %v1996
      %v4590 = vunpack.c.h.b16 %v1996
      %v4591 = vunpack.c.l.b16 %v1997
      %v4592 = vunpack.c.h.b16 %v1997
      %v4593 = vunpack.c.l.b16 %v1998
      %v4594 = vunpack.c.h.b16 %v1998
      %v4595 = vunpack.c.l.b16 %v1999
      %v4596 = vunpack.c.h.b16 %v1999
      %v4597 = vunpack.c.l.b16 %v2000
      %v4598 = vunpack.c.h.b16 %v2000
      %v4599 = vunpack.c.l.b16 %v2001
      %v4600 = vunpack.c.h.b16 %v2001
      %v4601 = vunpack.c.l.b16 %v2002
      %v4602 = vunpack.c.h.b16 %v2002
      %v4603 = vunpack.c.l.b16 %v2003
      %v4604 = vunpack.c.h.b16 %v2003
      %v4605 = vunpack.c.l.b16 %v2004
      %v4606 = vunpack.c.h.b16 %v2004
      %v4607 = vunpack.c.l.b16 %v2005
      %v4608 = vunpack.c.h.b16 %v2005
      %v4609 = vunpack.c.l.b16 %v2006
      %v4610 = vunpack.c.h.b16 %v2006
      %v4611 = vunpack.c.l.b16 %v2007
      %v4612 = vunpack.c.h.b16 %v2007
      %v4613 = vunpack.c.l.b16 %v2008
      %v4614 = vunpack.c.h.b16 %v2008
      %v4615 = vunpack.c.l.b16 %v2009
      %v4616 = vunpack.c.h.b16 %v2009
      %v4617 = vunpack.c.l.b16 %v2010
      %v4618 = vunpack.c.h.b16 %v2010
      %v4619 = vunpack.c.l.b16 %v2011
      %v4620 = vunpack.c.h.b16 %v2011
      %v4621 = vunpack.c.l.b16 %v2012
      %v4622 = vunpack.c.h.b16 %v2012
      %v4623 = vunpack.c.l.b16 %v2013
      %v4624 = vunpack.c.h.b16 %v2013
      %v4625 = vunpack.c.l.b16 %v2014
      %v4626 = vunpack.c.h.b16 %v2014
      %v4627 = vunpack.c.l.b16 %v2015
      %v4628 = vunpack.c.h.b16 %v2015
      %v4629 = vunpack.c.l.b16 %v2016
      %v4630 = vunpack.c.h.b16 %v2016
      %v4631 = vunpack.c.l.b16 %v2017
      %v4632 = vunpack.c.h.b16 %v2017
      %v4633 = vunpack.c.l.b16 %v2018
      %v4634 = vunpack.c.h.b16 %v2018
      %v4635 = vunpack.c.l.b16 %v2019
      %v4636 = vunpack.c.h.b16 %v2019
      %v4637 = vunpack.c.l.b16 %v2020
      %v4638 = vunpack.c.h.b16 %v2020
      %v4639 = vunpack.c.l.b16 %v2021
      %v4640 = vunpack.c.h.b16 %v2021
      %v4641 = vunpack.c.l.b16 %v2022
      %v4642 = vunpack.c.h.b16 %v2022
      %v4643 = vunpack.c.l.b16 %v2023
      %v4644 = vunpack.c.h.b16 %v2023
      %v4645 = vunpack.c.l.b16 %v2024
      %v4646 = vunpack.c.h.b16 %v2024
      %v4647 = vunpack.c.l.b16 %v2025
      %v4648 = vunpack.c.h.b16 %v2025
      %v4649 = vunpack.c.l.b16 %v2026
      %v4650 = vunpack.c.h.b16 %v2026
      %v4651 = vunpack.c.l.b16 %v2027
      %v4652 = vunpack.c.h.b16 %v2027
      %v4653 = vunpack.c.l.b16 %v2028
      %v4654 = vunpack.c.h.b16 %v2028
      %v4655 = vunpack.c.l.b16 %v2029
      %v4656 = vunpack.c.h.b16 %v2029
      %v4657 = vunpack.c.l.b16 %v2030
      %v4658 = vunpack.c.h.b16 %v2030
      %v4659 = vunpack.c.l.b16 %v2031
      %v4660 = vunpack.c.h.b16 %v2031
      %v4661 = vunpack.c.l.b16 %v2032
      %v4662 = vunpack.c.h.b16 %v2032
      %v4663 = vunpack.c.l.b16 %v2033
      %v4664 = vunpack.c.h.b16 %v2033
      %v4665 = vunpack.c.l.b16 %v2034
      %v4666 = vunpack.c.h.b16 %v2034
      %v4667 = vunpack.c.l.b16 %v2035
      %v4668 = vunpack.c.h.b16 %v2035
      %v4669 = vunpack.c.l.b16 %v2036
      %v4670 = vunpack.c.h.b16 %v2036
      %v4671 = vunpack.c.l.b16 %v2037
      %v4672 = vunpack.c.h.b16 %v2037
      %v4673 = vunpack.c.l.b16 %v2038
      %v4674 = vunpack.c.h.b16 %v2038
      %v4675 = vunpack.c.l.b16 %v2039
      %v4676 = vunpack.c.h.b16 %v2039
      %v4677 = vunpack.c.l.b16 %v2040
      %v4678 = vunpack.c.h.b16 %v2040
      %v4679 = vunpack.c.l.b16 %v2041
      %v4680 = vunpack.c.h.b16 %v2041
      %v4681 = vunpack.c.l.b16 %v2042
      %v4682 = vunpack.c.h.b16 %v2042
      %v4683 = vunpack.c.l.b16 %v2043
      %v4684 = vunpack.c.h.b16 %v2043
      %v4685 = vunpack.c.l.b16 %v2044
      %v4686 = vunpack.c.h.b16 %v2044
      %v4687 = vunpack.c.l.b16 %v2045
      %v4688 = vunpack.c.h.b16 %v2045
      %v4689 = vunpack.c.l.b16 %v2046
      %v4690 = vunpack.c.h.b16 %v2046
      %v4691 = vunpack.c.l.b16 %v2047
      %v4692 = vunpack.c.h.b16 %v2047
      %v4693 = vunpack.c.l.b16 %v2048
      %v4694 = vunpack.c.h.b16 %v2048
      %v4695 = vunpack.c.l.b16 %v2049
      %v4696 = vunpack.c.h.b16 %v2049
      %v4697 = vunpack.c.l.b16 %v2050
      %v4698 = vunpack.c.h.b16 %v2050
      %v4699 = vunpack.c.l.b16 %v2051
      %v4700 = vunpack.c.h.b16 %v2051
      %v4701 = vunpack.c.l.b16 %v2052
      %v4702 = vunpack.c.h.b16 %v2052
      %v4703 = vunpack.c.l.b16 %v2053
      %v4704 = vunpack.c.h.b16 %v2053
      %v4705 = vunpack.c.l.b16 %v2054
      %v4706 = vunpack.c.h.b16 %v2054
      %v4707 = vunpack.c.l.b16 %v2055
      %v4708 = vunpack.c.h.b16 %v2055
      %v4709 = vunpack.c.l.b16 %v2056
      %v4710 = vunpack.c.h.b16 %v2056
      %v4711 = vunpack.c.l.b16 %v2057
      %v4712 = vunpack.c.h.b16 %v2057
      %v4713 = vunpack.c.l.b16 %v2058
      %v4714 = vunpack.c.h.b16 %v2058
      %v4715 = vunpack.c.l.b16 %v2059
      %v4716 = vunpack.c.h.b16 %v2059
      %v4717 = vunpack.c.l.b16 %v2060
      %v4718 = vunpack.c.h.b16 %v2060
      %v4719 = vunpack.c.l.b16 %v2061
      %v4720 = vunpack.c.h.b16 %v2061
      %v4721 = vunpack.c.l.b16 %v2062
      %v4722 = vunpack.c.h.b16 %v2062
      %v4723 = vunpack.c.l.b16 %v2063
      %v4724 = vunpack.c.h.b16 %v2063
      %v4725 = vunpack.c.l.b16 %v2064
      %v4726 = vunpack.c.h.b16 %v2064
      %v4727 = vunpack.c.l.b16 %v2065
      %v4728 = vunpack.c.h.b16 %v2065
      %v4729 = vunpack.c.l.b16 %v2066
      %v4730 = vunpack.c.h.b16 %v2066
      %v4731 = vunpack.c.l.b16 %v2067
      %v4732 = vunpack.c.h.b16 %v2067
      %v4733 = vunpack.c.l.b16 %v2068
      %v4734 = vunpack.c.h.b16 %v2068
      %v4735 = vunpack.c.l.b16 %v2069
      %v4736 = vunpack.c.h.b16 %v2069
      %v4737 = vunpack.c.l.b16 %v2070
      %v4738 = vunpack.c.h.b16 %v2070
      %v4739 = vunpack.c.l.b16 %v2071
      %v4740 = vunpack.c.h.b16 %v2071
      %v4741 = vunpack.c.l.b16 %v2072
      %v4742 = vunpack.c.h.b16 %v2072
      %v4743 = vunpack.c.l.b16 %v2073
      %v4744 = vunpack.c.h.b16 %v2073
      %v4745 = vunpack.c.l.b16 %v2074
      %v4746 = vunpack.c.h.b16 %v2074
      %v4747 = vunpack.c.l.b16 %v2075
      %v4748 = vunpack.c.h.b16 %v2075
      %v4749 = vunpack.c.l.b16 %v2076
      %v4750 = vunpack.c.h.b16 %v2076
      %v4751 = vunpack.c.l.b16 %v2077
      %v4752 = vunpack.c.h.b16 %v2077
      %v4753 = vunpack.c.l.b16 %v2078
      %v4754 = vunpack.c.h.b16 %v2078
      %v4755 = vunpack.c.l.b16 %v2079
      %v4756 = vunpack.c.h.b16 %v2079
      %v4757 = vunpack.c.l.b16 %v2080
      %v4758 = vunpack.c.h.b16 %v2080
      %v4759 = vunpack.c.l.b16 %v2081
      %v4760 = vunpack.c.h.b16 %v2081
      %v4761 = vunpack.c.l.b16 %v2082
      %v4762 = vunpack.c.h.b16 %v2082
      %v4763 = vunpack.c.l.b16 %v2083
      %v4764 = vunpack.c.h.b16 %v2083
      %v4765 = vunpack.c.l.b16 %v2084
      %v4766 = vunpack.c.h.b16 %v2084
      %v4767 = vunpack.c.l.b16 %v2085
      %v4768 = vunpack.c.h.b16 %v2085
      %v4769 = vunpack.c.l.b16 %v2086
      %v4770 = vunpack.c.h.b16 %v2086
      %v4771 = vunpack.c.l.b16 %v2087
      %v4772 = vunpack.c.h.b16 %v2087
      %v4773 = vunpack.c.l.b16 %v2088
      %v4774 = vunpack.c.h.b16 %v2088
      %v4775 = vunpack.c.l.b16 %v2089
      %v4776 = vunpack.c.h.b16 %v2089
      %v4777 = vunpack.c.l.b16 %v2090
      %v4778 = vunpack.c.h.b16 %v2090
      %v4779 = vunpack.c.l.b16 %v2091
      %v4780 = vunpack.c.h.b16 %v2091
      %v4781 = vunpack.c.l.b16 %v2092
      %v4782 = vunpack.c.h.b16 %v2092
      %v4783 = vunpack.c.l.b16 %v2093
      %v4784 = vunpack.c.h.b16 %v2093
      %v4785 = vunpack.c.l.b16 %v2094
      %v4786 = vunpack.c.h.b16 %v2094
      %v4787 = vunpack.c.l.b16 %v2095
      %v4788 = vunpack.c.h.b16 %v2095
      %v4789 = vunpack.c.l.b16 %v2096
      %v4790 = vunpack.c.h.b16 %v2096
      %v4791 = vunpack.c.l.b16 %v2097
      %v4792 = vunpack.c.h.b16 %v2097
      %v4793 = vunpack.c.l.b16 %v2098
      %v4794 = vunpack.c.h.b16 %v2098
      %v4795 = vunpack.c.l.b16 %v2099
      %v4796 = vunpack.c.h.b16 %v2099
      %v4797 = vunpack.c.l.b16 %v2100
      %v4798 = vunpack.c.h.b16 %v2100
      %v4799 = vunpack.c.l.b16 %v2101
      %v4800 = vunpack.c.h.b16 %v2101
      %v4801 = vunpack.c.l.b16 %v2102
      %v4802 = vunpack.c.h.b16 %v2102
      %v4803 = vunpack.c.l.b16 %v2103
      %v4804 = vunpack.c.h.b16 %v2103
      %v4805 = vunpack.c.l.b16 %v2104
      %v4806 = vunpack.c.h.b16 %v2104
      %v4807 = vunpack.c.l.b16 %v2105
      %v4808 = vunpack.c.h.b16 %v2105
      %v4809 = vunpack.c.l.b16 %v2106
      %v4810 = vunpack.c.h.b16 %v2106
      %v4811 = vunpack.c.l.b16 %v2107
      %v4812 = vunpack.c.h.b16 %v2107
      %v4813 = vunpack.c.l.b16 %v2108
      %v4814 = vunpack.c.h.b16 %v2108
      %v4815 = vunpack.c.l.b16 %v2109
      %v4816 = vunpack.c.h.b16 %v2109
      %v4817 = vunpack.c.l.b16 %v2110
      %v4818 = vunpack.c.h.b16 %v2110
      %v4819 = vunpack.c.l.b16 %v2111
      %v4820 = vunpack.c.h.b16 %v2111
      %v4821 = vunpack.c.l.b16 %v2112
      %v4822 = vunpack.c.h.b16 %v2112
      %v4823 = vunpack.c.l.b16 %v2113
      %v4824 = vunpack.c.h.b16 %v2113
      %v4825 = vunpack.c.l.b16 %v2114
      %v4826 = vunpack.c.h.b16 %v2114
      %v4827 = vunpack.c.l.b16 %v2115
      %v4828 = vunpack.c.h.b16 %v2115
      %v4829 = vunpack.c.l.b16 %v2116
      %v4830 = vunpack.c.h.b16 %v2116
      %v4831 = vunpack.c.l.b16 %v2117
      %v4832 = vunpack.c.h.b16 %v2117
      %v4833 = vunpack.c.l.b16 %v2118
      %v4834 = vunpack.c.h.b16 %v2118
      %v4835 = vunpack.c.l.b16 %v2119
      %v4836 = vunpack.c.h.b16 %v2119
      %v4837 = vunpack.c.l.b16 %v2120
      %v4838 = vunpack.c.h.b16 %v2120
      %v4839 = vunpack.c.l.b16 %v2121
      %v4840 = vunpack.c.h.b16 %v2121
      %v4841 = vunpack.c.l.b16 %v2122
      %v4842 = vunpack.c.h.b16 %v2122
      %v4843 = vunpack.c.l.b16 %v2123
      %v4844 = vunpack.c.h.b16 %v2123
      %v4845 = vunpack.c.l.b16 %v2124
      %v4846 = vunpack.c.h.b16 %v2124
      %v4847 = vunpack.c.l.b16 %v2125
      %v4848 = vunpack.c.h.b16 %v2125
      %v4849 = vunpack.c.l.b16 %v2126
      %v4850 = vunpack.c.h.b16 %v2126
      %v4851 = vunpack.c.l.b16 %v2127
      %v4852 = vunpack.c.h.b16 %v2127
      %v4853 = vunpack.c.l.b16 %v2128
      %v4854 = vunpack.c.h.b16 %v2128
      %v4855 = vunpack.c.l.b16 %v2129
      %v4856 = vunpack.c.h.b16 %v2129
      %v4857 = vunpack.c.l.b16 %v2130
      %v4858 = vunpack.c.h.b16 %v2130
      %v4859 = vunpack.c.l.b16 %v2131
      %v4860 = vunpack.c.h.b16 %v2131
      %v4861 = vunpack.c.l.b16 %v2132
      %v4862 = vunpack.c.h.b16 %v2132
      %v4863 = vunpack.c.l.b16 %v2133
      %v4864 = vunpack.c.h.b16 %v2133
      %v4865 = vunpack.c.l.b16 %v2134
      %v4866 = vunpack.c.h.b16 %v2134
      %v4867 = vunpack.c.l.b16 %v2135
      %v4868 = vunpack.c.h.b16 %v2135
      %v4869 = vunpack.c.l.b16 %v2136
      %v4870 = vunpack.c.h.b16 %v2136
      %v4871 = vunpack.c.l.b16 %v2137
      %v4872 = vunpack.c.h.b16 %v2137
      %v4873 = vunpack.c.l.b16 %v2138
      %v4874 = vunpack.c.h.b16 %v2138
      %v4875 = vunpack.c.l.b16 %v2139
      %v4876 = vunpack.c.h.b16 %v2139
      %v4877 = vunpack.c.l.b16 %v2140
      %v4878 = vunpack.c.h.b16 %v2140
      %v4879 = vunpack.c.l.b16 %v2141
      %v4880 = vunpack.c.h.b16 %v2141
      %v4881 = vunpack.c.l.b16 %v2142
      %v4882 = vunpack.c.h.b16 %v2142
      %v4883 = vunpack.c.l.b16 %v2143
      %v4884 = vunpack.c.h.b16 %v2143
      %v4885 = vunpack.c.l.b16 %v2144
      %v4886 = vunpack.c.h.b16 %v2144
      %v4887 = vunpack.c.l.b16 %v2145
      %v4888 = vunpack.c.h.b16 %v2145
      %v4889 = vunpack.c.l.b16 %v2146
      %v4890 = vunpack.c.h.b16 %v2146
      %v4891 = vunpack.c.l.b16 %v2147
      %v4892 = vunpack.c.h.b16 %v2147
      %v4893 = vunpack.c.l.b16 %v2148
      %v4894 = vunpack.c.h.b16 %v2148
      %v4895 = vunpack.c.l.b16 %v2149
      %v4896 = vunpack.c.h.b16 %v2149
      %v4897 = vunpack.c.l.b16 %v2150
      %v4898 = vunpack.c.h.b16 %v2150
      %v4899 = vunpack.c.l.b16 %v2151
      %v4900 = vunpack.c.h.b16 %v2151
      %v4901 = vunpack.c.l.b16 %v2152
      %v4902 = vunpack.c.h.b16 %v2152
      %v4903 = vunpack.c.l.b16 %v2153
      %v4904 = vunpack.c.h.b16 %v2153
      %v4905 = vunpack.c.l.b16 %v2154
      %v4906 = vunpack.c.h.b16 %v2154
      %v4907 = vunpack.c.l.b16 %v2155
      %v4908 = vunpack.c.h.b16 %v2155
      %v4909 = vunpack.c.l.b16 %v2156
      %v4910 = vunpack.c.h.b16 %v2156
      %v4911 = vunpack.c.l.b16 %v2157
      %v4912 = vunpack.c.h.b16 %v2157
      %v4913 = vunpack.c.l.b16 %v2158
      %v4914 = vunpack.c.h.b16 %v2158
      %v4915 = vunpack.c.l.b16 %v2159
      %v4916 = vunpack.c.h.b16 %v2159
      %v4917 = vunpack.c.l.b16 %v2160
      %v4918 = vunpack.c.h.b16 %v2160
      %v4919 = vunpack.c.l.b16 %v2161
      %v4920 = vunpack.c.h.b16 %v2161
      %v4921 = vunpack.c.l.b16 %v2162
      %v4922 = vunpack.c.h.b16 %v2162
      %v4923 = vunpack.c.l.b16 %v2163
      %v4924 = vunpack.c.h.b16 %v2163
      %v4925 = vunpack.c.l.b16 %v2164
      %v4926 = vunpack.c.h.b16 %v2164
      %v4927 = vunpack.c.l.b16 %v2165
      %v4928 = vunpack.c.h.b16 %v2165
      %v4929 = vunpack.c.l.b16 %v2166
      %v4930 = vunpack.c.h.b16 %v2166
      %v4931 = vunpack.c.l.b16 %v2167
      %v4932 = vunpack.c.h.b16 %v2167
      %v4933 = vunpack.c.l.b16 %v2168
      %v4934 = vunpack.c.h.b16 %v2168
      %v4935 = vunpack.c.l.b16 %v2169
      %v4936 = vunpack.c.h.b16 %v2169
      %v4937 = vunpack.c.l.b16 %v2170
      %v4938 = vunpack.c.h.b16 %v2170
      %v4939 = vunpack.c.l.b16 %v2171
      %v4940 = vunpack.c.h.b16 %v2171
      %v4941 = vunpack.c.l.b16 %v2172
      %v4942 = vunpack.c.h.b16 %v2172
      %v4943 = vunpack.c.l.b16 %v2173
      %v4944 = vunpack.c.h.b16 %v2173
      %v4945 = vunpack.c.l.b16 %v2174
      %v4946 = vunpack.c.h.b16 %v2174
      %v4947 = vunpack.c.l.b16 %v2175
      %v4948 = vunpack.c.h.b16 %v2175
      %v4949 = vunpack.c.l.b16 %v2176
      %v4950 = vunpack.c.h.b16 %v2176
      %v4951 = vunpack.c.l.b16 %v2177
      %v4952 = vunpack.c.h.b16 %v2177
      %v4953 = vunpack.c.l.b16 %v2178
      %v4954 = vunpack.c.h.b16 %v2178
      %v4955 = vunpack.c.l.b16 %v2179
      %v4956 = vunpack.c.h.b16 %v2179
      %v4957 = vunpack.c.l.b16 %v2180
      %v4958 = vunpack.c.h.b16 %v2180
      %v4959 = vunpack.c.l.b16 %v2181
      %v4960 = vunpack.c.h.b16 %v2181
      %v4961 = vunpack.c.l.b16 %v2182
      %v4962 = vunpack.c.h.b16 %v2182
      %v4963 = vunpack.c.l.b16 %v2183
      %v4964 = vunpack.c.h.b16 %v2183
      %v4965 = vunpack.c.l.b16 %v2184
      %v4966 = vunpack.c.h.b16 %v2184
      %v4967 = vunpack.c.l.b16 %v2185
      %v4968 = vunpack.c.h.b16 %v2185
      %v4969 = vunpack.c.l.b16 %v2186
      %v4970 = vunpack.c.h.b16 %v2186
      %v4971 = vunpack.c.l.b16 %v2187
      %v4972 = vunpack.c.h.b16 %v2187
      %v4973 = vunpack.c.l.b16 %v2188
      %v4974 = vunpack.c.h.b16 %v2188
      %v4975 = vunpack.c.l.b16 %v2189
      %v4976 = vunpack.c.h.b16 %v2189
      %v4977 = vunpack.c.l.b16 %v2190
      %v4978 = vunpack.c.h.b16 %v2190
      %v4979 = vunpack.c.l.b16 %v2191
      %v4980 = vunpack.c.h.b16 %v2191
      %v4981 = vunpack.c.l.b16 %v2192
      %v4982 = vunpack.c.h.b16 %v2192
      %v4983 = vunpack.c.l.b16 %v2193
      %v4984 = vunpack.c.h.b16 %v2193
      %v4985 = vunpack.c.l.b16 %v2194
      %v4986 = vunpack.c.h.b16 %v2194
      %v4987 = vunpack.c.l.b16 %v2195
      %v4988 = vunpack.c.h.b16 %v2195
      %v4989 = vunpack.c.l.b16 %v2196
      %v4990 = vunpack.c.h.b16 %v2196
      %v4991 = vunpack.c.l.b16 %v2197
      %v4992 = vunpack.c.h.b16 %v2197
      %v4993 = vunpack.c.l.b16 %v2198
      %v4994 = vunpack.c.h.b16 %v2198
      %v4995 = vunpack.c.l.b16 %v2199
      %v4996 = vunpack.c.h.b16 %v2199
      %v4997 = vunpack.c.l.b16 %v2200
      %v4998 = vunpack.c.h.b16 %v2200
      %v4999 = vunpack.c.l.b16 %v2201
      %v5000 = vunpack.c.h.b16 %v2201
      %v5001 = vunpack.c.l.b16 %v2202
      %v5002 = vunpack.c.h.b16 %v2202
      %v5003 = vunpack.c.l.b16 %v2203
      %v5004 = vunpack.c.h.b16 %v2203
      %v5005 = vunpack.c.l.b16 %v2204
      %v5006 = vunpack.c.h.b16 %v2204
      %v5007 = vunpack.c.l.b16 %v2205
      %v5008 = vunpack.c.h.b16 %v2205
      %v5009 = vunpack.c.l.b16 %v2206
      %v5010 = vunpack.c.h.b16 %v2206
      %v5011 = vunpack.c.l.b16 %v2207
      %v5012 = vunpack.c.h.b16 %v2207
      %v5013 = vunpack.c.l.b16 %v2208
      %v5014 = vunpack.c.h.b16 %v2208
      %v5015 = vunpack.c.l.b16 %v2209
      %v5016 = vunpack.c.h.b16 %v2209
      %v5017 = vunpack.c.l.b16 %v2210
      %v5018 = vunpack.c.h.b16 %v2210
      %v5019 = vunpack.c.l.b16 %v2211
      %v5020 = vunpack.c.h.b16 %v2211
      %v5021 = vunpack.c.l.b16 %v2212
      %v5022 = vunpack.c.h.b16 %v2212
      %v5023 = vunpack.c.l.b16 %v2213
      %v5024 = vunpack.c.h.b16 %v2213
      %v5025 = vunpack.c.l.b16 %v2214
      %v5026 = vunpack.c.h.b16 %v2214
      %v5027 = vunpack.c.l.b16 %v2215
      %v5028 = vunpack.c.h.b16 %v2215
      %v5029 = vunpack.c.l.b16 %v2216
      %v5030 = vunpack.c.h.b16 %v2216
      %v5031 = vunpack.c.l.b16 %v2217
      %v5032 = vunpack.c.h.b16 %v2217
      %v5033 = vunpack.c.l.b16 %v2218
      %v5034 = vunpack.c.h.b16 %v2218
      %v5035 = vunpack.c.l.b16 %v2219
      %v5036 = vunpack.c.h.b16 %v2219
      %v5037 = vunpack.c.l.b16 %v2220
      %v5038 = vunpack.c.h.b16 %v2220
      %v5039 = vunpack.c.l.b16 %v2221
      %v5040 = vunpack.c.h.b16 %v2221
      %v5041 = vunpack.c.l.b16 %v2222
      %v5042 = vunpack.c.h.b16 %v2222
      %v5043 = vunpack.c.l.b16 %v2223
      %v5044 = vunpack.c.h.b16 %v2223
      %v5045 = vunpack.c.l.b16 %v2224
      %v5046 = vunpack.c.h.b16 %v2224
      %v5047 = vunpack.c.l.b16 %v2225
      %v5048 = vunpack.c.h.b16 %v2225
      %v5049 = vunpack.c.l.b16 %v2226
      %v5050 = vunpack.c.h.b16 %v2226
      %v5051 = vunpack.c.l.b16 %v2227
      %v5052 = vunpack.c.h.b16 %v2227
      %v5053 = vunpack.c.l.b16 %v2228
      %v5054 = vunpack.c.h.b16 %v2228
      %v5055 = vunpack.c.l.b16 %v2229
      %v5056 = vunpack.c.h.b16 %v2229
      %v5057 = vunpack.c.l.b16 %v2230
      %v5058 = vunpack.c.h.b16 %v2230
      %v5059 = vunpack.c.l.b16 %v2231
      %v5060 = vunpack.c.h.b16 %v2231
      %v5061 = vunpack.c.l.b16 %v2232
      %v5062 = vunpack.c.h.b16 %v2232
      %v5063 = vunpack.c.l.b16 %v2233
      %v5064 = vunpack.c.h.b16 %v2233
      %v5065 = vunpack.c.l.b16 %v2234
      %v5066 = vunpack.c.h.b16 %v2234
      %v5067 = vunpack.c.l.b16 %v2235
      %v5068 = vunpack.c.h.b16 %v2235
      %v5069 = vunpack.c.l.b16 %v2236
      %v5070 = vunpack.c.h.b16 %v2236
      %v5071 = vunpack.c.l.b16 %v2237
      %v5072 = vunpack.c.h.b16 %v2237
      %v5073 = vunpack.c.l.b16 %v2238
      %v5074 = vunpack.c.h.b16 %v2238
      %v5075 = vunpack.c.l.b16 %v2239
      %v5076 = vunpack.c.h.b16 %v2239
      %v5077 = vunpack.c.l.b16 %v2240
      %v5078 = vunpack.c.h.b16 %v2240
      %v5079 = vunpack.c.l.b16 %v2241
      %v5080 = vunpack.c.h.b16 %v2241
      %v5081 = vunpack.c.l.b16 %v2242
      %v5082 = vunpack.c.h.b16 %v2242
      %v5083 = vunpack.c.l.b16 %v2243
      %v5084 = vunpack.c.h.b16 %v2243
      %v5085 = vunpack.c.l.b16 %v2244
      %v5086 = vunpack.c.h.b16 %v2244
      %v5087 = vunpack.c.l.b16 %v2245
      %v5088 = vunpack.c.h.b16 %v2245
      %v5089 = vunpack.c.l.b16 %v2246
      %v5090 = vunpack.c.h.b16 %v2246
      %v5091 = vunpack.c.l.b16 %v2247
      %v5092 = vunpack.c.h.b16 %v2247
      %v5093 = vunpack.c.l.b16 %v2248
      %v5094 = vunpack.c.h.b16 %v2248
      %v5095 = vunpack.c.l.b16 %v2249
      %v5096 = vunpack.c.h.b16 %v2249
      %v5097 = vunpack.c.l.b16 %v2250
      %v5098 = vunpack.c.h.b16 %v2250
      %v5099 = vunpack.c.l.b16 %v2251
      %v5100 = vunpack.c.h.b16 %v2251
      %v5101 = vunpack.c.l.b16 %v2252
      %v5102 = vunpack.c.h.b16 %v2252
      %v5103 = vunpack.c.l.b16 %v2253
      %v5104 = vunpack.c.h.b16 %v2253
      %v5105 = vunpack.c.l.b16 %v2254
      %v5106 = vunpack.c.h.b16 %v2254
      %v5107 = vunpack.c.l.b16 %v2255
      %v5108 = vunpack.c.h.b16 %v2255
      %v5109 = vunpack.c.l.b16 %v2256
      %v5110 = vunpack.c.h.b16 %v2256
      %v5111 = vunpack.c.l.b16 %v2257
      %v5112 = vunpack.c.h.b16 %v2257
      %v5113 = vunpack.c.l.b16 %v2258
      %v5114 = vunpack.c.h.b16 %v2258
      %v5115 = vunpack.c.l.b16 %v2259
      %v5116 = vunpack.c.h.b16 %v2259
      %v5117 = vunpack.c.l.b16 %v2260
      %v5118 = vunpack.c.h.b16 %v2260
      %v5119 = vunpack.c.l.b16 %v2261
      %v5120 = vunpack.c.h.b16 %v2261
      %v5121 = vunpack.c.l.b16 %v2262
      %v5122 = vunpack.c.h.b16 %v2262
      %v5123 = vunpack.c.l.b16 %v2263
      %v5124 = vunpack.c.h.b16 %v2263
      %v5125 = vunpack.c.l.b16 %v2264
      %v5126 = vunpack.c.h.b16 %v2264
      %v5127 = vunpack.c.l.b16 %v2265
      %v5128 = vunpack.c.h.b16 %v2265
      %v5129 = vunpack.c.l.b16 %v2266
      %v5130 = vunpack.c.h.b16 %v2266
      %v5131 = vunpack.c.l.b16 %v2267
      %v5132 = vunpack.c.h.b16 %v2267
      %v5133 = vunpack.c.l.b16 %v2268
      %v5134 = vunpack.c.h.b16 %v2268
      %v5135 = vunpack.c.l.b16 %v2269
      %v5136 = vunpack.c.h.b16 %v2269
      %v5137 = vunpack.c.l.b16 %v2270
      %v5138 = vunpack.c.h.b16 %v2270
      %v5139 = vunpack.c.l.b16 %v2271
      %v5140 = vunpack.c.h.b16 %v2271
      %v5141 = vunpack.c.l.b16 %v2272
      %v5142 = vunpack.c.h.b16 %v2272
      %v5143 = vunpack.c.l.b16 %v2273
      %v5144 = vunpack.c.h.b16 %v2273
      %v5145 = vunpack.c.l.b16 %v2274
      %v5146 = vunpack.c.h.b16 %v2274
      %v5147 = vunpack.c.l.b16 %v2275
      %v5148 = vunpack.c.h.b16 %v2275
      %v5149 = vunpack.c.l.b16 %v2276
      %v5150 = vunpack.c.h.b16 %v2276
      %v5151 = vunpack.c.l.b16 %v2277
      %v5152 = vunpack.c.h.b16 %v2277
      %v5153 = vunpack.c.l.b16 %v2278
      %v5154 = vunpack.c.h.b16 %v2278
      %v5155 = vunpack.c.l.b16 %v2279
      %v5156 = vunpack.c.h.b16 %v2279
      %v5157 = vunpack.c.l.b16 %v2280
      %v5158 = vunpack.c.h.b16 %v2280
      %v5159 = vunpack.c.l.b16 %v2281
      %v5160 = vunpack.c.h.b16 %v2281
      %v5161 = vunpack.c.l.b16 %v2282
      %v5162 = vunpack.c.h.b16 %v2282
      %v5163 = vunpack.c.l.b16 %v2283
      %v5164 = vunpack.c.h.b16 %v2283
      %v5165 = vunpack.c.l.b16 %v2284
      %v5166 = vunpack.c.h.b16 %v2284
      %v5167 = vunpack.c.l.b16 %v2285
      %v5168 = vunpack.c.h.b16 %v2285
      %v5169 = vunpack.c.l.b16 %v2286
      %v5170 = vunpack.c.h.b16 %v2286
      %v5171 = vunpack.c.l.b16 %v2287
      %v5172 = vunpack.c.h.b16 %v2287
      %v5173 = vunpack.c.l.b16 %v2288
      %v5174 = vunpack.c.h.b16 %v2288
      %v5175 = vunpack.c.l.b16 %v2289
      %v5176 = vunpack.c.h.b16 %v2289
      %v5177 = vunpack.c.l.b16 %v2290
      %v5178 = vunpack.c.h.b16 %v2290
      %v5179 = vunpack.c.l.b16 %v2291
      %v5180 = vunpack.c.h.b16 %v2291
      %v5181 = vunpack.c.l.b16 %v2292
      %v5182 = vunpack.c.h.b16 %v2292
      %v5183 = vunpack.c.l.b16 %v2293
      %v5184 = vunpack.c.h.b16 %v2293
      %v5185 = vunpack.c.l.b16 %v2294
      %v5186 = vunpack.c.h.b16 %v2294
      %v5187 = vunpack.c.l.b16 %v2295
      %v5188 = vunpack.c.h.b16 %v2295
      %v5189 = vunpack.c.l.b16 %v2296
      %v5190 = vunpack.c.h.b16 %v2296
      %v5191 = vunpack.c.l.b16 %v2297
      %v5192 = vunpack.c.h.b16 %v2297
      %v5193 = vunpack.c.l.b16 %v2298
      %v5194 = vunpack.c.h.b16 %v2298
      %v5195 = vunpack.c.l.b16 %v2299
      %v5196 = vunpack.c.h.b16 %v2299
      %v5197 = vunpack.c.l.b16 %v2300
      %v5198 = vunpack.c.h.b16 %v2300
      %v5199 = vunpack.c.l.b16 %v2301
      %v5200 = vunpack.c.h.b16 %v2301
      %v5201 = vunpack.c.l.b16 %v2302
      %v5202 = vunpack.c.h.b16 %v2302
      %v5203 = vunpack.c.l.b16 %v2303
      %v5204 = vunpack.c.h.b16 %v2303
      %v5205 = vunpack.c.l.b16 %v2304
      %v5206 = vunpack.c.h.b16 %v2304
      %v5207 = vunpack.c.l.b16 %v2305
      %v5208 = vunpack.c.h.b16 %v2305
      %v5209 = vunpack.c.l.b16 %v2306
      %v5210 = vunpack.c.h.b16 %v2306
      %v5211 = vunpack.c.l.b16 %v2307
      %v5212 = vunpack.c.h.b16 %v2307
      %v5213 = vunpack.c.l.b16 %v2308
      %v5214 = vunpack.c.h.b16 %v2308
      %v5215 = vunpack.c.l.b16 %v2309
      %v5216 = vunpack.c.h.b16 %v2309
      %v5217 = vunpack.c.l.b16 %v2310
      %v5218 = vunpack.c.h.b16 %v2310
      %v5219 = vunpack.c.l.b16 %v2311
      %v5220 = vunpack.c.h.b16 %v2311
      %v5221 = vunpack.c.l.b16 %v2312
      %v5222 = vunpack.c.h.b16 %v2312
      %v5223 = vunpack.c.l.b16 %v2313
      %v5224 = vunpack.c.h.b16 %v2313
      %v5225 = vunpack.c.l.b16 %v2314
      %v5226 = vunpack.c.h.b16 %v2314
      %v5227 = vunpack.c.l.b16 %v2315
      %v5228 = vunpack.c.h.b16 %v2315
      %v5229 = vunpack.c.l.b16 %v2316
      %v5230 = vunpack.c.h.b16 %v2316
      %v5231 = vunpack.c.l.b16 %v2317
      %v5232 = vunpack.c.h.b16 %v2317
      %v5233 = vunpack.c.l.b16 %v2318
      %v5234 = vunpack.c.h.b16 %v2318
      %v5235 = vunpack.c.l.b16 %v2319
      %v5236 = vunpack.c.h.b16 %v2319
      %v5237 = vunpack.c.l.b16 %v2320
      %v5238 = vunpack.c.h.b16 %v2320
      %v5239 = vunpack.c.l.b16 %v2321
      %v5240 = vunpack.c.h.b16 %v2321
      %v5241 = vunpack.c.l.b16 %v2322
      %v5242 = vunpack.c.h.b16 %v2322
      %v5243 = vunpack.c.l.b16 %v2323
      %v5244 = vunpack.c.h.b16 %v2323
      %v5245 = vunpack.c.l.b16 %v2324
      %v5246 = vunpack.c.h.b16 %v2324
      %v5247 = vunpack.c.l.b16 %v2325
      %v5248 = vunpack.c.h.b16 %v2325
      %v5249 = vunpack.c.l.b16 %v2326
      %v5250 = vunpack.c.h.b16 %v2326
      %v5251 = vunpack.c.l.b16 %v2327
      %v5252 = vunpack.c.h.b16 %v2327
      %v5253 = vunpack.c.l.b16 %v2328
      %v5254 = vunpack.c.h.b16 %v2328
      %v5255 = vunpack.c.l.b16 %v2329
      %v5256 = vunpack.c.h.b16 %v2329
      %v5257 = vunpack.c.l.b16 %v2330
      %v5258 = vunpack.c.h.b16 %v2330
      %v5259 = vunpack.c.l.b16 %v2331
      %v5260 = vunpack.c.h.b16 %v2331
      %v5261 = vunpack.c.l.b16 %v2332
      %v5262 = vunpack.c.h.b16 %v2332
      %v5263 = vunpack.c.l.b16 %v2333
      %v5264 = vunpack.c.h.b16 %v2333
      %v5265 = vunpack.c.l.b16 %v2334
      %v5266 = vunpack.c.h.b16 %v2334
      %v5267 = vunpack.c.l.b16 %v2335
      %v5268 = vunpack.c.h.b16 %v2335
      %v5269 = vunpack.c.l.b16 %v2336
      %v5270 = vunpack.c.h.b16 %v2336
      %v5271 = vunpack.c.l.b16 %v2337
      %v5272 = vunpack.c.h.b16 %v2337
      %v5273 = vunpack.c.l.b16 %v2338
      %v5274 = vunpack.c.h.b16 %v2338
      %v5275 = vunpack.c.l.b16 %v2339
      %v5276 = vunpack.c.h.b16 %v2339
      %v5277 = vunpack.c.l.b16 %v2340
      %v5278 = vunpack.c.h.b16 %v2340
      %v5279 = vunpack.c.l.b16 %v2341
      %v5280 = vunpack.c.h.b16 %v2341
      %v5281 = vunpack.c.l.b16 %v2342
      %v5282 = vunpack.c.h.b16 %v2342
      %v5283 = vunpack.c.l.b16 %v2343
      %v5284 = vunpack.c.h.b16 %v2343
      %v5285 = vunpack.c.l.b16 %v2344
      %v5286 = vunpack.c.h.b16 %v2344
      %v5287 = vunpack.c.l.b16 %v2345
      %v5288 = vunpack.c.h.b16 %v2345
      %v5289 = vunpack.c.l.b16 %v2346
      %v5290 = vunpack.c.h.b16 %v2346
      %v5291 = vunpack.c.l.b16 %v2347
      %v5292 = vunpack.c.h.b16 %v2347
      %v5293 = vunpack.c.l.b16 %v2348
      %v5294 = vunpack.c.h.b16 %v2348
      %v5295 = vunpack.c.l.b16 %v2349
      %v5296 = vunpack.c.h.b16 %v2349
      %v5297 = vunpack.c.l.b16 %v2350
      %v5298 = vunpack.c.h.b16 %v2350
      %v5299 = vunpack.c.l.b16 %v2351
      %v5300 = vunpack.c.h.b16 %v2351
      %v5301 = vunpack.c.l.b16 %v2352
      %v5302 = vunpack.c.h.b16 %v2352
      %v5303 = vunpack.c.l.b16 %v2353
      %v5304 = vunpack.c.h.b16 %v2353
      %v5305 = vunpack.c.l.b16 %v2354
      %v5306 = vunpack.c.h.b16 %v2354
      %v5307 = vunpack.c.l.b16 %v2355
      %v5308 = vunpack.c.h.b16 %v2355
      %v5309 = vunpack.c.l.b16 %v2356
      %v5310 = vunpack.c.h.b16 %v2356
      %v5311 = vunpack.c.l.b16 %v2357
      %v5312 = vunpack.c.h.b16 %v2357
      %v5313 = vunpack.c.l.b16 %v2358
      %v5314 = vunpack.c.h.b16 %v2358
      %v5315 = vunpack.c.l.b16 %v2359
      %v5316 = vunpack.c.h.b16 %v2359
      %v5317 = vunpack.c.l.b16 %v2360
      %v5318 = vunpack.c.h.b16 %v2360
      %v5319 = vunpack.c.l.b16 %v2361
      %v5320 = vunpack.c.h.b16 %v2361
      %v5321 = vunpack.c.l.b16 %v2362
      %v5322 = vunpack.c.h.b16 %v2362
      %v5323 = vunpack.c.l.b16 %v2363
      %v5324 = vunpack.c.h.b16 %v2363
      %v5325 = vunpack.c.l.b16 %v2364
      %v5326 = vunpack.c.h.b16 %v2364
      %v5327 = vunpack.c.l.b16 %v2365
      %v5328 = vunpack.c.h.b16 %v2365
      %v5329 = vunpack.c.l.b16 %v2366
      %v5330 = vunpack.c.h.b16 %v2366
      %v5331 = vunpack.c.l.b16 %v2367
      %v5332 = vunpack.c.h.b16 %v2367
      %v5333 = vunpack.c.l.b16 %v2368
      %v5334 = vunpack.c.h.b16 %v2368
      %v5335 = vunpack.c.l.b16 %v2369
      %v5336 = vunpack.c.h.b16 %v2369
      %v5337 = vunpack.c.l.b16 %v2370
      %v5338 = vunpack.c.h.b16 %v2370
      %v5339 = vunpack.c.l.b16 %v2371
      %v5340 = vunpack.c.h.b16 %v2371
      %v5341 = vunpack.c.l.b16 %v2372
      %v5342 = vunpack.c.h.b16 %v2372
      %v5343 = vunpack.c.l.b16 %v2373
      %v5344 = vunpack.c.h.b16 %v2373
      %v5345 = vunpack.c.l.b16 %v2374
      %v5346 = vunpack.c.h.b16 %v2374
      %v5347 = vunpack.c.l.b16 %v2375
      %v5348 = vunpack.c.h.b16 %v2375
      %v5349 = vunpack.c.l.b16 %v2376
      %v5350 = vunpack.c.h.b16 %v2376
      %v5351 = vunpack.c.l.b16 %v2377
      %v5352 = vunpack.c.h.b16 %v2377
      %v5353 = vunpack.c.l.b16 %v2378
      %v5354 = vunpack.c.h.b16 %v2378
      %v5355 = vunpack.c.l.b16 %v2379
      %v5356 = vunpack.c.h.b16 %v2379
      %v5357 = vunpack.c.l.b16 %v2380
      %v5358 = vunpack.c.h.b16 %v2380
      %v5359 = vunpack.c.l.b16 %v2381
      %v5360 = vunpack.c.h.b16 %v2381
      %v5361 = vunpack.c.l.b16 %v2382
      %v5362 = vunpack.c.h.b16 %v2382
      %v5363 = vunpack.c.l.b16 %v2383
      %v5364 = vunpack.c.h.b16 %v2383
      %v5365 = vunpack.c.l.b16 %v2384
      %v5366 = vunpack.c.h.b16 %v2384
      %v5367 = vunpack.c.l.b16 %v2385
      %v5368 = vunpack.c.h.b16 %v2385
      %v5369 = vunpack.c.l.b16 %v2386
      %v5370 = vunpack.c.h.b16 %v2386
      %v5371 = vunpack.c.l.b16 %v2387
      %v5372 = vunpack.c.h.b16 %v2387
      %v5373 = vunpack.c.l.b16 %v2388
      %v5374 = vunpack.c.h.b16 %v2388
      %v5375 = vunpack.c.l.b16 %v2389
      %v5376 = vunpack.c.h.b16 %v2389
      %v5377 = vunpack.c.l.b16 %v2390
      %v5378 = vunpack.c.h.b16 %v2390
      %v5379 = vunpack.c.l.b16 %v2391
      %v5380 = vunpack.c.h.b16 %v2391
      %v5381 = vunpack.c.l.b16 %v2392
      %v5382 = vunpack.c.h.b16 %v2392
      %v5383 = vunpack.c.l.b16 %v2393
      %v5384 = vunpack.c.h.b16 %v2393
      %v5385 = vunpack.c.l.b16 %v2394
      %v5386 = vunpack.c.h.b16 %v2394
      %v5387 = vunpack.c.l.b16 %v2395
      %v5388 = vunpack.c.h.b16 %v2395
      %v5389 = vunpack.c.l.b16 %v2396
      %v5390 = vunpack.c.h.b16 %v2396
      %v5391 = vunpack.c.l.b16 %v2397
      %v5392 = vunpack.c.h.b16 %v2397
      %v5393 = vunpack.c.l.b16 %v2398
      %v5394 = vunpack.c.h.b16 %v2398
      %v5395 = vunpack.c.l.b16 %v2399
      %v5396 = vunpack.c.h.b16 %v2399
      %v5397 = vunpack.c.l.b16 %v2400
      %v5398 = vunpack.c.h.b16 %v2400
      %v5399 = vunpack.c.l.b16 %v2401
      %v5400 = vunpack.c.h.b16 %v2401
      %v5401 = vunpack.c.l.b16 %v2402
      %v5402 = vunpack.c.h.b16 %v2402
      %v5403 = vunpack.c.l.b16 %v2403
      %v5404 = vunpack.c.h.b16 %v2403
      %v5405 = vunpack.c.l.b16 %v2404
      %v5406 = vunpack.c.h.b16 %v2404
      %v5407 = vunpack.c.l.b16 %v2405
      %v5408 = vunpack.c.h.b16 %v2405
      %v5409 = vunpack.c.l.b16 %v2406
      %v5410 = vunpack.c.h.b16 %v2406
      %v5411 = vunpack.c.l.b16 %v2407
      %v5412 = vunpack.c.h.b16 %v2407
      %v5413 = vunpack.c.l.b16 %v2408
      %v5414 = vunpack.c.h.b16 %v2408
      %v5415 = vunpack.c.l.b16 %v2409
      %v5416 = vunpack.c.h.b16 %v2409
      %v5417 = vunpack.c.l.b16 %v2410
      %v5418 = vunpack.c.h.b16 %v2410
      %v5419 = vunpack.c.l.b16 %v2411
      %v5420 = vunpack.c.h.b16 %v2411
      %v5421 = vunpack.c.l.b16 %v2412
      %v5422 = vunpack.c.h.b16 %v2412
      %v5423 = vunpack.c.l.b16 %v2413
      %v5424 = vunpack.c.h.b16 %v2413
      %v5425 = vunpack.c.l.b16 %v2414
      %v5426 = vunpack.c.h.b16 %v2414
      %v5427 = vunpack.c.l.b16 %v2415
      %v5428 = vunpack.c.h.b16 %v2415
      %v5429 = vunpack.c.l.b16 %v2416
      %v5430 = vunpack.c.h.b16 %v2416
      %v5431 = vunpack.c.l.b16 %v2417
      %v5432 = vunpack.c.h.b16 %v2417
      %v5433 = vunpack.c.l.b16 %v2418
      %v5434 = vunpack.c.h.b16 %v2418
      %v5435 = vunpack.c.l.b16 %v2419
      %v5436 = vunpack.c.h.b16 %v2419
      %v5437 = vunpack.c.l.b16 %v2420
      %v5438 = vunpack.c.h.b16 %v2420
      %v5439 = vunpack.c.l.b16 %v2421
      %v5440 = vunpack.c.h.b16 %v2421
      %v5441 = vunpack.c.l.b16 %v2422
      %v5442 = vunpack.c.h.b16 %v2422
      %v5443 = vunpack.c.l.b16 %v2423
      %v5444 = vunpack.c.h.b16 %v2423
      %v5445 = vunpack.c.l.b16 %v2424
      %v5446 = vunpack.c.h.b16 %v2424
      %v5447 = vunpack.c.l.b16 %v2425
      %v5448 = vunpack.c.h.b16 %v2425
      %v5449 = vunpack.c.l.b16 %v2426
      %v5450 = vunpack.c.h.b16 %v2426
      %v5451 = vunpack.c.l.b16 %v2427
      %v5452 = vunpack.c.h.b16 %v2427
      %v5453 = vunpack.c.l.b16 %v2428
      %v5454 = vunpack.c.h.b16 %v2428
      %v5455 = vunpack.c.l.b16 %v2429
      %v5456 = vunpack.c.h.b16 %v2429
      %v5457 = vunpack.c.l.b16 %v2430
      %v5458 = vunpack.c.h.b16 %v2430
      %v5459 = vunpack.c.l.b16 %v2431
      %v5460 = vunpack.c.h.b16 %v2431
      %v5461 = vunpack.c.l.b16 %v2432
      %v5462 = vunpack.c.h.b16 %v2432
      %v5463 = vunpack.c.l.b16 %v2433
      %v5464 = vunpack.c.h.b16 %v2433
      %v5465 = vunpack.c.l.b16 %v2434
      %v5466 = vunpack.c.h.b16 %v2434
      %v5467 = vunpack.c.l.b16 %v2435
      %v5468 = vunpack.c.h.b16 %v2435
      %v5469 = vunpack.c.l.b16 %v2436
      %v5470 = vunpack.c.h.b16 %v2436
      %v5471 = vunpack.c.l.b16 %v2437
      %v5472 = vunpack.c.h.b16 %v2437
      %v5473 = vunpack.c.l.b16 %v2438
      %v5474 = vunpack.c.h.b16 %v2438
      %v5475 = vunpack.c.l.b16 %v2439
      %v5476 = vunpack.c.h.b16 %v2439
      %v5477 = vunpack.c.l.b16 %v2440
      %v5478 = vunpack.c.h.b16 %v2440
      %v5479 = vunpack.c.l.b16 %v2441
      %v5480 = vunpack.c.h.b16 %v2441
      %v5481 = vunpack.c.l.b16 %v2442
      %v5482 = vunpack.c.h.b16 %v2442
      %v5483 = vunpack.c.l.b16 %v2443
      %v5484 = vunpack.c.h.b16 %v2443
      %v5485 = vunpack.c.l.b16 %v2444
      %v5486 = vunpack.c.h.b16 %v2444
      %v5487 = vunpack.c.l.b16 %v2445
      %v5488 = vunpack.c.h.b16 %v2445
      %v5489 = vunpack.c.l.b16 %v2446
      %v5490 = vunpack.c.h.b16 %v2446
      %v5491 = vunpack.c.l.b16 %v2447
      %v5492 = vunpack.c.h.b16 %v2447
      %v5493 = vunpack.c.l.b16 %v2448
      %v5494 = vunpack.c.h.b16 %v2448
      %v5495 = vunpack.c.l.b16 %v2449
      %v5496 = vunpack.c.h.b16 %v2449
      %v5497 = vunpack.c.l.b16 %v2450
      %v5498 = vunpack.c.h.b16 %v2450
      %v5499 = vunpack.c.l.b16 %v2451
      %v5500 = vunpack.c.h.b16 %v2451
      %v5501 = vunpack.c.l.b16 %v2452
      %v5502 = vunpack.c.h.b16 %v2452
      %v5503 = vunpack.c.l.b16 %v2453
      %v5504 = vunpack.c.h.b16 %v2453
      %v5505 = vunpack.c.l.b16 %v2454
      %v5506 = vunpack.c.h.b16 %v2454
      %v5507 = vunpack.c.l.b16 %v2455
      %v5508 = vunpack.c.h.b16 %v2455
      %v5509 = vunpack.c.l.b16 %v2456
      %v5510 = vunpack.c.h.b16 %v2456
      %v5511 = vunpack.c.l.b16 %v2457
      %v5512 = vunpack.c.h.b16 %v2457
      %v5513 = vunpack.c.l.b16 %v2458
      %v5514 = vunpack.c.h.b16 %v2458
      %v5515 = vunpack.c.l.b16 %v2459
      %v5516 = vunpack.c.h.b16 %v2459
      %v5517 = vunpack.c.l.b16 %v2460
      %v5518 = vunpack.c.h.b16 %v2460
      %v5519 = vunpack.c.l.b16 %v2461
      %v5520 = vunpack.c.h.b16 %v2461
      %v5521 = vunpack.c.l.b16 %v2462
      %v5522 = vunpack.c.h.b16 %v2462
      %v5523 = vunpack.c.l.b16 %v2463
      %v5524 = vunpack.c.h.b16 %v2463
      %v5525 = vunpack.c.l.b16 %v2464
      %v5526 = vunpack.c.h.b16 %v2464
      %v5527 = vunpack.c.l.b16 %v2465
      %v5528 = vunpack.c.h.b16 %v2465
      %v5529 = vunpack.c.l.b16 %v2466
      %v5530 = vunpack.c.h.b16 %v2466
      %v5531 = vunpack.c.l.b16 %v2467
      %v5532 = vunpack.c.h.b16 %v2467
      %v5533 = vunpack.c.l.b16 %v2468
      %v5534 = vunpack.c.h.b16 %v2468
      %v5535 = vunpack.c.l.b16 %v2469
      %v5536 = vunpack.c.h.b16 %v2469
      %v5537 = vunpack.c.l.b16 %v2470
      %v5538 = vunpack.c.h.b16 %v2470
      %v5539 = vunpack.c.l.b16 %v2471
      %v5540 = vunpack.c.h.b16 %v2471
      %v5541 = vunpack.c.l.b16 %v2472
      %v5542 = vunpack.c.h.b16 %v2472
      %v5543 = vunpack.c.l.b16 %v2473
      %v5544 = vunpack.c.h.b16 %v2473
      %v5545 = vunpack.c.l.b16 %v2474
      %v5546 = vunpack.c.h.b16 %v2474
      %v5547 = vunpack.c.l.b16 %v2475
      %v5548 = vunpack.c.h.b16 %v2475
      %v5549 = vunpack.c.l.b16 %v2476
      %v5550 = vunpack.c.h.b16 %v2476
      %v5551 = vunpack.c.l.b16 %v2477
      %v5552 = vunpack.c.h.b16 %v2477
      %v5553 = vunpack.c.l.b16 %v2478
      %v5554 = vunpack.c.h.b16 %v2478
      %v5555 = vunpack.c.l.b16 %v2479
      %v5556 = vunpack.c.h.b16 %v2479
      %v5557 = vunpack.c.l.b16 %v2480
      %v5558 = vunpack.c.h.b16 %v2480
      %v5559 = vunpack.c.l.b16 %v2481
      %v5560 = vunpack.c.h.b16 %v2481
      %v5561 = vunpack.c.l.b16 %v2482
      %v5562 = vunpack.c.h.b16 %v2482
      %v5563 = vunpack.c.l.b16 %v2483
      %v5564 = vunpack.c.h.b16 %v2483
      %v5565 = vunpack.c.l.b16 %v2484
      %v5566 = vunpack.c.h.b16 %v2484
      %v5567 = vunpack.c.l.b16 %v2485
      %v5568 = vunpack.c.h.b16 %v2485
      %v5569 = vunpack.c.l.b16 %v2486
      %v5570 = vunpack.c.h.b16 %v2486
      %v5571 = vunpack.c.l.b16 %v2487
      %v5572 = vunpack.c.h.b16 %v2487
      %v5573 = vunpack.c.l.b16 %v2488
      %v5574 = vunpack.c.h.b16 %v2488
      %v5575 = vunpack.c.l.b16 %v2489
      %v5576 = vunpack.c.h.b16 %v2489
      %v5577 = vunpack.c.l.b16 %v2490
      %v5578 = vunpack.c.h.b16 %v2490
      %v5579 = vunpack.c.l.b16 %v2491
      %v5580 = vunpack.c.h.b16 %v2491
      %v5581 = vunpack.c.l.b16 %v2492
      %v5582 = vunpack.c.h.b16 %v2492
      %v5583 = vunpack.c.l.b16 %v2493
      %v5584 = vunpack.c.h.b16 %v2493
      %v5585 = vunpack.c.l.b16 %v2494
      %v5586 = vunpack.c.h.b16 %v2494
      %v5587 = vunpack.c.l.b16 %v2495
      %v5588 = vunpack.c.h.b16 %v2495
      %v5589 = vunpack.c.l.b16 %v2496
      %v5590 = vunpack.c.h.b16 %v2496
      %v5591 = vunpack.c.l.b16 %v2497
      %v5592 = vunpack.c.h.b16 %v2497
      %v5593 = vunpack.c.l.b16 %v2498
      %v5594 = vunpack.c.h.b16 %v2498
      %v5595 = vunpack.c.l.b16 %v2499
      %v5596 = vunpack.c.h.b16 %v2499
      %v5597 = vunpack.c.l.b16 %v2500
      %v5598 = vunpack.c.h.b16 %v2500
      %v5599 = vunpack.c.l.b16 %v2501
      %v5600 = vunpack.c.h.b16 %v2501
      %v5601 = vunpack.c.l.b16 %v2502
      %v5602 = vunpack.c.h.b16 %v2502
      %v5603 = vunpack.c.l.b16 %v2503
      %v5604 = vunpack.c.h.b16 %v2503
      %v5605 = vunpack.c.l.b16 %v2504
      %v5606 = vunpack.c.h.b16 %v2504
      %v5607 = vunpack.c.l.b16 %v2505
      %v5608 = vunpack.c.h.b16 %v2505
      %v5609 = vunpack.c.l.b16 %v2506
      %v5610 = vunpack.c.h.b16 %v2506
      %v5611 = vunpack.c.l.b16 %v2507
      %v5612 = vunpack.c.h.b16 %v2507
      %v5613 = vunpack.c.l.b16 %v2508
      %v5614 = vunpack.c.h.b16 %v2508
      %v5615 = vunpack.c.l.b16 %v2509
      %v5616 = vunpack.c.h.b16 %v2509
      %v5617 = vunpack.c.l.b16 %v2510
      %v5618 = vunpack.c.h.b16 %v2510
      %v5619 = vunpack.c.l.b16 %v2511
      %v5620 = vunpack.c.h.b16 %v2511
      %v5621 = vunpack.c.l.b16 %v2512
      %v5622 = vunpack.c.h.b16 %v2512
      %v5623 = vunpack.c.l.b16 %v2513
      %v5624 = vunpack.c.h.b16 %v2513
      %v5625 = vunpack.c.l.b16 %v2514
      %v5626 = vunpack.c.h.b16 %v2514
      %v5627 = vunpack.c.l.b16 %v2515
      %v5628 = vunpack.c.h.b16 %v2515
      %v5629 = vunpack.c.l.b16 %v2516
      %v5630 = vunpack.c.h.b16 %v2516
      %v5631 = vpack.c.b16 %v3591, %v3583
      %v5632 = vpack.c.b16 %v3592, %v3584
      %v5633 = vpack.c.b16 %v3593, %v3585
      %v5634 = vpack.c.b16 %v3594, %v3586
      %v5635 = vpack.c.b16 %v3595, %v3587
      %v5636 = vpack.c.b16 %v3596, %v3588
      %v5637 = vpack.c.b16 %v3597, %v3589
      %v5638 = vpack.c.b16 %v3598, %v3590
      %v5639 = vpack.c.b16 %v3607, %v3599
      %v5640 = vpack.c.b16 %v3608, %v3600
      %v5641 = vpack.c.b16 %v3609, %v3601
      %v5642 = vpack.c.b16 %v3610, %v3602
      %v5643 = vpack.c.b16 %v3611, %v3603
      %v5644 = vpack.c.b16 %v3612, %v3604
      %v5645 = vpack.c.b16 %v3613, %v3605
      %v5646 = vpack.c.b16 %v3614, %v3606
      %v5647 = vpack.c.b16 %v3623, %v3615
      %v5648 = vpack.c.b16 %v3624, %v3616
      %v5649 = vpack.c.b16 %v3625, %v3617
      %v5650 = vpack.c.b16 %v3626, %v3618
      %v5651 = vpack.c.b16 %v3627, %v3619
      %v5652 = vpack.c.b16 %v3628, %v3620
      %v5653 = vpack.c.b16 %v3629, %v3621
      %v5654 = vpack.c.b16 %v3630, %v3622
      %v5655 = vpack.c.b16 %v3639, %v3631
      %v5656 = vpack.c.b16 %v3640, %v3632
      %v5657 = vpack.c.b16 %v3641, %v3633
      %v5658 = vpack.c.b16 %v3642, %v3634
      %v5659 = vpack.c.b16 %v3643, %v3635
      %v5660 = vpack.c.b16 %v3644, %v3636
      %v5661 = vpack.c.b16 %v3645, %v3637
      %v5662 = vpack.c.b16 %v3646, %v3638
      %v5663 = vpack.c.b16 %v3655, %v3647
      %v5664 = vpack.c.b16 %v3656, %v3648
      %v5665 = vpack.c.b16 %v3657, %v3649
      %v5666 = vpack.c.b16 %v3658, %v3650
      %v5667 = vpack.c.b16 %v3659, %v3651
      %v5668 = vpack.c.b16 %v3660, %v3652
      %v5669 = vpack.c.b16 %v3661, %v3653
      %v5670 = vpack.c.b16 %v3662, %v3654
      %v5671 = vpack.c.b16 %v3671, %v3663
      %v5672 = vpack.c.b16 %v3672, %v3664
      %v5673 = vpack.c.b16 %v3673, %v3665
      %v5674 = vpack.c.b16 %v3674, %v3666
      %v5675 = vpack.c.b16 %v3675, %v3667
      %v5676 = vpack.c.b16 %v3676, %v3668
      %v5677 = vpack.c.b16 %v3677, %v3669
      %v5678 = vpack.c.b16 %v3678, %v3670
      %v5679 = vpack.c.b16 %v3687, %v3679
      %v5680 = vpack.c.b16 %v3688, %v3680
      %v5681 = vpack.c.b16 %v3689, %v3681
      %v5682 = vpack.c.b16 %v3690, %v3682
      %v5683 = vpack.c.b16 %v3691, %v3683
      %v5684 = vpack.c.b16 %v3692, %v3684
      %v5685 = vpack.c.b16 %v3693, %v3685
      %v5686 = vpack.c.b16 %v3694, %v3686
      %v5687 = vpack.c.b16 %v3703, %v3695
      %v5688 = vpack.c.b16 %v3704, %v3696
      %v5689 = vpack.c.b16 %v3705, %v3697
      %v5690 = vpack.c.b16 %v3706, %v3698
      %v5691 = vpack.c.b16 %v3707, %v3699
      %v5692 = vpack.c.b16 %v3708, %v3700
      %v5693 = vpack.c.b16 %v3709, %v3701
      %v5694 = vpack.c.b16 %v3710, %v3702
      %v5695 = vpack.c.b16 %v3719, %v3711
      %v5696 = vpack.c.b16 %v3720, %v3712
      %v5697 = vpack.c.b16 %v3721, %v3713
      %v5698 = vpack.c.b16 %v3722, %v3714
      %v5699 = vpack.c.b16 %v3723, %v3715
      %v5700 = vpack.c.b16 %v3724, %v3716
      %v5701 = vpack.c.b16 %v3725, %v3717
      %v5702 = vpack.c.b16 %v3726, %v3718
      %v5703 = vpack.c.b16 %v3735, %v3727
      %v5704 = vpack.c.b16 %v3736, %v3728
      %v5705 = vpack.c.b16 %v3737, %v3729
      %v5706 = vpack.c.b16 %v3738, %v3730
      %v5707 = vpack.c.b16 %v3739, %v3731
      %v5708 = vpack.c.b16 %v3740, %v3732
      %v5709 = vpack.c.b16 %v3741, %v3733
      %v5710 = vpack.c.b16 %v3742, %v3734
      %v5711 = vpack.c.b16 %v3751, %v3743
      %v5712 = vpack.c.b16 %v3752, %v3744
      %v5713 = vpack.c.b16 %v3753, %v3745
      %v5714 = vpack.c.b16 %v3754, %v3746
      %v5715 = vpack.c.b16 %v3755, %v3747
      %v5716 = vpack.c.b16 %v3756, %v3748
      %v5717 = vpack.c.b16 %v3757, %v3749
      %v5718 = vpack.c.b16 %v3758, %v3750
      %v5719 = vpack.c.b16 %v3767, %v3759
      %v5720 = vpack.c.b16 %v3768, %v3760
      %v5721 = vpack.c.b16 %v3769, %v3761
      %v5722 = vpack.c.b16 %v3770, %v3762
      %v5723 = vpack.c.b16 %v3771, %v3763
      %v5724 = vpack.c.b16 %v3772, %v3764
      %v5725 = vpack.c.b16 %v3773, %v3765
      %v5726 = vpack.c.b16 %v3774, %v3766
      %v5727 = vpack.c.b16 %v3783, %v3775
      %v5728 = vpack.c.b16 %v3784, %v3776
      %v5729 = vpack.c.b16 %v3785, %v3777
      %v5730 = vpack.c.b16 %v3786, %v3778
      %v5731 = vpack.c.b16 %v3787, %v3779
      %v5732 = vpack.c.b16 %v3788, %v3780
      %v5733 = vpack.c.b16 %v3789, %v3781
      %v5734 = vpack.c.b16 %v3790, %v3782
      %v5735 = vpack.c.b16 %v3799, %v3791
      %v5736 = vpack.c.b16 %v3800, %v3792
      %v5737 = vpack.c.b16 %v3801, %v3793
      %v5738 = vpack.c.b16 %v3802, %v3794
      %v5739 = vpack.c.b16 %v3803, %v3795
      %v5740 = vpack.c.b16 %v3804, %v3796
      %v5741 = vpack.c.b16 %v3805, %v3797
      %v5742 = vpack.c.b16 %v3806, %v3798
      %v5743 = vpack.c.b16 %v3815, %v3807
      %v5744 = vpack.c.b16 %v3816, %v3808
      %v5745 = vpack.c.b16 %v3817, %v3809
      %v5746 = vpack.c.b16 %v3818, %v3810
      %v5747 = vpack.c.b16 %v3819, %v3811
      %v5748 = vpack.c.b16 %v3820, %v3812
      %v5749 = vpack.c.b16 %v3821, %v3813
      %v5750 = vpack.c.b16 %v3822, %v3814
      %v5751 = vpack.c.b16 %v3831, %v3823
      %v5752 = vpack.c.b16 %v3832, %v3824
      %v5753 = vpack.c.b16 %v3833, %v3825
      %v5754 = vpack.c.b16 %v3834, %v3826
      %v5755 = vpack.c.b16 %v3835, %v3827
      %v5756 = vpack.c.b16 %v3836, %v3828
      %v5757 = vpack.c.b16 %v3837, %v3829
      %v5758 = vpack.c.b16 %v3838, %v3830
      %v5759 = vpack.c.b16 %v3847, %v3839
      %v5760 = vpack.c.b16 %v3848, %v3840
      %v5761 = vpack.c.b16 %v3849, %v3841
      %v5762 = vpack.c.b16 %v3850, %v3842
      %v5763 = vpack.c.b16 %v3851, %v3843
      %v5764 = vpack.c.b16 %v3852, %v3844
      %v5765 = vpack.c.b16 %v3853, %v3845
      %v5766 = vpack.c.b16 %v3854, %v3846
      %v5767 = vpack.c.b16 %v3863, %v3855
      %v5768 = vpack.c.b16 %v3864, %v3856
      %v5769 = vpack.c.b16 %v3865, %v3857
      %v5770 = vpack.c.b16 %v3866, %v3858
      %v5771 = vpack.c.b16 %v3867, %v3859
      %v5772 = vpack.c.b16 %v3868, %v3860
      %v5773 = vpack.c.b16 %v3869, %v3861
      %v5774 = vpack.c.b16 %v3870, %v3862
      %v5775 = vpack.c.b16 %v3879, %v3871
      %v5776 = vpack.c.b16 %v3880, %v3872
      %v5777 = vpack.c.b16 %v3881, %v3873
      %v5778 = vpack.c.b16 %v3882, %v3874
      %v5779 = vpack.c.b16 %v3883, %v3875
      %v5780 = vpack.c.b16 %v3884, %v3876
      %v5781 = vpack.c.b16 %v3885, %v3877
      %v5782 = vpack.c.b16 %v3886, %v3878
      %v5783 = vpack.c.b16 %v3895, %v3887
      %v5784 = vpack.c.b16 %v3896, %v3888
      %v5785 = vpack.c.b16 %v3897, %v3889
      %v5786 = vpack.c.b16 %v3898, %v3890
      %v5787 = vpack.c.b16 %v3899, %v3891
      %v5788 = vpack.c.b16 %v3900, %v3892
      %v5789 = vpack.c.b16 %v3901, %v3893
      %v5790 = vpack.c.b16 %v3902, %v3894
      %v5791 = vpack.c.b16 %v3911, %v3903
      %v5792 = vpack.c.b16 %v3912, %v3904
      %v5793 = vpack.c.b16 %v3913, %v3905
      %v5794 = vpack.c.b16 %v3914, %v3906
      %v5795 = vpack.c.b16 %v3915, %v3907
      %v5796 = vpack.c.b16 %v3916, %v3908
      %v5797 = vpack.c.b16 %v3917, %v3909
      %v5798 = vpack.c.b16 %v3918, %v3910
      %v5799 = vpack.c.b16 %v3927, %v3919
      %v5800 = vpack.c.b16 %v3928, %v3920
      %v5801 = vpack.c.b16 %v3929, %v3921
      %v5802 = vpack.c.b16 %v3930, %v3922
      %v5803 = vpack.c.b16 %v3931, %v3923
      %v5804 = vpack.c.b16 %v3932, %v3924
      %v5805 = vpack.c.b16 %v3933, %v3925
      %v5806 = vpack.c.b16 %v3934, %v3926
      %v5807 = vpack.c.b16 %v3943, %v3935
      %v5808 = vpack.c.b16 %v3944, %v3936
      %v5809 = vpack.c.b16 %v3945, %v3937
      %v5810 = vpack.c.b16 %v3946, %v3938
      %v5811 = vpack.c.b16 %v3947, %v3939
      %v5812 = vpack.c.b16 %v3948, %v3940
      %v5813 = vpack.c.b16 %v3949, %v3941
      %v5814 = vpack.c.b16 %v3950, %v3942
      %v5815 = vpack.c.b16 %v3959, %v3951
      %v5816 = vpack.c.b16 %v3960, %v3952
      %v5817 = vpack.c.b16 %v3961, %v3953
      %v5818 = vpack.c.b16 %v3962, %v3954
      %v5819 = vpack.c.b16 %v3963, %v3955
      %v5820 = vpack.c.b16 %v3964, %v3956
      %v5821 = vpack.c.b16 %v3965, %v3957
      %v5822 = vpack.c.b16 %v3966, %v3958
      %v5823 = vpack.c.b16 %v3975, %v3967
      %v5824 = vpack.c.b16 %v3976, %v3968
      %v5825 = vpack.c.b16 %v3977, %v3969
      %v5826 = vpack.c.b16 %v3978, %v3970
      %v5827 = vpack.c.b16 %v3979, %v3971
      %v5828 = vpack.c.b16 %v3980, %v3972
      %v5829 = vpack.c.b16 %v3981, %v3973
      %v5830 = vpack.c.b16 %v3982, %v3974
      %v5831 = vpack.c.b16 %v3991, %v3983
      %v5832 = vpack.c.b16 %v3992, %v3984
      %v5833 = vpack.c.b16 %v3993, %v3985
      %v5834 = vpack.c.b16 %v3994, %v3986
      %v5835 = vpack.c.b16 %v3995, %v3987
      %v5836 = vpack.c.b16 %v3996, %v3988
      %v5837 = vpack.c.b16 %v3997, %v3989
      %v5838 = vpack.c.b16 %v3998, %v3990
      %v5839 = vpack.c.b16 %v4007, %v3999
      %v5840 = vpack.c.b16 %v4008, %v4000
      %v5841 = vpack.c.b16 %v4009, %v4001
      %v5842 = vpack.c.b16 %v4010, %v4002
      %v5843 = vpack.c.b16 %v4011, %v4003
      %v5844 = vpack.c.b16 %v4012, %v4004
      %v5845 = vpack.c.b16 %v4013, %v4005
      %v5846 = vpack.c.b16 %v4014, %v4006
      %v5847 = vpack.c.b16 %v4023, %v4015
      %v5848 = vpack.c.b16 %v4024, %v4016
      %v5849 = vpack.c.b16 %v4025, %v4017
      %v5850 = vpack.c.b16 %v4026, %v4018
      %v5851 = vpack.c.b16 %v4027, %v4019
      %v5852 = vpack.c.b16 %v4028, %v4020
      %v5853 = vpack.c.b16 %v4029, %v4021
      %v5854 = vpack.c.b16 %v4030, %v4022
      %v5855 = vpack.c.b16 %v4039, %v4031
      %v5856 = vpack.c.b16 %v4040, %v4032
      %v5857 = vpack.c.b16 %v4041, %v4033
      %v5858 = vpack.c.b16 %v4042, %v4034
      %v5859 = vpack.c.b16 %v4043, %v4035
      %v5860 = vpack.c.b16 %v4044, %v4036
      %v5861 = vpack.c.b16 %v4045, %v4037
      %v5862 = vpack.c.b16 %v4046, %v4038
      %v5863 = vpack.c.b16 %v4055, %v4047
      %v5864 = vpack.c.b16 %v4056, %v4048
      %v5865 = vpack.c.b16 %v4057, %v4049
      %v5866 = vpack.c.b16 %v4058, %v4050
      %v5867 = vpack.c.b16 %v4059, %v4051
      %v5868 = vpack.c.b16 %v4060, %v4052
      %v5869 = vpack.c.b16 %v4061, %v4053
      %v5870 = vpack.c.b16 %v4062, %v4054
      %v5871 = vpack.c.b16 %v4071, %v4063
      %v5872 = vpack.c.b16 %v4072, %v4064
      %v5873 = vpack.c.b16 %v4073, %v4065
      %v5874 = vpack.c.b16 %v4074, %v4066
      %v5875 = vpack.c.b16 %v4075, %v4067
      %v5876 = vpack.c.b16 %v4076, %v4068
      %v5877 = vpack.c.b16 %v4077, %v4069
      %v5878 = vpack.c.b16 %v4078, %v4070
      %v5879 = vpack.c.b16 %v4087, %v4079
      %v5880 = vpack.c.b16 %v4088, %v4080
      %v5881 = vpack.c.b16 %v4089, %v4081
      %v5882 = vpack.c.b16 %v4090, %v4082
      %v5883 = vpack.c.b16 %v4091, %v4083
      %v5884 = vpack.c.b16 %v4092, %v4084
      %v5885 = vpack.c.b16 %v4093, %v4085
      %v5886 = vpack.c.b16 %v4094, %v4086
      %v5887 = vpack.c.b16 %v4103, %v4095
      %v5888 = vpack.c.b16 %v4104, %v4096
      %v5889 = vpack.c.b16 %v4105, %v4097
      %v5890 = vpack.c.b16 %v4106, %v4098
      %v5891 = vpack.c.b16 %v4107, %v4099
      %v5892 = vpack.c.b16 %v4108, %v4100
      %v5893 = vpack.c.b16 %v4109, %v4101
      %v5894 = vpack.c.b16 %v4110, %v4102
      %v5895 = vpack.c.b16 %v4119, %v4111
      %v5896 = vpack.c.b16 %v4120, %v4112
      %v5897 = vpack.c.b16 %v4121, %v4113
      %v5898 = vpack.c.b16 %v4122, %v4114
      %v5899 = vpack.c.b16 %v4123, %v4115
      %v5900 = vpack.c.b16 %v4124, %v4116
      %v5901 = vpack.c.b16 %v4125, %v4117
      %v5902 = vpack.c.b16 %v4126, %v4118
      %v5903 = vpack.c.b16 %v4135, %v4127
      %v5904 = vpack.c.b16 %v4136, %v4128
      %v5905 = vpack.c.b16 %v4137, %v4129
      %v5906 = vpack.c.b16 %v4138, %v4130
      %v5907 = vpack.c.b16 %v4139, %v4131
      %v5908 = vpack.c.b16 %v4140, %v4132
      %v5909 = vpack.c.b16 %v4141, %v4133
      %v5910 = vpack.c.b16 %v4142, %v4134
      %v5911 = vpack.c.b16 %v4151, %v4143
      %v5912 = vpack.c.b16 %v4152, %v4144
      %v5913 = vpack.c.b16 %v4153, %v4145
      %v5914 = vpack.c.b16 %v4154, %v4146
      %v5915 = vpack.c.b16 %v4155, %v4147
      %v5916 = vpack.c.b16 %v4156, %v4148
      %v5917 = vpack.c.b16 %v4157, %v4149
      %v5918 = vpack.c.b16 %v4158, %v4150
      %v5919 = vpack.c.b16 %v4167, %v4159
      %v5920 = vpack.c.b16 %v4168, %v4160
      %v5921 = vpack.c.b16 %v4169, %v4161
      %v5922 = vpack.c.b16 %v4170, %v4162
      %v5923 = vpack.c.b16 %v4171, %v4163
      %v5924 = vpack.c.b16 %v4172, %v4164
      %v5925 = vpack.c.b16 %v4173, %v4165
      %v5926 = vpack.c.b16 %v4174, %v4166
      %v5927 = vpack.c.b16 %v4183, %v4175
      %v5928 = vpack.c.b16 %v4184, %v4176
      %v5929 = vpack.c.b16 %v4185, %v4177
      %v5930 = vpack.c.b16 %v4186, %v4178
      %v5931 = vpack.c.b16 %v4187, %v4179
      %v5932 = vpack.c.b16 %v4188, %v4180
      %v5933 = vpack.c.b16 %v4189, %v4181
      %v5934 = vpack.c.b16 %v4190, %v4182
      %v5935 = vpack.c.b16 %v4199, %v4191
      %v5936 = vpack.c.b16 %v4200, %v4192
      %v5937 = vpack.c.b16 %v4201, %v4193
      %v5938 = vpack.c.b16 %v4202, %v4194
      %v5939 = vpack.c.b16 %v4203, %v4195
      %v5940 = vpack.c.b16 %v4204, %v4196
      %v5941 = vpack.c.b16 %v4205, %v4197
      %v5942 = vpack.c.b16 %v4206, %v4198
      %v5943 = vpack.c.b16 %v4215, %v4207
      %v5944 = vpack.c.b16 %v4216, %v4208
      %v5945 = vpack.c.b16 %v4217, %v4209
      %v5946 = vpack.c.b16 %v4218, %v4210
      %v5947 = vpack.c.b16 %v4219, %v4211
      %v5948 = vpack.c.b16 %v4220, %v4212
      %v5949 = vpack.c.b16 %v4221, %v4213
      %v5950 = vpack.c.b16 %v4222, %v4214
      %v5951 = vpack.c.b16 %v4231, %v4223
      %v5952 = vpack.c.b16 %v4232, %v4224
      %v5953 = vpack.c.b16 %v4233, %v4225
      %v5954 = vpack.c.b16 %v4234, %v4226
      %v5955 = vpack.c.b16 %v4235, %v4227
      %v5956 = vpack.c.b16 %v4236, %v4228
      %v5957 = vpack.c.b16 %v4237, %v4229
      %v5958 = vpack.c.b16 %v4238, %v4230
      %v5959 = vpack.c.b16 %v4247, %v4239
      %v5960 = vpack.c.b16 %v4248, %v4240
      %v5961 = vpack.c.b16 %v4249, %v4241
      %v5962 = vpack.c.b16 %v4250, %v4242
      %v5963 = vpack.c.b16 %v4251, %v4243
      %v5964 = vpack.c.b16 %v4252, %v4244
      %v5965 = vpack.c.b16 %v4253, %v4245
      %v5966 = vpack.c.b16 %v4254, %v4246
      %v5967 = vpack.c.b16 %v4263, %v4255
      %v5968 = vpack.c.b16 %v4264, %v4256
      %v5969 = vpack.c.b16 %v4265, %v4257
      %v5970 = vpack.c.b16 %v4266, %v4258
      %v5971 = vpack.c.b16 %v4267, %v4259
      %v5972 = vpack.c.b16 %v4268, %v4260
      %v5973 = vpack.c.b16 %v4269, %v4261
      %v5974 = vpack.c.b16 %v4270, %v4262
      %v5975 = vpack.c.b16 %v4279, %v4271
      %v5976 = vpack.c.b16 %v4280, %v4272
      %v5977 = vpack.c.b16 %v4281, %v4273
      %v5978 = vpack.c.b16 %v4282, %v4274
      %v5979 = vpack.c.b16 %v4283, %v4275
      %v5980 = vpack.c.b16 %v4284, %v4276
      %v5981 = vpack.c.b16 %v4285, %v4277
      %v5982 = vpack.c.b16 %v4286, %v4278
      %v5983 = vpack.c.b16 %v4295, %v4287
      %v5984 = vpack.c.b16 %v4296, %v4288
      %v5985 = vpack.c.b16 %v4297, %v4289
      %v5986 = vpack.c.b16 %v4298, %v4290
      %v5987 = vpack.c.b16 %v4299, %v4291
      %v5988 = vpack.c.b16 %v4300, %v4292
      %v5989 = vpack.c.b16 %v4301, %v4293
      %v5990 = vpack.c.b16 %v4302, %v4294
      %v5991 = vpack.c.b16 %v4311, %v4303
      %v5992 = vpack.c.b16 %v4312, %v4304
      %v5993 = vpack.c.b16 %v4313, %v4305
      %v5994 = vpack.c.b16 %v4314, %v4306
      %v5995 = vpack.c.b16 %v4315, %v4307
      %v5996 = vpack.c.b16 %v4316, %v4308
      %v5997 = vpack.c.b16 %v4317, %v4309
      %v5998 = vpack.c.b16 %v4318, %v4310
      %v5999 = vpack.c.b16 %v4327, %v4319
      %v6000 = vpack.c.b16 %v4328, %v4320
      %v6001 = vpack.c.b16 %v4329, %v4321
      %v6002 = vpack.c.b16 %v4330, %v4322
      %v6003 = vpack.c.b16 %v4331, %v4323
      %v6004 = vpack.c.b16 %v4332, %v4324
      %v6005 = vpack.c.b16 %v4333, %v4325
      %v6006 = vpack.c.b16 %v4334, %v4326
      %v6007 = vpack.c.b16 %v4343, %v4335
      %v6008 = vpack.c.b16 %v4344, %v4336
      %v6009 = vpack.c.b16 %v4345, %v4337
      %v6010 = vpack.c.b16 %v4346, %v4338
      %v6011 = vpack.c.b16 %v4347, %v4339
      %v6012 = vpack.c.b16 %v4348, %v4340
      %v6013 = vpack.c.b16 %v4349, %v4341
      %v6014 = vpack.c.b16 %v4350, %v4342
      %v6015 = vpack.c.b16 %v4359, %v4351
      %v6016 = vpack.c.b16 %v4360, %v4352
      %v6017 = vpack.c.b16 %v4361, %v4353
      %v6018 = vpack.c.b16 %v4362, %v4354
      %v6019 = vpack.c.b16 %v4363, %v4355
      %v6020 = vpack.c.b16 %v4364, %v4356
      %v6021 = vpack.c.b16 %v4365, %v4357
      %v6022 = vpack.c.b16 %v4366, %v4358
      %v6023 = vpack.c.b16 %v4375, %v4367
      %v6024 = vpack.c.b16 %v4376, %v4368
      %v6025 = vpack.c.b16 %v4377, %v4369
      %v6026 = vpack.c.b16 %v4378, %v4370
      %v6027 = vpack.c.b16 %v4379, %v4371
      %v6028 = vpack.c.b16 %v4380, %v4372
      %v6029 = vpack.c.b16 %v4381, %v4373
      %v6030 = vpack.c.b16 %v4382, %v4374
      %v6031 = vpack.c.b16 %v4391, %v4383
      %v6032 = vpack.c.b16 %v4392, %v4384
      %v6033 = vpack.c.b16 %v4393, %v4385
      %v6034 = vpack.c.b16 %v4394, %v4386
      %v6035 = vpack.c.b16 %v4395, %v4387
      %v6036 = vpack.c.b16 %v4396, %v4388
      %v6037 = vpack.c.b16 %v4397, %v4389
      %v6038 = vpack.c.b16 %v4398, %v4390
      %v6039 = vpack.c.b16 %v4407, %v4399
      %v6040 = vpack.c.b16 %v4408, %v4400
      %v6041 = vpack.c.b16 %v4409, %v4401
      %v6042 = vpack.c.b16 %v4410, %v4402
      %v6043 = vpack.c.b16 %v4411, %v4403
      %v6044 = vpack.c.b16 %v4412, %v4404
      %v6045 = vpack.c.b16 %v4413, %v4405
      %v6046 = vpack.c.b16 %v4414, %v4406
      %v6047 = vpack.c.b16 %v4423, %v4415
      %v6048 = vpack.c.b16 %v4424, %v4416
      %v6049 = vpack.c.b16 %v4425, %v4417
      %v6050 = vpack.c.b16 %v4426, %v4418
      %v6051 = vpack.c.b16 %v4427, %v4419
      %v6052 = vpack.c.b16 %v4428, %v4420
      %v6053 = vpack.c.b16 %v4429, %v4421
      %v6054 = vpack.c.b16 %v4430, %v4422
      %v6055 = vpack.c.b16 %v4439, %v4431
      %v6056 = vpack.c.b16 %v4440, %v4432
      %v6057 = vpack.c.b16 %v4441, %v4433
      %v6058 = vpack.c.b16 %v4442, %v4434
      %v6059 = vpack.c.b16 %v4443, %v4435
      %v6060 = vpack.c.b16 %v4444, %v4436
      %v6061 = vpack.c.b16 %v4445, %v4437
      %v6062 = vpack.c.b16 %v4446, %v4438
      %v6063 = vpack.c.b16 %v4455, %v4447
      %v6064 = vpack.c.b16 %v4456, %v4448
      %v6065 = vpack.c.b16 %v4457, %v4449
      %v6066 = vpack.c.b16 %v4458, %v4450
      %v6067 = vpack.c.b16 %v4459, %v4451
      %v6068 = vpack.c.b16 %v4460, %v4452
      %v6069 = vpack.c.b16 %v4461, %v4453
      %v6070 = vpack.c.b16 %v4462, %v4454
      %v6071 = vpack.c.b16 %v4471, %v4463
      %v6072 = vpack.c.b16 %v4472, %v4464
      %v6073 = vpack.c.b16 %v4473, %v4465
      %v6074 = vpack.c.b16 %v4474, %v4466
      %v6075 = vpack.c.b16 %v4475, %v4467
      %v6076 = vpack.c.b16 %v4476, %v4468
      %v6077 = vpack.c.b16 %v4477, %v4469
      %v6078 = vpack.c.b16 %v4478, %v4470
      %v6079 = vpack.c.b16 %v4487, %v4479
      %v6080 = vpack.c.b16 %v4488, %v4480
      %v6081 = vpack.c.b16 %v4489, %v4481
      %v6082 = vpack.c.b16 %v4490, %v4482
      %v6083 = vpack.c.b16 %v4491, %v4483
      %v6084 = vpack.c.b16 %v4492, %v4484
      %v6085 = vpack.c.b16 %v4493, %v4485
      %v6086 = vpack.c.b16 %v4494, %v4486
      %v6087 = vpack.c.b16 %v4503, %v4495
      %v6088 = vpack.c.b16 %v4504, %v4496
      %v6089 = vpack.c.b16 %v4505, %v4497
      %v6090 = vpack.c.b16 %v4506, %v4498
      %v6091 = vpack.c.b16 %v4507, %v4499
      %v6092 = vpack.c.b16 %v4508, %v4500
      %v6093 = vpack.c.b16 %v4509, %v4501
      %v6094 = vpack.c.b16 %v4510, %v4502
      %v6095 = vpack.c.b16 %v4519, %v4511
      %v6096 = vpack.c.b16 %v4520, %v4512
      %v6097 = vpack.c.b16 %v4521, %v4513
      %v6098 = vpack.c.b16 %v4522, %v4514
      %v6099 = vpack.c.b16 %v4523, %v4515
      %v6100 = vpack.c.b16 %v4524, %v4516
      %v6101 = vpack.c.b16 %v4525, %v4517
      %v6102 = vpack.c.b16 %v4526, %v4518
      %v6103 = vpack.c.b16 %v4535, %v4527
      %v6104 = vpack.c.b16 %v4536, %v4528
      %v6105 = vpack.c.b16 %v4537, %v4529
      %v6106 = vpack.c.b16 %v4538, %v4530
      %v6107 = vpack.c.b16 %v4539, %v4531
      %v6108 = vpack.c.b16 %v4540, %v4532
      %v6109 = vpack.c.b16 %v4541, %v4533
      %v6110 = vpack.c.b16 %v4542, %v4534
      %v6111 = vpack.c.b16 %v4551, %v4543
      %v6112 = vpack.c.b16 %v4552, %v4544
      %v6113 = vpack.c.b16 %v4553, %v4545
      %v6114 = vpack.c.b16 %v4554, %v4546
      %v6115 = vpack.c.b16 %v4555, %v4547
      %v6116 = vpack.c.b16 %v4556, %v4548
      %v6117 = vpack.c.b16 %v4557, %v4549
      %v6118 = vpack.c.b16 %v4558, %v4550
      %v6119 = vpack.c.b16 %v4567, %v4559
      %v6120 = vpack.c.b16 %v4568, %v4560
      %v6121 = vpack.c.b16 %v4569, %v4561
      %v6122 = vpack.c.b16 %v4570, %v4562
      %v6123 = vpack.c.b16 %v4571, %v4563
      %v6124 = vpack.c.b16 %v4572, %v4564
      %v6125 = vpack.c.b16 %v4573, %v4565
      %v6126 = vpack.c.b16 %v4574, %v4566
      %v6127 = vpack.c.b16 %v4583, %v4575
      %v6128 = vpack.c.b16 %v4584, %v4576
      %v6129 = vpack.c.b16 %v4585, %v4577
      %v6130 = vpack.c.b16 %v4586, %v4578
      %v6131 = vpack.c.b16 %v4587, %v4579
      %v6132 = vpack.c.b16 %v4588, %v4580
      %v6133 = vpack.c.b16 %v4589, %v4581
      %v6134 = vpack.c.b16 %v4590, %v4582
      %v6135 = vpack.c.b16 %v4599, %v4591
      %v6136 = vpack.c.b16 %v4600, %v4592
      %v6137 = vpack.c.b16 %v4601, %v4593
      %v6138 = vpack.c.b16 %v4602, %v4594
      %v6139 = vpack.c.b16 %v4603, %v4595
      %v6140 = vpack.c.b16 %v4604, %v4596
      %v6141 = vpack.c.b16 %v4605, %v4597
      %v6142 = vpack.c.b16 %v4606, %v4598
      %v6143 = vpack.c.b16 %v4615, %v4607
      %v6144 = vpack.c.b16 %v4616, %v4608
      %v6145 = vpack.c.b16 %v4617, %v4609
      %v6146 = vpack.c.b16 %v4618, %v4610
      %v6147 = vpack.c.b16 %v4619, %v4611
      %v6148 = vpack.c.b16 %v4620, %v4612
      %v6149 = vpack.c.b16 %v4621, %v4613
      %v6150 = vpack.c.b16 %v4622, %v4614
      %v6151 = vpack.c.b16 %v4631, %v4623
      %v6152 = vpack.c.b16 %v4632, %v4624
      %v6153 = vpack.c.b16 %v4633, %v4625
      %v6154 = vpack.c.b16 %v4634, %v4626
      %v6155 = vpack.c.b16 %v4635, %v4627
      %v6156 = vpack.c.b16 %v4636, %v4628
      %v6157 = vpack.c.b16 %v4637, %v4629
      %v6158 = vpack.c.b16 %v4638, %v4630
      %v6159 = vpack.c.b16 %v4647, %v4639
      %v6160 = vpack.c.b16 %v4648, %v4640
      %v6161 = vpack.c.b16 %v4649, %v4641
      %v6162 = vpack.c.b16 %v4650, %v4642
      %v6163 = vpack.c.b16 %v4651, %v4643
      %v6164 = vpack.c.b16 %v4652, %v4644
      %v6165 = vpack.c.b16 %v4653, %v4645
      %v6166 = vpack.c.b16 %v4654, %v4646
      %v6167 = vpack.c.b16 %v4663, %v4655
      %v6168 = vpack.c.b16 %v4664, %v4656
      %v6169 = vpack.c.b16 %v4665, %v4657
      %v6170 = vpack.c.b16 %v4666, %v4658
      %v6171 = vpack.c.b16 %v4667, %v4659
      %v6172 = vpack.c.b16 %v4668, %v4660
      %v6173 = vpack.c.b16 %v4669, %v4661
      %v6174 = vpack.c.b16 %v4670, %v4662
      %v6175 = vpack.c.b16 %v4679, %v4671
      %v6176 = vpack.c.b16 %v4680, %v4672
      %v6177 = vpack.c.b16 %v4681, %v4673
      %v6178 = vpack.c.b16 %v4682, %v4674
      %v6179 = vpack.c.b16 %v4683, %v4675
      %v6180 = vpack.c.b16 %v4684, %v4676
      %v6181 = vpack.c.b16 %v4685, %v4677
      %v6182 = vpack.c.b16 %v4686, %v4678
      %v6183 = vpack.c.b16 %v4695, %v4687
      %v6184 = vpack.c.b16 %v4696, %v4688
      %v6185 = vpack.c.b16 %v4697, %v4689
      %v6186 = vpack.c.b16 %v4698, %v4690
      %v6187 = vpack.c.b16 %v4699, %v4691
      %v6188 = vpack.c.b16 %v4700, %v4692
      %v6189 = vpack.c.b16 %v4701, %v4693
      %v6190 = vpack.c.b16 %v4702, %v4694
      %v6191 = vpack.c.b16 %v4711, %v4703
      %v6192 = vpack.c.b16 %v4712, %v4704
      %v6193 = vpack.c.b16 %v4713, %v4705
      %v6194 = vpack.c.b16 %v4714, %v4706
      %v6195 = vpack.c.b16 %v4715, %v4707
      %v6196 = vpack.c.b16 %v4716, %v4708
      %v6197 = vpack.c.b16 %v4717, %v4709
      %v6198 = vpack.c.b16 %v4718, %v4710
      %v6199 = vpack.c.b16 %v4727, %v4719
      %v6200 = vpack.c.b16 %v4728, %v4720
      %v6201 = vpack.c.b16 %v4729, %v4721
      %v6202 = vpack.c.b16 %v4730, %v4722
      %v6203 = vpack.c.b16 %v4731, %v4723
      %v6204 = vpack.c.b16 %v4732, %v4724
      %v6205 = vpack.c.b16 %v4733, %v4725
      %v6206 = vpack.c.b16 %v4734, %v4726
      %v6207 = vpack.c.b16 %v4743, %v4735
      %v6208 = vpack.c.b16 %v4744, %v4736
      %v6209 = vpack.c.b16 %v4745, %v4737
      %v6210 = vpack.c.b16 %v4746, %v4738
      %v6211 = vpack.c.b16 %v4747, %v4739
      %v6212 = vpack.c.b16 %v4748, %v4740
      %v6213 = vpack.c.b16 %v4749, %v4741
      %v6214 = vpack.c.b16 %v4750, %v4742
      %v6215 = vpack.c.b16 %v4759, %v4751
      %v6216 = vpack.c.b16 %v4760, %v4752
      %v6217 = vpack.c.b16 %v4761, %v4753
      %v6218 = vpack.c.b16 %v4762, %v4754
      %v6219 = vpack.c.b16 %v4763, %v4755
      %v6220 = vpack.c.b16 %v4764, %v4756
      %v6221 = vpack.c.b16 %v4765, %v4757
      %v6222 = vpack.c.b16 %v4766, %v4758
      %v6223 = vpack.c.b16 %v4775, %v4767
      %v6224 = vpack.c.b16 %v4776, %v4768
      %v6225 = vpack.c.b16 %v4777, %v4769
      %v6226 = vpack.c.b16 %v4778, %v4770
      %v6227 = vpack.c.b16 %v4779, %v4771
      %v6228 = vpack.c.b16 %v4780, %v4772
      %v6229 = vpack.c.b16 %v4781, %v4773
      %v6230 = vpack.c.b16 %v4782, %v4774
      %v6231 = vpack.c.b16 %v4791, %v4783
      %v6232 = vpack.c.b16 %v4792, %v4784
      %v6233 = vpack.c.b16 %v4793, %v4785
      %v6234 = vpack.c.b16 %v4794, %v4786
      %v6235 = vpack.c.b16 %v4795, %v4787
      %v6236 = vpack.c.b16 %v4796, %v4788
      %v6237 = vpack.c.b16 %v4797, %v4789
      %v6238 = vpack.c.b16 %v4798, %v4790
      %v6239 = vpack.c.b16 %v4807, %v4799
      %v6240 = vpack.c.b16 %v4808, %v4800
      %v6241 = vpack.c.b16 %v4809, %v4801
      %v6242 = vpack.c.b16 %v4810, %v4802
      %v6243 = vpack.c.b16 %v4811, %v4803
      %v6244 = vpack.c.b16 %v4812, %v4804
      %v6245 = vpack.c.b16 %v4813, %v4805
      %v6246 = vpack.c.b16 %v4814, %v4806
      %v6247 = vpack.c.b16 %v4823, %v4815
      %v6248 = vpack.c.b16 %v4824, %v4816
      %v6249 = vpack.c.b16 %v4825, %v4817
      %v6250 = vpack.c.b16 %v4826, %v4818
      %v6251 = vpack.c.b16 %v4827, %v4819
      %v6252 = vpack.c.b16 %v4828, %v4820
      %v6253 = vpack.c.b16 %v4829, %v4821
      %v6254 = vpack.c.b16 %v4830, %v4822
      %v6255 = vpack.c.b16 %v4839, %v4831
      %v6256 = vpack.c.b16 %v4840, %v4832
      %v6257 = vpack.c.b16 %v4841, %v4833
      %v6258 = vpack.c.b16 %v4842, %v4834
      %v6259 = vpack.c.b16 %v4843, %v4835
      %v6260 = vpack.c.b16 %v4844, %v4836
      %v6261 = vpack.c.b16 %v4845, %v4837
      %v6262 = vpack.c.b16 %v4846, %v4838
      %v6263 = vpack.c.b16 %v4855, %v4847
      %v6264 = vpack.c.b16 %v4856, %v4848
      %v6265 = vpack.c.b16 %v4857, %v4849
      %v6266 = vpack.c.b16 %v4858, %v4850
      %v6267 = vpack.c.b16 %v4859, %v4851
      %v6268 = vpack.c.b16 %v4860, %v4852
      %v6269 = vpack.c.b16 %v4861, %v4853
      %v6270 = vpack.c.b16 %v4862, %v4854
      %v6271 = vpack.c.b16 %v4871, %v4863
      %v6272 = vpack.c.b16 %v4872, %v4864
      %v6273 = vpack.c.b16 %v4873, %v4865
      %v6274 = vpack.c.b16 %v4874, %v4866
      %v6275 = vpack.c.b16 %v4875, %v4867
      %v6276 = vpack.c.b16 %v4876, %v4868
      %v6277 = vpack.c.b16 %v4877, %v4869
      %v6278 = vpack.c.b16 %v4878, %v4870
      %v6279 = vpack.c.b16 %v4887, %v4879
      %v6280 = vpack.c.b16 %v4888, %v4880
      %v6281 = vpack.c.b16 %v4889, %v4881
      %v6282 = vpack.c.b16 %v4890, %v4882
      %v6283 = vpack.c.b16 %v4891, %v4883
      %v6284 = vpack.c.b16 %v4892, %v4884
      %v6285 = vpack.c.b16 %v4893, %v4885
      %v6286 = vpack.c.b16 %v4894, %v4886
      %v6287 = vpack.c.b16 %v4903, %v4895
      %v6288 = vpack.c.b16 %v4904, %v4896
      %v6289 = vpack.c.b16 %v4905, %v4897
      %v6290 = vpack.c.b16 %v4906, %v4898
      %v6291 = vpack.c.b16 %v4907, %v4899
      %v6292 = vpack.c.b16 %v4908, %v4900
      %v6293 = vpack.c.b16 %v4909, %v4901
      %v6294 = vpack.c.b16 %v4910, %v4902
      %v6295 = vpack.c.b16 %v4919, %v4911
      %v6296 = vpack.c.b16 %v4920, %v4912
      %v6297 = vpack.c.b16 %v4921, %v4913
      %v6298 = vpack.c.b16 %v4922, %v4914
      %v6299 = vpack.c.b16 %v4923, %v4915
      %v6300 = vpack.c.b16 %v4924, %v4916
      %v6301 = vpack.c.b16 %v4925, %v4917
      %v6302 = vpack.c.b16 %v4926, %v4918
      %v6303 = vpack.c.b16 %v4935, %v4927
      %v6304 = vpack.c.b16 %v4936, %v4928
      %v6305 = vpack.c.b16 %v4937, %v4929
      %v6306 = vpack.c.b16 %v4938, %v4930
      %v6307 = vpack.c.b16 %v4939, %v4931
      %v6308 = vpack.c.b16 %v4940, %v4932
      %v6309 = vpack.c.b16 %v4941, %v4933
      %v6310 = vpack.c.b16 %v4942, %v4934
      %v6311 = vpack.c.b16 %v4951, %v4943
      %v6312 = vpack.c.b16 %v4952, %v4944
      %v6313 = vpack.c.b16 %v4953, %v4945
      %v6314 = vpack.c.b16 %v4954, %v4946
      %v6315 = vpack.c.b16 %v4955, %v4947
      %v6316 = vpack.c.b16 %v4956, %v4948
      %v6317 = vpack.c.b16 %v4957, %v4949
      %v6318 = vpack.c.b16 %v4958, %v4950
      %v6319 = vpack.c.b16 %v4967, %v4959
      %v6320 = vpack.c.b16 %v4968, %v4960
      %v6321 = vpack.c.b16 %v4969, %v4961
      %v6322 = vpack.c.b16 %v4970, %v4962
      %v6323 = vpack.c.b16 %v4971, %v4963
      %v6324 = vpack.c.b16 %v4972, %v4964
      %v6325 = vpack.c.b16 %v4973, %v4965
      %v6326 = vpack.c.b16 %v4974, %v4966
      %v6327 = vpack.c.b16 %v4983, %v4975
      %v6328 = vpack.c.b16 %v4984, %v4976
      %v6329 = vpack.c.b16 %v4985, %v4977
      %v6330 = vpack.c.b16 %v4986, %v4978
      %v6331 = vpack.c.b16 %v4987, %v4979
      %v6332 = vpack.c.b16 %v4988, %v4980
      %v6333 = vpack.c.b16 %v4989, %v4981
      %v6334 = vpack.c.b16 %v4990, %v4982
      %v6335 = vpack.c.b16 %v4999, %v4991
      %v6336 = vpack.c.b16 %v5000, %v4992
      %v6337 = vpack.c.b16 %v5001, %v4993
      %v6338 = vpack.c.b16 %v5002, %v4994
      %v6339 = vpack.c.b16 %v5003, %v4995
      %v6340 = vpack.c.b16 %v5004, %v4996
      %v6341 = vpack.c.b16 %v5005, %v4997
      %v6342 = vpack.c.b16 %v5006, %v4998
      %v6343 = vpack.c.b16 %v5015, %v5007
      %v6344 = vpack.c.b16 %v5016, %v5008
      %v6345 = vpack.c.b16 %v5017, %v5009
      %v6346 = vpack.c.b16 %v5018, %v5010
      %v6347 = vpack.c.b16 %v5019, %v5011
      %v6348 = vpack.c.b16 %v5020, %v5012
      %v6349 = vpack.c.b16 %v5021, %v5013
      %v6350 = vpack.c.b16 %v5022, %v5014
      %v6351 = vpack.c.b16 %v5031, %v5023
      %v6352 = vpack.c.b16 %v5032, %v5024
      %v6353 = vpack.c.b16 %v5033, %v5025
      %v6354 = vpack.c.b16 %v5034, %v5026
      %v6355 = vpack.c.b16 %v5035, %v5027
      %v6356 = vpack.c.b16 %v5036, %v5028
      %v6357 = vpack.c.b16 %v5037, %v5029
      %v6358 = vpack.c.b16 %v5038, %v5030
      %v6359 = vpack.c.b16 %v5047, %v5039
      %v6360 = vpack.c.b16 %v5048, %v5040
      %v6361 = vpack.c.b16 %v5049, %v5041
      %v6362 = vpack.c.b16 %v5050, %v5042
      %v6363 = vpack.c.b16 %v5051, %v5043
      %v6364 = vpack.c.b16 %v5052, %v5044
      %v6365 = vpack.c.b16 %v5053, %v5045
      %v6366 = vpack.c.b16 %v5054, %v5046
      %v6367 = vpack.c.b16 %v5063, %v5055
      %v6368 = vpack.c.b16 %v5064, %v5056
      %v6369 = vpack.c.b16 %v5065, %v5057
      %v6370 = vpack.c.b16 %v5066, %v5058
      %v6371 = vpack.c.b16 %v5067, %v5059
      %v6372 = vpack.c.b16 %v5068, %v5060
      %v6373 = vpack.c.b16 %v5069, %v5061
      %v6374 = vpack.c.b16 %v5070, %v5062
      %v6375 = vpack.c.b16 %v5079, %v5071
      %v6376 = vpack.c.b16 %v5080, %v5072
      %v6377 = vpack.c.b16 %v5081, %v5073
      %v6378 = vpack.c.b16 %v5082, %v5074
      %v6379 = vpack.c.b16 %v5083, %v5075
      %v6380 = vpack.c.b16 %v5084, %v5076
      %v6381 = vpack.c.b16 %v5085, %v5077
      %v6382 = vpack.c.b16 %v5086, %v5078
      %v6383 = vpack.c.b16 %v5095, %v5087
      %v6384 = vpack.c.b16 %v5096, %v5088
      %v6385 = vpack.c.b16 %v5097, %v5089
      %v6386 = vpack.c.b16 %v5098, %v5090
      %v6387 = vpack.c.b16 %v5099, %v5091
      %v6388 = vpack.c.b16 %v5100, %v5092
      %v6389 = vpack.c.b16 %v5101, %v5093
      %v6390 = vpack.c.b16 %v5102, %v5094
      %v6391 = vpack.c.b16 %v5111, %v5103
      %v6392 = vpack.c.b16 %v5112, %v5104
      %v6393 = vpack.c.b16 %v5113, %v5105
      %v6394 = vpack.c.b16 %v5114, %v5106
      %v6395 = vpack.c.b16 %v5115, %v5107
      %v6396 = vpack.c.b16 %v5116, %v5108
      %v6397 = vpack.c.b16 %v5117, %v5109
      %v6398 = vpack.c.b16 %v5118, %v5110
      %v6399 = vpack.c.b16 %v5127, %v5119
      %v6400 = vpack.c.b16 %v5128, %v5120
      %v6401 = vpack.c.b16 %v5129, %v5121
      %v6402 = vpack.c.b16 %v5130, %v5122
      %v6403 = vpack.c.b16 %v5131, %v5123
      %v6404 = vpack.c.b16 %v5132, %v5124
      %v6405 = vpack.c.b16 %v5133, %v5125
      %v6406 = vpack.c.b16 %v5134, %v5126
      %v6407 = vpack.c.b16 %v5143, %v5135
      %v6408 = vpack.c.b16 %v5144, %v5136
      %v6409 = vpack.c.b16 %v5145, %v5137
      %v6410 = vpack.c.b16 %v5146, %v5138
      %v6411 = vpack.c.b16 %v5147, %v5139
      %v6412 = vpack.c.b16 %v5148, %v5140
      %v6413 = vpack.c.b16 %v5149, %v5141
      %v6414 = vpack.c.b16 %v5150, %v5142
      %v6415 = vpack.c.b16 %v5159, %v5151
      %v6416 = vpack.c.b16 %v5160, %v5152
      %v6417 = vpack.c.b16 %v5161, %v5153
      %v6418 = vpack.c.b16 %v5162, %v5154
      %v6419 = vpack.c.b16 %v5163, %v5155
      %v6420 = vpack.c.b16 %v5164, %v5156
      %v6421 = vpack.c.b16 %v5165, %v5157
      %v6422 = vpack.c.b16 %v5166, %v5158
      %v6423 = vpack.c.b16 %v5175, %v5167
      %v6424 = vpack.c.b16 %v5176, %v5168
      %v6425 = vpack.c.b16 %v5177, %v5169
      %v6426 = vpack.c.b16 %v5178, %v5170
      %v6427 = vpack.c.b16 %v5179, %v5171
      %v6428 = vpack.c.b16 %v5180, %v5172
      %v6429 = vpack.c.b16 %v5181, %v5173
      %v6430 = vpack.c.b16 %v5182, %v5174
      %v6431 = vpack.c.b16 %v5191, %v5183
      %v6432 = vpack.c.b16 %v5192, %v5184
      %v6433 = vpack.c.b16 %v5193, %v5185
      %v6434 = vpack.c.b16 %v5194, %v5186
      %v6435 = vpack.c.b16 %v5195, %v5187
      %v6436 = vpack.c.b16 %v5196, %v5188
      %v6437 = vpack.c.b16 %v5197, %v5189
      %v6438 = vpack.c.b16 %v5198, %v5190
      %v6439 = vpack.c.b16 %v5207, %v5199
      %v6440 = vpack.c.b16 %v5208, %v5200
      %v6441 = vpack.c.b16 %v5209, %v5201
      %v6442 = vpack.c.b16 %v5210, %v5202
      %v6443 = vpack.c.b16 %v5211, %v5203
      %v6444 = vpack.c.b16 %v5212, %v5204
      %v6445 = vpack.c.b16 %v5213, %v5205
      %v6446 = vpack.c.b16 %v5214, %v5206
      %v6447 = vpack.c.b16 %v5223, %v5215
      %v6448 = vpack.c.b16 %v5224, %v5216
      %v6449 = vpack.c.b16 %v5225, %v5217
      %v6450 = vpack.c.b16 %v5226, %v5218
      %v6451 = vpack.c.b16 %v5227, %v5219
      %v6452 = vpack.c.b16 %v5228, %v5220
      %v6453 = vpack.c.b16 %v5229, %v5221
      %v6454 = vpack.c.b16 %v5230, %v5222
      %v6455 = vpack.c.b16 %v5239, %v5231
      %v6456 = vpack.c.b16 %v5240, %v5232
      %v6457 = vpack.c.b16 %v5241, %v5233
      %v6458 = vpack.c.b16 %v5242, %v5234
      %v6459 = vpack.c.b16 %v5243, %v5235
      %v6460 = vpack.c.b16 %v5244, %v5236
      %v6461 = vpack.c.b16 %v5245, %v5237
      %v6462 = vpack.c.b16 %v5246, %v5238
      %v6463 = vpack.c.b16 %v5255, %v5247
      %v6464 = vpack.c.b16 %v5256, %v5248
      %v6465 = vpack.c.b16 %v5257, %v5249
      %v6466 = vpack.c.b16 %v5258, %v5250
      %v6467 = vpack.c.b16 %v5259, %v5251
      %v6468 = vpack.c.b16 %v5260, %v5252
      %v6469 = vpack.c.b16 %v5261, %v5253
      %v6470 = vpack.c.b16 %v5262, %v5254
      %v6471 = vpack.c.b16 %v5271, %v5263
      %v6472 = vpack.c.b16 %v5272, %v5264
      %v6473 = vpack.c.b16 %v5273, %v5265
      %v6474 = vpack.c.b16 %v5274, %v5266
      %v6475 = vpack.c.b16 %v5275, %v5267
      %v6476 = vpack.c.b16 %v5276, %v5268
      %v6477 = vpack.c.b16 %v5277, %v5269
      %v6478 = vpack.c.b16 %v5278, %v5270
      %v6479 = vpack.c.b16 %v5287, %v5279
      %v6480 = vpack.c.b16 %v5288, %v5280
      %v6481 = vpack.c.b16 %v5289, %v5281
      %v6482 = vpack.c.b16 %v5290, %v5282
      %v6483 = vpack.c.b16 %v5291, %v5283
      %v6484 = vpack.c.b16 %v5292, %v5284
      %v6485 = vpack.c.b16 %v5293, %v5285
      %v6486 = vpack.c.b16 %v5294, %v5286
      %v6487 = vpack.c.b16 %v5303, %v5295
      %v6488 = vpack.c.b16 %v5304, %v5296
      %v6489 = vpack.c.b16 %v5305, %v5297
      %v6490 = vpack.c.b16 %v5306, %v5298
      %v6491 = vpack.c.b16 %v5307, %v5299
      %v6492 = vpack.c.b16 %v5308, %v5300
      %v6493 = vpack.c.b16 %v5309, %v5301
      %v6494 = vpack.c.b16 %v5310, %v5302
      %v6495 = vpack.c.b16 %v5319, %v5311
      %v6496 = vpack.c.b16 %v5320, %v5312
      %v6497 = vpack.c.b16 %v5321, %v5313
      %v6498 = vpack.c.b16 %v5322, %v5314
      %v6499 = vpack.c.b16 %v5323, %v5315
      %v6500 = vpack.c.b16 %v5324, %v5316
      %v6501 = vpack.c.b16 %v5325, %v5317
      %v6502 = vpack.c.b16 %v5326, %v5318
      %v6503 = vpack.c.b16 %v5335, %v5327
      %v6504 = vpack.c.b16 %v5336, %v5328
      %v6505 = vpack.c.b16 %v5337, %v5329
      %v6506 = vpack.c.b16 %v5338, %v5330
      %v6507 = vpack.c.b16 %v5339, %v5331
      %v6508 = vpack.c.b16 %v5340, %v5332
      %v6509 = vpack.c.b16 %v5341, %v5333
      %v6510 = vpack.c.b16 %v5342, %v5334
      %v6511 = vpack.c.b16 %v5351, %v5343
      %v6512 = vpack.c.b16 %v5352, %v5344
      %v6513 = vpack.c.b16 %v5353, %v5345
      %v6514 = vpack.c.b16 %v5354, %v5346
      %v6515 = vpack.c.b16 %v5355, %v5347
      %v6516 = vpack.c.b16 %v5356, %v5348
      %v6517 = vpack.c.b16 %v5357, %v5349
      %v6518 = vpack.c.b16 %v5358, %v5350
      %v6519 = vpack.c.b16 %v5367, %v5359
      %v6520 = vpack.c.b16 %v5368, %v5360
      %v6521 = vpack.c.b16 %v5369, %v5361
      %v6522 = vpack.c.b16 %v5370, %v5362
      %v6523 = vpack.c.b16 %v5371, %v5363
      %v6524 = vpack.c.b16 %v5372, %v5364
      %v6525 = vpack.c.b16 %v5373, %v5365
      %v6526 = vpack.c.b16 %v5374, %v5366
      %v6527 = vpack.c.b16 %v5383, %v5375
      %v6528 = vpack.c.b16 %v5384, %v5376
      %v6529 = vpack.c.b16 %v5385, %v5377
      %v6530 = vpack.c.b16 %v5386, %v5378
      %v6531 = vpack.c.b16 %v5387, %v5379
      %v6532 = vpack.c.b16 %v5388, %v5380
      %v6533 = vpack.c.b16 %v5389, %v5381
      %v6534 = vpack.c.b16 %v5390, %v5382
      %v6535 = vpack.c.b16 %v5399, %v5391
      %v6536 = vpack.c.b16 %v5400, %v5392
      %v6537 = vpack.c.b16 %v5401, %v5393
      %v6538 = vpack.c.b16 %v5402, %v5394
      %v6539 = vpack.c.b16 %v5403, %v5395
      %v6540 = vpack.c.b16 %v5404, %v5396
      %v6541 = vpack.c.b16 %v5405, %v5397
      %v6542 = vpack.c.b16 %v5406, %v5398
      %v6543 = vpack.c.b16 %v5415, %v5407
      %v6544 = vpack.c.b16 %v5416, %v5408
      %v6545 = vpack.c.b16 %v5417, %v5409
      %v6546 = vpack.c.b16 %v5418, %v5410
      %v6547 = vpack.c.b16 %v5419, %v5411
      %v6548 = vpack.c.b16 %v5420, %v5412
      %v6549 = vpack.c.b16 %v5421, %v5413
      %v6550 = vpack.c.b16 %v5422, %v5414
      %v6551 = vpack.c.b16 %v5431, %v5423
      %v6552 = vpack.c.b16 %v5432, %v5424
      %v6553 = vpack.c.b16 %v5433, %v5425
      %v6554 = vpack.c.b16 %v5434, %v5426
      %v6555 = vpack.c.b16 %v5435, %v5427
      %v6556 = vpack.c.b16 %v5436, %v5428
      %v6557 = vpack.c.b16 %v5437, %v5429
      %v6558 = vpack.c.b16 %v5438, %v5430
      %v6559 = vpack.c.b16 %v5447, %v5439
      %v6560 = vpack.c.b16 %v5448, %v5440
      %v6561 = vpack.c.b16 %v5449, %v5441
      %v6562 = vpack.c.b16 %v5450, %v5442
      %v6563 = vpack.c.b16 %v5451, %v5443
      %v6564 = vpack.c.b16 %v5452, %v5444
      %v6565 = vpack.c.b16 %v5453, %v5445
      %v6566 = vpack.c.b16 %v5454, %v5446
      %v6567 = vpack.c.b16 %v5463, %v5455
      %v6568 = vpack.c.b16 %v5464, %v5456
      %v6569 = vpack.c.b16 %v5465, %v5457
      %v6570 = vpack.c.b16 %v5466, %v5458
      %v6571 = vpack.c.b16 %v5467, %v5459
      %v6572 = vpack.c.b16 %v5468, %v5460
      %v6573 = vpack.c.b16 %v5469, %v5461
      %v6574 = vpack.c.b16 %v5470, %v5462
      %v6575 = vpack.c.b16 %v5479, %v5471
      %v6576 = vpack.c.b16 %v5480, %v5472
      %v6577 = vpack.c.b16 %v5481, %v5473
      %v6578 = vpack.c.b16 %v5482, %v5474
      %v6579 = vpack.c.b16 %v5483, %v5475
      %v6580 = vpack.c.b16 %v5484, %v5476
      %v6581 = vpack.c.b16 %v5485, %v5477
      %v6582 = vpack.c.b16 %v5486, %v5478
      %v6583 = vpack.c.b16 %v5495, %v5487
      %v6584 = vpack.c.b16 %v5496, %v5488
      %v6585 = vpack.c.b16 %v5497, %v5489
      %v6586 = vpack.c.b16 %v5498, %v5490
      %v6587 = vpack.c.b16 %v5499, %v5491
      %v6588 = vpack.c.b16 %v5500, %v5492
      %v6589 = vpack.c.b16 %v5501, %v5493
      %v6590 = vpack.c.b16 %v5502, %v5494
      %v6591 = vpack.c.b16 %v5511, %v5503
      %v6592 = vpack.c.b16 %v5512, %v5504
      %v6593 = vpack.c.b16 %v5513, %v5505
      %v6594 = vpack.c.b16 %v5514, %v5506
      %v6595 = vpack.c.b16 %v5515, %v5507
      %v6596 = vpack.c.b16 %v5516, %v5508
      %v6597 = vpack.c.b16 %v5517, %v5509
      %v6598 = vpack.c.b16 %v5518, %v5510
      %v6599 = vpack.c.b16 %v5527, %v5519
      %v6600 = vpack.c.b16 %v5528, %v5520
      %v6601 = vpack.c.b16 %v5529, %v5521
      %v6602 = vpack.c.b16 %v5530, %v5522
      %v6603 = vpack.c.b16 %v5531, %v5523
      %v6604 = vpack.c.b16 %v5532, %v5524
      %v6605 = vpack.c.b16 %v5533, %v5525
      %v6606 = vpack.c.b16 %v5534, %v5526
      %v6607 = vpack.c.b16 %v5543, %v5535
      %v6608 = vpack.c.b16 %v5544, %v5536
      %v6609 = vpack.c.b16 %v5545, %v5537
      %v6610 = vpack.c.b16 %v5546, %v5538
      %v6611 = vpack.c.b16 %v5547, %v5539
      %v6612 = vpack.c.b16 %v5548, %v5540
      %v6613 = vpack.c.b16 %v5549, %v5541
      %v6614 = vpack.c.b16 %v5550, %v5542
      %v6615 = vpack.c.b16 %v5559, %v5551
      %v6616 = vpack.c.b16 %v5560, %v5552
      %v6617 = vpack.c.b16 %v5561, %v5553
      %v6618 = vpack.c.b16 %v5562, %v5554
      %v6619 = vpack.c.b16 %v5563, %v5555
      %v6620 = vpack.c.b16 %v5564, %v5556
      %v6621 = vpack.c.b16 %v5565, %v5557
      %v6622 = vpack.c.b16 %v5566, %v5558
      %v6623 = vpack.c.b16 %v5575, %v5567
      %v6624 = vpack.c.b16 %v5576, %v5568
      %v6625 = vpack.c.b16 %v5577, %v5569
      %v6626 = vpack.c.b16 %v5578, %v5570
      %v6627 = vpack.c.b16 %v5579, %v5571
      %v6628 = vpack.c.b16 %v5580, %v5572
      %v6629 = vpack.c.b16 %v5581, %v5573
      %v6630 = vpack.c.b16 %v5582, %v5574
      %v6631 = vpack.c.b16 %v5591, %v5583
      %v6632 = vpack.c.b16 %v5592, %v5584
      %v6633 = vpack.c.b16 %v5593, %v5585
      %v6634 = vpack.c.b16 %v5594, %v5586
      %v6635 = vpack.c.b16 %v5595, %v5587
      %v6636 = vpack.c.b16 %v5596, %v5588
      %v6637 = vpack.c.b16 %v5597, %v5589
      %v6638 = vpack.c.b16 %v5598, %v5590
      %v6639 = vpack.c.b16 %v5607, %v5599
      %v6640 = vpack.c.b16 %v5608, %v5600
      %v6641 = vpack.c.b16 %v5609, %v5601
      %v6642 = vpack.c.b16 %v5610, %v5602
      %v6643 = vpack.c.b16 %v5611, %v5603
      %v6644 = vpack.c.b16 %v5612, %v5604
      %v6645 = vpack.c.b16 %v5613, %v5605
      %v6646 = vpack.c.b16 %v5614, %v5606
      %v6647 = vpack.c.b16 %v5623, %v5615
      %v6648 = vpack.c.b16 %v5624, %v5616
      %v6649 = vpack.c.b16 %v5625, %v5617
      %v6650 = vpack.c.b16 %v5626, %v5618
      %v6651 = vpack.c.b16 %v5627, %v5619
      %v6652 = vpack.c.b16 %v5628, %v5620
      %v6653 = vpack.c.b16 %v5629, %v5621
      %v6654 = vpack.c.b16 %v5630, %v5622
      %7679 = vmatprep.subr.bf16.mxu0 %v5632
      %7680 = vmatpush1.bf16.msra.mxu0 %v5631
      %7681 = vmatprep.subr.bf16.mxu0 %v5640
      %7682 = vmatpush1.bf16.msra.mxu0 %v5639
      %7683 = vmatprep.subr.bf16.mxu0 %v5648
      %7684 = vmatpush1.bf16.msra.mxu0 %v5647
      %7685 = vmatprep.subr.bf16.mxu0 %v5656
      %7686 = vmatpush1.bf16.msra.mxu0 %v5655
      %7687 = vmatprep.subr.bf16.mxu0 %v5664
      %7688 = vmatpush1.bf16.msra.mxu0 %v5663
      %7689 = vmatprep.subr.bf16.mxu0 %v5672
      %7690 = vmatpush1.bf16.msra.mxu0 %v5671
      %7691 = vmatprep.subr.bf16.mxu0 %v5680
      %7692 = vmatpush1.bf16.msra.mxu0 %v5679
      %7693 = vmatprep.subr.bf16.mxu0 %v5688
      %7694 = vmatpush1.bf16.msra.mxu0 %v5687
      %7695 = vmatprep.subr.bf16.mxu0 %v5696
      %7696 = vmatpush1.bf16.msra.mxu0 %v5695
      %7697 = vmatprep.subr.bf16.mxu0 %v5704
      %7698 = vmatpush1.bf16.msra.mxu0 %v5703
      %7699 = vmatprep.subr.bf16.mxu0 %v5712
      %7700 = vmatpush1.bf16.msra.mxu0 %v5711
      %7701 = vmatprep.subr.bf16.mxu0 %v5720
      %7702 = vmatpush1.bf16.msra.mxu0 %v5719
      %7703 = vmatprep.subr.bf16.mxu0 %v5728
      %7704 = vmatpush1.bf16.msra.mxu0 %v5727
      %7705 = vmatprep.subr.bf16.mxu0 %v5736
      %7706 = vmatpush1.bf16.msra.mxu0 %v5735
      %7707 = vmatprep.subr.bf16.mxu0 %v5744
      %7708 = vmatpush1.bf16.msra.mxu0 %v5743
      %7709 = vmatprep.subr.bf16.mxu0 %v5752
      %7710 = vmatpush1.bf16.msra.mxu0 %v5751
      %7711 = vmatprep.mubr.bf16.mxu0 %v1430
      %7712 = vmatmul.mubr.bf16.gmra.mrb[0].mxu0 %v1429
      %v7713 = vpop.f32.mrb[0].mxu0
      %v7714 = vadd.f32 %v2522, %v7713
      %v7715 = vpop.f32.mrb[0].mxu0
      %v7716 = vadd.f32 %v2526, %v7715
      %v7717 = vpop.f32.mrb[0].mxu0
      %v7718 = vadd.f32 %v2522, %v7717
      %v7719 = vpop.f32.mrb[0].mxu0
      %v7720 = vadd.f32 %v2526, %v7719
      %7721 = vmatprep.mubr.bf16.mxu0 %v1446
      %7722 = vmatmul.mubr.bf16.gmra.mrb[0].mxu0 %v1445
      %v7723 = vpop.f32.mrb[0].mxu0
      %v7724 = vadd.f32 %v2522, %v7723
      %v7725 = vpop.f32.mrb[0].mxu0
      %v7726 = vadd.f32 %v2526, %v7725
      %v7727 = vpop.f32.mrb[0].mxu0
      %v7728 = vadd.f32 %v2522, %v7727
      %v7729 = vpop.f32.mrb[0].mxu0
      %v7730 = vadd.f32 %v2526, %v7729
      %7731 = vmatprep.mubr.bf16.mxu0 %v1462
      %7732 = vmatmul.mubr.bf16.gmra.mrb[0].mxu0 %v1461
      %v7733 = vpop.f32.mrb[0].mxu0
      %v7734 = vadd.f32 %v2522, %v7733
      %v7735 = vpop.f32.mrb[0].mxu0
      %v7736 = vadd.f32 %v2526, %v7735
      %v7737 = vpop.f32.mrb[0].mxu0
      %v7738 = vadd.f32 %v2522, %v7737
      %v7739 = vpop.f32.mrb[0].mxu0
      %v7740 = vadd.f32 %v2526, %v7739
      %7741 = vmatprep.mubr.bf16.mxu0 %v1478
      %7742 = vmatmul.mubr.bf16.gmra.mrb[0].mxu0 %v1477
      %v7743 = vpop.f32.mrb[0].mxu0
      %v7744 = vadd.f32 %v2522, %v7743
      %v7745 = vpop.f32.mrb[0].mxu0
      %v7746 = vadd.f32 %v2526, %v7745
      %v7747 = vpop.f32.mrb[0].mxu0
      %v7748 = vadd.f32 %v2522, %v7747
      %v7749 = vpop.f32.mrb[0].mxu0
      %v7750 = vadd.f32 %v2526, %v7749
      %7751 = vdwg.mxu0
      %7752 = vmatprep.subr.bf16.mxu0 %v5760
      %7753 = vmatpush1.bf16.msra.mxu0 %v5759
      %7754 = vmatprep.subr.bf16.mxu0 %v5768
      %7755 = vmatpush1.bf16.msra.mxu0 %v5767
      %7756 = vmatprep.subr.bf16.mxu0 %v5776
      %7757 = vmatpush1.bf16.msra.mxu0 %v5775
      %7758 = vmatprep.subr.bf16.mxu0 %v5784
      %7759 = vmatpush1.bf16.msra.mxu0 %v5783
      %7760 = vmatprep.subr.bf16.mxu0 %v5792
      %7761 = vmatpush1.bf16.msra.mxu0 %v5791
      %7762 = vmatprep.subr.bf16.mxu0 %v5800
      %7763 = vmatpush1.bf16.msra.mxu0 %v5799
      %7764 = vmatprep.subr.bf16.mxu0 %v5808
      %7765 = vmatpush1.bf16.msra.mxu0 %v5807
      %7766 = vmatprep.subr.bf16.mxu0 %v5816
      %7767 = vmatpush1.bf16.msra.mxu0 %v5815
      %7768 = vmatprep.subr.bf16.mxu0 %v5824
      %7769 = vmatpush1.bf16.msra.mxu0 %v5823
      %7770 = vmatprep.subr.bf16.mxu0 %v5832
      %7771 = vmatpush1.bf16.msra.mxu0 %v5831
      %7772 = vmatprep.subr.bf16.mxu0 %v5840
      %7773 = vmatpush1.bf16.msra.mxu0 %v5839
      %7774 = vmatprep.subr.bf16.mxu0 %v5848
      %7775 = vmatpush1.bf16.msra.mxu0 %v5847
      %7776 = vmatprep.subr.bf16.mxu0 %v5856
      %7777 = vmatpush1.bf16.msra.mxu0 %v5855
      %7778 = vmatprep.subr.bf16.mxu0 %v5864
      %7779 = vmatpush1.bf16.msra.mxu0 %v5863
      %7780 = vmatprep.subr.bf16.mxu0 %v5872
      %7781 = vmatpush1.bf16.msra.mxu0 %v5871
      %7782 = vmatprep.subr.bf16.mxu0 %v5880
      %7783 = vmatpush1.bf16.msra.mxu0 %v5879
      %7784 = vmatprep.mubr.bf16.mxu0 %v1432
      %7785 = vmatmul.mubr.bf16.gmra.mrb[0].mxu0 %v1431
      %v7786 = vpop.f32.mrb[0].mxu0
      %v7787 = vadd.f32 %v7714, %v7786
      %v7788 = vpop.f32.mrb[0].mxu0
      %v7789 = vadd.f32 %v7716, %v7788
      %v7790 = vpop.f32.mrb[0].mxu0
      %v7791 = vadd.f32 %v7718, %v7790
      %v7792 = vpop.f32.mrb[0].mxu0
      %v7793 = vadd.f32 %v7720, %v7792
      %7794 = vmatprep.mubr.bf16.mxu0 %v1448
      %7795 = vmatmul.mubr.bf16.gmra.mrb[0].mxu0 %v1447
      %v7796 = vpop.f32.mrb[0].mxu0
      %v7797 = vadd.f32 %v7724, %v7796
      %v7798 = vpop.f32.mrb[0].mxu0
      %v7799 = vadd.f32 %v7726, %v7798
      %v7800 = vpop.f32.mrb[0].mxu0
      %v7801 = vadd.f32 %v7728, %v7800
      %v7802 = vpop.f32.mrb[0].mxu0
      %v7803 = vadd.f32 %v7730, %v7802
      %7804 = vmatprep.mubr.bf16.mxu0 %v1464
      %7805 = vmatmul.mubr.bf16.gmra.mrb[0].mxu0 %v1463
      %v7806 = vpop.f32.mrb[0].mxu0
      %v7807 = vadd.f32 %v7734, %v7806
      %v7808 = vpop.f32.mrb[0].mxu0
      %v7809 = vadd.f32 %v7736, %v7808
      %v7810 = vpop.f32.mrb[0].mxu0
      %v7811 = vadd.f32 %v7738, %v7810
      %v7812 = vpop.f32.mrb[0].mxu0
      %v7813 = vadd.f32 %v7740, %v7812
      %7814 = vmatprep.mubr.bf16.mxu0 %v1480
      %7815 = vmatmul.mubr.bf16.gmra.mrb[0].mxu0 %v1479
      %v7816 = vpop.f32.mrb[0].mxu0
      %v7817 = vadd.f32 %v7744, %v7816
      %v7818 = vpop.f32.mrb[0].mxu0
      %v7819 = vadd.f32 %v7746, %v7818
      %v7820 = vpop.f32.mrb[0].mxu0
      %v7821 = vadd.f32 %v7748, %v7820
      %v7822 = vpop.f32.mrb[0].mxu0
      %v7823 = vadd.f32 %v7750, %v7822
      %7824 = vdwg.mxu0
      %7825 = vmatprep.subr.bf16.mxu0 %v5888
      %7826 = vmatpush1.bf16.msra.mxu0 %v5887
      %7827 = vmatprep.subr.bf16.mxu0 %v5896
      %7828 = vmatpush1.bf16.msra.mxu0 %v5895
      %7829 = vmatprep.subr.bf16.mxu0 %v5904
      %7830 = vmatpush1.bf16.msra.mxu0 %v5903
      %7831 = vmatprep.subr.bf16.mxu0 %v5912
      %7832 = vmatpush1.bf16.msra.mxu0 %v5911
      %7833 = vmatprep.subr.bf16.mxu0 %v5920
      %7834 = vmatpush1.bf16.msra.mxu0 %v5919
      %7835 = vmatprep.subr.bf16.mxu0 %v5928
      %7836 = vmatpush1.bf16.msra.mxu0 %v5927
      %7837 = vmatprep.subr.bf16.mxu0 %v5936
      %7838 = vmatpush1.bf16.msra.mxu0 %v5935
      %7839 = vmatprep.subr.bf16.mxu0 %v5944
      %7840 = vmatpush1.bf16.msra.mxu0 %v5943
      %7841 = vmatprep.subr.bf16.mxu0 %v5952
      %7842 = vmatpush1.bf16.msra.mxu0 %v5951
      %7843 = vmatprep.subr.bf16.mxu0 %v5960
      %7844 = vmatpush1.bf16.msra.mxu0 %v5959
      %7845 = vmatprep.subr.bf16.mxu0 %v5968
      %7846 = vmatpush1.bf16.msra.mxu0 %v5967
      %7847 = vmatprep.subr.bf16.mxu0 %v5976
      %7848 = vmatpush1.bf16.msra.mxu0 %v5975
      %7849 = vmatprep.subr.bf16.mxu0 %v5984
      %7850 = vmatpush1.bf16.msra.mxu0 %v5983
      %7851 = vmatprep.subr.bf16.mxu0 %v5992
      %7852 = vmatpush1.bf16.msra.mxu0 %v5991
      %7853 = vmatprep.subr.bf16.mxu0 %v6000
      %7854 = vmatpush1.bf16.msra.mxu0 %v5999
      %7855 = vmatprep.subr.bf16.mxu0 %v6008
      %7856 = vmatpush1.bf16.msra.mxu0 %v6007
      %7857 = vmatprep.mubr.bf16.mxu0 %v1434
      %7858 = vmatmul.mubr.bf16.gmra.mrb[0].mxu0 %v1433
      %v7859 = vpop.f32.mrb[0].mxu0
      %v7860 = vadd.f32 %v7787, %v7859
      %v7861 = vpop.f32.mrb[0].mxu0
      %v7862 = vadd.f32 %v7789, %v7861
      %v7863 = vpop.f32.mrb[0].mxu0
      %v7864 = vadd.f32 %v7791, %v7863
      %v7865 = vpop.f32.mrb[0].mxu0
      %v7866 = vadd.f32 %v7793, %v7865
      %7867 = vmatprep.mubr.bf16.mxu0 %v1450
      %7868 = vmatmul.mubr.bf16.gmra.mrb[0].mxu0 %v1449
      %v7869 = vpop.f32.mrb[0].mxu0
      %v7870 = vadd.f32 %v7797, %v7869
      %v7871 = vpop.f32.mrb[0].mxu0
      %v7872 = vadd.f32 %v7799, %v7871
      %v7873 = vpop.f32.mrb[0].mxu0
      %v7874 = vadd.f32 %v7801, %v7873
      %v7875 = vpop.f32.mrb[0].mxu0
      %v7876 = vadd.f32 %v7803, %v7875
      %7877 = vmatprep.mubr.bf16.mxu0 %v1466
      %7878 = vmatmul.mubr.bf16.gmra.mrb[0].mxu0 %v1465
      %v7879 = vpop.f32.mrb[0].mxu0
      %v7880 = vadd.f32 %v7807, %v7879
      %v7881 = vpop.f32.mrb[0].mxu0
      %v7882 = vadd.f32 %v7809, %v7881
      %v7883 = vpop.f32.mrb[0].mxu0
      %v7884 = vadd.f32 %v7811, %v7883
      %v7885 = vpop.f32.mrb[0].mxu0
      %v7886 = vadd.f32 %v7813, %v7885
      %7887 = vmatprep.mubr.bf16.mxu0 %v1482
      %7888 = vmatmul.mubr.bf16.gmra.mrb[0].mxu0 %v1481
      %v7889 = vpop.f32.mrb[0].mxu0
      %v7890 = vadd.f32 %v7817, %v7889
      %v7891 = vpop.f32.mrb[0].mxu0
      %v7892 = vadd.f32 %v7819, %v7891
      %v7893 = vpop.f32.mrb[0].mxu0
      %v7894 = vadd.f32 %v7821, %v7893
      %v7895 = vpop.f32.mrb[0].mxu0
      %v7896 = vadd.f32 %v7823, %v7895
      %7897 = vdwg.mxu0
      %7898 = vmatprep.subr.bf16.mxu0 %v6016
      %7899 = vmatpush1.bf16.msra.mxu0 %v6015
      %7900 = vmatprep.subr.bf16.mxu0 %v6024
      %7901 = vmatpush1.bf16.msra.mxu0 %v6023
      %7902 = vmatprep.subr.bf16.mxu0 %v6032
      %7903 = vmatpush1.bf16.msra.mxu0 %v6031
      %7904 = vmatprep.subr.bf16.mxu0 %v6040
      %7905 = vmatpush1.bf16.msra.mxu0 %v6039
      %7906 = vmatprep.subr.bf16.mxu0 %v6048
      %7907 = vmatpush1.bf16.msra.mxu0 %v6047
      %7908 = vmatprep.subr.bf16.mxu0 %v6056
      %7909 = vmatpush1.bf16.msra.mxu0 %v6055
      %7910 = vmatprep.subr.bf16.mxu0 %v6064
      %7911 = vmatpush1.bf16.msra.mxu0 %v6063
      %7912 = vmatprep.subr.bf16.mxu0 %v6072
      %7913 = vmatpush1.bf16.msra.mxu0 %v6071
      %7914 = vmatprep.subr.bf16.mxu0 %v6080
      %7915 = vmatpush1.bf16.msra.mxu0 %v6079
      %7916 = vmatprep.subr.bf16.mxu0 %v6088
      %7917 = vmatpush1.bf16.msra.mxu0 %v6087
      %7918 = vmatprep.subr.bf16.mxu0 %v6096
      %7919 = vmatpush1.bf16.msra.mxu0 %v6095
      %7920 = vmatprep.subr.bf16.mxu0 %v6104
      %7921 = vmatpush1.bf16.msra.mxu0 %v6103
      %7922 = vmatprep.subr.bf16.mxu0 %v6112
      %7923 = vmatpush1.bf16.msra.mxu0 %v6111
      %7924 = vmatprep.subr.bf16.mxu0 %v6120
      %7925 = vmatpush1.bf16.msra.mxu0 %v6119
      %7926 = vmatprep.subr.bf16.mxu0 %v6128
      %7927 = vmatpush1.bf16.msra.mxu0 %v6127
      %7928 = vmatprep.subr.bf16.mxu0 %v6136
      %7929 = vmatpush1.bf16.msra.mxu0 %v6135
      %7930 = vmatprep.mubr.bf16.mxu0 %v1436
      %7931 = vmatmul.mubr.bf16.gmra.mrb[0].mxu0 %v1435
      %v7932 = vpop.f32.mrb[0].mxu0
      %v7933 = vadd.f32 %v7860, %v7932
      %v7934 = vpop.f32.mrb[0].mxu0
      %v7935 = vadd.f32 %v7862, %v7934
      %v7936 = vpop.f32.mrb[0].mxu0
      %v7937 = vadd.f32 %v7864, %v7936
      %v7938 = vpop.f32.mrb[0].mxu0
      %v7939 = vadd.f32 %v7866, %v7938
      %7940 = vmatprep.mubr.bf16.mxu0 %v1452
      %7941 = vmatmul.mubr.bf16.gmra.mrb[0].mxu0 %v1451
      %v7942 = vpop.f32.mrb[0].mxu0
      %v7943 = vadd.f32 %v7870, %v7942
      %v7944 = vpop.f32.mrb[0].mxu0
      %v7945 = vadd.f32 %v7872, %v7944
      %v7946 = vpop.f32.mrb[0].mxu0
      %v7947 = vadd.f32 %v7874, %v7946
      %v7948 = vpop.f32.mrb[0].mxu0
      %v7949 = vadd.f32 %v7876, %v7948
      %7950 = vmatprep.mubr.bf16.mxu0 %v1468
      %7951 = vmatmul.mubr.bf16.gmra.mrb[0].mxu0 %v1467
      %v7952 = vpop.f32.mrb[0].mxu0
      %v7953 = vadd.f32 %v7880, %v7952
      %v7954 = vpop.f32.mrb[0].mxu0
      %v7955 = vadd.f32 %v7882, %v7954
      %v7956 = vpop.f32.mrb[0].mxu0
      %v7957 = vadd.f32 %v7884, %v7956
      %v7958 = vpop.f32.mrb[0].mxu0
      %v7959 = vadd.f32 %v7886, %v7958
      %7960 = vmatprep.mubr.bf16.mxu0 %v1484
      %7961 = vmatmul.mubr.bf16.gmra.mrb[0].mxu0 %v1483
      %v7962 = vpop.f32.mrb[0].mxu0
      %v7963 = vadd.f32 %v7890, %v7962
      %v7964 = vpop.f32.mrb[0].mxu0
      %v7965 = vadd.f32 %v7892, %v7964
      %v7966 = vpop.f32.mrb[0].mxu0
      %v7967 = vadd.f32 %v7894, %v7966
      %v7968 = vpop.f32.mrb[0].mxu0
      %v7969 = vadd.f32 %v7896, %v7968
      %7970 = vdwg.mxu0
      %7971 = vmatprep.subr.bf16.mxu0 %v6144
      %7972 = vmatpush1.bf16.msra.mxu0 %v6143
      %7973 = vmatprep.subr.bf16.mxu0 %v6152
      %7974 = vmatpush1.bf16.msra.mxu0 %v6151
      %7975 = vmatprep.subr.bf16.mxu0 %v6160
      %7976 = vmatpush1.bf16.msra.mxu0 %v6159
      %7977 = vmatprep.subr.bf16.mxu0 %v6168
      %7978 = vmatpush1.bf16.msra.mxu0 %v6167
      %7979 = vmatprep.subr.bf16.mxu0 %v6176
      %7980 = vmatpush1.bf16.msra.mxu0 %v6175
      %7981 = vmatprep.subr.bf16.mxu0 %v6184
      %7982 = vmatpush1.bf16.msra.mxu0 %v6183
      %7983 = vmatprep.subr.bf16.mxu0 %v6192
      %7984 = vmatpush1.bf16.msra.mxu0 %v6191
      %7985 = vmatprep.subr.bf16.mxu0 %v6200
      %7986 = vmatpush1.bf16.msra.mxu0 %v6199
      %7987 = vmatprep.subr.bf16.mxu0 %v6208
      %7988 = vmatpush1.bf16.msra.mxu0 %v6207
      %7989 = vmatprep.subr.bf16.mxu0 %v6216
      %7990 = vmatpush1.bf16.msra.mxu0 %v6215
      %7991 = vmatprep.subr.bf16.mxu0 %v6224
      %7992 = vmatpush1.bf16.msra.mxu0 %v6223
      %7993 = vmatprep.subr.bf16.mxu0 %v6232
      %7994 = vmatpush1.bf16.msra.mxu0 %v6231
      %7995 = vmatprep.subr.bf16.mxu0 %v6240
      %7996 = vmatpush1.bf16.msra.mxu0 %v6239
      %7997 = vmatprep.subr.bf16.mxu0 %v6248
      %7998 = vmatpush1.bf16.msra.mxu0 %v6247
      %7999 = vmatprep.subr.bf16.mxu0 %v6256
      %8000 = vmatpush1.bf16.msra.mxu0 %v6255
      %8001 = vmatprep.subr.bf16.mxu0 %v6264
      %8002 = vmatpush1.bf16.msra.mxu0 %v6263
      %8003 = vmatprep.mubr.bf16.mxu0 %v1438
      %8004 = vmatmul.mubr.bf16.gmra.mrb[0].mxu0 %v1437
      %v8005 = vpop.f32.mrb[0].mxu0
      %v8006 = vadd.f32 %v7933, %v8005
      %v8007 = vpop.f32.mrb[0].mxu0
      %v8008 = vadd.f32 %v7935, %v8007
      %v8009 = vpop.f32.mrb[0].mxu0
      %v8010 = vadd.f32 %v7937, %v8009
      %v8011 = vpop.f32.mrb[0].mxu0
      %v8012 = vadd.f32 %v7939, %v8011
      %8013 = vmatprep.mubr.bf16.mxu0 %v1454
      %8014 = vmatmul.mubr.bf16.gmra.mrb[0].mxu0 %v1453
      %v8015 = vpop.f32.mrb[0].mxu0
      %v8016 = vadd.f32 %v7943, %v8015
      %v8017 = vpop.f32.mrb[0].mxu0
      %v8018 = vadd.f32 %v7945, %v8017
      %v8019 = vpop.f32.mrb[0].mxu0
      %v8020 = vadd.f32 %v7947, %v8019
      %v8021 = vpop.f32.mrb[0].mxu0
      %v8022 = vadd.f32 %v7949, %v8021
      %8023 = vmatprep.mubr.bf16.mxu0 %v1470
      %8024 = vmatmul.mubr.bf16.gmra.mrb[0].mxu0 %v1469
      %v8025 = vpop.f32.mrb[0].mxu0
      %v8026 = vadd.f32 %v7953, %v8025
      %v8027 = vpop.f32.mrb[0].mxu0
      %v8028 = vadd.f32 %v7955, %v8027
      %v8029 = vpop.f32.mrb[0].mxu0
      %v8030 = vadd.f32 %v7957, %v8029
      %v8031 = vpop.f32.mrb[0].mxu0
      %v8032 = vadd.f32 %v7959, %v8031
      %8033 = vmatprep.mubr.bf16.mxu0 %v1486
      %8034 = vmatmul.mubr.bf16.gmra.mrb[0].mxu0 %v1485
      %v8035 = vpop.f32.mrb[0].mxu0
      %v8036 = vadd.f32 %v7963, %v8035
      %v8037 = vpop.f32.mrb[0].mxu0
      %v8038 = vadd.f32 %v7965, %v8037
      %v8039 = vpop.f32.mrb[0].mxu0
      %v8040 = vadd.f32 %v7967, %v8039
      %v8041 = vpop.f32.mrb[0].mxu0
      %v8042 = vadd.f32 %v7969, %v8041
      %8043 = vdwg.mxu0
      %8044 = vmatprep.subr.bf16.mxu0 %v6272
      %8045 = vmatpush1.bf16.msra.mxu0 %v6271
      %8046 = vmatprep.subr.bf16.mxu0 %v6280
      %8047 = vmatpush1.bf16.msra.mxu0 %v6279
      %8048 = vmatprep.subr.bf16.mxu0 %v6288
      %8049 = vmatpush1.bf16.msra.mxu0 %v6287
      %8050 = vmatprep.subr.bf16.mxu0 %v6296
      %8051 = vmatpush1.bf16.msra.mxu0 %v6295
      %8052 = vmatprep.subr.bf16.mxu0 %v6304
      %8053 = vmatpush1.bf16.msra.mxu0 %v6303
      %8054 = vmatprep.subr.bf16.mxu0 %v6312
      %8055 = vmatpush1.bf16.msra.mxu0 %v6311
      %8056 = vmatprep.subr.bf16.mxu0 %v6320
      %8057 = vmatpush1.bf16.msra.mxu0 %v6319
      %8058 = vmatprep.subr.bf16.mxu0 %v6328
      %8059 = vmatpush1.bf16.msra.mxu0 %v6327
      %8060 = vmatprep.subr.bf16.mxu0 %v6336
      %8061 = vmatpush1.bf16.msra.mxu0 %v6335
      %8062 = vmatprep.subr.bf16.mxu0 %v6344
      %8063 = vmatpush1.bf16.msra.mxu0 %v6343
      %8064 = vmatprep.subr.bf16.mxu0 %v6352
      %8065 = vmatpush1.bf16.msra.mxu0 %v6351
      %8066 = vmatprep.subr.bf16.mxu0 %v6360
      %8067 = vmatpush1.bf16.msra.mxu0 %v6359
      %8068 = vmatprep.subr.bf16.mxu0 %v6368
      %8069 = vmatpush1.bf16.msra.mxu0 %v6367
      %8070 = vmatprep.subr.bf16.mxu0 %v6376
      %8071 = vmatpush1.bf16.msra.mxu0 %v6375
      %8072 = vmatprep.subr.bf16.mxu0 %v6384
      %8073 = vmatpush1.bf16.msra.mxu0 %v6383
      %8074 = vmatprep.subr.bf16.mxu0 %v6392
      %8075 = vmatpush1.bf16.msra.mxu0 %v6391
      %8076 = vmatprep.mubr.bf16.mxu0 %v1440
      %8077 = vmatmul.mubr.bf16.gmra.mrb[0].mxu0 %v1439
      %v8078 = vpop.f32.mrb[0].mxu0
      %v8079 = vadd.f32 %v8006, %v8078
      %v8080 = vpop.f32.mrb[0].mxu0
      %v8081 = vadd.f32 %v8008, %v8080
      %v8082 = vpop.f32.mrb[0].mxu0
      %v8083 = vadd.f32 %v8010, %v8082
      %v8084 = vpop.f32.mrb[0].mxu0
      %v8085 = vadd.f32 %v8012, %v8084
      %8086 = vmatprep.mubr.bf16.mxu0 %v1456
      %8087 = vmatmul.mubr.bf16.gmra.mrb[0].mxu0 %v1455
      %v8088 = vpop.f32.mrb[0].mxu0
      %v8089 = vadd.f32 %v8016, %v8088
      %v8090 = vpop.f32.mrb[0].mxu0
      %v8091 = vadd.f32 %v8018, %v8090
      %v8092 = vpop.f32.mrb[0].mxu0
      %v8093 = vadd.f32 %v8020, %v8092
      %v8094 = vpop.f32.mrb[0].mxu0
      %v8095 = vadd.f32 %v8022, %v8094
      %8096 = vmatprep.mubr.bf16.mxu0 %v1472
      %8097 = vmatmul.mubr.bf16.gmra.mrb[0].mxu0 %v1471
      %v8098 = vpop.f32.mrb[0].mxu0
      %v8099 = vadd.f32 %v8026, %v8098
      %v8100 = vpop.f32.mrb[0].mxu0
      %v8101 = vadd.f32 %v8028, %v8100
      %v8102 = vpop.f32.mrb[0].mxu0
      %v8103 = vadd.f32 %v8030, %v8102
      %v8104 = vpop.f32.mrb[0].mxu0
      %v8105 = vadd.f32 %v8032, %v8104
      %8106 = vmatprep.mubr.bf16.mxu0 %v1488
      %8107 = vmatmul.mubr.bf16.gmra.mrb[0].mxu0 %v1487
      %v8108 = vpop.f32.mrb[0].mxu0
      %v8109 = vadd.f32 %v8036, %v8108
      %v8110 = vpop.f32.mrb[0].mxu0
      %v8111 = vadd.f32 %v8038, %v8110
      %v8112 = vpop.f32.mrb[0].mxu0
      %v8113 = vadd.f32 %v8040, %v8112
      %v8114 = vpop.f32.mrb[0].mxu0
      %v8115 = vadd.f32 %v8042, %v8114
      %8116 = vdwg.mxu0
      %8117 = vmatprep.subr.bf16.mxu0 %v6400
      %8118 = vmatpush1.bf16.msra.mxu0 %v6399
      %8119 = vmatprep.subr.bf16.mxu0 %v6408
      %8120 = vmatpush1.bf16.msra.mxu0 %v6407
      %8121 = vmatprep.subr.bf16.mxu0 %v6416
      %8122 = vmatpush1.bf16.msra.mxu0 %v6415
      %8123 = vmatprep.subr.bf16.mxu0 %v6424
      %8124 = vmatpush1.bf16.msra.mxu0 %v6423
      %8125 = vmatprep.subr.bf16.mxu0 %v6432
      %8126 = vmatpush1.bf16.msra.mxu0 %v6431
      %8127 = vmatprep.subr.bf16.mxu0 %v6440
      %8128 = vmatpush1.bf16.msra.mxu0 %v6439
      %8129 = vmatprep.subr.bf16.mxu0 %v6448
      %8130 = vmatpush1.bf16.msra.mxu0 %v6447
      %8131 = vmatprep.subr.bf16.mxu0 %v6456
      %8132 = vmatpush1.bf16.msra.mxu0 %v6455
      %8133 = vmatprep.subr.bf16.mxu0 %v6464
      %8134 = vmatpush1.bf16.msra.mxu0 %v6463
      %8135 = vmatprep.subr.bf16.mxu0 %v6472
      %8136 = vmatpush1.bf16.msra.mxu0 %v6471
      %8137 = vmatprep.subr.bf16.mxu0 %v6480
      %8138 = vmatpush1.bf16.msra.mxu0 %v6479
      %8139 = vmatprep.subr.bf16.mxu0 %v6488
      %8140 = vmatpush1.bf16.msra.mxu0 %v6487
      %8141 = vmatprep.subr.bf16.mxu0 %v6496
      %8142 = vmatpush1.bf16.msra.mxu0 %v6495
      %8143 = vmatprep.subr.bf16.mxu0 %v6504
      %8144 = vmatpush1.bf16.msra.mxu0 %v6503
      %8145 = vmatprep.subr.bf16.mxu0 %v6512
      %8146 = vmatpush1.bf16.msra.mxu0 %v6511
      %8147 = vmatprep.subr.bf16.mxu0 %v6520
      %8148 = vmatpush1.bf16.msra.mxu0 %v6519
      %8149 = vmatprep.mubr.bf16.mxu0 %v1442
      %8150 = vmatmul.mubr.bf16.gmra.mrb[0].mxu0 %v1441
      %v8151 = vpop.f32.mrb[0].mxu0
      %v8152 = vadd.f32 %v8079, %v8151
      %v8153 = vpop.f32.mrb[0].mxu0
      %v8154 = vadd.f32 %v8081, %v8153
      %v8155 = vpop.f32.mrb[0].mxu0
      %v8156 = vadd.f32 %v8083, %v8155
      %v8157 = vpop.f32.mrb[0].mxu0
      %v8158 = vadd.f32 %v8085, %v8157
      %8159 = vmatprep.mubr.bf16.mxu0 %v1458
      %8160 = vmatmul.mubr.bf16.gmra.mrb[0].mxu0 %v1457
      %v8161 = vpop.f32.mrb[0].mxu0
      %v8162 = vadd.f32 %v8089, %v8161
      %v8163 = vpop.f32.mrb[0].mxu0
      %v8164 = vadd.f32 %v8091, %v8163
      %v8165 = vpop.f32.mrb[0].mxu0
      %v8166 = vadd.f32 %v8093, %v8165
      %v8167 = vpop.f32.mrb[0].mxu0
      %v8168 = vadd.f32 %v8095, %v8167
      %8169 = vmatprep.mubr.bf16.mxu0 %v1474
      %8170 = vmatmul.mubr.bf16.gmra.mrb[0].mxu0 %v1473
      %v8171 = vpop.f32.mrb[0].mxu0
      %v8172 = vadd.f32 %v8099, %v8171
      %v8173 = vpop.f32.mrb[0].mxu0
      %v8174 = vadd.f32 %v8101, %v8173
      %v8175 = vpop.f32.mrb[0].mxu0
      %v8176 = vadd.f32 %v8103, %v8175
      %v8177 = vpop.f32.mrb[0].mxu0
      %v8178 = vadd.f32 %v8105, %v8177
      %8179 = vmatprep.mubr.bf16.mxu0 %v1490
      %8180 = vmatmul.mubr.bf16.gmra.mrb[0].mxu0 %v1489
      %v8181 = vpop.f32.mrb[0].mxu0
      %v8182 = vadd.f32 %v8109, %v8181
      %v8183 = vpop.f32.mrb[0].mxu0
      %v8184 = vadd.f32 %v8111, %v8183
      %v8185 = vpop.f32.mrb[0].mxu0
      %v8186 = vadd.f32 %v8113, %v8185
      %v8187 = vpop.f32.mrb[0].mxu0
      %v8188 = vadd.f32 %v8115, %v8187
      %8189 = vdwg.mxu0
      %8190 = vmatprep.subr.bf16.mxu0 %v6528
      %8191 = vmatpush1.bf16.msra.mxu0 %v6527
      %8192 = vmatprep.subr.bf16.mxu0 %v6536
      %8193 = vmatpush1.bf16.msra.mxu0 %v6535
      %8194 = vmatprep.subr.bf16.mxu0 %v6544
      %8195 = vmatpush1.bf16.msra.mxu0 %v6543
      %8196 = vmatprep.subr.bf16.mxu0 %v6552
      %8197 = vmatpush1.bf16.msra.mxu0 %v6551
      %8198 = vmatprep.subr.bf16.mxu0 %v6560
      %8199 = vmatpush1.bf16.msra.mxu0 %v6559
      %8200 = vmatprep.subr.bf16.mxu0 %v6568
      %8201 = vmatpush1.bf16.msra.mxu0 %v6567
      %8202 = vmatprep.subr.bf16.mxu0 %v6576
      %8203 = vmatpush1.bf16.msra.mxu0 %v6575
      %8204 = vmatprep.subr.bf16.mxu0 %v6584
      %8205 = vmatpush1.bf16.msra.mxu0 %v6583
      %8206 = vmatprep.subr.bf16.mxu0 %v6592
      %8207 = vmatpush1.bf16.msra.mxu0 %v6591
      %8208 = vmatprep.subr.bf16.mxu0 %v6600
      %8209 = vmatpush1.bf16.msra.mxu0 %v6599
      %8210 = vmatprep.subr.bf16.mxu0 %v6608
      %8211 = vmatpush1.bf16.msra.mxu0 %v6607
      %8212 = vmatprep.subr.bf16.mxu0 %v6616
      %8213 = vmatpush1.bf16.msra.mxu0 %v6615
      %8214 = vmatprep.subr.bf16.mxu0 %v6624
      %8215 = vmatpush1.bf16.msra.mxu0 %v6623
      %8216 = vmatprep.subr.bf16.mxu0 %v6632
      %8217 = vmatpush1.bf16.msra.mxu0 %v6631
      %8218 = vmatprep.subr.bf16.mxu0 %v6640
      %8219 = vmatpush1.bf16.msra.mxu0 %v6639
      %8220 = vmatprep.subr.bf16.mxu0 %v6648
      %8221 = vmatpush1.bf16.msra.mxu0 %v6647
      %8222 = vmatprep.mubr.bf16.mxu0 %v1444
      %8223 = vmatmul.mubr.bf16.gmra.mrb[0].mxu0 %v1443
      %v8224 = vpop.f32.mrb[0].mxu0
      %v8225 = vadd.f32 %v8152, %v8224
      %v8226 = vpop.f32.mrb[0].mxu0
      %v8227 = vadd.f32 %v8154, %v8226
      %v8228 = vpop.f32.mrb[0].mxu0
      %v8229 = vadd.f32 %v8156, %v8228
      %v8230 = vpop.f32.mrb[0].mxu0
      %v8231 = vadd.f32 %v8158, %v8230
      %8232 = vmatprep.mubr.bf16.mxu0 %v1460
      %8233 = vmatmul.mubr.bf16.gmra.mrb[0].mxu0 %v1459
      %v8234 = vpop.f32.mrb[0].mxu0
      %v8235 = vadd.f32 %v8162, %v8234
      %v8236 = vpop.f32.mrb[0].mxu0
      %v8237 = vadd.f32 %v8164, %v8236
      %v8238 = vpop.f32.mrb[0].mxu0
      %v8239 = vadd.f32 %v8166, %v8238
      %v8240 = vpop.f32.mrb[0].mxu0
      %v8241 = vadd.f32 %v8168, %v8240
      %8242 = vmatprep.mubr.bf16.mxu0 %v1476
      %8243 = vmatmul.mubr.bf16.gmra.mrb[0].mxu0 %v1475
      %v8244 = vpop.f32.mrb[0].mxu0
      %v8245 = vadd.f32 %v8172, %v8244
      %v8246 = vpop.f32.mrb[0].mxu0
      %v8247 = vadd.f32 %v8174, %v8246
      %v8248 = vpop.f32.mrb[0].mxu0
      %v8249 = vadd.f32 %v8176, %v8248
      %v8250 = vpop.f32.mrb[0].mxu0
      %v8251 = vadd.f32 %v8178, %v8250
      %8252 = vmatprep.mubr.bf16.mxu0 %v1492
      %8253 = vmatmul.mubr.bf16.gmra.mrb[0].mxu0 %v1491
      %v8254 = vpop.f32.mrb[0].mxu0
      %v8255 = vadd.f32 %v8182, %v8254
      %v8256 = vpop.f32.mrb[0].mxu0
      %v8257 = vadd.f32 %v8184, %v8256
      %v8258 = vpop.f32.mrb[0].mxu0
      %v8259 = vadd.f32 %v8186, %v8258
      %v8260 = vpop.f32.mrb[0].mxu0
      %v8261 = vadd.f32 %v8188, %v8260
      %8262 = vdwg.mxu0
      %8263 = vmatprep.subr.bf16.mxu0 %v5634
      %8264 = vmatpush1.bf16.msra.mxu0 %v5633
      %8265 = vmatprep.subr.bf16.mxu0 %v5642
      %8266 = vmatpush1.bf16.msra.mxu0 %v5641
      %8267 = vmatprep.subr.bf16.mxu0 %v5650
      %8268 = vmatpush1.bf16.msra.mxu0 %v5649
      %8269 = vmatprep.subr.bf16.mxu0 %v5658
      %8270 = vmatpush1.bf16.msra.mxu0 %v5657
      %8271 = vmatprep.subr.bf16.mxu0 %v5666
      %8272 = vmatpush1.bf16.msra.mxu0 %v5665
      %8273 = vmatprep.subr.bf16.mxu0 %v5674
      %8274 = vmatpush1.bf16.msra.mxu0 %v5673
      %8275 = vmatprep.subr.bf16.mxu0 %v5682
      %8276 = vmatpush1.bf16.msra.mxu0 %v5681
      %8277 = vmatprep.subr.bf16.mxu0 %v5690
      %8278 = vmatpush1.bf16.msra.mxu0 %v5689
      %8279 = vmatprep.subr.bf16.mxu0 %v5698
      %8280 = vmatpush1.bf16.msra.mxu0 %v5697
      %8281 = vmatprep.subr.bf16.mxu0 %v5706
      %8282 = vmatpush1.bf16.msra.mxu0 %v5705
      %8283 = vmatprep.subr.bf16.mxu0 %v5714
      %8284 = vmatpush1.bf16.msra.mxu0 %v5713
      %8285 = vmatprep.subr.bf16.mxu0 %v5722
      %8286 = vmatpush1.bf16.msra.mxu0 %v5721
      %8287 = vmatprep.subr.bf16.mxu0 %v5730
      %8288 = vmatpush1.bf16.msra.mxu0 %v5729
      %8289 = vmatprep.subr.bf16.mxu0 %v5738
      %8290 = vmatpush1.bf16.msra.mxu0 %v5737
      %8291 = vmatprep.subr.bf16.mxu0 %v5746
      %8292 = vmatpush1.bf16.msra.mxu0 %v5745
      %8293 = vmatprep.subr.bf16.mxu0 %v5754
      %8294 = vmatpush1.bf16.msra.mxu0 %v5753
      %8295 = vmatprep.mubr.bf16.mxu0 %v1430
      %8296 = vmatmul.mubr.bf16.gmra.mrb[0].mxu0 %v1429
      %v8297 = vpop.f32.mrb[0].mxu0
      %v8298 = vadd.f32 %v2530, %v8297
      %v8299 = vpop.f32.mrb[0].mxu0
      %v8300 = vadd.f32 %v2534, %v8299
      %v8301 = vpop.f32.mrb[0].mxu0
      %v8302 = vadd.f32 %v2530, %v8301
      %v8303 = vpop.f32.mrb[0].mxu0
      %v8304 = vadd.f32 %v2534, %v8303
      %8305 = vmatprep.mubr.bf16.mxu0 %v1446
      %8306 = vmatmul.mubr.bf16.gmra.mrb[0].mxu0 %v1445
      %v8307 = vpop.f32.mrb[0].mxu0
      %v8308 = vadd.f32 %v2530, %v8307
      %v8309 = vpop.f32.mrb[0].mxu0
      %v8310 = vadd.f32 %v2534, %v8309
      %v8311 = vpop.f32.mrb[0].mxu0
      %v8312 = vadd.f32 %v2530, %v8311
      %v8313 = vpop.f32.mrb[0].mxu0
      %v8314 = vadd.f32 %v2534, %v8313
      %8315 = vmatprep.mubr.bf16.mxu0 %v1462
      %8316 = vmatmul.mubr.bf16.gmra.mrb[0].mxu0 %v1461
      %v8317 = vpop.f32.mrb[0].mxu0
      %v8318 = vadd.f32 %v2530, %v8317
      %v8319 = vpop.f32.mrb[0].mxu0
      %v8320 = vadd.f32 %v2534, %v8319
      %v8321 = vpop.f32.mrb[0].mxu0
      %v8322 = vadd.f32 %v2530, %v8321
      %v8323 = vpop.f32.mrb[0].mxu0
      %v8324 = vadd.f32 %v2534, %v8323
      %8325 = vmatprep.mubr.bf16.mxu0 %v1478
      %8326 = vmatmul.mubr.bf16.gmra.mrb[0].mxu0 %v1477
      %v8327 = vpop.f32.mrb[0].mxu0
      %v8328 = vadd.f32 %v2530, %v8327
      %v8329 = vpop.f32.mrb[0].mxu0
      %v8330 = vadd.f32 %v2534, %v8329
      %v8331 = vpop.f32.mrb[0].mxu0
      %v8332 = vadd.f32 %v2530, %v8331
      %v8333 = vpop.f32.mrb[0].mxu0
      %v8334 = vadd.f32 %v2534, %v8333
      %8335 = vdwg.mxu0
      %8336 = vmatprep.subr.bf16.mxu0 %v5762
      %8337 = vmatpush1.bf16.msra.mxu0 %v5761
      %8338 = vmatprep.subr.bf16.mxu0 %v5770
      %8339 = vmatpush1.bf16.msra.mxu0 %v5769
      %8340 = vmatprep.subr.bf16.mxu0 %v5778
      %8341 = vmatpush1.bf16.msra.mxu0 %v5777
      %8342 = vmatprep.subr.bf16.mxu0 %v5786
      %8343 = vmatpush1.bf16.msra.mxu0 %v5785
      %8344 = vmatprep.subr.bf16.mxu0 %v5794
      %8345 = vmatpush1.bf16.msra.mxu0 %v5793
      %8346 = vmatprep.subr.bf16.mxu0 %v5802
      %8347 = vmatpush1.bf16.msra.mxu0 %v5801
      %8348 = vmatprep.subr.bf16.mxu0 %v5810
      %8349 = vmatpush1.bf16.msra.mxu0 %v5809
      %8350 = vmatprep.subr.bf16.mxu0 %v5818
      %8351 = vmatpush1.bf16.msra.mxu0 %v5817
      %8352 = vmatprep.subr.bf16.mxu0 %v5826
      %8353 = vmatpush1.bf16.msra.mxu0 %v5825
      %8354 = vmatprep.subr.bf16.mxu0 %v5834
      %8355 = vmatpush1.bf16.msra.mxu0 %v5833
      %8356 = vmatprep.subr.bf16.mxu0 %v5842
      %8357 = vmatpush1.bf16.msra.mxu0 %v5841
      %8358 = vmatprep.subr.bf16.mxu0 %v5850
      %8359 = vmatpush1.bf16.msra.mxu0 %v5849
      %8360 = vmatprep.subr.bf16.mxu0 %v5858
      %8361 = vmatpush1.bf16.msra.mxu0 %v5857
      %8362 = vmatprep.subr.bf16.mxu0 %v5866
      %8363 = vmatpush1.bf16.msra.mxu0 %v5865
      %8364 = vmatprep.subr.bf16.mxu0 %v5874
      %8365 = vmatpush1.bf16.msra.mxu0 %v5873
      %8366 = vmatprep.subr.bf16.mxu0 %v5882
      %8367 = vmatpush1.bf16.msra.mxu0 %v5881
      %8368 = vmatprep.mubr.bf16.mxu0 %v1432
      %8369 = vmatmul.mubr.bf16.gmra.mrb[0].mxu0 %v1431
      %v8370 = vpop.f32.mrb[0].mxu0
      %v8371 = vadd.f32 %v8298, %v8370
      %v8372 = vpop.f32.mrb[0].mxu0
      %v8373 = vadd.f32 %v8300, %v8372
      %v8374 = vpop.f32.mrb[0].mxu0
      %v8375 = vadd.f32 %v8302, %v8374
      %v8376 = vpop.f32.mrb[0].mxu0
      %v8377 = vadd.f32 %v8304, %v8376
      %8378 = vmatprep.mubr.bf16.mxu0 %v1448
      %8379 = vmatmul.mubr.bf16.gmra.mrb[0].mxu0 %v1447
      %v8380 = vpop.f32.mrb[0].mxu0
      %v8381 = vadd.f32 %v8308, %v8380
      %v8382 = vpop.f32.mrb[0].mxu0
      %v8383 = vadd.f32 %v8310, %v8382
      %v8384 = vpop.f32.mrb[0].mxu0
      %v8385 = vadd.f32 %v8312, %v8384
      %v8386 = vpop.f32.mrb[0].mxu0
      %v8387 = vadd.f32 %v8314, %v8386
      %8388 = vmatprep.mubr.bf16.mxu0 %v1464
      %8389 = vmatmul.mubr.bf16.gmra.mrb[0].mxu0 %v1463
      %v8390 = vpop.f32.mrb[0].mxu0
      %v8391 = vadd.f32 %v8318, %v8390
      %v8392 = vpop.f32.mrb[0].mxu0
      %v8393 = vadd.f32 %v8320, %v8392
      %v8394 = vpop.f32.mrb[0].mxu0
      %v8395 = vadd.f32 %v8322, %v8394
      %v8396 = vpop.f32.mrb[0].mxu0
      %v8397 = vadd.f32 %v8324, %v8396
      %8398 = vmatprep.mubr.bf16.mxu0 %v1480
      %8399 = vmatmul.mubr.bf16.gmra.mrb[0].mxu0 %v1479
      %v8400 = vpop.f32.mrb[0].mxu0
      %v8401 = vadd.f32 %v8328, %v8400
      %v8402 = vpop.f32.mrb[0].mxu0
      %v8403 = vadd.f32 %v8330, %v8402
      %v8404 = vpop.f32.mrb[0].mxu0
      %v8405 = vadd.f32 %v8332, %v8404
      %v8406 = vpop.f32.mrb[0].mxu0
      %v8407 = vadd.f32 %v8334, %v8406
      %8408 = vdwg.mxu0
      %8409 = vmatprep.subr.bf16.mxu0 %v5890
      %8410 = vmatpush1.bf16.msra.mxu0 %v5889
      %8411 = vmatprep.subr.bf16.mxu0 %v5898
      %8412 = vmatpush1.bf16.msra.mxu0 %v5897
      %8413 = vmatprep.subr.bf16.mxu0 %v5906
      %8414 = vmatpush1.bf16.msra.mxu0 %v5905
      %8415 = vmatprep.subr.bf16.mxu0 %v5914
      %8416 = vmatpush1.bf16.msra.mxu0 %v5913
      %8417 = vmatprep.subr.bf16.mxu0 %v5922
      %8418 = vmatpush1.bf16.msra.mxu0 %v5921
      %8419 = vmatprep.subr.bf16.mxu0 %v5930
      %8420 = vmatpush1.bf16.msra.mxu0 %v5929
      %8421 = vmatprep.subr.bf16.mxu0 %v5938
      %8422 = vmatpush1.bf16.msra.mxu0 %v5937
      %8423 = vmatprep.subr.bf16.mxu0 %v5946
      %8424 = vmatpush1.bf16.msra.mxu0 %v5945
      %8425 = vmatprep.subr.bf16.mxu0 %v5954
      %8426 = vmatpush1.bf16.msra.mxu0 %v5953
      %8427 = vmatprep.subr.bf16.mxu0 %v5962
      %8428 = vmatpush1.bf16.msra.mxu0 %v5961
      %8429 = vmatprep.subr.bf16.mxu0 %v5970
      %8430 = vmatpush1.bf16.msra.mxu0 %v5969
      %8431 = vmatprep.subr.bf16.mxu0 %v5978
      %8432 = vmatpush1.bf16.msra.mxu0 %v5977
      %8433 = vmatprep.subr.bf16.mxu0 %v5986
      %8434 = vmatpush1.bf16.msra.mxu0 %v5985
      %8435 = vmatprep.subr.bf16.mxu0 %v5994
      %8436 = vmatpush1.bf16.msra.mxu0 %v5993
      %8437 = vmatprep.subr.bf16.mxu0 %v6002
      %8438 = vmatpush1.bf16.msra.mxu0 %v6001
      %8439 = vmatprep.subr.bf16.mxu0 %v6010
      %8440 = vmatpush1.bf16.msra.mxu0 %v6009
      %8441 = vmatprep.mubr.bf16.mxu0 %v1434
      %8442 = vmatmul.mubr.bf16.gmra.mrb[0].mxu0 %v1433
      %v8443 = vpop.f32.mrb[0].mxu0
      %v8444 = vadd.f32 %v8371, %v8443
      %v8445 = vpop.f32.mrb[0].mxu0
      %v8446 = vadd.f32 %v8373, %v8445
      %v8447 = vpop.f32.mrb[0].mxu0
      %v8448 = vadd.f32 %v8375, %v8447
      %v8449 = vpop.f32.mrb[0].mxu0
      %v8450 = vadd.f32 %v8377, %v8449
      %8451 = vmatprep.mubr.bf16.mxu0 %v1450
      %8452 = vmatmul.mubr.bf16.gmra.mrb[0].mxu0 %v1449
      %v8453 = vpop.f32.mrb[0].mxu0
      %v8454 = vadd.f32 %v8381, %v8453
      %v8455 = vpop.f32.mrb[0].mxu0
      %v8456 = vadd.f32 %v8383, %v8455
      %v8457 = vpop.f32.mrb[0].mxu0
      %v8458 = vadd.f32 %v8385, %v8457
      %v8459 = vpop.f32.mrb[0].mxu0
      %v8460 = vadd.f32 %v8387, %v8459
      %8461 = vmatprep.mubr.bf16.mxu0 %v1466
      %8462 = vmatmul.mubr.bf16.gmra.mrb[0].mxu0 %v1465
      %v8463 = vpop.f32.mrb[0].mxu0
      %v8464 = vadd.f32 %v8391, %v8463
      %v8465 = vpop.f32.mrb[0].mxu0
      %v8466 = vadd.f32 %v8393, %v8465
      %v8467 = vpop.f32.mrb[0].mxu0
      %v8468 = vadd.f32 %v8395, %v8467
      %v8469 = vpop.f32.mrb[0].mxu0
      %v8470 = vadd.f32 %v8397, %v8469
      %8471 = vmatprep.mubr.bf16.mxu0 %v1482
      %8472 = vmatmul.mubr.bf16.gmra.mrb[0].mxu0 %v1481
      %v8473 = vpop.f32.mrb[0].mxu0
      %v8474 = vadd.f32 %v8401, %v8473
      %v8475 = vpop.f32.mrb[0].mxu0
      %v8476 = vadd.f32 %v8403, %v8475
      %v8477 = vpop.f32.mrb[0].mxu0
      %v8478 = vadd.f32 %v8405, %v8477
      %v8479 = vpop.f32.mrb[0].mxu0
      %v8480 = vadd.f32 %v8407, %v8479
      %8481 = vdwg.mxu0
      %8482 = vmatprep.subr.bf16.mxu0 %v6018
      %8483 = vmatpush1.bf16.msra.mxu0 %v6017
      %8484 = vmatprep.subr.bf16.mxu0 %v6026
      %8485 = vmatpush1.bf16.msra.mxu0 %v6025
      %8486 = vmatprep.subr.bf16.mxu0 %v6034
      %8487 = vmatpush1.bf16.msra.mxu0 %v6033
      %8488 = vmatprep.subr.bf16.mxu0 %v6042
      %8489 = vmatpush1.bf16.msra.mxu0 %v6041
      %8490 = vmatprep.subr.bf16.mxu0 %v6050
      %8491 = vmatpush1.bf16.msra.mxu0 %v6049
      %8492 = vmatprep.subr.bf16.mxu0 %v6058
      %8493 = vmatpush1.bf16.msra.mxu0 %v6057
      %8494 = vmatprep.subr.bf16.mxu0 %v6066
      %8495 = vmatpush1.bf16.msra.mxu0 %v6065
      %8496 = vmatprep.subr.bf16.mxu0 %v6074
      %8497 = vmatpush1.bf16.msra.mxu0 %v6073
      %8498 = vmatprep.subr.bf16.mxu0 %v6082
      %8499 = vmatpush1.bf16.msra.mxu0 %v6081
      %8500 = vmatprep.subr.bf16.mxu0 %v6090
      %8501 = vmatpush1.bf16.msra.mxu0 %v6089
      %8502 = vmatprep.subr.bf16.mxu0 %v6098
      %8503 = vmatpush1.bf16.msra.mxu0 %v6097
      %8504 = vmatprep.subr.bf16.mxu0 %v6106
      %8505 = vmatpush1.bf16.msra.mxu0 %v6105
      %8506 = vmatprep.subr.bf16.mxu0 %v6114
      %8507 = vmatpush1.bf16.msra.mxu0 %v6113
      %8508 = vmatprep.subr.bf16.mxu0 %v6122
      %8509 = vmatpush1.bf16.msra.mxu0 %v6121
      %8510 = vmatprep.subr.bf16.mxu0 %v6130
      %8511 = vmatpush1.bf16.msra.mxu0 %v6129
      %8512 = vmatprep.subr.bf16.mxu0 %v6138
      %8513 = vmatpush1.bf16.msra.mxu0 %v6137
      %8514 = vmatprep.mubr.bf16.mxu0 %v1436
      %8515 = vmatmul.mubr.bf16.gmra.mrb[0].mxu0 %v1435
      %v8516 = vpop.f32.mrb[0].mxu0
      %v8517 = vadd.f32 %v8444, %v8516
      %v8518 = vpop.f32.mrb[0].mxu0
      %v8519 = vadd.f32 %v8446, %v8518
      %v8520 = vpop.f32.mrb[0].mxu0
      %v8521 = vadd.f32 %v8448, %v8520
      %v8522 = vpop.f32.mrb[0].mxu0
      %v8523 = vadd.f32 %v8450, %v8522
      %8524 = vmatprep.mubr.bf16.mxu0 %v1452
      %8525 = vmatmul.mubr.bf16.gmra.mrb[0].mxu0 %v1451
      %v8526 = vpop.f32.mrb[0].mxu0
      %v8527 = vadd.f32 %v8454, %v8526
      %v8528 = vpop.f32.mrb[0].mxu0
      %v8529 = vadd.f32 %v8456, %v8528
      %v8530 = vpop.f32.mrb[0].mxu0
      %v8531 = vadd.f32 %v8458, %v8530
      %v8532 = vpop.f32.mrb[0].mxu0
      %v8533 = vadd.f32 %v8460, %v8532
      %8534 = vmatprep.mubr.bf16.mxu0 %v1468
      %8535 = vmatmul.mubr.bf16.gmra.mrb[0].mxu0 %v1467
      %v8536 = vpop.f32.mrb[0].mxu0
      %v8537 = vadd.f32 %v8464, %v8536
      %v8538 = vpop.f32.mrb[0].mxu0
      %v8539 = vadd.f32 %v8466, %v8538
      %v8540 = vpop.f32.mrb[0].mxu0
      %v8541 = vadd.f32 %v8468, %v8540
      %v8542 = vpop.f32.mrb[0].mxu0
      %v8543 = vadd.f32 %v8470, %v8542
      %8544 = vmatprep.mubr.bf16.mxu0 %v1484
      %8545 = vmatmul.mubr.bf16.gmra.mrb[0].mxu0 %v1483
      %v8546 = vpop.f32.mrb[0].mxu0
      %v8547 = vadd.f32 %v8474, %v8546
      %v8548 = vpop.f32.mrb[0].mxu0
      %v8549 = vadd.f32 %v8476, %v8548
      %v8550 = vpop.f32.mrb[0].mxu0
      %v8551 = vadd.f32 %v8478, %v8550
      %v8552 = vpop.f32.mrb[0].mxu0
      %v8553 = vadd.f32 %v8480, %v8552
      %8554 = vdwg.mxu0
      %8555 = vmatprep.subr.bf16.mxu0 %v6146
      %8556 = vmatpush1.bf16.msra.mxu0 %v6145
      %8557 = vmatprep.subr.bf16.mxu0 %v6154
      %8558 = vmatpush1.bf16.msra.mxu0 %v6153
      %8559 = vmatprep.subr.bf16.mxu0 %v6162
      %8560 = vmatpush1.bf16.msra.mxu0 %v6161
      %8561 = vmatprep.subr.bf16.mxu0 %v6170
      %8562 = vmatpush1.bf16.msra.mxu0 %v6169
      %8563 = vmatprep.subr.bf16.mxu0 %v6178
      %8564 = vmatpush1.bf16.msra.mxu0 %v6177
      %8565 = vmatprep.subr.bf16.mxu0 %v6186
      %8566 = vmatpush1.bf16.msra.mxu0 %v6185
      %8567 = vmatprep.subr.bf16.mxu0 %v6194
      %8568 = vmatpush1.bf16.msra.mxu0 %v6193
      %8569 = vmatprep.subr.bf16.mxu0 %v6202
      %8570 = vmatpush1.bf16.msra.mxu0 %v6201
      %8571 = vmatprep.subr.bf16.mxu0 %v6210
      %8572 = vmatpush1.bf16.msra.mxu0 %v6209
      %8573 = vmatprep.subr.bf16.mxu0 %v6218
      %8574 = vmatpush1.bf16.msra.mxu0 %v6217
      %8575 = vmatprep.subr.bf16.mxu0 %v6226
      %8576 = vmatpush1.bf16.msra.mxu0 %v6225
      %8577 = vmatprep.subr.bf16.mxu0 %v6234
      %8578 = vmatpush1.bf16.msra.mxu0 %v6233
      %8579 = vmatprep.subr.bf16.mxu0 %v6242
      %8580 = vmatpush1.bf16.msra.mxu0 %v6241
      %8581 = vmatprep.subr.bf16.mxu0 %v6250
      %8582 = vmatpush1.bf16.msra.mxu0 %v6249
      %8583 = vmatprep.subr.bf16.mxu0 %v6258
      %8584 = vmatpush1.bf16.msra.mxu0 %v6257
      %8585 = vmatprep.subr.bf16.mxu0 %v6266
      %8586 = vmatpush1.bf16.msra.mxu0 %v6265
      %8587 = vmatprep.mubr.bf16.mxu0 %v1438
      %8588 = vmatmul.mubr.bf16.gmra.mrb[0].mxu0 %v1437
      %v8589 = vpop.f32.mrb[0].mxu0
      %v8590 = vadd.f32 %v8517, %v8589
      %v8591 = vpop.f32.mrb[0].mxu0
      %v8592 = vadd.f32 %v8519, %v8591
      %v8593 = vpop.f32.mrb[0].mxu0
      %v8594 = vadd.f32 %v8521, %v8593
      %v8595 = vpop.f32.mrb[0].mxu0
      %v8596 = vadd.f32 %v8523, %v8595
      %8597 = vmatprep.mubr.bf16.mxu0 %v1454
      %8598 = vmatmul.mubr.bf16.gmra.mrb[0].mxu0 %v1453
      %v8599 = vpop.f32.mrb[0].mxu0
      %v8600 = vadd.f32 %v8527, %v8599
      %v8601 = vpop.f32.mrb[0].mxu0
      %v8602 = vadd.f32 %v8529, %v8601
      %v8603 = vpop.f32.mrb[0].mxu0
      %v8604 = vadd.f32 %v8531, %v8603
      %v8605 = vpop.f32.mrb[0].mxu0
      %v8606 = vadd.f32 %v8533, %v8605
      %8607 = vmatprep.mubr.bf16.mxu0 %v1470
      %8608 = vmatmul.mubr.bf16.gmra.mrb[0].mxu0 %v1469
      %v8609 = vpop.f32.mrb[0].mxu0
      %v8610 = vadd.f32 %v8537, %v8609
      %v8611 = vpop.f32.mrb[0].mxu0
      %v8612 = vadd.f32 %v8539, %v8611
      %v8613 = vpop.f32.mrb[0].mxu0
      %v8614 = vadd.f32 %v8541, %v8613
      %v8615 = vpop.f32.mrb[0].mxu0
      %v8616 = vadd.f32 %v8543, %v8615
      %8617 = vmatprep.mubr.bf16.mxu0 %v1486
      %8618 = vmatmul.mubr.bf16.gmra.mrb[0].mxu0 %v1485
      %v8619 = vpop.f32.mrb[0].mxu0
      %v8620 = vadd.f32 %v8547, %v8619
      %v8621 = vpop.f32.mrb[0].mxu0
      %v8622 = vadd.f32 %v8549, %v8621
      %v8623 = vpop.f32.mrb[0].mxu0
      %v8624 = vadd.f32 %v8551, %v8623
      %v8625 = vpop.f32.mrb[0].mxu0
      %v8626 = vadd.f32 %v8553, %v8625
      %8627 = vdwg.mxu0
      %8628 = vmatprep.subr.bf16.mxu0 %v6274
      %8629 = vmatpush1.bf16.msra.mxu0 %v6273
      %8630 = vmatprep.subr.bf16.mxu0 %v6282
      %8631 = vmatpush1.bf16.msra.mxu0 %v6281
      %8632 = vmatprep.subr.bf16.mxu0 %v6290
      %8633 = vmatpush1.bf16.msra.mxu0 %v6289
      %8634 = vmatprep.subr.bf16.mxu0 %v6298
      %8635 = vmatpush1.bf16.msra.mxu0 %v6297
      %8636 = vmatprep.subr.bf16.mxu0 %v6306
      %8637 = vmatpush1.bf16.msra.mxu0 %v6305
      %8638 = vmatprep.subr.bf16.mxu0 %v6314
      %8639 = vmatpush1.bf16.msra.mxu0 %v6313
      %8640 = vmatprep.subr.bf16.mxu0 %v6322
      %8641 = vmatpush1.bf16.msra.mxu0 %v6321
      %8642 = vmatprep.subr.bf16.mxu0 %v6330
      %8643 = vmatpush1.bf16.msra.mxu0 %v6329
      %8644 = vmatprep.subr.bf16.mxu0 %v6338
      %8645 = vmatpush1.bf16.msra.mxu0 %v6337
      %8646 = vmatprep.subr.bf16.mxu0 %v6346
      %8647 = vmatpush1.bf16.msra.mxu0 %v6345
      %8648 = vmatprep.subr.bf16.mxu0 %v6354
      %8649 = vmatpush1.bf16.msra.mxu0 %v6353
      %8650 = vmatprep.subr.bf16.mxu0 %v6362
      %8651 = vmatpush1.bf16.msra.mxu0 %v6361
      %8652 = vmatprep.subr.bf16.mxu0 %v6370
      %8653 = vmatpush1.bf16.msra.mxu0 %v6369
      %8654 = vmatprep.subr.bf16.mxu0 %v6378
      %8655 = vmatpush1.bf16.msra.mxu0 %v6377
      %8656 = vmatprep.subr.bf16.mxu0 %v6386
      %8657 = vmatpush1.bf16.msra.mxu0 %v6385
      %8658 = vmatprep.subr.bf16.mxu0 %v6394
      %8659 = vmatpush1.bf16.msra.mxu0 %v6393
      %8660 = vmatprep.mubr.bf16.mxu0 %v1440
      %8661 = vmatmul.mubr.bf16.gmra.mrb[0].mxu0 %v1439
      %v8662 = vpop.f32.mrb[0].mxu0
      %v8663 = vadd.f32 %v8590, %v8662
      %v8664 = vpop.f32.mrb[0].mxu0
      %v8665 = vadd.f32 %v8592, %v8664
      %v8666 = vpop.f32.mrb[0].mxu0
      %v8667 = vadd.f32 %v8594, %v8666
      %v8668 = vpop.f32.mrb[0].mxu0
      %v8669 = vadd.f32 %v8596, %v8668
      %8670 = vmatprep.mubr.bf16.mxu0 %v1456
      %8671 = vmatmul.mubr.bf16.gmra.mrb[0].mxu0 %v1455
      %v8672 = vpop.f32.mrb[0].mxu0
      %v8673 = vadd.f32 %v8600, %v8672
      %v8674 = vpop.f32.mrb[0].mxu0
      %v8675 = vadd.f32 %v8602, %v8674
      %v8676 = vpop.f32.mrb[0].mxu0
      %v8677 = vadd.f32 %v8604, %v8676
      %v8678 = vpop.f32.mrb[0].mxu0
      %v8679 = vadd.f32 %v8606, %v8678
      %8680 = vmatprep.mubr.bf16.mxu0 %v1472
      %8681 = vmatmul.mubr.bf16.gmra.mrb[0].mxu0 %v1471
      %v8682 = vpop.f32.mrb[0].mxu0
      %v8683 = vadd.f32 %v8610, %v8682
      %v8684 = vpop.f32.mrb[0].mxu0
      %v8685 = vadd.f32 %v8612, %v8684
      %v8686 = vpop.f32.mrb[0].mxu0
      %v8687 = vadd.f32 %v8614, %v8686
      %v8688 = vpop.f32.mrb[0].mxu0
      %v8689 = vadd.f32 %v8616, %v8688
      %8690 = vmatprep.mubr.bf16.mxu0 %v1488
      %8691 = vmatmul.mubr.bf16.gmra.mrb[0].mxu0 %v1487
      %v8692 = vpop.f32.mrb[0].mxu0
      %v8693 = vadd.f32 %v8620, %v8692
      %v8694 = vpop.f32.mrb[0].mxu0
      %v8695 = vadd.f32 %v8622, %v8694
      %v8696 = vpop.f32.mrb[0].mxu0
      %v8697 = vadd.f32 %v8624, %v8696
      %v8698 = vpop.f32.mrb[0].mxu0
      %v8699 = vadd.f32 %v8626, %v8698
      %8700 = vdwg.mxu0
      %8701 = vmatprep.subr.bf16.mxu0 %v6402
      %8702 = vmatpush1.bf16.msra.mxu0 %v6401
      %8703 = vmatprep.subr.bf16.mxu0 %v6410
      %8704 = vmatpush1.bf16.msra.mxu0 %v6409
      %8705 = vmatprep.subr.bf16.mxu0 %v6418
      %8706 = vmatpush1.bf16.msra.mxu0 %v6417
      %8707 = vmatprep.subr.bf16.mxu0 %v6426
      %8708 = vmatpush1.bf16.msra.mxu0 %v6425
      %8709 = vmatprep.subr.bf16.mxu0 %v6434
      %8710 = vmatpush1.bf16.msra.mxu0 %v6433
      %8711 = vmatprep.subr.bf16.mxu0 %v6442
      %8712 = vmatpush1.bf16.msra.mxu0 %v6441
      %8713 = vmatprep.subr.bf16.mxu0 %v6450
      %8714 = vmatpush1.bf16.msra.mxu0 %v6449
      %8715 = vmatprep.subr.bf16.mxu0 %v6458
      %8716 = vmatpush1.bf16.msra.mxu0 %v6457
      %8717 = vmatprep.subr.bf16.mxu0 %v6466
      %8718 = vmatpush1.bf16.msra.mxu0 %v6465
      %8719 = vmatprep.subr.bf16.mxu0 %v6474
      %8720 = vmatpush1.bf16.msra.mxu0 %v6473
      %8721 = vmatprep.subr.bf16.mxu0 %v6482
      %8722 = vmatpush1.bf16.msra.mxu0 %v6481
      %8723 = vmatprep.subr.bf16.mxu0 %v6490
      %8724 = vmatpush1.bf16.msra.mxu0 %v6489
      %8725 = vmatprep.subr.bf16.mxu0 %v6498
      %8726 = vmatpush1.bf16.msra.mxu0 %v6497
      %8727 = vmatprep.subr.bf16.mxu0 %v6506
      %8728 = vmatpush1.bf16.msra.mxu0 %v6505
      %8729 = vmatprep.subr.bf16.mxu0 %v6514
      %8730 = vmatpush1.bf16.msra.mxu0 %v6513
      %8731 = vmatprep.subr.bf16.mxu0 %v6522
      %8732 = vmatpush1.bf16.msra.mxu0 %v6521
      %8733 = vmatprep.mubr.bf16.mxu0 %v1442
      %8734 = vmatmul.mubr.bf16.gmra.mrb[0].mxu0 %v1441
      %v8735 = vpop.f32.mrb[0].mxu0
      %v8736 = vadd.f32 %v8663, %v8735
      %v8737 = vpop.f32.mrb[0].mxu0
      %v8738 = vadd.f32 %v8665, %v8737
      %v8739 = vpop.f32.mrb[0].mxu0
      %v8740 = vadd.f32 %v8667, %v8739
      %v8741 = vpop.f32.mrb[0].mxu0
      %v8742 = vadd.f32 %v8669, %v8741
      %8743 = vmatprep.mubr.bf16.mxu0 %v1458
      %8744 = vmatmul.mubr.bf16.gmra.mrb[0].mxu0 %v1457
      %v8745 = vpop.f32.mrb[0].mxu0
      %v8746 = vadd.f32 %v8673, %v8745
      %v8747 = vpop.f32.mrb[0].mxu0
      %v8748 = vadd.f32 %v8675, %v8747
      %v8749 = vpop.f32.mrb[0].mxu0
      %v8750 = vadd.f32 %v8677, %v8749
      %v8751 = vpop.f32.mrb[0].mxu0
      %v8752 = vadd.f32 %v8679, %v8751
      %8753 = vmatprep.mubr.bf16.mxu0 %v1474
      %8754 = vmatmul.mubr.bf16.gmra.mrb[0].mxu0 %v1473
      %v8755 = vpop.f32.mrb[0].mxu0
      %v8756 = vadd.f32 %v8683, %v8755
      %v8757 = vpop.f32.mrb[0].mxu0
      %v8758 = vadd.f32 %v8685, %v8757
      %v8759 = vpop.f32.mrb[0].mxu0
      %v8760 = vadd.f32 %v8687, %v8759
      %v8761 = vpop.f32.mrb[0].mxu0
      %v8762 = vadd.f32 %v8689, %v8761
      %8763 = vmatprep.mubr.bf16.mxu0 %v1490
      %8764 = vmatmul.mubr.bf16.gmra.mrb[0].mxu0 %v1489
      %v8765 = vpop.f32.mrb[0].mxu0
      %v8766 = vadd.f32 %v8693, %v8765
      %v8767 = vpop.f32.mrb[0].mxu0
      %v8768 = vadd.f32 %v8695, %v8767
      %v8769 = vpop.f32.mrb[0].mxu0
      %v8770 = vadd.f32 %v8697, %v8769
      %v8771 = vpop.f32.mrb[0].mxu0
      %v8772 = vadd.f32 %v8699, %v8771
      %8773 = vdwg.mxu0
      %8774 = vmatprep.subr.bf16.mxu0 %v6530
      %8775 = vmatpush1.bf16.msra.mxu0 %v6529
      %8776 = vmatprep.subr.bf16.mxu0 %v6538
      %8777 = vmatpush1.bf16.msra.mxu0 %v6537
      %8778 = vmatprep.subr.bf16.mxu0 %v6546
      %8779 = vmatpush1.bf16.msra.mxu0 %v6545
      %8780 = vmatprep.subr.bf16.mxu0 %v6554
      %8781 = vmatpush1.bf16.msra.mxu0 %v6553
      %8782 = vmatprep.subr.bf16.mxu0 %v6562
      %8783 = vmatpush1.bf16.msra.mxu0 %v6561
      %8784 = vmatprep.subr.bf16.mxu0 %v6570
      %8785 = vmatpush1.bf16.msra.mxu0 %v6569
      %8786 = vmatprep.subr.bf16.mxu0 %v6578
      %8787 = vmatpush1.bf16.msra.mxu0 %v6577
      %8788 = vmatprep.subr.bf16.mxu0 %v6586
      %8789 = vmatpush1.bf16.msra.mxu0 %v6585
      %8790 = vmatprep.subr.bf16.mxu0 %v6594
      %8791 = vmatpush1.bf16.msra.mxu0 %v6593
      %8792 = vmatprep.subr.bf16.mxu0 %v6602
      %8793 = vmatpush1.bf16.msra.mxu0 %v6601
      %8794 = vmatprep.subr.bf16.mxu0 %v6610
      %8795 = vmatpush1.bf16.msra.mxu0 %v6609
      %8796 = vmatprep.subr.bf16.mxu0 %v6618
      %8797 = vmatpush1.bf16.msra.mxu0 %v6617
      %8798 = vmatprep.subr.bf16.mxu0 %v6626
      %8799 = vmatpush1.bf16.msra.mxu0 %v6625
      %8800 = vmatprep.subr.bf16.mxu0 %v6634
      %8801 = vmatpush1.bf16.msra.mxu0 %v6633
      %8802 = vmatprep.subr.bf16.mxu0 %v6642
      %8803 = vmatpush1.bf16.msra.mxu0 %v6641
      %8804 = vmatprep.subr.bf16.mxu0 %v6650
      %8805 = vmatpush1.bf16.msra.mxu0 %v6649
      %8806 = vmatprep.mubr.bf16.mxu0 %v1444
      %8807 = vmatmul.mubr.bf16.gmra.mrb[0].mxu0 %v1443
      %v8808 = vpop.f32.mrb[0].mxu0
      %v8809 = vadd.f32 %v8736, %v8808
      %v8810 = vpop.f32.mrb[0].mxu0
      %v8811 = vadd.f32 %v8738, %v8810
      %v8812 = vpop.f32.mrb[0].mxu0
      %v8813 = vadd.f32 %v8740, %v8812
      %v8814 = vpop.f32.mrb[0].mxu0
      %v8815 = vadd.f32 %v8742, %v8814
      %8816 = vmatprep.mubr.bf16.mxu0 %v1460
      %8817 = vmatmul.mubr.bf16.gmra.mrb[0].mxu0 %v1459
      %v8818 = vpop.f32.mrb[0].mxu0
      %v8819 = vadd.f32 %v8746, %v8818
      %v8820 = vpop.f32.mrb[0].mxu0
      %v8821 = vadd.f32 %v8748, %v8820
      %v8822 = vpop.f32.mrb[0].mxu0
      %v8823 = vadd.f32 %v8750, %v8822
      %v8824 = vpop.f32.mrb[0].mxu0
      %v8825 = vadd.f32 %v8752, %v8824
      %8826 = vmatprep.mubr.bf16.mxu0 %v1476
      %8827 = vmatmul.mubr.bf16.gmra.mrb[0].mxu0 %v1475
      %v8828 = vpop.f32.mrb[0].mxu0
      %v8829 = vadd.f32 %v8756, %v8828
      %v8830 = vpop.f32.mrb[0].mxu0
      %v8831 = vadd.f32 %v8758, %v8830
      %v8832 = vpop.f32.mrb[0].mxu0
      %v8833 = vadd.f32 %v8760, %v8832
      %v8834 = vpop.f32.mrb[0].mxu0
      %v8835 = vadd.f32 %v8762, %v8834
      %8836 = vmatprep.mubr.bf16.mxu0 %v1492
      %8837 = vmatmul.mubr.bf16.gmra.mrb[0].mxu0 %v1491
      %v8838 = vpop.f32.mrb[0].mxu0
      %v8839 = vadd.f32 %v8766, %v8838
      %v8840 = vpop.f32.mrb[0].mxu0
      %v8841 = vadd.f32 %v8768, %v8840
      %v8842 = vpop.f32.mrb[0].mxu0
      %v8843 = vadd.f32 %v8770, %v8842
      %v8844 = vpop.f32.mrb[0].mxu0
      %v8845 = vadd.f32 %v8772, %v8844
      %8846 = vdwg.mxu0
      %8847 = vmatprep.subr.bf16.mxu0 %v5636
      %8848 = vmatpush1.bf16.msra.mxu0 %v5635
      %8849 = vmatprep.subr.bf16.mxu0 %v5644
      %8850 = vmatpush1.bf16.msra.mxu0 %v5643
      %8851 = vmatprep.subr.bf16.mxu0 %v5652
      %8852 = vmatpush1.bf16.msra.mxu0 %v5651
      %8853 = vmatprep.subr.bf16.mxu0 %v5660
      %8854 = vmatpush1.bf16.msra.mxu0 %v5659
      %8855 = vmatprep.subr.bf16.mxu0 %v5668
      %8856 = vmatpush1.bf16.msra.mxu0 %v5667
      %8857 = vmatprep.subr.bf16.mxu0 %v5676
      %8858 = vmatpush1.bf16.msra.mxu0 %v5675
      %8859 = vmatprep.subr.bf16.mxu0 %v5684
      %8860 = vmatpush1.bf16.msra.mxu0 %v5683
      %8861 = vmatprep.subr.bf16.mxu0 %v5692
      %8862 = vmatpush1.bf16.msra.mxu0 %v5691
      %8863 = vmatprep.subr.bf16.mxu0 %v5700
      %8864 = vmatpush1.bf16.msra.mxu0 %v5699
      %8865 = vmatprep.subr.bf16.mxu0 %v5708
      %8866 = vmatpush1.bf16.msra.mxu0 %v5707
      %8867 = vmatprep.subr.bf16.mxu0 %v5716
      %8868 = vmatpush1.bf16.msra.mxu0 %v5715
      %8869 = vmatprep.subr.bf16.mxu0 %v5724
      %8870 = vmatpush1.bf16.msra.mxu0 %v5723
      %8871 = vmatprep.subr.bf16.mxu0 %v5732
      %8872 = vmatpush1.bf16.msra.mxu0 %v5731
      %8873 = vmatprep.subr.bf16.mxu0 %v5740
      %8874 = vmatpush1.bf16.msra.mxu0 %v5739
      %8875 = vmatprep.subr.bf16.mxu0 %v5748
      %8876 = vmatpush1.bf16.msra.mxu0 %v5747
      %8877 = vmatprep.subr.bf16.mxu0 %v5756
      %8878 = vmatpush1.bf16.msra.mxu0 %v5755
      %8879 = vmatprep.mubr.bf16.mxu0 %v1430
      %8880 = vmatmul.mubr.bf16.gmra.mrb[0].mxu0 %v1429
      %v8881 = vpop.f32.mrb[0].mxu0
      %v8882 = vadd.f32 %v2538, %v8881
      %v8883 = vpop.f32.mrb[0].mxu0
      %v8884 = vadd.f32 %v2542, %v8883
      %v8885 = vpop.f32.mrb[0].mxu0
      %v8886 = vadd.f32 %v2538, %v8885
      %v8887 = vpop.f32.mrb[0].mxu0
      %v8888 = vadd.f32 %v2542, %v8887
      %8889 = vmatprep.mubr.bf16.mxu0 %v1446
      %8890 = vmatmul.mubr.bf16.gmra.mrb[0].mxu0 %v1445
      %v8891 = vpop.f32.mrb[0].mxu0
      %v8892 = vadd.f32 %v2538, %v8891
      %v8893 = vpop.f32.mrb[0].mxu0
      %v8894 = vadd.f32 %v2542, %v8893
      %v8895 = vpop.f32.mrb[0].mxu0
      %v8896 = vadd.f32 %v2538, %v8895
      %v8897 = vpop.f32.mrb[0].mxu0
      %v8898 = vadd.f32 %v2542, %v8897
      %8899 = vmatprep.mubr.bf16.mxu0 %v1462
      %8900 = vmatmul.mubr.bf16.gmra.mrb[0].mxu0 %v1461
      %v8901 = vpop.f32.mrb[0].mxu0
      %v8902 = vadd.f32 %v2538, %v8901
      %v8903 = vpop.f32.mrb[0].mxu0
      %v8904 = vadd.f32 %v2542, %v8903
      %v8905 = vpop.f32.mrb[0].mxu0
      %v8906 = vadd.f32 %v2538, %v8905
      %v8907 = vpop.f32.mrb[0].mxu0
      %v8908 = vadd.f32 %v2542, %v8907
      %8909 = vmatprep.mubr.bf16.mxu0 %v1478
      %8910 = vmatmul.mubr.bf16.gmra.mrb[0].mxu0 %v1477
      %v8911 = vpop.f32.mrb[0].mxu0
      %v8912 = vadd.f32 %v2538, %v8911
      %v8913 = vpop.f32.mrb[0].mxu0
      %v8914 = vadd.f32 %v2542, %v8913
      %v8915 = vpop.f32.mrb[0].mxu0
      %v8916 = vadd.f32 %v2538, %v8915
      %v8917 = vpop.f32.mrb[0].mxu0
      %v8918 = vadd.f32 %v2542, %v8917
      %8919 = vdwg.mxu0
      %8920 = vmatprep.subr.bf16.mxu0 %v5764
      %8921 = vmatpush1.bf16.msra.mxu0 %v5763
      %8922 = vmatprep.subr.bf16.mxu0 %v5772
      %8923 = vmatpush1.bf16.msra.mxu0 %v5771
      %8924 = vmatprep.subr.bf16.mxu0 %v5780
      %8925 = vmatpush1.bf16.msra.mxu0 %v5779
      %8926 = vmatprep.subr.bf16.mxu0 %v5788
      %8927 = vmatpush1.bf16.msra.mxu0 %v5787
      %8928 = vmatprep.subr.bf16.mxu0 %v5796
      %8929 = vmatpush1.bf16.msra.mxu0 %v5795
      %8930 = vmatprep.subr.bf16.mxu0 %v5804
      %8931 = vmatpush1.bf16.msra.mxu0 %v5803
      %8932 = vmatprep.subr.bf16.mxu0 %v5812
      %8933 = vmatpush1.bf16.msra.mxu0 %v5811
      %8934 = vmatprep.subr.bf16.mxu0 %v5820
      %8935 = vmatpush1.bf16.msra.mxu0 %v5819
      %8936 = vmatprep.subr.bf16.mxu0 %v5828
      %8937 = vmatpush1.bf16.msra.mxu0 %v5827
      %8938 = vmatprep.subr.bf16.mxu0 %v5836
      %8939 = vmatpush1.bf16.msra.mxu0 %v5835
      %8940 = vmatprep.subr.bf16.mxu0 %v5844
      %8941 = vmatpush1.bf16.msra.mxu0 %v5843
      %8942 = vmatprep.subr.bf16.mxu0 %v5852
      %8943 = vmatpush1.bf16.msra.mxu0 %v5851
      %8944 = vmatprep.subr.bf16.mxu0 %v5860
      %8945 = vmatpush1.bf16.msra.mxu0 %v5859
      %8946 = vmatprep.subr.bf16.mxu0 %v5868
      %8947 = vmatpush1.bf16.msra.mxu0 %v5867
      %8948 = vmatprep.subr.bf16.mxu0 %v5876
      %8949 = vmatpush1.bf16.msra.mxu0 %v5875
      %8950 = vmatprep.subr.bf16.mxu0 %v5884
      %8951 = vmatpush1.bf16.msra.mxu0 %v5883
      %8952 = vmatprep.mubr.bf16.mxu0 %v1432
      %8953 = vmatmul.mubr.bf16.gmra.mrb[0].mxu0 %v1431
      %v8954 = vpop.f32.mrb[0].mxu0
      %v8955 = vadd.f32 %v8882, %v8954
      %v8956 = vpop.f32.mrb[0].mxu0
      %v8957 = vadd.f32 %v8884, %v8956
      %v8958 = vpop.f32.mrb[0].mxu0
      %v8959 = vadd.f32 %v8886, %v8958
      %v8960 = vpop.f32.mrb[0].mxu0
      %v8961 = vadd.f32 %v8888, %v8960
      %8962 = vmatprep.mubr.bf16.mxu0 %v1448
      %8963 = vmatmul.mubr.bf16.gmra.mrb[0].mxu0 %v1447
      %v8964 = vpop.f32.mrb[0].mxu0
      %v8965 = vadd.f32 %v8892, %v8964
      %v8966 = vpop.f32.mrb[0].mxu0
      %v8967 = vadd.f32 %v8894, %v8966
      %v8968 = vpop.f32.mrb[0].mxu0
      %v8969 = vadd.f32 %v8896, %v8968
      %v8970 = vpop.f32.mrb[0].mxu0
      %v8971 = vadd.f32 %v8898, %v8970
      %8972 = vmatprep.mubr.bf16.mxu0 %v1464
      %8973 = vmatmul.mubr.bf16.gmra.mrb[0].mxu0 %v1463
      %v8974 = vpop.f32.mrb[0].mxu0
      %v8975 = vadd.f32 %v8902, %v8974
      %v8976 = vpop.f32.mrb[0].mxu0
      %v8977 = vadd.f32 %v8904, %v8976
      %v8978 = vpop.f32.mrb[0].mxu0
      %v8979 = vadd.f32 %v8906, %v8978
      %v8980 = vpop.f32.mrb[0].mxu0
      %v8981 = vadd.f32 %v8908, %v8980
      %8982 = vmatprep.mubr.bf16.mxu0 %v1480
      %8983 = vmatmul.mubr.bf16.gmra.mrb[0].mxu0 %v1479
      %v8984 = vpop.f32.mrb[0].mxu0
      %v8985 = vadd.f32 %v8912, %v8984
      %v8986 = vpop.f32.mrb[0].mxu0
      %v8987 = vadd.f32 %v8914, %v8986
      %v8988 = vpop.f32.mrb[0].mxu0
      %v8989 = vadd.f32 %v8916, %v8988
      %v8990 = vpop.f32.mrb[0].mxu0
      %v8991 = vadd.f32 %v8918, %v8990
      %8992 = vdwg.mxu0
      %8993 = vmatprep.subr.bf16.mxu0 %v5892
      %8994 = vmatpush1.bf16.msra.mxu0 %v5891
      %8995 = vmatprep.subr.bf16.mxu0 %v5900
      %8996 = vmatpush1.bf16.msra.mxu0 %v5899
      %8997 = vmatprep.subr.bf16.mxu0 %v5908
      %8998 = vmatpush1.bf16.msra.mxu0 %v5907
      %8999 = vmatprep.subr.bf16.mxu0 %v5916
      %9000 = vmatpush1.bf16.msra.mxu0 %v5915
      %9001 = vmatprep.subr.bf16.mxu0 %v5924
      %9002 = vmatpush1.bf16.msra.mxu0 %v5923
      %9003 = vmatprep.subr.bf16.mxu0 %v5932
      %9004 = vmatpush1.bf16.msra.mxu0 %v5931
      %9005 = vmatprep.subr.bf16.mxu0 %v5940
      %9006 = vmatpush1.bf16.msra.mxu0 %v5939
      %9007 = vmatprep.subr.bf16.mxu0 %v5948
      %9008 = vmatpush1.bf16.msra.mxu0 %v5947
      %9009 = vmatprep.subr.bf16.mxu0 %v5956
      %9010 = vmatpush1.bf16.msra.mxu0 %v5955
      %9011 = vmatprep.subr.bf16.mxu0 %v5964
      %9012 = vmatpush1.bf16.msra.mxu0 %v5963
      %9013 = vmatprep.subr.bf16.mxu0 %v5972
      %9014 = vmatpush1.bf16.msra.mxu0 %v5971
      %9015 = vmatprep.subr.bf16.mxu0 %v5980
      %9016 = vmatpush1.bf16.msra.mxu0 %v5979
      %9017 = vmatprep.subr.bf16.mxu0 %v5988
      %9018 = vmatpush1.bf16.msra.mxu0 %v5987
      %9019 = vmatprep.subr.bf16.mxu0 %v5996
      %9020 = vmatpush1.bf16.msra.mxu0 %v5995
      %9021 = vmatprep.subr.bf16.mxu0 %v6004
      %9022 = vmatpush1.bf16.msra.mxu0 %v6003
      %9023 = vmatprep.subr.bf16.mxu0 %v6012
      %9024 = vmatpush1.bf16.msra.mxu0 %v6011
      %9025 = vmatprep.mubr.bf16.mxu0 %v1434
      %9026 = vmatmul.mubr.bf16.gmra.mrb[0].mxu0 %v1433
      %v9027 = vpop.f32.mrb[0].mxu0
      %v9028 = vadd.f32 %v8955, %v9027
      %v9029 = vpop.f32.mrb[0].mxu0
      %v9030 = vadd.f32 %v8957, %v9029
      %v9031 = vpop.f32.mrb[0].mxu0
      %v9032 = vadd.f32 %v8959, %v9031
      %v9033 = vpop.f32.mrb[0].mxu0
      %v9034 = vadd.f32 %v8961, %v9033
      %9035 = vmatprep.mubr.bf16.mxu0 %v1450
      %9036 = vmatmul.mubr.bf16.gmra.mrb[0].mxu0 %v1449
      %v9037 = vpop.f32.mrb[0].mxu0
      %v9038 = vadd.f32 %v8965, %v9037
      %v9039 = vpop.f32.mrb[0].mxu0
      %v9040 = vadd.f32 %v8967, %v9039
      %v9041 = vpop.f32.mrb[0].mxu0
      %v9042 = vadd.f32 %v8969, %v9041
      %v9043 = vpop.f32.mrb[0].mxu0
      %v9044 = vadd.f32 %v8971, %v9043
      %9045 = vmatprep.mubr.bf16.mxu0 %v1466
      %9046 = vmatmul.mubr.bf16.gmra.mrb[0].mxu0 %v1465
      %v9047 = vpop.f32.mrb[0].mxu0
      %v9048 = vadd.f32 %v8975, %v9047
      %v9049 = vpop.f32.mrb[0].mxu0
      %v9050 = vadd.f32 %v8977, %v9049
      %v9051 = vpop.f32.mrb[0].mxu0
      %v9052 = vadd.f32 %v8979, %v9051
      %v9053 = vpop.f32.mrb[0].mxu0
      %v9054 = vadd.f32 %v8981, %v9053
      %9055 = vmatprep.mubr.bf16.mxu0 %v1482
      %9056 = vmatmul.mubr.bf16.gmra.mrb[0].mxu0 %v1481
      %v9057 = vpop.f32.mrb[0].mxu0
      %v9058 = vadd.f32 %v8985, %v9057
      %v9059 = vpop.f32.mrb[0].mxu0
      %v9060 = vadd.f32 %v8987, %v9059
      %v9061 = vpop.f32.mrb[0].mxu0
      %v9062 = vadd.f32 %v8989, %v9061
      %v9063 = vpop.f32.mrb[0].mxu0
      %v9064 = vadd.f32 %v8991, %v9063
      %9065 = vdwg.mxu0
      %9066 = vmatprep.subr.bf16.mxu0 %v6020
      %9067 = vmatpush1.bf16.msra.mxu0 %v6019
      %9068 = vmatprep.subr.bf16.mxu0 %v6028
      %9069 = vmatpush1.bf16.msra.mxu0 %v6027
      %9070 = vmatprep.subr.bf16.mxu0 %v6036
      %9071 = vmatpush1.bf16.msra.mxu0 %v6035
      %9072 = vmatprep.subr.bf16.mxu0 %v6044
      %9073 = vmatpush1.bf16.msra.mxu0 %v6043
      %9074 = vmatprep.subr.bf16.mxu0 %v6052
      %9075 = vmatpush1.bf16.msra.mxu0 %v6051
      %9076 = vmatprep.subr.bf16.mxu0 %v6060
      %9077 = vmatpush1.bf16.msra.mxu0 %v6059
      %9078 = vmatprep.subr.bf16.mxu0 %v6068
      %9079 = vmatpush1.bf16.msra.mxu0 %v6067
      %9080 = vmatprep.subr.bf16.mxu0 %v6076
      %9081 = vmatpush1.bf16.msra.mxu0 %v6075
      %9082 = vmatprep.subr.bf16.mxu0 %v6084
      %9083 = vmatpush1.bf16.msra.mxu0 %v6083
      %9084 = vmatprep.subr.bf16.mxu0 %v6092
      %9085 = vmatpush1.bf16.msra.mxu0 %v6091
      %9086 = vmatprep.subr.bf16.mxu0 %v6100
      %9087 = vmatpush1.bf16.msra.mxu0 %v6099
      %9088 = vmatprep.subr.bf16.mxu0 %v6108
      %9089 = vmatpush1.bf16.msra.mxu0 %v6107
      %9090 = vmatprep.subr.bf16.mxu0 %v6116
      %9091 = vmatpush1.bf16.msra.mxu0 %v6115
      %9092 = vmatprep.subr.bf16.mxu0 %v6124
      %9093 = vmatpush1.bf16.msra.mxu0 %v6123
      %9094 = vmatprep.subr.bf16.mxu0 %v6132
      %9095 = vmatpush1.bf16.msra.mxu0 %v6131
      %9096 = vmatprep.subr.bf16.mxu0 %v6140
      %9097 = vmatpush1.bf16.msra.mxu0 %v6139
      %9098 = vmatprep.mubr.bf16.mxu0 %v1436
      %9099 = vmatmul.mubr.bf16.gmra.mrb[0].mxu0 %v1435
      %v9100 = vpop.f32.mrb[0].mxu0
      %v9101 = vadd.f32 %v9028, %v9100
      %v9102 = vpop.f32.mrb[0].mxu0
      %v9103 = vadd.f32 %v9030, %v9102
      %v9104 = vpop.f32.mrb[0].mxu0
      %v9105 = vadd.f32 %v9032, %v9104
      %v9106 = vpop.f32.mrb[0].mxu0
      %v9107 = vadd.f32 %v9034, %v9106
      %9108 = vmatprep.mubr.bf16.mxu0 %v1452
      %9109 = vmatmul.mubr.bf16.gmra.mrb[0].mxu0 %v1451
      %v9110 = vpop.f32.mrb[0].mxu0
      %v9111 = vadd.f32 %v9038, %v9110
      %v9112 = vpop.f32.mrb[0].mxu0
      %v9113 = vadd.f32 %v9040, %v9112
      %v9114 = vpop.f32.mrb[0].mxu0
      %v9115 = vadd.f32 %v9042, %v9114
      %v9116 = vpop.f32.mrb[0].mxu0
      %v9117 = vadd.f32 %v9044, %v9116
      %9118 = vmatprep.mubr.bf16.mxu0 %v1468
      %9119 = vmatmul.mubr.bf16.gmra.mrb[0].mxu0 %v1467
      %v9120 = vpop.f32.mrb[0].mxu0
      %v9121 = vadd.f32 %v9048, %v9120
      %v9122 = vpop.f32.mrb[0].mxu0
      %v9123 = vadd.f32 %v9050, %v9122
      %v9124 = vpop.f32.mrb[0].mxu0
      %v9125 = vadd.f32 %v9052, %v9124
      %v9126 = vpop.f32.mrb[0].mxu0
      %v9127 = vadd.f32 %v9054, %v9126
      %9128 = vmatprep.mubr.bf16.mxu0 %v1484
      %9129 = vmatmul.mubr.bf16.gmra.mrb[0].mxu0 %v1483
      %v9130 = vpop.f32.mrb[0].mxu0
      %v9131 = vadd.f32 %v9058, %v9130
      %v9132 = vpop.f32.mrb[0].mxu0
      %v9133 = vadd.f32 %v9060, %v9132
      %v9134 = vpop.f32.mrb[0].mxu0
      %v9135 = vadd.f32 %v9062, %v9134
      %v9136 = vpop.f32.mrb[0].mxu0
      %v9137 = vadd.f32 %v9064, %v9136
      %9138 = vdwg.mxu0
      %9139 = vmatprep.subr.bf16.mxu0 %v6148
      %9140 = vmatpush1.bf16.msra.mxu0 %v6147
      %9141 = vmatprep.subr.bf16.mxu0 %v6156
      %9142 = vmatpush1.bf16.msra.mxu0 %v6155
      %9143 = vmatprep.subr.bf16.mxu0 %v6164
      %9144 = vmatpush1.bf16.msra.mxu0 %v6163
      %9145 = vmatprep.subr.bf16.mxu0 %v6172
      %9146 = vmatpush1.bf16.msra.mxu0 %v6171
      %9147 = vmatprep.subr.bf16.mxu0 %v6180
      %9148 = vmatpush1.bf16.msra.mxu0 %v6179
      %9149 = vmatprep.subr.bf16.mxu0 %v6188
      %9150 = vmatpush1.bf16.msra.mxu0 %v6187
      %9151 = vmatprep.subr.bf16.mxu0 %v6196
      %9152 = vmatpush1.bf16.msra.mxu0 %v6195
      %9153 = vmatprep.subr.bf16.mxu0 %v6204
      %9154 = vmatpush1.bf16.msra.mxu0 %v6203
      %9155 = vmatprep.subr.bf16.mxu0 %v6212
      %9156 = vmatpush1.bf16.msra.mxu0 %v6211
      %9157 = vmatprep.subr.bf16.mxu0 %v6220
      %9158 = vmatpush1.bf16.msra.mxu0 %v6219
      %9159 = vmatprep.subr.bf16.mxu0 %v6228
      %9160 = vmatpush1.bf16.msra.mxu0 %v6227
      %9161 = vmatprep.subr.bf16.mxu0 %v6236
      %9162 = vmatpush1.bf16.msra.mxu0 %v6235
      %9163 = vmatprep.subr.bf16.mxu0 %v6244
      %9164 = vmatpush1.bf16.msra.mxu0 %v6243
      %9165 = vmatprep.subr.bf16.mxu0 %v6252
      %9166 = vmatpush1.bf16.msra.mxu0 %v6251
      %9167 = vmatprep.subr.bf16.mxu0 %v6260
      %9168 = vmatpush1.bf16.msra.mxu0 %v6259
      %9169 = vmatprep.subr.bf16.mxu0 %v6268
      %9170 = vmatpush1.bf16.msra.mxu0 %v6267
      %9171 = vmatprep.mubr.bf16.mxu0 %v1438
      %9172 = vmatmul.mubr.bf16.gmra.mrb[0].mxu0 %v1437
      %v9173 = vpop.f32.mrb[0].mxu0
      %v9174 = vadd.f32 %v9101, %v9173
      %v9175 = vpop.f32.mrb[0].mxu0
      %v9176 = vadd.f32 %v9103, %v9175
      %v9177 = vpop.f32.mrb[0].mxu0
      %v9178 = vadd.f32 %v9105, %v9177
      %v9179 = vpop.f32.mrb[0].mxu0
      %v9180 = vadd.f32 %v9107, %v9179
      %9181 = vmatprep.mubr.bf16.mxu0 %v1454
      %9182 = vmatmul.mubr.bf16.gmra.mrb[0].mxu0 %v1453
      %v9183 = vpop.f32.mrb[0].mxu0
      %v9184 = vadd.f32 %v9111, %v9183
      %v9185 = vpop.f32.mrb[0].mxu0
      %v9186 = vadd.f32 %v9113, %v9185
      %v9187 = vpop.f32.mrb[0].mxu0
      %v9188 = vadd.f32 %v9115, %v9187
      %v9189 = vpop.f32.mrb[0].mxu0
      %v9190 = vadd.f32 %v9117, %v9189
      %9191 = vmatprep.mubr.bf16.mxu0 %v1470
      %9192 = vmatmul.mubr.bf16.gmra.mrb[0].mxu0 %v1469
      %v9193 = vpop.f32.mrb[0].mxu0
      %v9194 = vadd.f32 %v9121, %v9193
      %v9195 = vpop.f32.mrb[0].mxu0
      %v9196 = vadd.f32 %v9123, %v9195
      %v9197 = vpop.f32.mrb[0].mxu0
      %v9198 = vadd.f32 %v9125, %v9197
      %v9199 = vpop.f32.mrb[0].mxu0
      %v9200 = vadd.f32 %v9127, %v9199
      %9201 = vmatprep.mubr.bf16.mxu0 %v1486
      %9202 = vmatmul.mubr.bf16.gmra.mrb[0].mxu0 %v1485
      %v9203 = vpop.f32.mrb[0].mxu0
      %v9204 = vadd.f32 %v9131, %v9203
      %v9205 = vpop.f32.mrb[0].mxu0
      %v9206 = vadd.f32 %v9133, %v9205
      %v9207 = vpop.f32.mrb[0].mxu0
      %v9208 = vadd.f32 %v9135, %v9207
      %v9209 = vpop.f32.mrb[0].mxu0
      %v9210 = vadd.f32 %v9137, %v9209
      %9211 = vdwg.mxu0
      %9212 = vmatprep.subr.bf16.mxu0 %v6276
      %9213 = vmatpush1.bf16.msra.mxu0 %v6275
      %9214 = vmatprep.subr.bf16.mxu0 %v6284
      %9215 = vmatpush1.bf16.msra.mxu0 %v6283
      %9216 = vmatprep.subr.bf16.mxu0 %v6292
      %9217 = vmatpush1.bf16.msra.mxu0 %v6291
      %9218 = vmatprep.subr.bf16.mxu0 %v6300
      %9219 = vmatpush1.bf16.msra.mxu0 %v6299
      %9220 = vmatprep.subr.bf16.mxu0 %v6308
      %9221 = vmatpush1.bf16.msra.mxu0 %v6307
      %9222 = vmatprep.subr.bf16.mxu0 %v6316
      %9223 = vmatpush1.bf16.msra.mxu0 %v6315
      %9224 = vmatprep.subr.bf16.mxu0 %v6324
      %9225 = vmatpush1.bf16.msra.mxu0 %v6323
      %9226 = vmatprep.subr.bf16.mxu0 %v6332
      %9227 = vmatpush1.bf16.msra.mxu0 %v6331
      %9228 = vmatprep.subr.bf16.mxu0 %v6340
      %9229 = vmatpush1.bf16.msra.mxu0 %v6339
      %9230 = vmatprep.subr.bf16.mxu0 %v6348
      %9231 = vmatpush1.bf16.msra.mxu0 %v6347
      %9232 = vmatprep.subr.bf16.mxu0 %v6356
      %9233 = vmatpush1.bf16.msra.mxu0 %v6355
      %9234 = vmatprep.subr.bf16.mxu0 %v6364
      %9235 = vmatpush1.bf16.msra.mxu0 %v6363
      %9236 = vmatprep.subr.bf16.mxu0 %v6372
      %9237 = vmatpush1.bf16.msra.mxu0 %v6371
      %9238 = vmatprep.subr.bf16.mxu0 %v6380
      %9239 = vmatpush1.bf16.msra.mxu0 %v6379
      %9240 = vmatprep.subr.bf16.mxu0 %v6388
      %9241 = vmatpush1.bf16.msra.mxu0 %v6387
      %9242 = vmatprep.subr.bf16.mxu0 %v6396
      %9243 = vmatpush1.bf16.msra.mxu0 %v6395
      %9244 = vmatprep.mubr.bf16.mxu0 %v1440
      %9245 = vmatmul.mubr.bf16.gmra.mrb[0].mxu0 %v1439
      %v9246 = vpop.f32.mrb[0].mxu0
      %v9247 = vadd.f32 %v9174, %v9246
      %v9248 = vpop.f32.mrb[0].mxu0
      %v9249 = vadd.f32 %v9176, %v9248
      %v9250 = vpop.f32.mrb[0].mxu0
      %v9251 = vadd.f32 %v9178, %v9250
      %v9252 = vpop.f32.mrb[0].mxu0
      %v9253 = vadd.f32 %v9180, %v9252
      %9254 = vmatprep.mubr.bf16.mxu0 %v1456
      %9255 = vmatmul.mubr.bf16.gmra.mrb[0].mxu0 %v1455
      %v9256 = vpop.f32.mrb[0].mxu0
      %v9257 = vadd.f32 %v9184, %v9256
      %v9258 = vpop.f32.mrb[0].mxu0
      %v9259 = vadd.f32 %v9186, %v9258
      %v9260 = vpop.f32.mrb[0].mxu0
      %v9261 = vadd.f32 %v9188, %v9260
      %v9262 = vpop.f32.mrb[0].mxu0
      %v9263 = vadd.f32 %v9190, %v9262
      %9264 = vmatprep.mubr.bf16.mxu0 %v1472
      %9265 = vmatmul.mubr.bf16.gmra.mrb[0].mxu0 %v1471
      %v9266 = vpop.f32.mrb[0].mxu0
      %v9267 = vadd.f32 %v9194, %v9266
      %v9268 = vpop.f32.mrb[0].mxu0
      %v9269 = vadd.f32 %v9196, %v9268
      %v9270 = vpop.f32.mrb[0].mxu0
      %v9271 = vadd.f32 %v9198, %v9270
      %v9272 = vpop.f32.mrb[0].mxu0
      %v9273 = vadd.f32 %v9200, %v9272
      %9274 = vmatprep.mubr.bf16.mxu0 %v1488
      %9275 = vmatmul.mubr.bf16.gmra.mrb[0].mxu0 %v1487
      %v9276 = vpop.f32.mrb[0].mxu0
      %v9277 = vadd.f32 %v9204, %v9276
      %v9278 = vpop.f32.mrb[0].mxu0
      %v9279 = vadd.f32 %v9206, %v9278
      %v9280 = vpop.f32.mrb[0].mxu0
      %v9281 = vadd.f32 %v9208, %v9280
      %v9282 = vpop.f32.mrb[0].mxu0
      %v9283 = vadd.f32 %v9210, %v9282
      %9284 = vdwg.mxu0
      %9285 = vmatprep.subr.bf16.mxu0 %v6404
      %9286 = vmatpush1.bf16.msra.mxu0 %v6403
      %9287 = vmatprep.subr.bf16.mxu0 %v6412
      %9288 = vmatpush1.bf16.msra.mxu0 %v6411
      %9289 = vmatprep.subr.bf16.mxu0 %v6420
      %9290 = vmatpush1.bf16.msra.mxu0 %v6419
      %9291 = vmatprep.subr.bf16.mxu0 %v6428
      %9292 = vmatpush1.bf16.msra.mxu0 %v6427
      %9293 = vmatprep.subr.bf16.mxu0 %v6436
      %9294 = vmatpush1.bf16.msra.mxu0 %v6435
      %9295 = vmatprep.subr.bf16.mxu0 %v6444
      %9296 = vmatpush1.bf16.msra.mxu0 %v6443
      %9297 = vmatprep.subr.bf16.mxu0 %v6452
      %9298 = vmatpush1.bf16.msra.mxu0 %v6451
      %9299 = vmatprep.subr.bf16.mxu0 %v6460
      %9300 = vmatpush1.bf16.msra.mxu0 %v6459
      %9301 = vmatprep.subr.bf16.mxu0 %v6468
      %9302 = vmatpush1.bf16.msra.mxu0 %v6467
      %9303 = vmatprep.subr.bf16.mxu0 %v6476
      %9304 = vmatpush1.bf16.msra.mxu0 %v6475
      %9305 = vmatprep.subr.bf16.mxu0 %v6484
      %9306 = vmatpush1.bf16.msra.mxu0 %v6483
      %9307 = vmatprep.subr.bf16.mxu0 %v6492
      %9308 = vmatpush1.bf16.msra.mxu0 %v6491
      %9309 = vmatprep.subr.bf16.mxu0 %v6500
      %9310 = vmatpush1.bf16.msra.mxu0 %v6499
      %9311 = vmatprep.subr.bf16.mxu0 %v6508
      %9312 = vmatpush1.bf16.msra.mxu0 %v6507
      %9313 = vmatprep.subr.bf16.mxu0 %v6516
      %9314 = vmatpush1.bf16.msra.mxu0 %v6515
      %9315 = vmatprep.subr.bf16.mxu0 %v6524
      %9316 = vmatpush1.bf16.msra.mxu0 %v6523
      %9317 = vmatprep.mubr.bf16.mxu0 %v1442
      %9318 = vmatmul.mubr.bf16.gmra.mrb[0].mxu0 %v1441
      %v9319 = vpop.f32.mrb[0].mxu0
      %v9320 = vadd.f32 %v9247, %v9319
      %v9321 = vpop.f32.mrb[0].mxu0
      %v9322 = vadd.f32 %v9249, %v9321
      %v9323 = vpop.f32.mrb[0].mxu0
      %v9324 = vadd.f32 %v9251, %v9323
      %v9325 = vpop.f32.mrb[0].mxu0
      %v9326 = vadd.f32 %v9253, %v9325
      %9327 = vmatprep.mubr.bf16.mxu0 %v1458
      %9328 = vmatmul.mubr.bf16.gmra.mrb[0].mxu0 %v1457
      %v9329 = vpop.f32.mrb[0].mxu0
      %v9330 = vadd.f32 %v9257, %v9329
      %v9331 = vpop.f32.mrb[0].mxu0
      %v9332 = vadd.f32 %v9259, %v9331
      %v9333 = vpop.f32.mrb[0].mxu0
      %v9334 = vadd.f32 %v9261, %v9333
      %v9335 = vpop.f32.mrb[0].mxu0
      %v9336 = vadd.f32 %v9263, %v9335
      %9337 = vmatprep.mubr.bf16.mxu0 %v1474
      %9338 = vmatmul.mubr.bf16.gmra.mrb[0].mxu0 %v1473
      %v9339 = vpop.f32.mrb[0].mxu0
      %v9340 = vadd.f32 %v9267, %v9339
      %v9341 = vpop.f32.mrb[0].mxu0
      %v9342 = vadd.f32 %v9269, %v9341
      %v9343 = vpop.f32.mrb[0].mxu0
      %v9344 = vadd.f32 %v9271, %v9343
      %v9345 = vpop.f32.mrb[0].mxu0
      %v9346 = vadd.f32 %v9273, %v9345
      %9347 = vmatprep.mubr.bf16.mxu0 %v1490
      %9348 = vmatmul.mubr.bf16.gmra.mrb[0].mxu0 %v1489
      %v9349 = vpop.f32.mrb[0].mxu0
      %v9350 = vadd.f32 %v9277, %v9349
      %v9351 = vpop.f32.mrb[0].mxu0
      %v9352 = vadd.f32 %v9279, %v9351
      %v9353 = vpop.f32.mrb[0].mxu0
      %v9354 = vadd.f32 %v9281, %v9353
      %v9355 = vpop.f32.mrb[0].mxu0
      %v9356 = vadd.f32 %v9283, %v9355
      %9357 = vdwg.mxu0
      %9358 = vmatprep.subr.bf16.mxu0 %v6532
      %9359 = vmatpush1.bf16.msra.mxu0 %v6531
      %9360 = vmatprep.subr.bf16.mxu0 %v6540
      %9361 = vmatpush1.bf16.msra.mxu0 %v6539
      %9362 = vmatprep.subr.bf16.mxu0 %v6548
      %9363 = vmatpush1.bf16.msra.mxu0 %v6547
      %9364 = vmatprep.subr.bf16.mxu0 %v6556
      %9365 = vmatpush1.bf16.msra.mxu0 %v6555
      %9366 = vmatprep.subr.bf16.mxu0 %v6564
      %9367 = vmatpush1.bf16.msra.mxu0 %v6563
      %9368 = vmatprep.subr.bf16.mxu0 %v6572
      %9369 = vmatpush1.bf16.msra.mxu0 %v6571
      %9370 = vmatprep.subr.bf16.mxu0 %v6580
      %9371 = vmatpush1.bf16.msra.mxu0 %v6579
      %9372 = vmatprep.subr.bf16.mxu0 %v6588
      %9373 = vmatpush1.bf16.msra.mxu0 %v6587
      %9374 = vmatprep.subr.bf16.mxu0 %v6596
      %9375 = vmatpush1.bf16.msra.mxu0 %v6595
      %9376 = vmatprep.subr.bf16.mxu0 %v6604
      %9377 = vmatpush1.bf16.msra.mxu0 %v6603
      %9378 = vmatprep.subr.bf16.mxu0 %v6612
      %9379 = vmatpush1.bf16.msra.mxu0 %v6611
      %9380 = vmatprep.subr.bf16.mxu0 %v6620
      %9381 = vmatpush1.bf16.msra.mxu0 %v6619
      %9382 = vmatprep.subr.bf16.mxu0 %v6628
      %9383 = vmatpush1.bf16.msra.mxu0 %v6627
      %9384 = vmatprep.subr.bf16.mxu0 %v6636
      %9385 = vmatpush1.bf16.msra.mxu0 %v6635
      %9386 = vmatprep.subr.bf16.mxu0 %v6644
      %9387 = vmatpush1.bf16.msra.mxu0 %v6643
      %9388 = vmatprep.subr.bf16.mxu0 %v6652
      %9389 = vmatpush1.bf16.msra.mxu0 %v6651
      %9390 = vmatprep.mubr.bf16.mxu0 %v1444
      %9391 = vmatmul.mubr.bf16.gmra.mrb[0].mxu0 %v1443
      %v9392 = vpop.f32.mrb[0].mxu0
      %v9393 = vadd.f32 %v9320, %v9392
      %v9394 = vpop.f32.mrb[0].mxu0
      %v9395 = vadd.f32 %v9322, %v9394
      %v9396 = vpop.f32.mrb[0].mxu0
      %v9397 = vadd.f32 %v9324, %v9396
      %v9398 = vpop.f32.mrb[0].mxu0
      %v9399 = vadd.f32 %v9326, %v9398
      %9400 = vmatprep.mubr.bf16.mxu0 %v1460
      %9401 = vmatmul.mubr.bf16.gmra.mrb[0].mxu0 %v1459
      %v9402 = vpop.f32.mrb[0].mxu0
      %v9403 = vadd.f32 %v9330, %v9402
      %v9404 = vpop.f32.mrb[0].mxu0
      %v9405 = vadd.f32 %v9332, %v9404
      %v9406 = vpop.f32.mrb[0].mxu0
      %v9407 = vadd.f32 %v9334, %v9406
      %v9408 = vpop.f32.mrb[0].mxu0
      %v9409 = vadd.f32 %v9336, %v9408
      %9410 = vmatprep.mubr.bf16.mxu0 %v1476
      %9411 = vmatmul.mubr.bf16.gmra.mrb[0].mxu0 %v1475
      %v9412 = vpop.f32.mrb[0].mxu0
      %v9413 = vadd.f32 %v9340, %v9412
      %v9414 = vpop.f32.mrb[0].mxu0
      %v9415 = vadd.f32 %v9342, %v9414
      %v9416 = vpop.f32.mrb[0].mxu0
      %v9417 = vadd.f32 %v9344, %v9416
      %v9418 = vpop.f32.mrb[0].mxu0
      %v9419 = vadd.f32 %v9346, %v9418
      %9420 = vmatprep.mubr.bf16.mxu0 %v1492
      %9421 = vmatmul.mubr.bf16.gmra.mrb[0].mxu0 %v1491
      %v9422 = vpop.f32.mrb[0].mxu0
      %v9423 = vadd.f32 %v9350, %v9422
      %v9424 = vpop.f32.mrb[0].mxu0
      %v9425 = vadd.f32 %v9352, %v9424
      %v9426 = vpop.f32.mrb[0].mxu0
      %v9427 = vadd.f32 %v9354, %v9426
      %v9428 = vpop.f32.mrb[0].mxu0
      %v9429 = vadd.f32 %v9356, %v9428
      %9430 = vdwg.mxu0
      %9431 = vmatprep.subr.bf16.mxu0 %v5638
      %9432 = vmatpush1.bf16.msra.mxu0 %v5637
      %9433 = vmatprep.subr.bf16.mxu0 %v5646
      %9434 = vmatpush1.bf16.msra.mxu0 %v5645
      %9435 = vmatprep.subr.bf16.mxu0 %v5654
      %9436 = vmatpush1.bf16.msra.mxu0 %v5653
      %9437 = vmatprep.subr.bf16.mxu0 %v5662
      %9438 = vmatpush1.bf16.msra.mxu0 %v5661
      %9439 = vmatprep.subr.bf16.mxu0 %v5670
      %9440 = vmatpush1.bf16.msra.mxu0 %v5669
      %9441 = vmatprep.subr.bf16.mxu0 %v5678
      %9442 = vmatpush1.bf16.msra.mxu0 %v5677
      %9443 = vmatprep.subr.bf16.mxu0 %v5686
      %9444 = vmatpush1.bf16.msra.mxu0 %v5685
      %9445 = vmatprep.subr.bf16.mxu0 %v5694
      %9446 = vmatpush1.bf16.msra.mxu0 %v5693
      %9447 = vmatprep.subr.bf16.mxu0 %v5702
      %9448 = vmatpush1.bf16.msra.mxu0 %v5701
      %9449 = vmatprep.subr.bf16.mxu0 %v5710
      %9450 = vmatpush1.bf16.msra.mxu0 %v5709
      %9451 = vmatprep.subr.bf16.mxu0 %v5718
      %9452 = vmatpush1.bf16.msra.mxu0 %v5717
      %9453 = vmatprep.subr.bf16.mxu0 %v5726
      %9454 = vmatpush1.bf16.msra.mxu0 %v5725
      %9455 = vmatprep.subr.bf16.mxu0 %v5734
      %9456 = vmatpush1.bf16.msra.mxu0 %v5733
      %9457 = vmatprep.subr.bf16.mxu0 %v5742
      %9458 = vmatpush1.bf16.msra.mxu0 %v5741
      %9459 = vmatprep.subr.bf16.mxu0 %v5750
      %9460 = vmatpush1.bf16.msra.mxu0 %v5749
      %9461 = vmatprep.subr.bf16.mxu0 %v5758
      %9462 = vmatpush1.bf16.msra.mxu0 %v5757
      %9463 = vmatprep.mubr.bf16.mxu0 %v1430
      %9464 = vmatmul.mubr.bf16.gmra.mrb[0].mxu0 %v1429
      %v9465 = vpop.f32.mrb[0].mxu0
      %v9466 = vadd.f32 %v2546, %v9465
      %v9467 = vpop.f32.mrb[0].mxu0
      %v9468 = vadd.f32 %v2550, %v9467
      %v9469 = vpop.f32.mrb[0].mxu0
      %v9470 = vadd.f32 %v2546, %v9469
      %v9471 = vpop.f32.mrb[0].mxu0
      %v9472 = vadd.f32 %v2550, %v9471
      %9473 = vmatprep.mubr.bf16.mxu0 %v1446
      %9474 = vmatmul.mubr.bf16.gmra.mrb[0].mxu0 %v1445
      %v9475 = vpop.f32.mrb[0].mxu0
      %v9476 = vadd.f32 %v2546, %v9475
      %v9477 = vpop.f32.mrb[0].mxu0
      %v9478 = vadd.f32 %v2550, %v9477
      %v9479 = vpop.f32.mrb[0].mxu0
      %v9480 = vadd.f32 %v2546, %v9479
      %v9481 = vpop.f32.mrb[0].mxu0
      %v9482 = vadd.f32 %v2550, %v9481
      %9483 = vmatprep.mubr.bf16.mxu0 %v1462
      %9484 = vmatmul.mubr.bf16.gmra.mrb[0].mxu0 %v1461
      %v9485 = vpop.f32.mrb[0].mxu0
      %v9486 = vadd.f32 %v2546, %v9485
      %v9487 = vpop.f32.mrb[0].mxu0
      %v9488 = vadd.f32 %v2550, %v9487
      %v9489 = vpop.f32.mrb[0].mxu0
      %v9490 = vadd.f32 %v2546, %v9489
      %v9491 = vpop.f32.mrb[0].mxu0
      %v9492 = vadd.f32 %v2550, %v9491
      %9493 = vmatprep.mubr.bf16.mxu0 %v1478
      %9494 = vmatmul.mubr.bf16.gmra.mrb[0].mxu0 %v1477
      %v9495 = vpop.f32.mrb[0].mxu0
      %v9496 = vadd.f32 %v2546, %v9495
      %v9497 = vpop.f32.mrb[0].mxu0
      %v9498 = vadd.f32 %v2550, %v9497
      %v9499 = vpop.f32.mrb[0].mxu0
      %v9500 = vadd.f32 %v2546, %v9499
      %v9501 = vpop.f32.mrb[0].mxu0
      %v9502 = vadd.f32 %v2550, %v9501
      %9503 = vdwg.mxu0
      %9504 = vmatprep.subr.bf16.mxu0 %v5766
      %9505 = vmatpush1.bf16.msra.mxu0 %v5765
      %9506 = vmatprep.subr.bf16.mxu0 %v5774
      %9507 = vmatpush1.bf16.msra.mxu0 %v5773
      %9508 = vmatprep.subr.bf16.mxu0 %v5782
      %9509 = vmatpush1.bf16.msra.mxu0 %v5781
      %9510 = vmatprep.subr.bf16.mxu0 %v5790
      %9511 = vmatpush1.bf16.msra.mxu0 %v5789
      %9512 = vmatprep.subr.bf16.mxu0 %v5798
      %9513 = vmatpush1.bf16.msra.mxu0 %v5797
      %9514 = vmatprep.subr.bf16.mxu0 %v5806
      %9515 = vmatpush1.bf16.msra.mxu0 %v5805
      %9516 = vmatprep.subr.bf16.mxu0 %v5814
      %9517 = vmatpush1.bf16.msra.mxu0 %v5813
      %9518 = vmatprep.subr.bf16.mxu0 %v5822
      %9519 = vmatpush1.bf16.msra.mxu0 %v5821
      %9520 = vmatprep.subr.bf16.mxu0 %v5830
      %9521 = vmatpush1.bf16.msra.mxu0 %v5829
      %9522 = vmatprep.subr.bf16.mxu0 %v5838
      %9523 = vmatpush1.bf16.msra.mxu0 %v5837
      %9524 = vmatprep.subr.bf16.mxu0 %v5846
      %9525 = vmatpush1.bf16.msra.mxu0 %v5845
      %9526 = vmatprep.subr.bf16.mxu0 %v5854
      %9527 = vmatpush1.bf16.msra.mxu0 %v5853
      %9528 = vmatprep.subr.bf16.mxu0 %v5862
      %9529 = vmatpush1.bf16.msra.mxu0 %v5861
      %9530 = vmatprep.subr.bf16.mxu0 %v5870
      %9531 = vmatpush1.bf16.msra.mxu0 %v5869
      %9532 = vmatprep.subr.bf16.mxu0 %v5878
      %9533 = vmatpush1.bf16.msra.mxu0 %v5877
      %9534 = vmatprep.subr.bf16.mxu0 %v5886
      %9535 = vmatpush1.bf16.msra.mxu0 %v5885
      %9536 = vmatprep.mubr.bf16.mxu0 %v1432
      %9537 = vmatmul.mubr.bf16.gmra.mrb[0].mxu0 %v1431
      %v9538 = vpop.f32.mrb[0].mxu0
      %v9539 = vadd.f32 %v9466, %v9538
      %v9540 = vpop.f32.mrb[0].mxu0
      %v9541 = vadd.f32 %v9468, %v9540
      %v9542 = vpop.f32.mrb[0].mxu0
      %v9543 = vadd.f32 %v9470, %v9542
      %v9544 = vpop.f32.mrb[0].mxu0
      %v9545 = vadd.f32 %v9472, %v9544
      %9546 = vmatprep.mubr.bf16.mxu0 %v1448
      %9547 = vmatmul.mubr.bf16.gmra.mrb[0].mxu0 %v1447
      %v9548 = vpop.f32.mrb[0].mxu0
      %v9549 = vadd.f32 %v9476, %v9548
      %v9550 = vpop.f32.mrb[0].mxu0
      %v9551 = vadd.f32 %v9478, %v9550
      %v9552 = vpop.f32.mrb[0].mxu0
      %v9553 = vadd.f32 %v9480, %v9552
      %v9554 = vpop.f32.mrb[0].mxu0
      %v9555 = vadd.f32 %v9482, %v9554
      %9556 = vmatprep.mubr.bf16.mxu0 %v1464
      %9557 = vmatmul.mubr.bf16.gmra.mrb[0].mxu0 %v1463
      %v9558 = vpop.f32.mrb[0].mxu0
      %v9559 = vadd.f32 %v9486, %v9558
      %v9560 = vpop.f32.mrb[0].mxu0
      %v9561 = vadd.f32 %v9488, %v9560
      %v9562 = vpop.f32.mrb[0].mxu0
      %v9563 = vadd.f32 %v9490, %v9562
      %v9564 = vpop.f32.mrb[0].mxu0
      %v9565 = vadd.f32 %v9492, %v9564
      %9566 = vmatprep.mubr.bf16.mxu0 %v1480
      %9567 = vmatmul.mubr.bf16.gmra.mrb[0].mxu0 %v1479
      %v9568 = vpop.f32.mrb[0].mxu0
      %v9569 = vadd.f32 %v9496, %v9568
      %v9570 = vpop.f32.mrb[0].mxu0
      %v9571 = vadd.f32 %v9498, %v9570
      %v9572 = vpop.f32.mrb[0].mxu0
      %v9573 = vadd.f32 %v9500, %v9572
      %v9574 = vpop.f32.mrb[0].mxu0
      %v9575 = vadd.f32 %v9502, %v9574
      %9576 = vdwg.mxu0
      %9577 = vmatprep.subr.bf16.mxu0 %v5894
      %9578 = vmatpush1.bf16.msra.mxu0 %v5893
      %9579 = vmatprep.subr.bf16.mxu0 %v5902
      %9580 = vmatpush1.bf16.msra.mxu0 %v5901
      %9581 = vmatprep.subr.bf16.mxu0 %v5910
      %9582 = vmatpush1.bf16.msra.mxu0 %v5909
      %9583 = vmatprep.subr.bf16.mxu0 %v5918
      %9584 = vmatpush1.bf16.msra.mxu0 %v5917
      %9585 = vmatprep.subr.bf16.mxu0 %v5926
      %9586 = vmatpush1.bf16.msra.mxu0 %v5925
      %9587 = vmatprep.subr.bf16.mxu0 %v5934
      %9588 = vmatpush1.bf16.msra.mxu0 %v5933
      %9589 = vmatprep.subr.bf16.mxu0 %v5942
      %9590 = vmatpush1.bf16.msra.mxu0 %v5941
      %9591 = vmatprep.subr.bf16.mxu0 %v5950
      %9592 = vmatpush1.bf16.msra.mxu0 %v5949
      %9593 = vmatprep.subr.bf16.mxu0 %v5958
      %9594 = vmatpush1.bf16.msra.mxu0 %v5957
      %9595 = vmatprep.subr.bf16.mxu0 %v5966
      %9596 = vmatpush1.bf16.msra.mxu0 %v5965
      %9597 = vmatprep.subr.bf16.mxu0 %v5974
      %9598 = vmatpush1.bf16.msra.mxu0 %v5973
      %9599 = vmatprep.subr.bf16.mxu0 %v5982
      %9600 = vmatpush1.bf16.msra.mxu0 %v5981
      %9601 = vmatprep.subr.bf16.mxu0 %v5990
      %9602 = vmatpush1.bf16.msra.mxu0 %v5989
      %9603 = vmatprep.subr.bf16.mxu0 %v5998
      %9604 = vmatpush1.bf16.msra.mxu0 %v5997
      %9605 = vmatprep.subr.bf16.mxu0 %v6006
      %9606 = vmatpush1.bf16.msra.mxu0 %v6005
      %9607 = vmatprep.subr.bf16.mxu0 %v6014
      %9608 = vmatpush1.bf16.msra.mxu0 %v6013
      %9609 = vmatprep.mubr.bf16.mxu0 %v1434
      %9610 = vmatmul.mubr.bf16.gmra.mrb[0].mxu0 %v1433
      %v9611 = vpop.f32.mrb[0].mxu0
      %v9612 = vadd.f32 %v9539, %v9611
      %v9613 = vpop.f32.mrb[0].mxu0
      %v9614 = vadd.f32 %v9541, %v9613
      %v9615 = vpop.f32.mrb[0].mxu0
      %v9616 = vadd.f32 %v9543, %v9615
      %v9617 = vpop.f32.mrb[0].mxu0
      %v9618 = vadd.f32 %v9545, %v9617
      %9619 = vmatprep.mubr.bf16.mxu0 %v1450
      %9620 = vmatmul.mubr.bf16.gmra.mrb[0].mxu0 %v1449
      %v9621 = vpop.f32.mrb[0].mxu0
      %v9622 = vadd.f32 %v9549, %v9621
      %v9623 = vpop.f32.mrb[0].mxu0
      %v9624 = vadd.f32 %v9551, %v9623
      %v9625 = vpop.f32.mrb[0].mxu0
      %v9626 = vadd.f32 %v9553, %v9625
      %v9627 = vpop.f32.mrb[0].mxu0
      %v9628 = vadd.f32 %v9555, %v9627
      %9629 = vmatprep.mubr.bf16.mxu0 %v1466
      %9630 = vmatmul.mubr.bf16.gmra.mrb[0].mxu0 %v1465
      %v9631 = vpop.f32.mrb[0].mxu0
      %v9632 = vadd.f32 %v9559, %v9631
      %v9633 = vpop.f32.mrb[0].mxu0
      %v9634 = vadd.f32 %v9561, %v9633
      %v9635 = vpop.f32.mrb[0].mxu0
      %v9636 = vadd.f32 %v9563, %v9635
      %v9637 = vpop.f32.mrb[0].mxu0
      %v9638 = vadd.f32 %v9565, %v9637
      %9639 = vmatprep.mubr.bf16.mxu0 %v1482
      %9640 = vmatmul.mubr.bf16.gmra.mrb[0].mxu0 %v1481
      %v9641 = vpop.f32.mrb[0].mxu0
      %v9642 = vadd.f32 %v9569, %v9641
      %v9643 = vpop.f32.mrb[0].mxu0
      %v9644 = vadd.f32 %v9571, %v9643
      %v9645 = vpop.f32.mrb[0].mxu0
      %v9646 = vadd.f32 %v9573, %v9645
      %v9647 = vpop.f32.mrb[0].mxu0
      %v9648 = vadd.f32 %v9575, %v9647
      %9649 = vdwg.mxu0
      %9650 = vmatprep.subr.bf16.mxu0 %v6022
      %9651 = vmatpush1.bf16.msra.mxu0 %v6021
      %9652 = vmatprep.subr.bf16.mxu0 %v6030
      %9653 = vmatpush1.bf16.msra.mxu0 %v6029
      %9654 = vmatprep.subr.bf16.mxu0 %v6038
      %9655 = vmatpush1.bf16.msra.mxu0 %v6037
      %9656 = vmatprep.subr.bf16.mxu0 %v6046
      %9657 = vmatpush1.bf16.msra.mxu0 %v6045
      %9658 = vmatprep.subr.bf16.mxu0 %v6054
      %9659 = vmatpush1.bf16.msra.mxu0 %v6053
      %9660 = vmatprep.subr.bf16.mxu0 %v6062
      %9661 = vmatpush1.bf16.msra.mxu0 %v6061
      %9662 = vmatprep.subr.bf16.mxu0 %v6070
      %9663 = vmatpush1.bf16.msra.mxu0 %v6069
      %9664 = vmatprep.subr.bf16.mxu0 %v6078
      %9665 = vmatpush1.bf16.msra.mxu0 %v6077
      %9666 = vmatprep.subr.bf16.mxu0 %v6086
      %9667 = vmatpush1.bf16.msra.mxu0 %v6085
      %9668 = vmatprep.subr.bf16.mxu0 %v6094
      %9669 = vmatpush1.bf16.msra.mxu0 %v6093
      %9670 = vmatprep.subr.bf16.mxu0 %v6102
      %9671 = vmatpush1.bf16.msra.mxu0 %v6101
      %9672 = vmatprep.subr.bf16.mxu0 %v6110
      %9673 = vmatpush1.bf16.msra.mxu0 %v6109
      %9674 = vmatprep.subr.bf16.mxu0 %v6118
      %9675 = vmatpush1.bf16.msra.mxu0 %v6117
      %9676 = vmatprep.subr.bf16.mxu0 %v6126
      %9677 = vmatpush1.bf16.msra.mxu0 %v6125
      %9678 = vmatprep.subr.bf16.mxu0 %v6134
      %9679 = vmatpush1.bf16.msra.mxu0 %v6133
      %9680 = vmatprep.subr.bf16.mxu0 %v6142
      %9681 = vmatpush1.bf16.msra.mxu0 %v6141
      %9682 = vmatprep.mubr.bf16.mxu0 %v1436
      %9683 = vmatmul.mubr.bf16.gmra.mrb[0].mxu0 %v1435
      %v9684 = vpop.f32.mrb[0].mxu0
      %v9685 = vadd.f32 %v9612, %v9684
      %v9686 = vpop.f32.mrb[0].mxu0
      %v9687 = vadd.f32 %v9614, %v9686
      %v9688 = vpop.f32.mrb[0].mxu0
      %v9689 = vadd.f32 %v9616, %v9688
      %v9690 = vpop.f32.mrb[0].mxu0
      %v9691 = vadd.f32 %v9618, %v9690
      %9692 = vmatprep.mubr.bf16.mxu0 %v1452
      %9693 = vmatmul.mubr.bf16.gmra.mrb[0].mxu0 %v1451
      %v9694 = vpop.f32.mrb[0].mxu0
      %v9695 = vadd.f32 %v9622, %v9694
      %v9696 = vpop.f32.mrb[0].mxu0
      %v9697 = vadd.f32 %v9624, %v9696
      %v9698 = vpop.f32.mrb[0].mxu0
      %v9699 = vadd.f32 %v9626, %v9698
      %v9700 = vpop.f32.mrb[0].mxu0
      %v9701 = vadd.f32 %v9628, %v9700
      %9702 = vmatprep.mubr.bf16.mxu0 %v1468
      %9703 = vmatmul.mubr.bf16.gmra.mrb[0].mxu0 %v1467
      %v9704 = vpop.f32.mrb[0].mxu0
      %v9705 = vadd.f32 %v9632, %v9704
      %v9706 = vpop.f32.mrb[0].mxu0
      %v9707 = vadd.f32 %v9634, %v9706
      %v9708 = vpop.f32.mrb[0].mxu0
      %v9709 = vadd.f32 %v9636, %v9708
      %v9710 = vpop.f32.mrb[0].mxu0
      %v9711 = vadd.f32 %v9638, %v9710
      %9712 = vmatprep.mubr.bf16.mxu0 %v1484
      %9713 = vmatmul.mubr.bf16.gmra.mrb[0].mxu0 %v1483
      %v9714 = vpop.f32.mrb[0].mxu0
      %v9715 = vadd.f32 %v9642, %v9714
      %v9716 = vpop.f32.mrb[0].mxu0
      %v9717 = vadd.f32 %v9644, %v9716
      %v9718 = vpop.f32.mrb[0].mxu0
      %v9719 = vadd.f32 %v9646, %v9718
      %v9720 = vpop.f32.mrb[0].mxu0
      %v9721 = vadd.f32 %v9648, %v9720
      %9722 = vdwg.mxu0
      %9723 = vmatprep.subr.bf16.mxu0 %v6150
      %9724 = vmatpush1.bf16.msra.mxu0 %v6149
      %9725 = vmatprep.subr.bf16.mxu0 %v6158
      %9726 = vmatpush1.bf16.msra.mxu0 %v6157
      %9727 = vmatprep.subr.bf16.mxu0 %v6166
      %9728 = vmatpush1.bf16.msra.mxu0 %v6165
      %9729 = vmatprep.subr.bf16.mxu0 %v6174
      %9730 = vmatpush1.bf16.msra.mxu0 %v6173
      %9731 = vmatprep.subr.bf16.mxu0 %v6182
      %9732 = vmatpush1.bf16.msra.mxu0 %v6181
      %9733 = vmatprep.subr.bf16.mxu0 %v6190
      %9734 = vmatpush1.bf16.msra.mxu0 %v6189
      %9735 = vmatprep.subr.bf16.mxu0 %v6198
      %9736 = vmatpush1.bf16.msra.mxu0 %v6197
      %9737 = vmatprep.subr.bf16.mxu0 %v6206
      %9738 = vmatpush1.bf16.msra.mxu0 %v6205
      %9739 = vmatprep.subr.bf16.mxu0 %v6214
      %9740 = vmatpush1.bf16.msra.mxu0 %v6213
      %9741 = vmatprep.subr.bf16.mxu0 %v6222
      %9742 = vmatpush1.bf16.msra.mxu0 %v6221
      %9743 = vmatprep.subr.bf16.mxu0 %v6230
      %9744 = vmatpush1.bf16.msra.mxu0 %v6229
      %9745 = vmatprep.subr.bf16.mxu0 %v6238
      %9746 = vmatpush1.bf16.msra.mxu0 %v6237
      %9747 = vmatprep.subr.bf16.mxu0 %v6246
      %9748 = vmatpush1.bf16.msra.mxu0 %v6245
      %9749 = vmatprep.subr.bf16.mxu0 %v6254
      %9750 = vmatpush1.bf16.msra.mxu0 %v6253
      %9751 = vmatprep.subr.bf16.mxu0 %v6262
      %9752 = vmatpush1.bf16.msra.mxu0 %v6261
      %9753 = vmatprep.subr.bf16.mxu0 %v6270
      %9754 = vmatpush1.bf16.msra.mxu0 %v6269
      %9755 = vmatprep.mubr.bf16.mxu0 %v1438
      %9756 = vmatmul.mubr.bf16.gmra.mrb[0].mxu0 %v1437
      %v9757 = vpop.f32.mrb[0].mxu0
      %v9758 = vadd.f32 %v9685, %v9757
      %v9759 = vpop.f32.mrb[0].mxu0
      %v9760 = vadd.f32 %v9687, %v9759
      %v9761 = vpop.f32.mrb[0].mxu0
      %v9762 = vadd.f32 %v9689, %v9761
      %v9763 = vpop.f32.mrb[0].mxu0
      %v9764 = vadd.f32 %v9691, %v9763
      %9765 = vmatprep.mubr.bf16.mxu0 %v1454
      %9766 = vmatmul.mubr.bf16.gmra.mrb[0].mxu0 %v1453
      %v9767 = vpop.f32.mrb[0].mxu0
      %v9768 = vadd.f32 %v9695, %v9767
      %v9769 = vpop.f32.mrb[0].mxu0
      %v9770 = vadd.f32 %v9697, %v9769
      %v9771 = vpop.f32.mrb[0].mxu0
      %v9772 = vadd.f32 %v9699, %v9771
      %v9773 = vpop.f32.mrb[0].mxu0
      %v9774 = vadd.f32 %v9701, %v9773
      %9775 = vmatprep.mubr.bf16.mxu0 %v1470
      %9776 = vmatmul.mubr.bf16.gmra.mrb[0].mxu0 %v1469
      %v9777 = vpop.f32.mrb[0].mxu0
      %v9778 = vadd.f32 %v9705, %v9777
      %v9779 = vpop.f32.mrb[0].mxu0
      %v9780 = vadd.f32 %v9707, %v9779
      %v9781 = vpop.f32.mrb[0].mxu0
      %v9782 = vadd.f32 %v9709, %v9781
      %v9783 = vpop.f32.mrb[0].mxu0
      %v9784 = vadd.f32 %v9711, %v9783
      %9785 = vmatprep.mubr.bf16.mxu0 %v1486
      %9786 = vmatmul.mubr.bf16.gmra.mrb[0].mxu0 %v1485
      %v9787 = vpop.f32.mrb[0].mxu0
      %v9788 = vadd.f32 %v9715, %v9787
      %v9789 = vpop.f32.mrb[0].mxu0
      %v9790 = vadd.f32 %v9717, %v9789
      %v9791 = vpop.f32.mrb[0].mxu0
      %v9792 = vadd.f32 %v9719, %v9791
      %v9793 = vpop.f32.mrb[0].mxu0
      %v9794 = vadd.f32 %v9721, %v9793
      %9795 = vdwg.mxu0
      %9796 = vmatprep.subr.bf16.mxu0 %v6278
      %9797 = vmatpush1.bf16.msra.mxu0 %v6277
      %9798 = vmatprep.subr.bf16.mxu0 %v6286
      %9799 = vmatpush1.bf16.msra.mxu0 %v6285
      %9800 = vmatprep.subr.bf16.mxu0 %v6294
      %9801 = vmatpush1.bf16.msra.mxu0 %v6293
      %9802 = vmatprep.subr.bf16.mxu0 %v6302
      %9803 = vmatpush1.bf16.msra.mxu0 %v6301
      %9804 = vmatprep.subr.bf16.mxu0 %v6310
      %9805 = vmatpush1.bf16.msra.mxu0 %v6309
      %9806 = vmatprep.subr.bf16.mxu0 %v6318
      %9807 = vmatpush1.bf16.msra.mxu0 %v6317
      %9808 = vmatprep.subr.bf16.mxu0 %v6326
      %9809 = vmatpush1.bf16.msra.mxu0 %v6325
      %9810 = vmatprep.subr.bf16.mxu0 %v6334
      %9811 = vmatpush1.bf16.msra.mxu0 %v6333
      %9812 = vmatprep.subr.bf16.mxu0 %v6342
      %9813 = vmatpush1.bf16.msra.mxu0 %v6341
      %9814 = vmatprep.subr.bf16.mxu0 %v6350
      %9815 = vmatpush1.bf16.msra.mxu0 %v6349
      %9816 = vmatprep.subr.bf16.mxu0 %v6358
      %9817 = vmatpush1.bf16.msra.mxu0 %v6357
      %9818 = vmatprep.subr.bf16.mxu0 %v6366
      %9819 = vmatpush1.bf16.msra.mxu0 %v6365
      %9820 = vmatprep.subr.bf16.mxu0 %v6374
      %9821 = vmatpush1.bf16.msra.mxu0 %v6373
      %9822 = vmatprep.subr.bf16.mxu0 %v6382
      %9823 = vmatpush1.bf16.msra.mxu0 %v6381
      %9824 = vmatprep.subr.bf16.mxu0 %v6390
      %9825 = vmatpush1.bf16.msra.mxu0 %v6389
      %9826 = vmatprep.subr.bf16.mxu0 %v6398
      %9827 = vmatpush1.bf16.msra.mxu0 %v6397
      %9828 = vmatprep.mubr.bf16.mxu0 %v1440
      %9829 = vmatmul.mubr.bf16.gmra.mrb[0].mxu0 %v1439
      %v9830 = vpop.f32.mrb[0].mxu0
      %v9831 = vadd.f32 %v9758, %v9830
      %v9832 = vpop.f32.mrb[0].mxu0
      %v9833 = vadd.f32 %v9760, %v9832
      %v9834 = vpop.f32.mrb[0].mxu0
      %v9835 = vadd.f32 %v9762, %v9834
      %v9836 = vpop.f32.mrb[0].mxu0
      %v9837 = vadd.f32 %v9764, %v9836
      %9838 = vmatprep.mubr.bf16.mxu0 %v1456
      %9839 = vmatmul.mubr.bf16.gmra.mrb[0].mxu0 %v1455
      %v9840 = vpop.f32.mrb[0].mxu0
      %v9841 = vadd.f32 %v9768, %v9840
      %v9842 = vpop.f32.mrb[0].mxu0
      %v9843 = vadd.f32 %v9770, %v9842
      %v9844 = vpop.f32.mrb[0].mxu0
      %v9845 = vadd.f32 %v9772, %v9844
      %v9846 = vpop.f32.mrb[0].mxu0
      %v9847 = vadd.f32 %v9774, %v9846
      %9848 = vmatprep.mubr.bf16.mxu0 %v1472
      %9849 = vmatmul.mubr.bf16.gmra.mrb[0].mxu0 %v1471
      %v9850 = vpop.f32.mrb[0].mxu0
      %v9851 = vadd.f32 %v9778, %v9850
      %v9852 = vpop.f32.mrb[0].mxu0
      %v9853 = vadd.f32 %v9780, %v9852
      %v9854 = vpop.f32.mrb[0].mxu0
      %v9855 = vadd.f32 %v9782, %v9854
      %v9856 = vpop.f32.mrb[0].mxu0
      %v9857 = vadd.f32 %v9784, %v9856
      %9858 = vmatprep.mubr.bf16.mxu0 %v1488
      %9859 = vmatmul.mubr.bf16.gmra.mrb[0].mxu0 %v1487
      %v9860 = vpop.f32.mrb[0].mxu0
      %v9861 = vadd.f32 %v9788, %v9860
      %v9862 = vpop.f32.mrb[0].mxu0
      %v9863 = vadd.f32 %v9790, %v9862
      %v9864 = vpop.f32.mrb[0].mxu0
      %v9865 = vadd.f32 %v9792, %v9864
      %v9866 = vpop.f32.mrb[0].mxu0
      %v9867 = vadd.f32 %v9794, %v9866
      %9868 = vdwg.mxu0
      %9869 = vmatprep.subr.bf16.mxu0 %v6406
      %9870 = vmatpush1.bf16.msra.mxu0 %v6405
      %9871 = vmatprep.subr.bf16.mxu0 %v6414
      %9872 = vmatpush1.bf16.msra.mxu0 %v6413
      %9873 = vmatprep.subr.bf16.mxu0 %v6422
      %9874 = vmatpush1.bf16.msra.mxu0 %v6421
      %9875 = vmatprep.subr.bf16.mxu0 %v6430
      %9876 = vmatpush1.bf16.msra.mxu0 %v6429
      %9877 = vmatprep.subr.bf16.mxu0 %v6438
      %9878 = vmatpush1.bf16.msra.mxu0 %v6437
      %9879 = vmatprep.subr.bf16.mxu0 %v6446
      %9880 = vmatpush1.bf16.msra.mxu0 %v6445
      %9881 = vmatprep.subr.bf16.mxu0 %v6454
      %9882 = vmatpush1.bf16.msra.mxu0 %v6453
      %9883 = vmatprep.subr.bf16.mxu0 %v6462
      %9884 = vmatpush1.bf16.msra.mxu0 %v6461
      %9885 = vmatprep.subr.bf16.mxu0 %v6470
      %9886 = vmatpush1.bf16.msra.mxu0 %v6469
      %9887 = vmatprep.subr.bf16.mxu0 %v6478
      %9888 = vmatpush1.bf16.msra.mxu0 %v6477
      %9889 = vmatprep.subr.bf16.mxu0 %v6486
      %9890 = vmatpush1.bf16.msra.mxu0 %v6485
      %9891 = vmatprep.subr.bf16.mxu0 %v6494
      %9892 = vmatpush1.bf16.msra.mxu0 %v6493
      %9893 = vmatprep.subr.bf16.mxu0 %v6502
      %9894 = vmatpush1.bf16.msra.mxu0 %v6501
      %9895 = vmatprep.subr.bf16.mxu0 %v6510
      %9896 = vmatpush1.bf16.msra.mxu0 %v6509
      %9897 = vmatprep.subr.bf16.mxu0 %v6518
      %9898 = vmatpush1.bf16.msra.mxu0 %v6517
      %9899 = vmatprep.subr.bf16.mxu0 %v6526
      %9900 = vmatpush1.bf16.msra.mxu0 %v6525
      %9901 = vmatprep.mubr.bf16.mxu0 %v1442
      %9902 = vmatmul.mubr.bf16.gmra.mrb[0].mxu0 %v1441
      %v9903 = vpop.f32.mrb[0].mxu0
      %v9904 = vadd.f32 %v9831, %v9903
      %v9905 = vpop.f32.mrb[0].mxu0
      %v9906 = vadd.f32 %v9833, %v9905
      %v9907 = vpop.f32.mrb[0].mxu0
      %v9908 = vadd.f32 %v9835, %v9907
      %v9909 = vpop.f32.mrb[0].mxu0
      %v9910 = vadd.f32 %v9837, %v9909
      %9911 = vmatprep.mubr.bf16.mxu0 %v1458
      %9912 = vmatmul.mubr.bf16.gmra.mrb[0].mxu0 %v1457
      %v9913 = vpop.f32.mrb[0].mxu0
      %v9914 = vadd.f32 %v9841, %v9913
      %v9915 = vpop.f32.mrb[0].mxu0
      %v9916 = vadd.f32 %v9843, %v9915
      %v9917 = vpop.f32.mrb[0].mxu0
      %v9918 = vadd.f32 %v9845, %v9917
      %v9919 = vpop.f32.mrb[0].mxu0
      %v9920 = vadd.f32 %v9847, %v9919
      %9921 = vmatprep.mubr.bf16.mxu0 %v1474
      %9922 = vmatmul.mubr.bf16.gmra.mrb[0].mxu0 %v1473
      %v9923 = vpop.f32.mrb[0].mxu0
      %v9924 = vadd.f32 %v9851, %v9923
      %v9925 = vpop.f32.mrb[0].mxu0
      %v9926 = vadd.f32 %v9853, %v9925
      %v9927 = vpop.f32.mrb[0].mxu0
      %v9928 = vadd.f32 %v9855, %v9927
      %v9929 = vpop.f32.mrb[0].mxu0
      %v9930 = vadd.f32 %v9857, %v9929
      %9931 = vmatprep.mubr.bf16.mxu0 %v1490
      %9932 = vmatmul.mubr.bf16.gmra.mrb[0].mxu0 %v1489
      %v9933 = vpop.f32.mrb[0].mxu0
      %v9934 = vadd.f32 %v9861, %v9933
      %v9935 = vpop.f32.mrb[0].mxu0
      %v9936 = vadd.f32 %v9863, %v9935
      %v9937 = vpop.f32.mrb[0].mxu0
      %v9938 = vadd.f32 %v9865, %v9937
      %v9939 = vpop.f32.mrb[0].mxu0
      %v9940 = vadd.f32 %v9867, %v9939
      %9941 = vdwg.mxu0
      %9942 = vmatprep.subr.bf16.mxu0 %v6534
      %9943 = vmatpush1.bf16.msra.mxu0 %v6533
      %9944 = vmatprep.subr.bf16.mxu0 %v6542
      %9945 = vmatpush1.bf16.msra.mxu0 %v6541
      %9946 = vmatprep.subr.bf16.mxu0 %v6550
      %9947 = vmatpush1.bf16.msra.mxu0 %v6549
      %9948 = vmatprep.subr.bf16.mxu0 %v6558
      %9949 = vmatpush1.bf16.msra.mxu0 %v6557
      %9950 = vmatprep.subr.bf16.mxu0 %v6566
      %9951 = vmatpush1.bf16.msra.mxu0 %v6565
      %9952 = vmatprep.subr.bf16.mxu0 %v6574
      %9953 = vmatpush1.bf16.msra.mxu0 %v6573
      %9954 = vmatprep.subr.bf16.mxu0 %v6582
      %9955 = vmatpush1.bf16.msra.mxu0 %v6581
      %9956 = vmatprep.subr.bf16.mxu0 %v6590
      %9957 = vmatpush1.bf16.msra.mxu0 %v6589
      %9958 = vmatprep.subr.bf16.mxu0 %v6598
      %9959 = vmatpush1.bf16.msra.mxu0 %v6597
      %9960 = vmatprep.subr.bf16.mxu0 %v6606
      %9961 = vmatpush1.bf16.msra.mxu0 %v6605
      %9962 = vmatprep.subr.bf16.mxu0 %v6614
      %9963 = vmatpush1.bf16.msra.mxu0 %v6613
      %9964 = vmatprep.subr.bf16.mxu0 %v6622
      %9965 = vmatpush1.bf16.msra.mxu0 %v6621
      %9966 = vmatprep.subr.bf16.mxu0 %v6630
      %9967 = vmatpush1.bf16.msra.mxu0 %v6629
      %9968 = vmatprep.subr.bf16.mxu0 %v6638
      %9969 = vmatpush1.bf16.msra.mxu0 %v6637
      %9970 = vmatprep.subr.bf16.mxu0 %v6646
      %9971 = vmatpush1.bf16.msra.mxu0 %v6645
      %9972 = vmatprep.subr.bf16.mxu0 %v6654
      %9973 = vmatpush1.bf16.msra.mxu0 %v6653
      %9974 = vmatprep.mubr.bf16.mxu0 %v1444
      %9975 = vmatmul.mubr.bf16.gmra.mrb[0].mxu0 %v1443
      %v9976 = vpop.f32.mrb[0].mxu0
      %v9977 = vadd.f32 %v9904, %v9976
      %v9978 = vpop.f32.mrb[0].mxu0
      %v9979 = vadd.f32 %v9906, %v9978
      %v9980 = vpop.f32.mrb[0].mxu0
      %v9981 = vadd.f32 %v9908, %v9980
      %v9982 = vpop.f32.mrb[0].mxu0
      %v9983 = vadd.f32 %v9910, %v9982
      %9984 = vmatprep.mubr.bf16.mxu0 %v1460
      %9985 = vmatmul.mubr.bf16.gmra.mrb[0].mxu0 %v1459
      %v9986 = vpop.f32.mrb[0].mxu0
      %v9987 = vadd.f32 %v9914, %v9986
      %v9988 = vpop.f32.mrb[0].mxu0
      %v9989 = vadd.f32 %v9916, %v9988
      %v9990 = vpop.f32.mrb[0].mxu0
      %v9991 = vadd.f32 %v9918, %v9990
      %v9992 = vpop.f32.mrb[0].mxu0
      %v9993 = vadd.f32 %v9920, %v9992
      %9994 = vmatprep.mubr.bf16.mxu0 %v1476
      %9995 = vmatmul.mubr.bf16.gmra.mrb[0].mxu0 %v1475
      %v9996 = vpop.f32.mrb[0].mxu0
      %v9997 = vadd.f32 %v9924, %v9996
      %v9998 = vpop.f32.mrb[0].mxu0
      %v9999 = vadd.f32 %v9926, %v9998
      %v10000 = vpop.f32.mrb[0].mxu0
      %v10001 = vadd.f32 %v9928, %v10000
      %v10002 = vpop.f32.mrb[0].mxu0
      %v10003 = vadd.f32 %v9930, %v10002
      %10004 = vmatprep.mubr.bf16.mxu0 %v1492
      %10005 = vmatmul.mubr.bf16.gmra.mrb[0].mxu0 %v1491
      %v10006 = vpop.f32.mrb[0].mxu0
      %v10007 = vadd.f32 %v9934, %v10006
      %v10008 = vpop.f32.mrb[0].mxu0
      %v10009 = vadd.f32 %v9936, %v10008
      %v10010 = vpop.f32.mrb[0].mxu0
      %v10011 = vadd.f32 %v9938, %v10010
      %v10012 = vpop.f32.mrb[0].mxu0
      %v10013 = vadd.f32 %v9940, %v10012
      %10014 = vdwg.mxu0
      %v10015 = vpack.c.bf16 %v8229, %v8225
      %v10016 = vpack.c.bf16 %v8231, %v8227
      %v10017 = vpack.c.bf16 %v8813, %v8809
      %v10018 = vpack.c.bf16 %v8815, %v8811
      %v10019 = vpack.c.bf16 %v9397, %v9393
      %v10020 = vpack.c.bf16 %v9399, %v9395
      %v10021 = vpack.c.bf16 %v9981, %v9977
      %v10022 = vpack.c.bf16 %v9983, %v9979
      %v10023 = vpack.c.bf16 %v8239, %v8235
      %v10024 = vpack.c.bf16 %v8241, %v8237
      %v10025 = vpack.c.bf16 %v8823, %v8819
      %v10026 = vpack.c.bf16 %v8825, %v8821
      %v10027 = vpack.c.bf16 %v9407, %v9403
      %v10028 = vpack.c.bf16 %v9409, %v9405
      %v10029 = vpack.c.bf16 %v9991, %v9987
      %v10030 = vpack.c.bf16 %v9993, %v9989
      %v10031 = vpack.c.bf16 %v8249, %v8245
      %v10032 = vpack.c.bf16 %v8251, %v8247
      %v10033 = vpack.c.bf16 %v8833, %v8829
      %v10034 = vpack.c.bf16 %v8835, %v8831
      %v10035 = vpack.c.bf16 %v9417, %v9413
      %v10036 = vpack.c.bf16 %v9419, %v9415
      %v10037 = vpack.c.bf16 %v10001, %v9997
      %v10038 = vpack.c.bf16 %v10003, %v9999
      %v10039 = vpack.c.bf16 %v8259, %v8255
      %v10040 = vpack.c.bf16 %v8261, %v8257
      %v10041 = vpack.c.bf16 %v8843, %v8839
      %v10042 = vpack.c.bf16 %v8845, %v8841
      %v10043 = vpack.c.bf16 %v9427, %v9423
      %v10044 = vpack.c.bf16 %v9429, %v9425
      %v10045 = vpack.c.bf16 %v10011, %v10007
      %v10046 = vpack.c.bf16 %v10013, %v10009
      %v10047 = vmul.bf16 %v10015, 1045249613
      %v10048 = vmul.bf16 %v10016, 1045249613
      %v10049 = vmul.bf16 %v10017, 1045249613
      %v10050 = vmul.bf16 %v10018, 1045249613
      %v10051 = vmul.bf16 %v10019, 1045249613
      %v10052 = vmul.bf16 %v10020, 1045249613
      %v10053 = vmul.bf16 %v10021, 1045249613
      %v10054 = vmul.bf16 %v10022, 1045249613
      %v10055 = vmul.bf16 %v10023, 1045249613
      %v10056 = vmul.bf16 %v10024, 1045249613
      %v10057 = vmul.bf16 %v10025, 1045249613
      %v10058 = vmul.bf16 %v10026, 1045249613
      %v10059 = vmul.bf16 %v10027, 1045249613
      %v10060 = vmul.bf16 %v10028, 1045249613
      %v10061 = vmul.bf16 %v10029, 1045249613
      %v10062 = vmul.bf16 %v10030, 1045249613
      %v10063 = vmul.bf16 %v10031, 1045249613
      %v10064 = vmul.bf16 %v10032, 1045249613
      %v10065 = vmul.bf16 %v10033, 1045249613
      %v10066 = vmul.bf16 %v10034, 1045249613
      %v10067 = vmul.bf16 %v10035, 1045249613
      %v10068 = vmul.bf16 %v10036, 1045249613
      %v10069 = vmul.bf16 %v10037, 1045249613
      %v10070 = vmul.bf16 %v10038, 1045249613
      %v10071 = vmul.bf16 %v10039, 1045249613
      %v10072 = vmul.bf16 %v10040, 1045249613
      %v10073 = vmul.bf16 %v10041, 1045249613
      %v10074 = vmul.bf16 %v10042, 1045249613
      %v10075 = vmul.bf16 %v10043, 1045249613
      %v10076 = vmul.bf16 %v10044, 1045249613
      %v10077 = vmul.bf16 %v10045, 1045249613
      %v10078 = vmul.bf16 %v10046, 1045249613
      %v10079 = vmax.bf16 %v10015, %v10047
      %v10080 = vmax.bf16 %v10016, %v10048
      %v10081 = vmax.bf16 %v10017, %v10049
      %v10082 = vmax.bf16 %v10018, %v10050
      %v10083 = vmax.bf16 %v10019, %v10051
      %v10084 = vmax.bf16 %v10020, %v10052
      %v10085 = vmax.bf16 %v10021, %v10053
      %v10086 = vmax.bf16 %v10022, %v10054
      %v10087 = vmax.bf16 %v10023, %v10055
      %v10088 = vmax.bf16 %v10024, %v10056
      %v10089 = vmax.bf16 %v10025, %v10057
      %v10090 = vmax.bf16 %v10026, %v10058
      %v10091 = vmax.bf16 %v10027, %v10059
      %v10092 = vmax.bf16 %v10028, %v10060
      %v10093 = vmax.bf16 %v10029, %v10061
      %v10094 = vmax.bf16 %v10030, %v10062
      %v10095 = vmax.bf16 %v10031, %v10063
      %v10096 = vmax.bf16 %v10032, %v10064
      %v10097 = vmax.bf16 %v10033, %v10065
      %v10098 = vmax.bf16 %v10034, %v10066
      %v10099 = vmax.bf16 %v10035, %v10067
      %v10100 = vmax.bf16 %v10036, %v10068
      %v10101 = vmax.bf16 %v10037, %v10069
      %v10102 = vmax.bf16 %v10038, %v10070
      %v10103 = vmax.bf16 %v10039, %v10071
      %v10104 = vmax.bf16 %v10040, %v10072
      %v10105 = vmax.bf16 %v10041, %v10073
      %v10106 = vmax.bf16 %v10042, %v10074
      %v10107 = vmax.bf16 %v10043, %v10075
      %v10108 = vmax.bf16 %v10044, %v10076
      %v10109 = vmax.bf16 %v10045, %v10077
      %v10110 = vmax.bf16 %v10046, %v10078
      %v10111 = vld [vmem:[%s5] sm:$0xff]
      %v10112 = vld [vmem:[%s5 + $0x8] sm:$0xff]
      %v10113 = vld [vmem:[%s5 + $0x10] sm:$0xff]
      %v10114 = vld [vmem:[%s5 + $0x18] sm:$0xff]
      %v10115 = vld [vmem:[%s5 + $0x20] sm:$0xff]
      %v10116 = vld [vmem:[%s5 + $0x28] sm:$0xff]
      %v10117 = vld [vmem:[%s5 + $0x30] sm:$0xff]
      %v10118 = vld [vmem:[%s5 + $0x38] sm:$0xff]
      %v10119 = vld [vmem:[%s5 + $0x40] sm:$0xff]
      %v10120 = vld [vmem:[%s5 + $0x48] sm:$0xff]
      %v10121 = vld [vmem:[%s5 + $0x50] sm:$0xff]
      %v10122 = vld [vmem:[%s5 + $0x58] sm:$0xff]
      %v10123 = vld [vmem:[%s5 + $0x60] sm:$0xff]
      %v10124 = vld [vmem:[%s5 + $0x68] sm:$0xff]
      %v10125 = vld [vmem:[%s5 + $0x70] sm:$0xff]
      %v10126 = vld [vmem:[%s5 + $0x78] sm:$0xff]
      %v10127 = vld [vmem:[%s5 + $0x80] sm:$0xff]
      %v10128 = vld [vmem:[%s5 + $0x88] sm:$0xff]
      %v10129 = vld [vmem:[%s5 + $0x90] sm:$0xff]
      %v10130 = vld [vmem:[%s5 + $0x98] sm:$0xff]
      %v10131 = vld [vmem:[%s5 + $0xa0] sm:$0xff]
      %v10132 = vld [vmem:[%s5 + $0xa8] sm:$0xff]
      %v10133 = vld [vmem:[%s5 + $0xb0] sm:$0xff]
      %v10134 = vld [vmem:[%s5 + $0xb8] sm:$0xff]
      %v10135 = vld [vmem:[%s5 + $0xc0] sm:$0xff]
      %v10136 = vld [vmem:[%s5 + $0xc8] sm:$0xff]
      %v10137 = vld [vmem:[%s5 + $0xd0] sm:$0xff]
      %v10138 = vld [vmem:[%s5 + $0xd8] sm:$0xff]
      %v10139 = vld [vmem:[%s5 + $0xe0] sm:$0xff]
      %v10140 = vld [vmem:[%s5 + $0xe8] sm:$0xff]
      %v10141 = vld [vmem:[%s5 + $0xf0] sm:$0xff]
      %v10142 = vld [vmem:[%s5 + $0xf8] sm:$0xff]
      %v10143 = vld [vmem:[%s5 + $0x100] sm:$0xff]
      %v10144 = vld [vmem:[%s5 + $0x108] sm:$0xff]
      %v10145 = vld [vmem:[%s5 + $0x110] sm:$0xff]
      %v10146 = vld [vmem:[%s5 + $0x118] sm:$0xff]
      %v10147 = vld [vmem:[%s5 + $0x120] sm:$0xff]
      %v10148 = vld [vmem:[%s5 + $0x128] sm:$0xff]
      %v10149 = vld [vmem:[%s5 + $0x130] sm:$0xff]
      %v10150 = vld [vmem:[%s5 + $0x138] sm:$0xff]
      %v10151 = vld [vmem:[%s5 + $0x140] sm:$0xff]
      %v10152 = vld [vmem:[%s5 + $0x148] sm:$0xff]
      %v10153 = vld [vmem:[%s5 + $0x150] sm:$0xff]
      %v10154 = vld [vmem:[%s5 + $0x158] sm:$0xff]
      %v10155 = vld [vmem:[%s5 + $0x160] sm:$0xff]
      %v10156 = vld [vmem:[%s5 + $0x168] sm:$0xff]
      %v10157 = vld [vmem:[%s5 + $0x170] sm:$0xff]
      %v10158 = vld [vmem:[%s5 + $0x178] sm:$0xff]
      %v10159 = vld [vmem:[%s5 + $0x180] sm:$0xff]
      %v10160 = vld [vmem:[%s5 + $0x188] sm:$0xff]
      %v10161 = vld [vmem:[%s5 + $0x190] sm:$0xff]
      %v10162 = vld [vmem:[%s5 + $0x198] sm:$0xff]
      %v10163 = vld [vmem:[%s5 + $0x1a0] sm:$0xff]
      %v10164 = vld [vmem:[%s5 + $0x1a8] sm:$0xff]
      %v10165 = vld [vmem:[%s5 + $0x1b0] sm:$0xff]
      %v10166 = vld [vmem:[%s5 + $0x1b8] sm:$0xff]
      %v10167 = vld [vmem:[%s5 + $0x1c0] sm:$0xff]
      %v10168 = vld [vmem:[%s5 + $0x1c8] sm:$0xff]
      %v10169 = vld [vmem:[%s5 + $0x1d0] sm:$0xff]
      %v10170 = vld [vmem:[%s5 + $0x1d8] sm:$0xff]
      %v10171 = vld [vmem:[%s5 + $0x1e0] sm:$0xff]
      %v10172 = vld [vmem:[%s5 + $0x1e8] sm:$0xff]
      %v10173 = vld [vmem:[%s5 + $0x1f0] sm:$0xff]
      %v10174 = vld [vmem:[%s5 + $0x1f8] sm:$0xff]
      %v10175 = vld [vmem:[%s5 + $0x200] sm:$0xff]
      %v10176 = vld [vmem:[%s5 + $0x208] sm:$0xff]
      %v10177 = vld [vmem:[%s5 + $0x210] sm:$0xff]
      %v10178 = vld [vmem:[%s5 + $0x218] sm:$0xff]
      %v10179 = vld [vmem:[%s5 + $0x220] sm:$0xff]
      %v10180 = vld [vmem:[%s5 + $0x228] sm:$0xff]
      %v10181 = vld [vmem:[%s5 + $0x230] sm:$0xff]
      %v10182 = vld [vmem:[%s5 + $0x238] sm:$0xff]
      %v10183 = vld [vmem:[%s5 + $0x240] sm:$0xff]
      %v10184 = vld [vmem:[%s5 + $0x248] sm:$0xff]
      %v10185 = vld [vmem:[%s5 + $0x250] sm:$0xff]
      %v10186 = vld [vmem:[%s5 + $0x258] sm:$0xff]
      %v10187 = vld [vmem:[%s5 + $0x260] sm:$0xff]
      %v10188 = vld [vmem:[%s5 + $0x268] sm:$0xff]
      %v10189 = vld [vmem:[%s5 + $0x270] sm:$0xff]
      %v10190 = vld [vmem:[%s5 + $0x278] sm:$0xff]
      %v10191 = vld [vmem:[%s5 + $0x280] sm:$0xff]
      %v10192 = vld [vmem:[%s5 + $0x288] sm:$0xff]
      %v10193 = vld [vmem:[%s5 + $0x290] sm:$0xff]
      %v10194 = vld [vmem:[%s5 + $0x298] sm:$0xff]
      %v10195 = vld [vmem:[%s5 + $0x2a0] sm:$0xff]
      %v10196 = vld [vmem:[%s5 + $0x2a8] sm:$0xff]
      %v10197 = vld [vmem:[%s5 + $0x2b0] sm:$0xff]
      %v10198 = vld [vmem:[%s5 + $0x2b8] sm:$0xff]
      %v10199 = vld [vmem:[%s5 + $0x2c0] sm:$0xff]
      %v10200 = vld [vmem:[%s5 + $0x2c8] sm:$0xff]
      %v10201 = vld [vmem:[%s5 + $0x2d0] sm:$0xff]
      %v10202 = vld [vmem:[%s5 + $0x2d8] sm:$0xff]
      %v10203 = vld [vmem:[%s5 + $0x2e0] sm:$0xff]
      %v10204 = vld [vmem:[%s5 + $0x2e8] sm:$0xff]
      %v10205 = vld [vmem:[%s5 + $0x2f0] sm:$0xff]
      %v10206 = vld [vmem:[%s5 + $0x2f8] sm:$0xff]
      %v10207 = vld [vmem:[%s5 + $0x300] sm:$0xff]
      %v10208 = vld [vmem:[%s5 + $0x308] sm:$0xff]
      %v10209 = vld [vmem:[%s5 + $0x310] sm:$0xff]
      %v10210 = vld [vmem:[%s5 + $0x318] sm:$0xff]
      %v10211 = vld [vmem:[%s5 + $0x320] sm:$0xff]
      %v10212 = vld [vmem:[%s5 + $0x328] sm:$0xff]
      %v10213 = vld [vmem:[%s5 + $0x330] sm:$0xff]
      %v10214 = vld [vmem:[%s5 + $0x338] sm:$0xff]
      %v10215 = vld [vmem:[%s5 + $0x340] sm:$0xff]
      %v10216 = vld [vmem:[%s5 + $0x348] sm:$0xff]
      %v10217 = vld [vmem:[%s5 + $0x350] sm:$0xff]
      %v10218 = vld [vmem:[%s5 + $0x358] sm:$0xff]
      %v10219 = vld [vmem:[%s5 + $0x360] sm:$0xff]
      %v10220 = vld [vmem:[%s5 + $0x368] sm:$0xff]
      %v10221 = vld [vmem:[%s5 + $0x370] sm:$0xff]
      %v10222 = vld [vmem:[%s5 + $0x378] sm:$0xff]
      %v10223 = vld [vmem:[%s5 + $0x380] sm:$0xff]
      %v10224 = vld [vmem:[%s5 + $0x388] sm:$0xff]
      %v10225 = vld [vmem:[%s5 + $0x390] sm:$0xff]
      %v10226 = vld [vmem:[%s5 + $0x398] sm:$0xff]
      %v10227 = vld [vmem:[%s5 + $0x3a0] sm:$0xff]
      %v10228 = vld [vmem:[%s5 + $0x3a8] sm:$0xff]
      %v10229 = vld [vmem:[%s5 + $0x3b0] sm:$0xff]
      %v10230 = vld [vmem:[%s5 + $0x3b8] sm:$0xff]
      %v10231 = vld [vmem:[%s5 + $0x3c0] sm:$0xff]
      %v10232 = vld [vmem:[%s5 + $0x3c8] sm:$0xff]
      %v10233 = vld [vmem:[%s5 + $0x3d0] sm:$0xff]
      %v10234 = vld [vmem:[%s5 + $0x3d8] sm:$0xff]
      %v10235 = vld [vmem:[%s5 + $0x3e0] sm:$0xff]
      %v10236 = vld [vmem:[%s5 + $0x3e8] sm:$0xff]
      %v10237 = vld [vmem:[%s5 + $0x3f0] sm:$0xff]
      %v10238 = vld [vmem:[%s5 + $0x3f8] sm:$0xff]
      %v10239 = vld [vmem:[%s5 + $0x400] sm:$0xff]
      %v10240 = vld [vmem:[%s5 + $0x408] sm:$0xff]
      %v10241 = vld [vmem:[%s5 + $0x410] sm:$0xff]
      %v10242 = vld [vmem:[%s5 + $0x418] sm:$0xff]
      %v10243 = vld [vmem:[%s5 + $0x420] sm:$0xff]
      %v10244 = vld [vmem:[%s5 + $0x428] sm:$0xff]
      %v10245 = vld [vmem:[%s5 + $0x430] sm:$0xff]
      %v10246 = vld [vmem:[%s5 + $0x438] sm:$0xff]
      %v10247 = vld [vmem:[%s5 + $0x440] sm:$0xff]
      %v10248 = vld [vmem:[%s5 + $0x448] sm:$0xff]
      %v10249 = vld [vmem:[%s5 + $0x450] sm:$0xff]
      %v10250 = vld [vmem:[%s5 + $0x458] sm:$0xff]
      %v10251 = vld [vmem:[%s5 + $0x460] sm:$0xff]
      %v10252 = vld [vmem:[%s5 + $0x468] sm:$0xff]
      %v10253 = vld [vmem:[%s5 + $0x470] sm:$0xff]
      %v10254 = vld [vmem:[%s5 + $0x478] sm:$0xff]
      %v10255 = vld [vmem:[%s5 + $0x480] sm:$0xff]
      %v10256 = vld [vmem:[%s5 + $0x488] sm:$0xff]
      %v10257 = vld [vmem:[%s5 + $0x490] sm:$0xff]
      %v10258 = vld [vmem:[%s5 + $0x498] sm:$0xff]
      %v10259 = vld [vmem:[%s5 + $0x4a0] sm:$0xff]
      %v10260 = vld [vmem:[%s5 + $0x4a8] sm:$0xff]
      %v10261 = vld [vmem:[%s5 + $0x4b0] sm:$0xff]
      %v10262 = vld [vmem:[%s5 + $0x4b8] sm:$0xff]
      %v10263 = vld [vmem:[%s5 + $0x4c0] sm:$0xff]
      %v10264 = vld [vmem:[%s5 + $0x4c8] sm:$0xff]
      %v10265 = vld [vmem:[%s5 + $0x4d0] sm:$0xff]
      %v10266 = vld [vmem:[%s5 + $0x4d8] sm:$0xff]
      %v10267 = vld [vmem:[%s5 + $0x4e0] sm:$0xff]
      %v10268 = vld [vmem:[%s5 + $0x4e8] sm:$0xff]
      %v10269 = vld [vmem:[%s5 + $0x4f0] sm:$0xff]
      %v10270 = vld [vmem:[%s5 + $0x4f8] sm:$0xff]
      %v10271 = vld [vmem:[%s5 + $0x500] sm:$0xff]
      %v10272 = vld [vmem:[%s5 + $0x508] sm:$0xff]
      %v10273 = vld [vmem:[%s5 + $0x510] sm:$0xff]
      %v10274 = vld [vmem:[%s5 + $0x518] sm:$0xff]
      %v10275 = vld [vmem:[%s5 + $0x520] sm:$0xff]
      %v10276 = vld [vmem:[%s5 + $0x528] sm:$0xff]
      %v10277 = vld [vmem:[%s5 + $0x530] sm:$0xff]
      %v10278 = vld [vmem:[%s5 + $0x538] sm:$0xff]
      %v10279 = vld [vmem:[%s5 + $0x540] sm:$0xff]
      %v10280 = vld [vmem:[%s5 + $0x548] sm:$0xff]
      %v10281 = vld [vmem:[%s5 + $0x550] sm:$0xff]
      %v10282 = vld [vmem:[%s5 + $0x558] sm:$0xff]
      %v10283 = vld [vmem:[%s5 + $0x560] sm:$0xff]
      %v10284 = vld [vmem:[%s5 + $0x568] sm:$0xff]
      %v10285 = vld [vmem:[%s5 + $0x570] sm:$0xff]
      %v10286 = vld [vmem:[%s5 + $0x578] sm:$0xff]
      %v10287 = vld [vmem:[%s5 + $0x580] sm:$0xff]
      %v10288 = vld [vmem:[%s5 + $0x588] sm:$0xff]
      %v10289 = vld [vmem:[%s5 + $0x590] sm:$0xff]
      %v10290 = vld [vmem:[%s5 + $0x598] sm:$0xff]
      %v10291 = vld [vmem:[%s5 + $0x5a0] sm:$0xff]
      %v10292 = vld [vmem:[%s5 + $0x5a8] sm:$0xff]
      %v10293 = vld [vmem:[%s5 + $0x5b0] sm:$0xff]
      %v10294 = vld [vmem:[%s5 + $0x5b8] sm:$0xff]
      %v10295 = vld [vmem:[%s5 + $0x5c0] sm:$0xff]
      %v10296 = vld [vmem:[%s5 + $0x5c8] sm:$0xff]
      %v10297 = vld [vmem:[%s5 + $0x5d0] sm:$0xff]
      %v10298 = vld [vmem:[%s5 + $0x5d8] sm:$0xff]
      %v10299 = vld [vmem:[%s5 + $0x5e0] sm:$0xff]
      %v10300 = vld [vmem:[%s5 + $0x5e8] sm:$0xff]
      %v10301 = vld [vmem:[%s5 + $0x5f0] sm:$0xff]
      %v10302 = vld [vmem:[%s5 + $0x5f8] sm:$0xff]
      %v10303 = vld [vmem:[%s5 + $0x600] sm:$0xff]
      %v10304 = vld [vmem:[%s5 + $0x608] sm:$0xff]
      %v10305 = vld [vmem:[%s5 + $0x610] sm:$0xff]
      %v10306 = vld [vmem:[%s5 + $0x618] sm:$0xff]
      %v10307 = vld [vmem:[%s5 + $0x620] sm:$0xff]
      %v10308 = vld [vmem:[%s5 + $0x628] sm:$0xff]
      %v10309 = vld [vmem:[%s5 + $0x630] sm:$0xff]
      %v10310 = vld [vmem:[%s5 + $0x638] sm:$0xff]
      %v10311 = vld [vmem:[%s5 + $0x640] sm:$0xff]
      %v10312 = vld [vmem:[%s5 + $0x648] sm:$0xff]
      %v10313 = vld [vmem:[%s5 + $0x650] sm:$0xff]
      %v10314 = vld [vmem:[%s5 + $0x658] sm:$0xff]
      %v10315 = vld [vmem:[%s5 + $0x660] sm:$0xff]
      %v10316 = vld [vmem:[%s5 + $0x668] sm:$0xff]
      %v10317 = vld [vmem:[%s5 + $0x670] sm:$0xff]
      %v10318 = vld [vmem:[%s5 + $0x678] sm:$0xff]
      %v10319 = vld [vmem:[%s5 + $0x680] sm:$0xff]
      %v10320 = vld [vmem:[%s5 + $0x688] sm:$0xff]
      %v10321 = vld [vmem:[%s5 + $0x690] sm:$0xff]
      %v10322 = vld [vmem:[%s5 + $0x698] sm:$0xff]
      %v10323 = vld [vmem:[%s5 + $0x6a0] sm:$0xff]
      %v10324 = vld [vmem:[%s5 + $0x6a8] sm:$0xff]
      %v10325 = vld [vmem:[%s5 + $0x6b0] sm:$0xff]
      %v10326 = vld [vmem:[%s5 + $0x6b8] sm:$0xff]
      %v10327 = vld [vmem:[%s5 + $0x6c0] sm:$0xff]
      %v10328 = vld [vmem:[%s5 + $0x6c8] sm:$0xff]
      %v10329 = vld [vmem:[%s5 + $0x6d0] sm:$0xff]
      %v10330 = vld [vmem:[%s5 + $0x6d8] sm:$0xff]
      %v10331 = vld [vmem:[%s5 + $0x6e0] sm:$0xff]
      %v10332 = vld [vmem:[%s5 + $0x6e8] sm:$0xff]
      %v10333 = vld [vmem:[%s5 + $0x6f0] sm:$0xff]
      %v10334 = vld [vmem:[%s5 + $0x6f8] sm:$0xff]
      %v10335 = vld [vmem:[%s5 + $0x700] sm:$0xff]
      %v10336 = vld [vmem:[%s5 + $0x708] sm:$0xff]
      %v10337 = vld [vmem:[%s5 + $0x710] sm:$0xff]
      %v10338 = vld [vmem:[%s5 + $0x718] sm:$0xff]
      %v10339 = vld [vmem:[%s5 + $0x720] sm:$0xff]
      %v10340 = vld [vmem:[%s5 + $0x728] sm:$0xff]
      %v10341 = vld [vmem:[%s5 + $0x730] sm:$0xff]
      %v10342 = vld [vmem:[%s5 + $0x738] sm:$0xff]
      %v10343 = vld [vmem:[%s5 + $0x740] sm:$0xff]
      %v10344 = vld [vmem:[%s5 + $0x748] sm:$0xff]
      %v10345 = vld [vmem:[%s5 + $0x750] sm:$0xff]
      %v10346 = vld [vmem:[%s5 + $0x758] sm:$0xff]
      %v10347 = vld [vmem:[%s5 + $0x760] sm:$0xff]
      %v10348 = vld [vmem:[%s5 + $0x768] sm:$0xff]
      %v10349 = vld [vmem:[%s5 + $0x770] sm:$0xff]
      %v10350 = vld [vmem:[%s5 + $0x778] sm:$0xff]
      %v10351 = vld [vmem:[%s5 + $0x780] sm:$0xff]
      %v10352 = vld [vmem:[%s5 + $0x788] sm:$0xff]
      %v10353 = vld [vmem:[%s5 + $0x790] sm:$0xff]
      %v10354 = vld [vmem:[%s5 + $0x798] sm:$0xff]
      %v10355 = vld [vmem:[%s5 + $0x7a0] sm:$0xff]
      %v10356 = vld [vmem:[%s5 + $0x7a8] sm:$0xff]
      %v10357 = vld [vmem:[%s5 + $0x7b0] sm:$0xff]
      %v10358 = vld [vmem:[%s5 + $0x7b8] sm:$0xff]
      %v10359 = vld [vmem:[%s5 + $0x7c0] sm:$0xff]
      %v10360 = vld [vmem:[%s5 + $0x7c8] sm:$0xff]
      %v10361 = vld [vmem:[%s5 + $0x7d0] sm:$0xff]
      %v10362 = vld [vmem:[%s5 + $0x7d8] sm:$0xff]
      %v10363 = vld [vmem:[%s5 + $0x7e0] sm:$0xff]
      %v10364 = vld [vmem:[%s5 + $0x7e8] sm:$0xff]
      %v10365 = vld [vmem:[%s5 + $0x7f0] sm:$0xff]
      %v10366 = vld [vmem:[%s5 + $0x7f8] sm:$0xff]
      %v10367 = vld [vmem:[%s6] sm:$0xf]
      %v10369 = vlaneseq
      %v10370 = vshrl.u32 %v10369, 7
      %v10371 = vsub.s32 0, %v10370
      %v10372 = vrot.slane %v10367, %v10371
      %v10373 = vlaneseq
      %v10374 = vshrl.u32 %v10373, 7
      %v10375 = vsub.s32 1, %v10374
      %v10376 = vrot.slane %v10367, %v10375
      %v10377 = vlaneseq
      %v10378 = vshrl.u32 %v10377, 7
      %v10379 = vsub.s32 2, %v10378
      %v10380 = vrot.slane %v10367, %v10379
      %v10381 = vlaneseq
      %v10382 = vshrl.u32 %v10381, 7
      %v10383 = vsub.s32 3, %v10382
      %v10384 = vrot.slane %v10367, %v10383
      %v10645 = vunpack.c.l.b16 %v10111
      %v10646 = vunpack.c.h.b16 %v10111
      %v10647 = vunpack.c.l.b16 %v10112
      %v10648 = vunpack.c.h.b16 %v10112
      %v10649 = vunpack.c.l.b16 %v10113
      %v10650 = vunpack.c.h.b16 %v10113
      %v10651 = vunpack.c.l.b16 %v10114
      %v10652 = vunpack.c.h.b16 %v10114
      %v10653 = vunpack.c.l.b16 %v10115
      %v10654 = vunpack.c.h.b16 %v10115
      %v10655 = vunpack.c.l.b16 %v10116
      %v10656 = vunpack.c.h.b16 %v10116
      %v10657 = vunpack.c.l.b16 %v10117
      %v10658 = vunpack.c.h.b16 %v10117
      %v10659 = vunpack.c.l.b16 %v10118
      %v10660 = vunpack.c.h.b16 %v10118
      %v10661 = vunpack.c.l.b16 %v10119
      %v10662 = vunpack.c.h.b16 %v10119
      %v10663 = vunpack.c.l.b16 %v10120
      %v10664 = vunpack.c.h.b16 %v10120
      %v10665 = vunpack.c.l.b16 %v10121
      %v10666 = vunpack.c.h.b16 %v10121
      %v10667 = vunpack.c.l.b16 %v10122
      %v10668 = vunpack.c.h.b16 %v10122
      %v10669 = vunpack.c.l.b16 %v10123
      %v10670 = vunpack.c.h.b16 %v10123
      %v10671 = vunpack.c.l.b16 %v10124
      %v10672 = vunpack.c.h.b16 %v10124
      %v10673 = vunpack.c.l.b16 %v10125
      %v10674 = vunpack.c.h.b16 %v10125
      %v10675 = vunpack.c.l.b16 %v10126
      %v10676 = vunpack.c.h.b16 %v10126
      %v10677 = vunpack.c.l.b16 %v10127
      %v10678 = vunpack.c.h.b16 %v10127
      %v10679 = vunpack.c.l.b16 %v10128
      %v10680 = vunpack.c.h.b16 %v10128
      %v10681 = vunpack.c.l.b16 %v10129
      %v10682 = vunpack.c.h.b16 %v10129
      %v10683 = vunpack.c.l.b16 %v10130
      %v10684 = vunpack.c.h.b16 %v10130
      %v10685 = vunpack.c.l.b16 %v10131
      %v10686 = vunpack.c.h.b16 %v10131
      %v10687 = vunpack.c.l.b16 %v10132
      %v10688 = vunpack.c.h.b16 %v10132
      %v10689 = vunpack.c.l.b16 %v10133
      %v10690 = vunpack.c.h.b16 %v10133
      %v10691 = vunpack.c.l.b16 %v10134
      %v10692 = vunpack.c.h.b16 %v10134
      %v10693 = vunpack.c.l.b16 %v10135
      %v10694 = vunpack.c.h.b16 %v10135
      %v10695 = vunpack.c.l.b16 %v10136
      %v10696 = vunpack.c.h.b16 %v10136
      %v10697 = vunpack.c.l.b16 %v10137
      %v10698 = vunpack.c.h.b16 %v10137
      %v10699 = vunpack.c.l.b16 %v10138
      %v10700 = vunpack.c.h.b16 %v10138
      %v10701 = vunpack.c.l.b16 %v10139
      %v10702 = vunpack.c.h.b16 %v10139
      %v10703 = vunpack.c.l.b16 %v10140
      %v10704 = vunpack.c.h.b16 %v10140
      %v10705 = vunpack.c.l.b16 %v10141
      %v10706 = vunpack.c.h.b16 %v10141
      %v10707 = vunpack.c.l.b16 %v10142
      %v10708 = vunpack.c.h.b16 %v10142
      %v10709 = vunpack.c.l.b16 %v10143
      %v10710 = vunpack.c.h.b16 %v10143
      %v10711 = vunpack.c.l.b16 %v10144
      %v10712 = vunpack.c.h.b16 %v10144
      %v10713 = vunpack.c.l.b16 %v10145
      %v10714 = vunpack.c.h.b16 %v10145
      %v10715 = vunpack.c.l.b16 %v10146
      %v10716 = vunpack.c.h.b16 %v10146
      %v10717 = vunpack.c.l.b16 %v10147
      %v10718 = vunpack.c.h.b16 %v10147
      %v10719 = vunpack.c.l.b16 %v10148
      %v10720 = vunpack.c.h.b16 %v10148
      %v10721 = vunpack.c.l.b16 %v10149
      %v10722 = vunpack.c.h.b16 %v10149
      %v10723 = vunpack.c.l.b16 %v10150
      %v10724 = vunpack.c.h.b16 %v10150
      %v10725 = vunpack.c.l.b16 %v10151
      %v10726 = vunpack.c.h.b16 %v10151
      %v10727 = vunpack.c.l.b16 %v10152
      %v10728 = vunpack.c.h.b16 %v10152
      %v10729 = vunpack.c.l.b16 %v10153
      %v10730 = vunpack.c.h.b16 %v10153
      %v10731 = vunpack.c.l.b16 %v10154
      %v10732 = vunpack.c.h.b16 %v10154
      %v10733 = vunpack.c.l.b16 %v10155
      %v10734 = vunpack.c.h.b16 %v10155
      %v10735 = vunpack.c.l.b16 %v10156
      %v10736 = vunpack.c.h.b16 %v10156
      %v10737 = vunpack.c.l.b16 %v10157
      %v10738 = vunpack.c.h.b16 %v10157
      %v10739 = vunpack.c.l.b16 %v10158
      %v10740 = vunpack.c.h.b16 %v10158
      %v10741 = vunpack.c.l.b16 %v10159
      %v10742 = vunpack.c.h.b16 %v10159
      %v10743 = vunpack.c.l.b16 %v10160
      %v10744 = vunpack.c.h.b16 %v10160
      %v10745 = vunpack.c.l.b16 %v10161
      %v10746 = vunpack.c.h.b16 %v10161
      %v10747 = vunpack.c.l.b16 %v10162
      %v10748 = vunpack.c.h.b16 %v10162
      %v10749 = vunpack.c.l.b16 %v10163
      %v10750 = vunpack.c.h.b16 %v10163
      %v10751 = vunpack.c.l.b16 %v10164
      %v10752 = vunpack.c.h.b16 %v10164
      %v10753 = vunpack.c.l.b16 %v10165
      %v10754 = vunpack.c.h.b16 %v10165
      %v10755 = vunpack.c.l.b16 %v10166
      %v10756 = vunpack.c.h.b16 %v10166
      %v10757 = vunpack.c.l.b16 %v10167
      %v10758 = vunpack.c.h.b16 %v10167
      %v10759 = vunpack.c.l.b16 %v10168
      %v10760 = vunpack.c.h.b16 %v10168
      %v10761 = vunpack.c.l.b16 %v10169
      %v10762 = vunpack.c.h.b16 %v10169
      %v10763 = vunpack.c.l.b16 %v10170
      %v10764 = vunpack.c.h.b16 %v10170
      %v10765 = vunpack.c.l.b16 %v10171
      %v10766 = vunpack.c.h.b16 %v10171
      %v10767 = vunpack.c.l.b16 %v10172
      %v10768 = vunpack.c.h.b16 %v10172
      %v10769 = vunpack.c.l.b16 %v10173
      %v10770 = vunpack.c.h.b16 %v10173
      %v10771 = vunpack.c.l.b16 %v10174
      %v10772 = vunpack.c.h.b16 %v10174
      %v10773 = vunpack.c.l.b16 %v10175
      %v10774 = vunpack.c.h.b16 %v10175
      %v10775 = vunpack.c.l.b16 %v10176
      %v10776 = vunpack.c.h.b16 %v10176
      %v10777 = vunpack.c.l.b16 %v10177
      %v10778 = vunpack.c.h.b16 %v10177
      %v10779 = vunpack.c.l.b16 %v10178
      %v10780 = vunpack.c.h.b16 %v10178
      %v10781 = vunpack.c.l.b16 %v10179
      %v10782 = vunpack.c.h.b16 %v10179
      %v10783 = vunpack.c.l.b16 %v10180
      %v10784 = vunpack.c.h.b16 %v10180
      %v10785 = vunpack.c.l.b16 %v10181
      %v10786 = vunpack.c.h.b16 %v10181
      %v10787 = vunpack.c.l.b16 %v10182
      %v10788 = vunpack.c.h.b16 %v10182
      %v10789 = vunpack.c.l.b16 %v10183
      %v10790 = vunpack.c.h.b16 %v10183
      %v10791 = vunpack.c.l.b16 %v10184
      %v10792 = vunpack.c.h.b16 %v10184
      %v10793 = vunpack.c.l.b16 %v10185
      %v10794 = vunpack.c.h.b16 %v10185
      %v10795 = vunpack.c.l.b16 %v10186
      %v10796 = vunpack.c.h.b16 %v10186
      %v10797 = vunpack.c.l.b16 %v10187
      %v10798 = vunpack.c.h.b16 %v10187
      %v10799 = vunpack.c.l.b16 %v10188
      %v10800 = vunpack.c.h.b16 %v10188
      %v10801 = vunpack.c.l.b16 %v10189
      %v10802 = vunpack.c.h.b16 %v10189
      %v10803 = vunpack.c.l.b16 %v10190
      %v10804 = vunpack.c.h.b16 %v10190
      %v10805 = vunpack.c.l.b16 %v10191
      %v10806 = vunpack.c.h.b16 %v10191
      %v10807 = vunpack.c.l.b16 %v10192
      %v10808 = vunpack.c.h.b16 %v10192
      %v10809 = vunpack.c.l.b16 %v10193
      %v10810 = vunpack.c.h.b16 %v10193
      %v10811 = vunpack.c.l.b16 %v10194
      %v10812 = vunpack.c.h.b16 %v10194
      %v10813 = vunpack.c.l.b16 %v10195
      %v10814 = vunpack.c.h.b16 %v10195
      %v10815 = vunpack.c.l.b16 %v10196
      %v10816 = vunpack.c.h.b16 %v10196
      %v10817 = vunpack.c.l.b16 %v10197
      %v10818 = vunpack.c.h.b16 %v10197
      %v10819 = vunpack.c.l.b16 %v10198
      %v10820 = vunpack.c.h.b16 %v10198
      %v10821 = vunpack.c.l.b16 %v10199
      %v10822 = vunpack.c.h.b16 %v10199
      %v10823 = vunpack.c.l.b16 %v10200
      %v10824 = vunpack.c.h.b16 %v10200
      %v10825 = vunpack.c.l.b16 %v10201
      %v10826 = vunpack.c.h.b16 %v10201
      %v10827 = vunpack.c.l.b16 %v10202
      %v10828 = vunpack.c.h.b16 %v10202
      %v10829 = vunpack.c.l.b16 %v10203
      %v10830 = vunpack.c.h.b16 %v10203
      %v10831 = vunpack.c.l.b16 %v10204
      %v10832 = vunpack.c.h.b16 %v10204
      %v10833 = vunpack.c.l.b16 %v10205
      %v10834 = vunpack.c.h.b16 %v10205
      %v10835 = vunpack.c.l.b16 %v10206
      %v10836 = vunpack.c.h.b16 %v10206
      %v10837 = vunpack.c.l.b16 %v10207
      %v10838 = vunpack.c.h.b16 %v10207
      %v10839 = vunpack.c.l.b16 %v10208
      %v10840 = vunpack.c.h.b16 %v10208
      %v10841 = vunpack.c.l.b16 %v10209
      %v10842 = vunpack.c.h.b16 %v10209
      %v10843 = vunpack.c.l.b16 %v10210
      %v10844 = vunpack.c.h.b16 %v10210
      %v10845 = vunpack.c.l.b16 %v10211
      %v10846 = vunpack.c.h.b16 %v10211
      %v10847 = vunpack.c.l.b16 %v10212
      %v10848 = vunpack.c.h.b16 %v10212
      %v10849 = vunpack.c.l.b16 %v10213
      %v10850 = vunpack.c.h.b16 %v10213
      %v10851 = vunpack.c.l.b16 %v10214
      %v10852 = vunpack.c.h.b16 %v10214
      %v10853 = vunpack.c.l.b16 %v10215
      %v10854 = vunpack.c.h.b16 %v10215
      %v10855 = vunpack.c.l.b16 %v10216
      %v10856 = vunpack.c.h.b16 %v10216
      %v10857 = vunpack.c.l.b16 %v10217
      %v10858 = vunpack.c.h.b16 %v10217
      %v10859 = vunpack.c.l.b16 %v10218
      %v10860 = vunpack.c.h.b16 %v10218
      %v10861 = vunpack.c.l.b16 %v10219
      %v10862 = vunpack.c.h.b16 %v10219
      %v10863 = vunpack.c.l.b16 %v10220
      %v10864 = vunpack.c.h.b16 %v10220
      %v10865 = vunpack.c.l.b16 %v10221
      %v10866 = vunpack.c.h.b16 %v10221
      %v10867 = vunpack.c.l.b16 %v10222
      %v10868 = vunpack.c.h.b16 %v10222
      %v10869 = vunpack.c.l.b16 %v10223
      %v10870 = vunpack.c.h.b16 %v10223
      %v10871 = vunpack.c.l.b16 %v10224
      %v10872 = vunpack.c.h.b16 %v10224
      %v10873 = vunpack.c.l.b16 %v10225
      %v10874 = vunpack.c.h.b16 %v10225
      %v10875 = vunpack.c.l.b16 %v10226
      %v10876 = vunpack.c.h.b16 %v10226
      %v10877 = vunpack.c.l.b16 %v10227
      %v10878 = vunpack.c.h.b16 %v10227
      %v10879 = vunpack.c.l.b16 %v10228
      %v10880 = vunpack.c.h.b16 %v10228
      %v10881 = vunpack.c.l.b16 %v10229
      %v10882 = vunpack.c.h.b16 %v10229
      %v10883 = vunpack.c.l.b16 %v10230
      %v10884 = vunpack.c.h.b16 %v10230
      %v10885 = vunpack.c.l.b16 %v10231
      %v10886 = vunpack.c.h.b16 %v10231
      %v10887 = vunpack.c.l.b16 %v10232
      %v10888 = vunpack.c.h.b16 %v10232
      %v10889 = vunpack.c.l.b16 %v10233
      %v10890 = vunpack.c.h.b16 %v10233
      %v10891 = vunpack.c.l.b16 %v10234
      %v10892 = vunpack.c.h.b16 %v10234
      %v10893 = vunpack.c.l.b16 %v10235
      %v10894 = vunpack.c.h.b16 %v10235
      %v10895 = vunpack.c.l.b16 %v10236
      %v10896 = vunpack.c.h.b16 %v10236
      %v10897 = vunpack.c.l.b16 %v10237
      %v10898 = vunpack.c.h.b16 %v10237
      %v10899 = vunpack.c.l.b16 %v10238
      %v10900 = vunpack.c.h.b16 %v10238
      %v10901 = vunpack.c.l.b16 %v10239
      %v10902 = vunpack.c.h.b16 %v10239
      %v10903 = vunpack.c.l.b16 %v10240
      %v10904 = vunpack.c.h.b16 %v10240
      %v10905 = vunpack.c.l.b16 %v10241
      %v10906 = vunpack.c.h.b16 %v10241
      %v10907 = vunpack.c.l.b16 %v10242
      %v10908 = vunpack.c.h.b16 %v10242
      %v10909 = vunpack.c.l.b16 %v10243
      %v10910 = vunpack.c.h.b16 %v10243
      %v10911 = vunpack.c.l.b16 %v10244
      %v10912 = vunpack.c.h.b16 %v10244
      %v10913 = vunpack.c.l.b16 %v10245
      %v10914 = vunpack.c.h.b16 %v10245
      %v10915 = vunpack.c.l.b16 %v10246
      %v10916 = vunpack.c.h.b16 %v10246
      %v10917 = vunpack.c.l.b16 %v10247
      %v10918 = vunpack.c.h.b16 %v10247
      %v10919 = vunpack.c.l.b16 %v10248
      %v10920 = vunpack.c.h.b16 %v10248
      %v10921 = vunpack.c.l.b16 %v10249
      %v10922 = vunpack.c.h.b16 %v10249
      %v10923 = vunpack.c.l.b16 %v10250
      %v10924 = vunpack.c.h.b16 %v10250
      %v10925 = vunpack.c.l.b16 %v10251
      %v10926 = vunpack.c.h.b16 %v10251
      %v10927 = vunpack.c.l.b16 %v10252
      %v10928 = vunpack.c.h.b16 %v10252
      %v10929 = vunpack.c.l.b16 %v10253
      %v10930 = vunpack.c.h.b16 %v10253
      %v10931 = vunpack.c.l.b16 %v10254
      %v10932 = vunpack.c.h.b16 %v10254
      %v10933 = vunpack.c.l.b16 %v10255
      %v10934 = vunpack.c.h.b16 %v10255
      %v10935 = vunpack.c.l.b16 %v10256
      %v10936 = vunpack.c.h.b16 %v10256
      %v10937 = vunpack.c.l.b16 %v10257
      %v10938 = vunpack.c.h.b16 %v10257
      %v10939 = vunpack.c.l.b16 %v10258
      %v10940 = vunpack.c.h.b16 %v10258
      %v10941 = vunpack.c.l.b16 %v10259
      %v10942 = vunpack.c.h.b16 %v10259
      %v10943 = vunpack.c.l.b16 %v10260
      %v10944 = vunpack.c.h.b16 %v10260
      %v10945 = vunpack.c.l.b16 %v10261
      %v10946 = vunpack.c.h.b16 %v10261
      %v10947 = vunpack.c.l.b16 %v10262
      %v10948 = vunpack.c.h.b16 %v10262
      %v10949 = vunpack.c.l.b16 %v10263
      %v10950 = vunpack.c.h.b16 %v10263
      %v10951 = vunpack.c.l.b16 %v10264
      %v10952 = vunpack.c.h.b16 %v10264
      %v10953 = vunpack.c.l.b16 %v10265
      %v10954 = vunpack.c.h.b16 %v10265
      %v10955 = vunpack.c.l.b16 %v10266
      %v10956 = vunpack.c.h.b16 %v10266
      %v10957 = vunpack.c.l.b16 %v10267
      %v10958 = vunpack.c.h.b16 %v10267
      %v10959 = vunpack.c.l.b16 %v10268
      %v10960 = vunpack.c.h.b16 %v10268
      %v10961 = vunpack.c.l.b16 %v10269
      %v10962 = vunpack.c.h.b16 %v10269
      %v10963 = vunpack.c.l.b16 %v10270
      %v10964 = vunpack.c.h.b16 %v10270
      %v10965 = vunpack.c.l.b16 %v10271
      %v10966 = vunpack.c.h.b16 %v10271
      %v10967 = vunpack.c.l.b16 %v10272
      %v10968 = vunpack.c.h.b16 %v10272
      %v10969 = vunpack.c.l.b16 %v10273
      %v10970 = vunpack.c.h.b16 %v10273
      %v10971 = vunpack.c.l.b16 %v10274
      %v10972 = vunpack.c.h.b16 %v10274
      %v10973 = vunpack.c.l.b16 %v10275
      %v10974 = vunpack.c.h.b16 %v10275
      %v10975 = vunpack.c.l.b16 %v10276
      %v10976 = vunpack.c.h.b16 %v10276
      %v10977 = vunpack.c.l.b16 %v10277
      %v10978 = vunpack.c.h.b16 %v10277
      %v10979 = vunpack.c.l.b16 %v10278
      %v10980 = vunpack.c.h.b16 %v10278
      %v10981 = vunpack.c.l.b16 %v10279
      %v10982 = vunpack.c.h.b16 %v10279
      %v10983 = vunpack.c.l.b16 %v10280
      %v10984 = vunpack.c.h.b16 %v10280
      %v10985 = vunpack.c.l.b16 %v10281
      %v10986 = vunpack.c.h.b16 %v10281
      %v10987 = vunpack.c.l.b16 %v10282
      %v10988 = vunpack.c.h.b16 %v10282
      %v10989 = vunpack.c.l.b16 %v10283
      %v10990 = vunpack.c.h.b16 %v10283
      %v10991 = vunpack.c.l.b16 %v10284
      %v10992 = vunpack.c.h.b16 %v10284
      %v10993 = vunpack.c.l.b16 %v10285
      %v10994 = vunpack.c.h.b16 %v10285
      %v10995 = vunpack.c.l.b16 %v10286
      %v10996 = vunpack.c.h.b16 %v10286
      %v10997 = vunpack.c.l.b16 %v10287
      %v10998 = vunpack.c.h.b16 %v10287
      %v10999 = vunpack.c.l.b16 %v10288
      %v11000 = vunpack.c.h.b16 %v10288
      %v11001 = vunpack.c.l.b16 %v10289
      %v11002 = vunpack.c.h.b16 %v10289
      %v11003 = vunpack.c.l.b16 %v10290
      %v11004 = vunpack.c.h.b16 %v10290
      %v11005 = vunpack.c.l.b16 %v10291
      %v11006 = vunpack.c.h.b16 %v10291
      %v11007 = vunpack.c.l.b16 %v10292
      %v11008 = vunpack.c.h.b16 %v10292
      %v11009 = vunpack.c.l.b16 %v10293
      %v11010 = vunpack.c.h.b16 %v10293
      %v11011 = vunpack.c.l.b16 %v10294
      %v11012 = vunpack.c.h.b16 %v10294
      %v11013 = vunpack.c.l.b16 %v10295
      %v11014 = vunpack.c.h.b16 %v10295
      %v11015 = vunpack.c.l.b16 %v10296
      %v11016 = vunpack.c.h.b16 %v10296
      %v11017 = vunpack.c.l.b16 %v10297
      %v11018 = vunpack.c.h.b16 %v10297
      %v11019 = vunpack.c.l.b16 %v10298
      %v11020 = vunpack.c.h.b16 %v10298
      %v11021 = vunpack.c.l.b16 %v10299
      %v11022 = vunpack.c.h.b16 %v10299
      %v11023 = vunpack.c.l.b16 %v10300
      %v11024 = vunpack.c.h.b16 %v10300
      %v11025 = vunpack.c.l.b16 %v10301
      %v11026 = vunpack.c.h.b16 %v10301
      %v11027 = vunpack.c.l.b16 %v10302
      %v11028 = vunpack.c.h.b16 %v10302
      %v11029 = vunpack.c.l.b16 %v10303
      %v11030 = vunpack.c.h.b16 %v10303
      %v11031 = vunpack.c.l.b16 %v10304
      %v11032 = vunpack.c.h.b16 %v10304
      %v11033 = vunpack.c.l.b16 %v10305
      %v11034 = vunpack.c.h.b16 %v10305
      %v11035 = vunpack.c.l.b16 %v10306
      %v11036 = vunpack.c.h.b16 %v10306
      %v11037 = vunpack.c.l.b16 %v10307
      %v11038 = vunpack.c.h.b16 %v10307
      %v11039 = vunpack.c.l.b16 %v10308
      %v11040 = vunpack.c.h.b16 %v10308
      %v11041 = vunpack.c.l.b16 %v10309
      %v11042 = vunpack.c.h.b16 %v10309
      %v11043 = vunpack.c.l.b16 %v10310
      %v11044 = vunpack.c.h.b16 %v10310
      %v11045 = vunpack.c.l.b16 %v10311
      %v11046 = vunpack.c.h.b16 %v10311
      %v11047 = vunpack.c.l.b16 %v10312
      %v11048 = vunpack.c.h.b16 %v10312
      %v11049 = vunpack.c.l.b16 %v10313
      %v11050 = vunpack.c.h.b16 %v10313
      %v11051 = vunpack.c.l.b16 %v10314
      %v11052 = vunpack.c.h.b16 %v10314
      %v11053 = vunpack.c.l.b16 %v10315
      %v11054 = vunpack.c.h.b16 %v10315
      %v11055 = vunpack.c.l.b16 %v10316
      %v11056 = vunpack.c.h.b16 %v10316
      %v11057 = vunpack.c.l.b16 %v10317
      %v11058 = vunpack.c.h.b16 %v10317
      %v11059 = vunpack.c.l.b16 %v10318
      %v11060 = vunpack.c.h.b16 %v10318
      %v11061 = vunpack.c.l.b16 %v10319
      %v11062 = vunpack.c.h.b16 %v10319
      %v11063 = vunpack.c.l.b16 %v10320
      %v11064 = vunpack.c.h.b16 %v10320
      %v11065 = vunpack.c.l.b16 %v10321
      %v11066 = vunpack.c.h.b16 %v10321
      %v11067 = vunpack.c.l.b16 %v10322
      %v11068 = vunpack.c.h.b16 %v10322
      %v11069 = vunpack.c.l.b16 %v10323
      %v11070 = vunpack.c.h.b16 %v10323
      %v11071 = vunpack.c.l.b16 %v10324
      %v11072 = vunpack.c.h.b16 %v10324
      %v11073 = vunpack.c.l.b16 %v10325
      %v11074 = vunpack.c.h.b16 %v10325
      %v11075 = vunpack.c.l.b16 %v10326
      %v11076 = vunpack.c.h.b16 %v10326
      %v11077 = vunpack.c.l.b16 %v10327
      %v11078 = vunpack.c.h.b16 %v10327
      %v11079 = vunpack.c.l.b16 %v10328
      %v11080 = vunpack.c.h.b16 %v10328
      %v11081 = vunpack.c.l.b16 %v10329
      %v11082 = vunpack.c.h.b16 %v10329
      %v11083 = vunpack.c.l.b16 %v10330
      %v11084 = vunpack.c.h.b16 %v10330
      %v11085 = vunpack.c.l.b16 %v10331
      %v11086 = vunpack.c.h.b16 %v10331
      %v11087 = vunpack.c.l.b16 %v10332
      %v11088 = vunpack.c.h.b16 %v10332
      %v11089 = vunpack.c.l.b16 %v10333
      %v11090 = vunpack.c.h.b16 %v10333
      %v11091 = vunpack.c.l.b16 %v10334
      %v11092 = vunpack.c.h.b16 %v10334
      %v11093 = vunpack.c.l.b16 %v10335
      %v11094 = vunpack.c.h.b16 %v10335
      %v11095 = vunpack.c.l.b16 %v10336
      %v11096 = vunpack.c.h.b16 %v10336
      %v11097 = vunpack.c.l.b16 %v10337
      %v11098 = vunpack.c.h.b16 %v10337
      %v11099 = vunpack.c.l.b16 %v10338
      %v11100 = vunpack.c.h.b16 %v10338
      %v11101 = vunpack.c.l.b16 %v10339
      %v11102 = vunpack.c.h.b16 %v10339
      %v11103 = vunpack.c.l.b16 %v10340
      %v11104 = vunpack.c.h.b16 %v10340
      %v11105 = vunpack.c.l.b16 %v10341
      %v11106 = vunpack.c.h.b16 %v10341
      %v11107 = vunpack.c.l.b16 %v10342
      %v11108 = vunpack.c.h.b16 %v10342
      %v11109 = vunpack.c.l.b16 %v10343
      %v11110 = vunpack.c.h.b16 %v10343
      %v11111 = vunpack.c.l.b16 %v10344
      %v11112 = vunpack.c.h.b16 %v10344
      %v11113 = vunpack.c.l.b16 %v10345
      %v11114 = vunpack.c.h.b16 %v10345
      %v11115 = vunpack.c.l.b16 %v10346
      %v11116 = vunpack.c.h.b16 %v10346
      %v11117 = vunpack.c.l.b16 %v10347
      %v11118 = vunpack.c.h.b16 %v10347
      %v11119 = vunpack.c.l.b16 %v10348
      %v11120 = vunpack.c.h.b16 %v10348
      %v11121 = vunpack.c.l.b16 %v10349
      %v11122 = vunpack.c.h.b16 %v10349
      %v11123 = vunpack.c.l.b16 %v10350
      %v11124 = vunpack.c.h.b16 %v10350
      %v11125 = vunpack.c.l.b16 %v10351
      %v11126 = vunpack.c.h.b16 %v10351
      %v11127 = vunpack.c.l.b16 %v10352
      %v11128 = vunpack.c.h.b16 %v10352
      %v11129 = vunpack.c.l.b16 %v10353
      %v11130 = vunpack.c.h.b16 %v10353
      %v11131 = vunpack.c.l.b16 %v10354
      %v11132 = vunpack.c.h.b16 %v10354
      %v11133 = vunpack.c.l.b16 %v10355
      %v11134 = vunpack.c.h.b16 %v10355
      %v11135 = vunpack.c.l.b16 %v10356
      %v11136 = vunpack.c.h.b16 %v10356
      %v11137 = vunpack.c.l.b16 %v10357
      %v11138 = vunpack.c.h.b16 %v10357
      %v11139 = vunpack.c.l.b16 %v10358
      %v11140 = vunpack.c.h.b16 %v10358
      %v11141 = vunpack.c.l.b16 %v10359
      %v11142 = vunpack.c.h.b16 %v10359
      %v11143 = vunpack.c.l.b16 %v10360
      %v11144 = vunpack.c.h.b16 %v10360
      %v11145 = vunpack.c.l.b16 %v10361
      %v11146 = vunpack.c.h.b16 %v10361
      %v11147 = vunpack.c.l.b16 %v10362
      %v11148 = vunpack.c.h.b16 %v10362
      %v11149 = vunpack.c.l.b16 %v10363
      %v11150 = vunpack.c.h.b16 %v10363
      %v11151 = vunpack.c.l.b16 %v10364
      %v11152 = vunpack.c.h.b16 %v10364
      %v11153 = vunpack.c.l.b16 %v10365
      %v11154 = vunpack.c.h.b16 %v10365
      %v11155 = vunpack.c.l.b16 %v10366
      %v11156 = vunpack.c.h.b16 %v10366
      %v11157 = vpack.c.b16 %v10649, %v10645
      %v11158 = vpack.c.b16 %v10650, %v10646
      %v11159 = vpack.c.b16 %v10651, %v10647
      %v11160 = vpack.c.b16 %v10652, %v10648
      %v11161 = vpack.c.b16 %v10657, %v10653
      %v11162 = vpack.c.b16 %v10658, %v10654
      %v11163 = vpack.c.b16 %v10659, %v10655
      %v11164 = vpack.c.b16 %v10660, %v10656
      %v11165 = vpack.c.b16 %v10665, %v10661
      %v11166 = vpack.c.b16 %v10666, %v10662
      %v11167 = vpack.c.b16 %v10667, %v10663
      %v11168 = vpack.c.b16 %v10668, %v10664
      %v11169 = vpack.c.b16 %v10673, %v10669
      %v11170 = vpack.c.b16 %v10674, %v10670
      %v11171 = vpack.c.b16 %v10675, %v10671
      %v11172 = vpack.c.b16 %v10676, %v10672
      %v11173 = vpack.c.b16 %v10681, %v10677
      %v11174 = vpack.c.b16 %v10682, %v10678
      %v11175 = vpack.c.b16 %v10683, %v10679
      %v11176 = vpack.c.b16 %v10684, %v10680
      %v11177 = vpack.c.b16 %v10689, %v10685
      %v11178 = vpack.c.b16 %v10690, %v10686
      %v11179 = vpack.c.b16 %v10691, %v10687
      %v11180 = vpack.c.b16 %v10692, %v10688
      %v11181 = vpack.c.b16 %v10697, %v10693
      %v11182 = vpack.c.b16 %v10698, %v10694
      %v11183 = vpack.c.b16 %v10699, %v10695
      %v11184 = vpack.c.b16 %v10700, %v10696
      %v11185 = vpack.c.b16 %v10705, %v10701
      %v11186 = vpack.c.b16 %v10706, %v10702
      %v11187 = vpack.c.b16 %v10707, %v10703
      %v11188 = vpack.c.b16 %v10708, %v10704
      %v11189 = vpack.c.b16 %v10713, %v10709
      %v11190 = vpack.c.b16 %v10714, %v10710
      %v11191 = vpack.c.b16 %v10715, %v10711
      %v11192 = vpack.c.b16 %v10716, %v10712
      %v11193 = vpack.c.b16 %v10721, %v10717
      %v11194 = vpack.c.b16 %v10722, %v10718
      %v11195 = vpack.c.b16 %v10723, %v10719
      %v11196 = vpack.c.b16 %v10724, %v10720
      %v11197 = vpack.c.b16 %v10729, %v10725
      %v11198 = vpack.c.b16 %v10730, %v10726
      %v11199 = vpack.c.b16 %v10731, %v10727
      %v11200 = vpack.c.b16 %v10732, %v10728
      %v11201 = vpack.c.b16 %v10737, %v10733
      %v11202 = vpack.c.b16 %v10738, %v10734
      %v11203 = vpack.c.b16 %v10739, %v10735
      %v11204 = vpack.c.b16 %v10740, %v10736
      %v11205 = vpack.c.b16 %v10745, %v10741
      %v11206 = vpack.c.b16 %v10746, %v10742
      %v11207 = vpack.c.b16 %v10747, %v10743
      %v11208 = vpack.c.b16 %v10748, %v10744
      %v11209 = vpack.c.b16 %v10753, %v10749
      %v11210 = vpack.c.b16 %v10754, %v10750
      %v11211 = vpack.c.b16 %v10755, %v10751
      %v11212 = vpack.c.b16 %v10756, %v10752
      %v11213 = vpack.c.b16 %v10761, %v10757
      %v11214 = vpack.c.b16 %v10762, %v10758
      %v11215 = vpack.c.b16 %v10763, %v10759
      %v11216 = vpack.c.b16 %v10764, %v10760
      %v11217 = vpack.c.b16 %v10769, %v10765
      %v11218 = vpack.c.b16 %v10770, %v10766
      %v11219 = vpack.c.b16 %v10771, %v10767
      %v11220 = vpack.c.b16 %v10772, %v10768
      %v11221 = vpack.c.b16 %v10777, %v10773
      %v11222 = vpack.c.b16 %v10778, %v10774
      %v11223 = vpack.c.b16 %v10779, %v10775
      %v11224 = vpack.c.b16 %v10780, %v10776
      %v11225 = vpack.c.b16 %v10785, %v10781
      %v11226 = vpack.c.b16 %v10786, %v10782
      %v11227 = vpack.c.b16 %v10787, %v10783
      %v11228 = vpack.c.b16 %v10788, %v10784
      %v11229 = vpack.c.b16 %v10793, %v10789
      %v11230 = vpack.c.b16 %v10794, %v10790
      %v11231 = vpack.c.b16 %v10795, %v10791
      %v11232 = vpack.c.b16 %v10796, %v10792
      %v11233 = vpack.c.b16 %v10801, %v10797
      %v11234 = vpack.c.b16 %v10802, %v10798
      %v11235 = vpack.c.b16 %v10803, %v10799
      %v11236 = vpack.c.b16 %v10804, %v10800
      %v11237 = vpack.c.b16 %v10809, %v10805
      %v11238 = vpack.c.b16 %v10810, %v10806
      %v11239 = vpack.c.b16 %v10811, %v10807
      %v11240 = vpack.c.b16 %v10812, %v10808
      %v11241 = vpack.c.b16 %v10817, %v10813
      %v11242 = vpack.c.b16 %v10818, %v10814
      %v11243 = vpack.c.b16 %v10819, %v10815
      %v11244 = vpack.c.b16 %v10820, %v10816
      %v11245 = vpack.c.b16 %v10825, %v10821
      %v11246 = vpack.c.b16 %v10826, %v10822
      %v11247 = vpack.c.b16 %v10827, %v10823
      %v11248 = vpack.c.b16 %v10828, %v10824
      %v11249 = vpack.c.b16 %v10833, %v10829
      %v11250 = vpack.c.b16 %v10834, %v10830
      %v11251 = vpack.c.b16 %v10835, %v10831
      %v11252 = vpack.c.b16 %v10836, %v10832
      %v11253 = vpack.c.b16 %v10841, %v10837
      %v11254 = vpack.c.b16 %v10842, %v10838
      %v11255 = vpack.c.b16 %v10843, %v10839
      %v11256 = vpack.c.b16 %v10844, %v10840
      %v11257 = vpack.c.b16 %v10849, %v10845
      %v11258 = vpack.c.b16 %v10850, %v10846
      %v11259 = vpack.c.b16 %v10851, %v10847
      %v11260 = vpack.c.b16 %v10852, %v10848
      %v11261 = vpack.c.b16 %v10857, %v10853
      %v11262 = vpack.c.b16 %v10858, %v10854
      %v11263 = vpack.c.b16 %v10859, %v10855
      %v11264 = vpack.c.b16 %v10860, %v10856
      %v11265 = vpack.c.b16 %v10865, %v10861
      %v11266 = vpack.c.b16 %v10866, %v10862
      %v11267 = vpack.c.b16 %v10867, %v10863
      %v11268 = vpack.c.b16 %v10868, %v10864
      %v11269 = vpack.c.b16 %v10873, %v10869
      %v11270 = vpack.c.b16 %v10874, %v10870
      %v11271 = vpack.c.b16 %v10875, %v10871
      %v11272 = vpack.c.b16 %v10876, %v10872
      %v11273 = vpack.c.b16 %v10881, %v10877
      %v11274 = vpack.c.b16 %v10882, %v10878
      %v11275 = vpack.c.b16 %v10883, %v10879
      %v11276 = vpack.c.b16 %v10884, %v10880
      %v11277 = vpack.c.b16 %v10889, %v10885
      %v11278 = vpack.c.b16 %v10890, %v10886
      %v11279 = vpack.c.b16 %v10891, %v10887
      %v11280 = vpack.c.b16 %v10892, %v10888
      %v11281 = vpack.c.b16 %v10897, %v10893
      %v11282 = vpack.c.b16 %v10898, %v10894
      %v11283 = vpack.c.b16 %v10899, %v10895
      %v11284 = vpack.c.b16 %v10900, %v10896
      %v11285 = vpack.c.b16 %v10905, %v10901
      %v11286 = vpack.c.b16 %v10906, %v10902
      %v11287 = vpack.c.b16 %v10907, %v10903
      %v11288 = vpack.c.b16 %v10908, %v10904
      %v11289 = vpack.c.b16 %v10913, %v10909
      %v11290 = vpack.c.b16 %v10914, %v10910
      %v11291 = vpack.c.b16 %v10915, %v10911
      %v11292 = vpack.c.b16 %v10916, %v10912
      %v11293 = vpack.c.b16 %v10921, %v10917
      %v11294 = vpack.c.b16 %v10922, %v10918
      %v11295 = vpack.c.b16 %v10923, %v10919
      %v11296 = vpack.c.b16 %v10924, %v10920
      %v11297 = vpack.c.b16 %v10929, %v10925
      %v11298 = vpack.c.b16 %v10930, %v10926
      %v11299 = vpack.c.b16 %v10931, %v10927
      %v11300 = vpack.c.b16 %v10932, %v10928
      %v11301 = vpack.c.b16 %v10937, %v10933
      %v11302 = vpack.c.b16 %v10938, %v10934
      %v11303 = vpack.c.b16 %v10939, %v10935
      %v11304 = vpack.c.b16 %v10940, %v10936
      %v11305 = vpack.c.b16 %v10945, %v10941
      %v11306 = vpack.c.b16 %v10946, %v10942
      %v11307 = vpack.c.b16 %v10947, %v10943
      %v11308 = vpack.c.b16 %v10948, %v10944
      %v11309 = vpack.c.b16 %v10953, %v10949
      %v11310 = vpack.c.b16 %v10954, %v10950
      %v11311 = vpack.c.b16 %v10955, %v10951
      %v11312 = vpack.c.b16 %v10956, %v10952
      %v11313 = vpack.c.b16 %v10961, %v10957
      %v11314 = vpack.c.b16 %v10962, %v10958
      %v11315 = vpack.c.b16 %v10963, %v10959
      %v11316 = vpack.c.b16 %v10964, %v10960
      %v11317 = vpack.c.b16 %v10969, %v10965
      %v11318 = vpack.c.b16 %v10970, %v10966
      %v11319 = vpack.c.b16 %v10971, %v10967
      %v11320 = vpack.c.b16 %v10972, %v10968
      %v11321 = vpack.c.b16 %v10977, %v10973
      %v11322 = vpack.c.b16 %v10978, %v10974
      %v11323 = vpack.c.b16 %v10979, %v10975
      %v11324 = vpack.c.b16 %v10980, %v10976
      %v11325 = vpack.c.b16 %v10985, %v10981
      %v11326 = vpack.c.b16 %v10986, %v10982
      %v11327 = vpack.c.b16 %v10987, %v10983
      %v11328 = vpack.c.b16 %v10988, %v10984
      %v11329 = vpack.c.b16 %v10993, %v10989
      %v11330 = vpack.c.b16 %v10994, %v10990
      %v11331 = vpack.c.b16 %v10995, %v10991
      %v11332 = vpack.c.b16 %v10996, %v10992
      %v11333 = vpack.c.b16 %v11001, %v10997
      %v11334 = vpack.c.b16 %v11002, %v10998
      %v11335 = vpack.c.b16 %v11003, %v10999
      %v11336 = vpack.c.b16 %v11004, %v11000
      %v11337 = vpack.c.b16 %v11009, %v11005
      %v11338 = vpack.c.b16 %v11010, %v11006
      %v11339 = vpack.c.b16 %v11011, %v11007
      %v11340 = vpack.c.b16 %v11012, %v11008
      %v11341 = vpack.c.b16 %v11017, %v11013
      %v11342 = vpack.c.b16 %v11018, %v11014
      %v11343 = vpack.c.b16 %v11019, %v11015
      %v11344 = vpack.c.b16 %v11020, %v11016
      %v11345 = vpack.c.b16 %v11025, %v11021
      %v11346 = vpack.c.b16 %v11026, %v11022
      %v11347 = vpack.c.b16 %v11027, %v11023
      %v11348 = vpack.c.b16 %v11028, %v11024
      %v11349 = vpack.c.b16 %v11033, %v11029
      %v11350 = vpack.c.b16 %v11034, %v11030
      %v11351 = vpack.c.b16 %v11035, %v11031
      %v11352 = vpack.c.b16 %v11036, %v11032
      %v11353 = vpack.c.b16 %v11041, %v11037
      %v11354 = vpack.c.b16 %v11042, %v11038
      %v11355 = vpack.c.b16 %v11043, %v11039
      %v11356 = vpack.c.b16 %v11044, %v11040
      %v11357 = vpack.c.b16 %v11049, %v11045
      %v11358 = vpack.c.b16 %v11050, %v11046
      %v11359 = vpack.c.b16 %v11051, %v11047
      %v11360 = vpack.c.b16 %v11052, %v11048
      %v11361 = vpack.c.b16 %v11057, %v11053
      %v11362 = vpack.c.b16 %v11058, %v11054
      %v11363 = vpack.c.b16 %v11059, %v11055
      %v11364 = vpack.c.b16 %v11060, %v11056
      %v11365 = vpack.c.b16 %v11065, %v11061
      %v11366 = vpack.c.b16 %v11066, %v11062
      %v11367 = vpack.c.b16 %v11067, %v11063
      %v11368 = vpack.c.b16 %v11068, %v11064
      %v11369 = vpack.c.b16 %v11073, %v11069
      %v11370 = vpack.c.b16 %v11074, %v11070
      %v11371 = vpack.c.b16 %v11075, %v11071
      %v11372 = vpack.c.b16 %v11076, %v11072
      %v11373 = vpack.c.b16 %v11081, %v11077
      %v11374 = vpack.c.b16 %v11082, %v11078
      %v11375 = vpack.c.b16 %v11083, %v11079
      %v11376 = vpack.c.b16 %v11084, %v11080
      %v11377 = vpack.c.b16 %v11089, %v11085
      %v11378 = vpack.c.b16 %v11090, %v11086
      %v11379 = vpack.c.b16 %v11091, %v11087
      %v11380 = vpack.c.b16 %v11092, %v11088
      %v11381 = vpack.c.b16 %v11097, %v11093
      %v11382 = vpack.c.b16 %v11098, %v11094
      %v11383 = vpack.c.b16 %v11099, %v11095
      %v11384 = vpack.c.b16 %v11100, %v11096
      %v11385 = vpack.c.b16 %v11105, %v11101
      %v11386 = vpack.c.b16 %v11106, %v11102
      %v11387 = vpack.c.b16 %v11107, %v11103
      %v11388 = vpack.c.b16 %v11108, %v11104
      %v11389 = vpack.c.b16 %v11113, %v11109
      %v11390 = vpack.c.b16 %v11114, %v11110
      %v11391 = vpack.c.b16 %v11115, %v11111
      %v11392 = vpack.c.b16 %v11116, %v11112
      %v11393 = vpack.c.b16 %v11121, %v11117
      %v11394 = vpack.c.b16 %v11122, %v11118
      %v11395 = vpack.c.b16 %v11123, %v11119
      %v11396 = vpack.c.b16 %v11124, %v11120
      %v11397 = vpack.c.b16 %v11129, %v11125
      %v11398 = vpack.c.b16 %v11130, %v11126
      %v11399 = vpack.c.b16 %v11131, %v11127
      %v11400 = vpack.c.b16 %v11132, %v11128
      %v11401 = vpack.c.b16 %v11137, %v11133
      %v11402 = vpack.c.b16 %v11138, %v11134
      %v11403 = vpack.c.b16 %v11139, %v11135
      %v11404 = vpack.c.b16 %v11140, %v11136
      %v11405 = vpack.c.b16 %v11145, %v11141
      %v11406 = vpack.c.b16 %v11146, %v11142
      %v11407 = vpack.c.b16 %v11147, %v11143
      %v11408 = vpack.c.b16 %v11148, %v11144
      %v11409 = vpack.c.b16 %v11153, %v11149
      %v11410 = vpack.c.b16 %v11154, %v11150
      %v11411 = vpack.c.b16 %v11155, %v11151
      %v11412 = vpack.c.b16 %v11156, %v11152
      %11669 = vmatprep.subr.bf16.mxu0 %v11158
      %11670 = vmatpush1.bf16.msra.mxu0 %v11157
      %11671 = vmatprep.subr.bf16.mxu0 %v11162
      %11672 = vmatpush1.bf16.msra.mxu0 %v11161
      %11673 = vmatprep.subr.bf16.mxu0 %v11166
      %11674 = vmatpush1.bf16.msra.mxu0 %v11165
      %11675 = vmatprep.subr.bf16.mxu0 %v11170
      %11676 = vmatpush1.bf16.msra.mxu0 %v11169
      %11677 = vmatprep.subr.bf16.mxu0 %v11174
      %11678 = vmatpush1.bf16.msra.mxu0 %v11173
      %11679 = vmatprep.subr.bf16.mxu0 %v11178
      %11680 = vmatpush1.bf16.msra.mxu0 %v11177
      %11681 = vmatprep.subr.bf16.mxu0 %v11182
      %11682 = vmatpush1.bf16.msra.mxu0 %v11181
      %11683 = vmatprep.subr.bf16.mxu0 %v11186
      %11684 = vmatpush1.bf16.msra.mxu0 %v11185
      %11685 = vmatprep.subr.bf16.mxu0 %v11190
      %11686 = vmatpush1.bf16.msra.mxu0 %v11189
      %11687 = vmatprep.subr.bf16.mxu0 %v11194
      %11688 = vmatpush1.bf16.msra.mxu0 %v11193
      %11689 = vmatprep.subr.bf16.mxu0 %v11198
      %11690 = vmatpush1.bf16.msra.mxu0 %v11197
      %11691 = vmatprep.subr.bf16.mxu0 %v11202
      %11692 = vmatpush1.bf16.msra.mxu0 %v11201
      %11693 = vmatprep.subr.bf16.mxu0 %v11206
      %11694 = vmatpush1.bf16.msra.mxu0 %v11205
      %11695 = vmatprep.subr.bf16.mxu0 %v11210
      %11696 = vmatpush1.bf16.msra.mxu0 %v11209
      %11697 = vmatprep.subr.bf16.mxu0 %v11214
      %11698 = vmatpush1.bf16.msra.mxu0 %v11213
      %11699 = vmatprep.subr.bf16.mxu0 %v11218
      %11700 = vmatpush1.bf16.msra.mxu0 %v11217
      %11701 = vmatprep.mubr.bf16.mxu0 %v10080
      %11702 = vmatmul.mubr.bf16.gmra.mrb[0].mxu0 %v10079
      %v11703 = vpop.f32.mrb[0].mxu0
      %v11704 = vadd.f32 %v10372, %v11703
      %v11705 = vpop.f32.mrb[0].mxu0
      %v11706 = vadd.f32 %v10376, %v11705
      %v11707 = vpop.f32.mrb[0].mxu0
      %v11708 = vadd.f32 %v10372, %v11707
      %v11709 = vpop.f32.mrb[0].mxu0
      %v11710 = vadd.f32 %v10376, %v11709
      %11711 = vmatprep.mubr.bf16.mxu0 %v10088
      %11712 = vmatmul.mubr.bf16.gmra.mrb[0].mxu0 %v10087
      %v11713 = vpop.f32.mrb[0].mxu0
      %v11714 = vadd.f32 %v10372, %v11713
      %v11715 = vpop.f32.mrb[0].mxu0
      %v11716 = vadd.f32 %v10376, %v11715
      %v11717 = vpop.f32.mrb[0].mxu0
      %v11718 = vadd.f32 %v10372, %v11717
      %v11719 = vpop.f32.mrb[0].mxu0
      %v11720 = vadd.f32 %v10376, %v11719
      %11721 = vmatprep.mubr.bf16.mxu0 %v10096
      %11722 = vmatmul.mubr.bf16.gmra.mrb[0].mxu0 %v10095
      %v11723 = vpop.f32.mrb[0].mxu0
      %v11724 = vadd.f32 %v10372, %v11723
      %v11725 = vpop.f32.mrb[0].mxu0
      %v11726 = vadd.f32 %v10376, %v11725
      %v11727 = vpop.f32.mrb[0].mxu0
      %v11728 = vadd.f32 %v10372, %v11727
      %v11729 = vpop.f32.mrb[0].mxu0
      %v11730 = vadd.f32 %v10376, %v11729
      %11731 = vmatprep.mubr.bf16.mxu0 %v10104
      %11732 = vmatmul.mubr.bf16.gmra.mrb[0].mxu0 %v10103
      %v11733 = vpop.f32.mrb[0].mxu0
      %v11734 = vadd.f32 %v10372, %v11733
      %v11735 = vpop.f32.mrb[0].mxu0
      %v11736 = vadd.f32 %v10376, %v11735
      %v11737 = vpop.f32.mrb[0].mxu0
      %v11738 = vadd.f32 %v10372, %v11737
      %v11739 = vpop.f32.mrb[0].mxu0
      %v11740 = vadd.f32 %v10376, %v11739
      %11741 = vdwg.mxu0
      %11742 = vmatprep.subr.bf16.mxu0 %v11222
      %11743 = vmatpush1.bf16.msra.mxu0 %v11221
      %11744 = vmatprep.subr.bf16.mxu0 %v11226
      %11745 = vmatpush1.bf16.msra.mxu0 %v11225
      %11746 = vmatprep.subr.bf16.mxu0 %v11230
      %11747 = vmatpush1.bf16.msra.mxu0 %v11229
      %11748 = vmatprep.subr.bf16.mxu0 %v11234
      %11749 = vmatpush1.bf16.msra.mxu0 %v11233
      %11750 = vmatprep.subr.bf16.mxu0 %v11238
      %11751 = vmatpush1.bf16.msra.mxu0 %v11237
      %11752 = vmatprep.subr.bf16.mxu0 %v11242
      %11753 = vmatpush1.bf16.msra.mxu0 %v11241
      %11754 = vmatprep.subr.bf16.mxu0 %v11246
      %11755 = vmatpush1.bf16.msra.mxu0 %v11245
      %11756 = vmatprep.subr.bf16.mxu0 %v11250
      %11757 = vmatpush1.bf16.msra.mxu0 %v11249
      %11758 = vmatprep.subr.bf16.mxu0 %v11254
      %11759 = vmatpush1.bf16.msra.mxu0 %v11253
      %11760 = vmatprep.subr.bf16.mxu0 %v11258
      %11761 = vmatpush1.bf16.msra.mxu0 %v11257
      %11762 = vmatprep.subr.bf16.mxu0 %v11262
      %11763 = vmatpush1.bf16.msra.mxu0 %v11261
      %11764 = vmatprep.subr.bf16.mxu0 %v11266
      %11765 = vmatpush1.bf16.msra.mxu0 %v11265
      %11766 = vmatprep.subr.bf16.mxu0 %v11270
      %11767 = vmatpush1.bf16.msra.mxu0 %v11269
      %11768 = vmatprep.subr.bf16.mxu0 %v11274
      %11769 = vmatpush1.bf16.msra.mxu0 %v11273
      %11770 = vmatprep.subr.bf16.mxu0 %v11278
      %11771 = vmatpush1.bf16.msra.mxu0 %v11277
      %11772 = vmatprep.subr.bf16.mxu0 %v11282
      %11773 = vmatpush1.bf16.msra.mxu0 %v11281
      %11774 = vmatprep.mubr.bf16.mxu0 %v10082
      %11775 = vmatmul.mubr.bf16.gmra.mrb[0].mxu0 %v10081
      %v11776 = vpop.f32.mrb[0].mxu0
      %v11777 = vadd.f32 %v11704, %v11776
      %v11778 = vpop.f32.mrb[0].mxu0
      %v11779 = vadd.f32 %v11706, %v11778
      %v11780 = vpop.f32.mrb[0].mxu0
      %v11781 = vadd.f32 %v11708, %v11780
      %v11782 = vpop.f32.mrb[0].mxu0
      %v11783 = vadd.f32 %v11710, %v11782
      %11784 = vmatprep.mubr.bf16.mxu0 %v10090
      %11785 = vmatmul.mubr.bf16.gmra.mrb[0].mxu0 %v10089
      %v11786 = vpop.f32.mrb[0].mxu0
      %v11787 = vadd.f32 %v11714, %v11786
      %v11788 = vpop.f32.mrb[0].mxu0
      %v11789 = vadd.f32 %v11716, %v11788
      %v11790 = vpop.f32.mrb[0].mxu0
      %v11791 = vadd.f32 %v11718, %v11790
      %v11792 = vpop.f32.mrb[0].mxu0
      %v11793 = vadd.f32 %v11720, %v11792
      %11794 = vmatprep.mubr.bf16.mxu0 %v10098
      %11795 = vmatmul.mubr.bf16.gmra.mrb[0].mxu0 %v10097
      %v11796 = vpop.f32.mrb[0].mxu0
      %v11797 = vadd.f32 %v11724, %v11796
      %v11798 = vpop.f32.mrb[0].mxu0
      %v11799 = vadd.f32 %v11726, %v11798
      %v11800 = vpop.f32.mrb[0].mxu0
      %v11801 = vadd.f32 %v11728, %v11800
      %v11802 = vpop.f32.mrb[0].mxu0
      %v11803 = vadd.f32 %v11730, %v11802
      %11804 = vmatprep.mubr.bf16.mxu0 %v10106
      %11805 = vmatmul.mubr.bf16.gmra.mrb[0].mxu0 %v10105
      %v11806 = vpop.f32.mrb[0].mxu0
      %v11807 = vadd.f32 %v11734, %v11806
      %v11808 = vpop.f32.mrb[0].mxu0
      %v11809 = vadd.f32 %v11736, %v11808
      %v11810 = vpop.f32.mrb[0].mxu0
      %v11811 = vadd.f32 %v11738, %v11810
      %v11812 = vpop.f32.mrb[0].mxu0
      %v11813 = vadd.f32 %v11740, %v11812
      %11814 = vdwg.mxu0
      %11815 = vmatprep.subr.bf16.mxu0 %v11286
      %11816 = vmatpush1.bf16.msra.mxu0 %v11285
      %11817 = vmatprep.subr.bf16.mxu0 %v11290
      %11818 = vmatpush1.bf16.msra.mxu0 %v11289
      %11819 = vmatprep.subr.bf16.mxu0 %v11294
      %11820 = vmatpush1.bf16.msra.mxu0 %v11293
      %11821 = vmatprep.subr.bf16.mxu0 %v11298
      %11822 = vmatpush1.bf16.msra.mxu0 %v11297
      %11823 = vmatprep.subr.bf16.mxu0 %v11302
      %11824 = vmatpush1.bf16.msra.mxu0 %v11301
      %11825 = vmatprep.subr.bf16.mxu0 %v11306
      %11826 = vmatpush1.bf16.msra.mxu0 %v11305
      %11827 = vmatprep.subr.bf16.mxu0 %v11310
      %11828 = vmatpush1.bf16.msra.mxu0 %v11309
      %11829 = vmatprep.subr.bf16.mxu0 %v11314
      %11830 = vmatpush1.bf16.msra.mxu0 %v11313
      %11831 = vmatprep.subr.bf16.mxu0 %v11318
      %11832 = vmatpush1.bf16.msra.mxu0 %v11317
      %11833 = vmatprep.subr.bf16.mxu0 %v11322
      %11834 = vmatpush1.bf16.msra.mxu0 %v11321
      %11835 = vmatprep.subr.bf16.mxu0 %v11326
      %11836 = vmatpush1.bf16.msra.mxu0 %v11325
      %11837 = vmatprep.subr.bf16.mxu0 %v11330
      %11838 = vmatpush1.bf16.msra.mxu0 %v11329
      %11839 = vmatprep.subr.bf16.mxu0 %v11334
      %11840 = vmatpush1.bf16.msra.mxu0 %v11333
      %11841 = vmatprep.subr.bf16.mxu0 %v11338
      %11842 = vmatpush1.bf16.msra.mxu0 %v11337
      %11843 = vmatprep.subr.bf16.mxu0 %v11342
      %11844 = vmatpush1.bf16.msra.mxu0 %v11341
      %11845 = vmatprep.subr.bf16.mxu0 %v11346
      %11846 = vmatpush1.bf16.msra.mxu0 %v11345
      %11847 = vmatprep.mubr.bf16.mxu0 %v10084
      %11848 = vmatmul.mubr.bf16.gmra.mrb[0].mxu0 %v10083
      %v11849 = vpop.f32.mrb[0].mxu0
      %v11850 = vadd.f32 %v11777, %v11849
      %v11851 = vpop.f32.mrb[0].mxu0
      %v11852 = vadd.f32 %v11779, %v11851
      %v11853 = vpop.f32.mrb[0].mxu0
      %v11854 = vadd.f32 %v11781, %v11853
      %v11855 = vpop.f32.mrb[0].mxu0
      %v11856 = vadd.f32 %v11783, %v11855
      %11857 = vmatprep.mubr.bf16.mxu0 %v10092
      %11858 = vmatmul.mubr.bf16.gmra.mrb[0].mxu0 %v10091
      %v11859 = vpop.f32.mrb[0].mxu0
      %v11860 = vadd.f32 %v11787, %v11859
      %v11861 = vpop.f32.mrb[0].mxu0
      %v11862 = vadd.f32 %v11789, %v11861
      %v11863 = vpop.f32.mrb[0].mxu0
      %v11864 = vadd.f32 %v11791, %v11863
      %v11865 = vpop.f32.mrb[0].mxu0
      %v11866 = vadd.f32 %v11793, %v11865
      %11867 = vmatprep.mubr.bf16.mxu0 %v10100
      %11868 = vmatmul.mubr.bf16.gmra.mrb[0].mxu0 %v10099
      %v11869 = vpop.f32.mrb[0].mxu0
      %v11870 = vadd.f32 %v11797, %v11869
      %v11871 = vpop.f32.mrb[0].mxu0
      %v11872 = vadd.f32 %v11799, %v11871
      %v11873 = vpop.f32.mrb[0].mxu0
      %v11874 = vadd.f32 %v11801, %v11873
      %v11875 = vpop.f32.mrb[0].mxu0
      %v11876 = vadd.f32 %v11803, %v11875
      %11877 = vmatprep.mubr.bf16.mxu0 %v10108
      %11878 = vmatmul.mubr.bf16.gmra.mrb[0].mxu0 %v10107
      %v11879 = vpop.f32.mrb[0].mxu0
      %v11880 = vadd.f32 %v11807, %v11879
      %v11881 = vpop.f32.mrb[0].mxu0
      %v11882 = vadd.f32 %v11809, %v11881
      %v11883 = vpop.f32.mrb[0].mxu0
      %v11884 = vadd.f32 %v11811, %v11883
      %v11885 = vpop.f32.mrb[0].mxu0
      %v11886 = vadd.f32 %v11813, %v11885
      %11887 = vdwg.mxu0
      %11888 = vmatprep.subr.bf16.mxu0 %v11350
      %11889 = vmatpush1.bf16.msra.mxu0 %v11349
      %11890 = vmatprep.subr.bf16.mxu0 %v11354
      %11891 = vmatpush1.bf16.msra.mxu0 %v11353
      %11892 = vmatprep.subr.bf16.mxu0 %v11358
      %11893 = vmatpush1.bf16.msra.mxu0 %v11357
      %11894 = vmatprep.subr.bf16.mxu0 %v11362
      %11895 = vmatpush1.bf16.msra.mxu0 %v11361
      %11896 = vmatprep.subr.bf16.mxu0 %v11366
      %11897 = vmatpush1.bf16.msra.mxu0 %v11365
      %11898 = vmatprep.subr.bf16.mxu0 %v11370
      %11899 = vmatpush1.bf16.msra.mxu0 %v11369
      %11900 = vmatprep.subr.bf16.mxu0 %v11374
      %11901 = vmatpush1.bf16.msra.mxu0 %v11373
      %11902 = vmatprep.subr.bf16.mxu0 %v11378
      %11903 = vmatpush1.bf16.msra.mxu0 %v11377
      %11904 = vmatprep.subr.bf16.mxu0 %v11382
      %11905 = vmatpush1.bf16.msra.mxu0 %v11381
      %11906 = vmatprep.subr.bf16.mxu0 %v11386
      %11907 = vmatpush1.bf16.msra.mxu0 %v11385
      %11908 = vmatprep.subr.bf16.mxu0 %v11390
      %11909 = vmatpush1.bf16.msra.mxu0 %v11389
      %11910 = vmatprep.subr.bf16.mxu0 %v11394
      %11911 = vmatpush1.bf16.msra.mxu0 %v11393
      %11912 = vmatprep.subr.bf16.mxu0 %v11398
      %11913 = vmatpush1.bf16.msra.mxu0 %v11397
      %11914 = vmatprep.subr.bf16.mxu0 %v11402
      %11915 = vmatpush1.bf16.msra.mxu0 %v11401
      %11916 = vmatprep.subr.bf16.mxu0 %v11406
      %11917 = vmatpush1.bf16.msra.mxu0 %v11405
      %11918 = vmatprep.subr.bf16.mxu0 %v11410
      %11919 = vmatpush1.bf16.msra.mxu0 %v11409
      %11920 = vmatprep.mubr.bf16.mxu0 %v10086
      %11921 = vmatmul.mubr.bf16.gmra.mrb[0].mxu0 %v10085
      %v11922 = vpop.f32.mrb[0].mxu0
      %v11923 = vadd.f32 %v11850, %v11922
      %v11924 = vpop.f32.mrb[0].mxu0
      %v11925 = vadd.f32 %v11852, %v11924
      %v11926 = vpop.f32.mrb[0].mxu0
      %v11927 = vadd.f32 %v11854, %v11926
      %v11928 = vpop.f32.mrb[0].mxu0
      %v11929 = vadd.f32 %v11856, %v11928
      %11930 = vmatprep.mubr.bf16.mxu0 %v10094
      %11931 = vmatmul.mubr.bf16.gmra.mrb[0].mxu0 %v10093
      %v11932 = vpop.f32.mrb[0].mxu0
      %v11933 = vadd.f32 %v11860, %v11932
      %v11934 = vpop.f32.mrb[0].mxu0
      %v11935 = vadd.f32 %v11862, %v11934
      %v11936 = vpop.f32.mrb[0].mxu0
      %v11937 = vadd.f32 %v11864, %v11936
      %v11938 = vpop.f32.mrb[0].mxu0
      %v11939 = vadd.f32 %v11866, %v11938
      %11940 = vmatprep.mubr.bf16.mxu0 %v10102
      %11941 = vmatmul.mubr.bf16.gmra.mrb[0].mxu0 %v10101
      %v11942 = vpop.f32.mrb[0].mxu0
      %v11943 = vadd.f32 %v11870, %v11942
      %v11944 = vpop.f32.mrb[0].mxu0
      %v11945 = vadd.f32 %v11872, %v11944
      %v11946 = vpop.f32.mrb[0].mxu0
      %v11947 = vadd.f32 %v11874, %v11946
      %v11948 = vpop.f32.mrb[0].mxu0
      %v11949 = vadd.f32 %v11876, %v11948
      %11950 = vmatprep.mubr.bf16.mxu0 %v10110
      %11951 = vmatmul.mubr.bf16.gmra.mrb[0].mxu0 %v10109
      %v11952 = vpop.f32.mrb[0].mxu0
      %v11953 = vadd.f32 %v11880, %v11952
      %v11954 = vpop.f32.mrb[0].mxu0
      %v11955 = vadd.f32 %v11882, %v11954
      %v11956 = vpop.f32.mrb[0].mxu0
      %v11957 = vadd.f32 %v11884, %v11956
      %v11958 = vpop.f32.mrb[0].mxu0
      %v11959 = vadd.f32 %v11886, %v11958
      %11960 = vdwg.mxu0
      %11961 = vmatprep.subr.bf16.mxu0 %v11160
      %11962 = vmatpush1.bf16.msra.mxu0 %v11159
      %11963 = vmatprep.subr.bf16.mxu0 %v11164
      %11964 = vmatpush1.bf16.msra.mxu0 %v11163
      %11965 = vmatprep.subr.bf16.mxu0 %v11168
      %11966 = vmatpush1.bf16.msra.mxu0 %v11167
      %11967 = vmatprep.subr.bf16.mxu0 %v11172
      %11968 = vmatpush1.bf16.msra.mxu0 %v11171
      %11969 = vmatprep.subr.bf16.mxu0 %v11176
      %11970 = vmatpush1.bf16.msra.mxu0 %v11175
      %11971 = vmatprep.subr.bf16.mxu0 %v11180
      %11972 = vmatpush1.bf16.msra.mxu0 %v11179
      %11973 = vmatprep.subr.bf16.mxu0 %v11184
      %11974 = vmatpush1.bf16.msra.mxu0 %v11183
      %11975 = vmatprep.subr.bf16.mxu0 %v11188
      %11976 = vmatpush1.bf16.msra.mxu0 %v11187
      %11977 = vmatprep.subr.bf16.mxu0 %v11192
      %11978 = vmatpush1.bf16.msra.mxu0 %v11191
      %11979 = vmatprep.subr.bf16.mxu0 %v11196
      %11980 = vmatpush1.bf16.msra.mxu0 %v11195
      %11981 = vmatprep.subr.bf16.mxu0 %v11200
      %11982 = vmatpush1.bf16.msra.mxu0 %v11199
      %11983 = vmatprep.subr.bf16.mxu0 %v11204
      %11984 = vmatpush1.bf16.msra.mxu0 %v11203
      %11985 = vmatprep.subr.bf16.mxu0 %v11208
      %11986 = vmatpush1.bf16.msra.mxu0 %v11207
      %11987 = vmatprep.subr.bf16.mxu0 %v11212
      %11988 = vmatpush1.bf16.msra.mxu0 %v11211
      %11989 = vmatprep.subr.bf16.mxu0 %v11216
      %11990 = vmatpush1.bf16.msra.mxu0 %v11215
      %11991 = vmatprep.subr.bf16.mxu0 %v11220
      %11992 = vmatpush1.bf16.msra.mxu0 %v11219
      %11993 = vmatprep.mubr.bf16.mxu0 %v10080
      %11994 = vmatmul.mubr.bf16.gmra.mrb[0].mxu0 %v10079
      %v11995 = vpop.f32.mrb[0].mxu0
      %v11996 = vadd.f32 %v10380, %v11995
      %v11997 = vpop.f32.mrb[0].mxu0
      %v11998 = vadd.f32 %v10384, %v11997
      %v11999 = vpop.f32.mrb[0].mxu0
      %v12000 = vadd.f32 %v10380, %v11999
      %v12001 = vpop.f32.mrb[0].mxu0
      %v12002 = vadd.f32 %v10384, %v12001
      %12003 = vmatprep.mubr.bf16.mxu0 %v10088
      %12004 = vmatmul.mubr.bf16.gmra.mrb[0].mxu0 %v10087
      %v12005 = vpop.f32.mrb[0].mxu0
      %v12006 = vadd.f32 %v10380, %v12005
      %v12007 = vpop.f32.mrb[0].mxu0
      %v12008 = vadd.f32 %v10384, %v12007
      %v12009 = vpop.f32.mrb[0].mxu0
      %v12010 = vadd.f32 %v10380, %v12009
      %v12011 = vpop.f32.mrb[0].mxu0
      %v12012 = vadd.f32 %v10384, %v12011
      %12013 = vmatprep.mubr.bf16.mxu0 %v10096
      %12014 = vmatmul.mubr.bf16.gmra.mrb[0].mxu0 %v10095
      %v12015 = vpop.f32.mrb[0].mxu0
      %v12016 = vadd.f32 %v10380, %v12015
      %v12017 = vpop.f32.mrb[0].mxu0
      %v12018 = vadd.f32 %v10384, %v12017
      %v12019 = vpop.f32.mrb[0].mxu0
      %v12020 = vadd.f32 %v10380, %v12019
      %v12021 = vpop.f32.mrb[0].mxu0
      %v12022 = vadd.f32 %v10384, %v12021
      %12023 = vmatprep.mubr.bf16.mxu0 %v10104
      %12024 = vmatmul.mubr.bf16.gmra.mrb[0].mxu0 %v10103
      %v12025 = vpop.f32.mrb[0].mxu0
      %v12026 = vadd.f32 %v10380, %v12025
      %v12027 = vpop.f32.mrb[0].mxu0
      %v12028 = vadd.f32 %v10384, %v12027
      %v12029 = vpop.f32.mrb[0].mxu0
      %v12030 = vadd.f32 %v10380, %v12029
      %v12031 = vpop.f32.mrb[0].mxu0
      %v12032 = vadd.f32 %v10384, %v12031
      %12033 = vdwg.mxu0
      %12034 = vmatprep.subr.bf16.mxu0 %v11224
      %12035 = vmatpush1.bf16.msra.mxu0 %v11223
      %12036 = vmatprep.subr.bf16.mxu0 %v11228
      %12037 = vmatpush1.bf16.msra.mxu0 %v11227
      %12038 = vmatprep.subr.bf16.mxu0 %v11232
      %12039 = vmatpush1.bf16.msra.mxu0 %v11231
      %12040 = vmatprep.subr.bf16.mxu0 %v11236
      %12041 = vmatpush1.bf16.msra.mxu0 %v11235
      %12042 = vmatprep.subr.bf16.mxu0 %v11240
      %12043 = vmatpush1.bf16.msra.mxu0 %v11239
      %12044 = vmatprep.subr.bf16.mxu0 %v11244
      %12045 = vmatpush1.bf16.msra.mxu0 %v11243
      %12046 = vmatprep.subr.bf16.mxu0 %v11248
      %12047 = vmatpush1.bf16.msra.mxu0 %v11247
      %12048 = vmatprep.subr.bf16.mxu0 %v11252
      %12049 = vmatpush1.bf16.msra.mxu0 %v11251
      %12050 = vmatprep.subr.bf16.mxu0 %v11256
      %12051 = vmatpush1.bf16.msra.mxu0 %v11255
      %12052 = vmatprep.subr.bf16.mxu0 %v11260
      %12053 = vmatpush1.bf16.msra.mxu0 %v11259
      %12054 = vmatprep.subr.bf16.mxu0 %v11264
      %12055 = vmatpush1.bf16.msra.mxu0 %v11263
      %12056 = vmatprep.subr.bf16.mxu0 %v11268
      %12057 = vmatpush1.bf16.msra.mxu0 %v11267
      %12058 = vmatprep.subr.bf16.mxu0 %v11272
      %12059 = vmatpush1.bf16.msra.mxu0 %v11271
      %12060 = vmatprep.subr.bf16.mxu0 %v11276
      %12061 = vmatpush1.bf16.msra.mxu0 %v11275
      %12062 = vmatprep.subr.bf16.mxu0 %v11280
      %12063 = vmatpush1.bf16.msra.mxu0 %v11279
      %12064 = vmatprep.subr.bf16.mxu0 %v11284
      %12065 = vmatpush1.bf16.msra.mxu0 %v11283
      %12066 = vmatprep.mubr.bf16.mxu0 %v10082
      %12067 = vmatmul.mubr.bf16.gmra.mrb[0].mxu0 %v10081
      %v12068 = vpop.f32.mrb[0].mxu0
      %v12069 = vadd.f32 %v11996, %v12068
      %v12070 = vpop.f32.mrb[0].mxu0
      %v12071 = vadd.f32 %v11998, %v12070
      %v12072 = vpop.f32.mrb[0].mxu0
      %v12073 = vadd.f32 %v12000, %v12072
      %v12074 = vpop.f32.mrb[0].mxu0
      %v12075 = vadd.f32 %v12002, %v12074
      %12076 = vmatprep.mubr.bf16.mxu0 %v10090
      %12077 = vmatmul.mubr.bf16.gmra.mrb[0].mxu0 %v10089
      %v12078 = vpop.f32.mrb[0].mxu0
      %v12079 = vadd.f32 %v12006, %v12078
      %v12080 = vpop.f32.mrb[0].mxu0
      %v12081 = vadd.f32 %v12008, %v12080
      %v12082 = vpop.f32.mrb[0].mxu0
      %v12083 = vadd.f32 %v12010, %v12082
      %v12084 = vpop.f32.mrb[0].mxu0
      %v12085 = vadd.f32 %v12012, %v12084
      %12086 = vmatprep.mubr.bf16.mxu0 %v10098
      %12087 = vmatmul.mubr.bf16.gmra.mrb[0].mxu0 %v10097
      %v12088 = vpop.f32.mrb[0].mxu0
      %v12089 = vadd.f32 %v12016, %v12088
      %v12090 = vpop.f32.mrb[0].mxu0
      %v12091 = vadd.f32 %v12018, %v12090
      %v12092 = vpop.f32.mrb[0].mxu0
      %v12093 = vadd.f32 %v12020, %v12092
      %v12094 = vpop.f32.mrb[0].mxu0
      %v12095 = vadd.f32 %v12022, %v12094
      %12096 = vmatprep.mubr.bf16.mxu0 %v10106
      %12097 = vmatmul.mubr.bf16.gmra.mrb[0].mxu0 %v10105
      %v12098 = vpop.f32.mrb[0].mxu0
      %v12099 = vadd.f32 %v12026, %v12098
      %v12100 = vpop.f32.mrb[0].mxu0
      %v12101 = vadd.f32 %v12028, %v12100
      %v12102 = vpop.f32.mrb[0].mxu0
      %v12103 = vadd.f32 %v12030, %v12102
      %v12104 = vpop.f32.mrb[0].mxu0
      %v12105 = vadd.f32 %v12032, %v12104
      %12106 = vdwg.mxu0
      %12107 = vmatprep.subr.bf16.mxu0 %v11288
      %12108 = vmatpush1.bf16.msra.mxu0 %v11287
      %12109 = vmatprep.subr.bf16.mxu0 %v11292
      %12110 = vmatpush1.bf16.msra.mxu0 %v11291
      %12111 = vmatprep.subr.bf16.mxu0 %v11296
      %12112 = vmatpush1.bf16.msra.mxu0 %v11295
      %12113 = vmatprep.subr.bf16.mxu0 %v11300
      %12114 = vmatpush1.bf16.msra.mxu0 %v11299
      %12115 = vmatprep.subr.bf16.mxu0 %v11304
      %12116 = vmatpush1.bf16.msra.mxu0 %v11303
      %12117 = vmatprep.subr.bf16.mxu0 %v11308
      %12118 = vmatpush1.bf16.msra.mxu0 %v11307
      %12119 = vmatprep.subr.bf16.mxu0 %v11312
      %12120 = vmatpush1.bf16.msra.mxu0 %v11311
      %12121 = vmatprep.subr.bf16.mxu0 %v11316
      %12122 = vmatpush1.bf16.msra.mxu0 %v11315
      %12123 = vmatprep.subr.bf16.mxu0 %v11320
      %12124 = vmatpush1.bf16.msra.mxu0 %v11319
      %12125 = vmatprep.subr.bf16.mxu0 %v11324
      %12126 = vmatpush1.bf16.msra.mxu0 %v11323
      %12127 = vmatprep.subr.bf16.mxu0 %v11328
      %12128 = vmatpush1.bf16.msra.mxu0 %v11327
      %12129 = vmatprep.subr.bf16.mxu0 %v11332
      %12130 = vmatpush1.bf16.msra.mxu0 %v11331
      %12131 = vmatprep.subr.bf16.mxu0 %v11336
      %12132 = vmatpush1.bf16.msra.mxu0 %v11335
      %12133 = vmatprep.subr.bf16.mxu0 %v11340
      %12134 = vmatpush1.bf16.msra.mxu0 %v11339
      %12135 = vmatprep.subr.bf16.mxu0 %v11344
      %12136 = vmatpush1.bf16.msra.mxu0 %v11343
      %12137 = vmatprep.subr.bf16.mxu0 %v11348
      %12138 = vmatpush1.bf16.msra.mxu0 %v11347
      %12139 = vmatprep.mubr.bf16.mxu0 %v10084
      %12140 = vmatmul.mubr.bf16.gmra.mrb[0].mxu0 %v10083
      %v12141 = vpop.f32.mrb[0].mxu0
      %v12142 = vadd.f32 %v12069, %v12141
      %v12143 = vpop.f32.mrb[0].mxu0
      %v12144 = vadd.f32 %v12071, %v12143
      %v12145 = vpop.f32.mrb[0].mxu0
      %v12146 = vadd.f32 %v12073, %v12145
      %v12147 = vpop.f32.mrb[0].mxu0
      %v12148 = vadd.f32 %v12075, %v12147
      %12149 = vmatprep.mubr.bf16.mxu0 %v10092
      %12150 = vmatmul.mubr.bf16.gmra.mrb[0].mxu0 %v10091
      %v12151 = vpop.f32.mrb[0].mxu0
      %v12152 = vadd.f32 %v12079, %v12151
      %v12153 = vpop.f32.mrb[0].mxu0
      %v12154 = vadd.f32 %v12081, %v12153
      %v12155 = vpop.f32.mrb[0].mxu0
      %v12156 = vadd.f32 %v12083, %v12155
      %v12157 = vpop.f32.mrb[0].mxu0
      %v12158 = vadd.f32 %v12085, %v12157
      %12159 = vmatprep.mubr.bf16.mxu0 %v10100
      %12160 = vmatmul.mubr.bf16.gmra.mrb[0].mxu0 %v10099
      %v12161 = vpop.f32.mrb[0].mxu0
      %v12162 = vadd.f32 %v12089, %v12161
      %v12163 = vpop.f32.mrb[0].mxu0
      %v12164 = vadd.f32 %v12091, %v12163
      %v12165 = vpop.f32.mrb[0].mxu0
      %v12166 = vadd.f32 %v12093, %v12165
      %v12167 = vpop.f32.mrb[0].mxu0
      %v12168 = vadd.f32 %v12095, %v12167
      %12169 = vmatprep.mubr.bf16.mxu0 %v10108
      %12170 = vmatmul.mubr.bf16.gmra.mrb[0].mxu0 %v10107
      %v12171 = vpop.f32.mrb[0].mxu0
      %v12172 = vadd.f32 %v12099, %v12171
      %v12173 = vpop.f32.mrb[0].mxu0
      %v12174 = vadd.f32 %v12101, %v12173
      %v12175 = vpop.f32.mrb[0].mxu0
      %v12176 = vadd.f32 %v12103, %v12175
      %v12177 = vpop.f32.mrb[0].mxu0
      %v12178 = vadd.f32 %v12105, %v12177
      %12179 = vdwg.mxu0
      %12180 = vmatprep.subr.bf16.mxu0 %v11352
      %12181 = vmatpush1.bf16.msra.mxu0 %v11351
      %12182 = vmatprep.subr.bf16.mxu0 %v11356
      %12183 = vmatpush1.bf16.msra.mxu0 %v11355
      %12184 = vmatprep.subr.bf16.mxu0 %v11360
      %12185 = vmatpush1.bf16.msra.mxu0 %v11359
      %12186 = vmatprep.subr.bf16.mxu0 %v11364
      %12187 = vmatpush1.bf16.msra.mxu0 %v11363
      %12188 = vmatprep.subr.bf16.mxu0 %v11368
      %12189 = vmatpush1.bf16.msra.mxu0 %v11367
      %12190 = vmatprep.subr.bf16.mxu0 %v11372
      %12191 = vmatpush1.bf16.msra.mxu0 %v11371
      %12192 = vmatprep.subr.bf16.mxu0 %v11376
      %12193 = vmatpush1.bf16.msra.mxu0 %v11375
      %12194 = vmatprep.subr.bf16.mxu0 %v11380
      %12195 = vmatpush1.bf16.msra.mxu0 %v11379
      %12196 = vmatprep.subr.bf16.mxu0 %v11384
      %12197 = vmatpush1.bf16.msra.mxu0 %v11383
      %12198 = vmatprep.subr.bf16.mxu0 %v11388
      %12199 = vmatpush1.bf16.msra.mxu0 %v11387
      %12200 = vmatprep.subr.bf16.mxu0 %v11392
      %12201 = vmatpush1.bf16.msra.mxu0 %v11391
      %12202 = vmatprep.subr.bf16.mxu0 %v11396
      %12203 = vmatpush1.bf16.msra.mxu0 %v11395
      %12204 = vmatprep.subr.bf16.mxu0 %v11400
      %12205 = vmatpush1.bf16.msra.mxu0 %v11399
      %12206 = vmatprep.subr.bf16.mxu0 %v11404
      %12207 = vmatpush1.bf16.msra.mxu0 %v11403
      %12208 = vmatprep.subr.bf16.mxu0 %v11408
      %12209 = vmatpush1.bf16.msra.mxu0 %v11407
      %12210 = vmatprep.subr.bf16.mxu0 %v11412
      %12211 = vmatpush1.bf16.msra.mxu0 %v11411
      %12212 = vmatprep.mubr.bf16.mxu0 %v10086
      %12213 = vmatmul.mubr.bf16.gmra.mrb[0].mxu0 %v10085
      %v12214 = vpop.f32.mrb[0].mxu0
      %v12215 = vadd.f32 %v12142, %v12214
      %v12216 = vpop.f32.mrb[0].mxu0
      %v12217 = vadd.f32 %v12144, %v12216
      %v12218 = vpop.f32.mrb[0].mxu0
      %v12219 = vadd.f32 %v12146, %v12218
      %v12220 = vpop.f32.mrb[0].mxu0
      %v12221 = vadd.f32 %v12148, %v12220
      %12222 = vmatprep.mubr.bf16.mxu0 %v10094
      %12223 = vmatmul.mubr.bf16.gmra.mrb[0].mxu0 %v10093
      %v12224 = vpop.f32.mrb[0].mxu0
      %v12225 = vadd.f32 %v12152, %v12224
      %v12226 = vpop.f32.mrb[0].mxu0
      %v12227 = vadd.f32 %v12154, %v12226
      %v12228 = vpop.f32.mrb[0].mxu0
      %v12229 = vadd.f32 %v12156, %v12228
      %v12230 = vpop.f32.mrb[0].mxu0
      %v12231 = vadd.f32 %v12158, %v12230
      %12232 = vmatprep.mubr.bf16.mxu0 %v10102
      %12233 = vmatmul.mubr.bf16.gmra.mrb[0].mxu0 %v10101
      %v12234 = vpop.f32.mrb[0].mxu0
      %v12235 = vadd.f32 %v12162, %v12234
      %v12236 = vpop.f32.mrb[0].mxu0
      %v12237 = vadd.f32 %v12164, %v12236
      %v12238 = vpop.f32.mrb[0].mxu0
      %v12239 = vadd.f32 %v12166, %v12238
      %v12240 = vpop.f32.mrb[0].mxu0
      %v12241 = vadd.f32 %v12168, %v12240
      %12242 = vmatprep.mubr.bf16.mxu0 %v10110
      %12243 = vmatmul.mubr.bf16.gmra.mrb[0].mxu0 %v10109
      %v12244 = vpop.f32.mrb[0].mxu0
      %v12245 = vadd.f32 %v12172, %v12244
      %v12246 = vpop.f32.mrb[0].mxu0
      %v12247 = vadd.f32 %v12174, %v12246
      %v12248 = vpop.f32.mrb[0].mxu0
      %v12249 = vadd.f32 %v12176, %v12248
      %v12250 = vpop.f32.mrb[0].mxu0
      %v12251 = vadd.f32 %v12178, %v12250
      %12252 = vdwg.mxu0
      %v12253 = vmul.f32 %v11923, 0.2
      %v12254 = vmul.f32 %v11925, 0.2
      %v12255 = vmul.f32 %v12215, 0.2
      %v12256 = vmul.f32 %v12217, 0.2
      %v12257 = vmul.f32 %v11927, 0.2
      %v12258 = vmul.f32 %v11929, 0.2
      %v12259 = vmul.f32 %v12219, 0.2
      %v12260 = vmul.f32 %v12221, 0.2
      %v12261 = vmul.f32 %v11933, 0.2
      %v12262 = vmul.f32 %v11935, 0.2
      %v12263 = vmul.f32 %v12225, 0.2
      %v12264 = vmul.f32 %v12227, 0.2
      %v12265 = vmul.f32 %v11937, 0.2
      %v12266 = vmul.f32 %v11939, 0.2
      %v12267 = vmul.f32 %v12229, 0.2
      %v12268 = vmul.f32 %v12231, 0.2
      %v12269 = vmul.f32 %v11943, 0.2
      %v12270 = vmul.f32 %v11945, 0.2
      %v12271 = vmul.f32 %v12235, 0.2
      %v12272 = vmul.f32 %v12237, 0.2
      %v12273 = vmul.f32 %v11947, 0.2
      %v12274 = vmul.f32 %v11949, 0.2
      %v12275 = vmul.f32 %v12239, 0.2
      %v12276 = vmul.f32 %v12241, 0.2
      %v12277 = vmul.f32 %v11953, 0.2
      %v12278 = vmul.f32 %v11955, 0.2
      %v12279 = vmul.f32 %v12245, 0.2
      %v12280 = vmul.f32 %v12247, 0.2
      %v12281 = vmul.f32 %v11957, 0.2
      %v12282 = vmul.f32 %v11959, 0.2
      %v12283 = vmul.f32 %v12249, 0.2
      %v12284 = vmul.f32 %v12251, 0.2
      %v12285 = vmax.f32 %v11923, %v12253
      %v12286 = vmax.f32 %v11925, %v12254
      %v12287 = vmax.f32 %v12215, %v12255
      %v12288 = vmax.f32 %v12217, %v12256
      %v12289 = vmax.f32 %v11927, %v12257
      %v12290 = vmax.f32 %v11929, %v12258
      %v12291 = vmax.f32 %v12219, %v12259
      %v12292 = vmax.f32 %v12221, %v12260
      %v12293 = vmax.f32 %v11933, %v12261
      %v12294 = vmax.f32 %v11935, %v12262
      %v12295 = vmax.f32 %v12225, %v12263
      %v12296 = vmax.f32 %v12227, %v12264
      %v12297 = vmax.f32 %v11937, %v12265
      %v12298 = vmax.f32 %v11939, %v12266
      %v12299 = vmax.f32 %v12229, %v12267
      %v12300 = vmax.f32 %v12231, %v12268
      %v12301 = vmax.f32 %v11943, %v12269
      %v12302 = vmax.f32 %v11945, %v12270
      %v12303 = vmax.f32 %v12235, %v12271
      %v12304 = vmax.f32 %v12237, %v12272
      %v12305 = vmax.f32 %v11947, %v12273
      %v12306 = vmax.f32 %v11949, %v12274
      %v12307 = vmax.f32 %v12239, %v12275
      %v12308 = vmax.f32 %v12241, %v12276
      %v12309 = vmax.f32 %v11953, %v12277
      %v12310 = vmax.f32 %v11955, %v12278
      %v12311 = vmax.f32 %v12245, %v12279
      %v12312 = vmax.f32 %v12247, %v12280
      %v12313 = vmax.f32 %v11957, %v12281
      %v12314 = vmax.f32 %v11959, %v12282
      %v12315 = vmax.f32 %v12249, %v12283
      %v12316 = vmax.f32 %v12251, %v12284
      %v12317 = vld [vmem:[%s7] sm:$0xf]
      %v12319 = vlaneseq
      %v12320 = vshrl.u32 %v12319, 7
      %v12321 = vsub.s32 0, %v12320
      %v12322 = vrot.slane %v12317, %v12321
      %v12323 = vlaneseq
      %v12324 = vshrl.u32 %v12323, 7
      %v12325 = vsub.s32 1, %v12324
      %v12326 = vrot.slane %v12317, %v12325
      %v12327 = vlaneseq
      %v12328 = vshrl.u32 %v12327, 7
      %v12329 = vsub.s32 2, %v12328
      %v12330 = vrot.slane %v12317, %v12329
      %v12331 = vlaneseq
      %v12332 = vshrl.u32 %v12331, 7
      %v12333 = vsub.s32 3, %v12332
      %v12334 = vrot.slane %v12317, %v12333
      %v12339 = vmul.f32 %v12285, %v12322
      %v12340 = vmul.f32 %v12286, %v12326
      %v12341 = vmul.f32 %v12287, %v12330
      %v12342 = vmul.f32 %v12288, %v12334
      %v12343 = vmul.f32 %v12289, %v12322
      %v12344 = vmul.f32 %v12290, %v12326
      %v12345 = vmul.f32 %v12291, %v12330
      %v12346 = vmul.f32 %v12292, %v12334
      %v12347 = vmul.f32 %v12293, %v12322
      %v12348 = vmul.f32 %v12294, %v12326
      %v12349 = vmul.f32 %v12295, %v12330
      %v12350 = vmul.f32 %v12296, %v12334
      %v12351 = vmul.f32 %v12297, %v12322
      %v12352 = vmul.f32 %v12298, %v12326
      %v12353 = vmul.f32 %v12299, %v12330
      %v12354 = vmul.f32 %v12300, %v12334
      %v12355 = vmul.f32 %v12301, %v12322
      %v12356 = vmul.f32 %v12302, %v12326
      %v12357 = vmul.f32 %v12303, %v12330
      %v12358 = vmul.f32 %v12304, %v12334
      %v12359 = vmul.f32 %v12305, %v12322
      %v12360 = vmul.f32 %v12306, %v12326
      %v12361 = vmul.f32 %v12307, %v12330
      %v12362 = vmul.f32 %v12308, %v12334
      %v12363 = vmul.f32 %v12309, %v12322
      %v12364 = vmul.f32 %v12310, %v12326
      %v12365 = vmul.f32 %v12311, %v12330
      %v12366 = vmul.f32 %v12312, %v12334
      %v12367 = vmul.f32 %v12313, %v12322
      %v12368 = vmul.f32 %v12314, %v12326
      %v12369 = vmul.f32 %v12315, %v12330
      %v12370 = vmul.f32 %v12316, %v12334
      %v12371 = vadd.f32 %v12339, %v12340
      %v12372 = vadd.f32 %v12371, %v12341
      %v12373 = vadd.f32 %v12372, %v12342
      %12374 = vadd.xlane.f32.xlu0 %v12373
      %v12375 = vpop.xlane.xlu0 %12374
      %v12376 = vadd.f32 %v12343, %v12344
      %v12377 = vadd.f32 %v12376, %v12345
      %v12378 = vadd.f32 %v12377, %v12346
      %12379 = vadd.xlane.f32.xlu0 %v12378
      %v12380 = vpop.xlane.xlu0 %12379
      %v12381 = vadd.f32 %v12347, %v12348
      %v12382 = vadd.f32 %v12381, %v12349
      %v12383 = vadd.f32 %v12382, %v12350
      %12384 = vadd.xlane.f32.xlu0 %v12383
      %v12385 = vpop.xlane.xlu0 %12384
      %v12386 = vadd.f32 %v12351, %v12352
      %v12387 = vadd.f32 %v12386, %v12353
      %v12388 = vadd.f32 %v12387, %v12354
      %12389 = vadd.xlane.f32.xlu0 %v12388
      %v12390 = vpop.xlane.xlu0 %12389
      %v12391 = vadd.f32 %v12355, %v12356
      %v12392 = vadd.f32 %v12391, %v12357
      %v12393 = vadd.f32 %v12392, %v12358
      %12394 = vadd.xlane.f32.xlu0 %v12393
      %v12395 = vpop.xlane.xlu0 %12394
      %v12396 = vadd.f32 %v12359, %v12360
      %v12397 = vadd.f32 %v12396, %v12361
      %v12398 = vadd.f32 %v12397, %v12362
      %12399 = vadd.xlane.f32.xlu0 %v12398
      %v12400 = vpop.xlane.xlu0 %12399
      %v12401 = vadd.f32 %v12363, %v12364
      %v12402 = vadd.f32 %v12401, %v12365
      %v12403 = vadd.f32 %v12402, %v12366
      %12404 = vadd.xlane.f32.xlu0 %v12403
      %v12405 = vpop.xlane.xlu0 %12404
      %v12406 = vadd.f32 %v12367, %v12368
      %v12407 = vadd.f32 %v12406, %v12369
      %v12408 = vadd.f32 %v12407, %v12370
      %12409 = vadd.xlane.f32.xlu0 %v12408
      %v12410 = vpop.xlane.xlu0 %12409
      %v12411 = vld [vmem:[#allocation2] sm:$0x1]
      %v12413 = vlaneseq
      %v12414 = vshrl.u32 %v12413, 7
      %v12415 = vsub.s32 0, %v12414
      %v12416 = vrot.slane %v12411, %v12415
      %v12418 = vadd.f32 %v12375, %v12416
      %v12419 = vadd.f32 %v12380, %v12416
      %v12420 = vadd.f32 %v12385, %v12416
      %v12421 = vadd.f32 %v12390, %v12416
      %v12422 = vadd.f32 %v12395, %v12416
      %v12423 = vadd.f32 %v12400, %v12416
      %v12424 = vadd.f32 %v12405, %v12416
      %v12425 = vadd.f32 %v12410, %v12416
      %v12426 = vxor.u32 %v12418, 2147483648
      %v12427 = vxor.u32 %v12419, 2147483648
      %v12428 = vxor.u32 %v12420, 2147483648
      %v12429 = vxor.u32 %v12421, 2147483648
      %v12430 = vxor.u32 %v12422, 2147483648
      %v12431 = vxor.u32 %v12423, 2147483648
      %v12432 = vxor.u32 %v12424, 2147483648
      %v12433 = vxor.u32 %v12425, 2147483648
      %v12434 = vmul.f32 %v12426, 1.442695
      %v12435 = vpow.pop %v12434
      %v12436 = vmul.f32 %v12427, 1.442695
      %v12437 = vpow.pop %v12436
      %v12438 = vmul.f32 %v12428, 1.442695
      %v12439 = vpow.pop %v12438
      %v12440 = vmul.f32 %v12429, 1.442695
      %v12441 = vpow.pop %v12440
      %v12442 = vmul.f32 %v12430, 1.442695
      %v12443 = vpow.pop %v12442
      %v12444 = vmul.f32 %v12431, 1.442695
      %v12445 = vpow.pop %v12444
      %v12446 = vmul.f32 %v12432, 1.442695
      %v12447 = vpow.pop %v12446
      %v12448 = vmul.f32 %v12433, 1.442695
      %v12449 = vpow.pop %v12448
      %v12450 = vadd.f32 %v12435, 1.0
      %v12451 = vadd.f32 %v12437, 1.0
      %v12452 = vadd.f32 %v12439, 1.0
      %v12453 = vadd.f32 %v12441, 1.0
      %v12454 = vadd.f32 %v12443, 1.0
      %v12455 = vadd.f32 %v12445, 1.0
      %v12456 = vadd.f32 %v12447, 1.0
      %v12457 = vadd.f32 %v12449, 1.0
      %v12458 = vrcp.pop %v12450
      %v12459 = vmul.f32 1.0, %v12458
      %v12460 = vrcp.pop %v12451
      %v12461 = vmul.f32 1.0, %v12460
      %v12462 = vrcp.pop %v12452
      %v12463 = vmul.f32 1.0, %v12462
      %v12464 = vrcp.pop %v12453
      %v12465 = vmul.f32 1.0, %v12464
      %v12466 = vrcp.pop %v12454
      %v12467 = vmul.f32 1.0, %v12466
      %v12468 = vrcp.pop %v12455
      %v12469 = vmul.f32 1.0, %v12468
      %v12470 = vrcp.pop %v12456
      %v12471 = vmul.f32 1.0, %v12470
      %v12472 = vrcp.pop %v12457
      %v12473 = vmul.f32 1.0, %v12472
      %vm12474 = vcmask 7168
      %12475 = vst.msk [vmem:[%s336] sm:$0xff] %vm12474, %v12459
      %12476 = vst.msk [vmem:[%s336 + $0x8] sm:$0xff] %vm12474, %v12461
      %12477 = vst.msk [vmem:[%s336 + $0x10] sm:$0xff] %vm12474, %v12463
      %12478 = vst.msk [vmem:[%s336 + $0x18] sm:$0xff] %vm12474, %v12465
      %12479 = vst.msk [vmem:[%s336 + $0x20] sm:$0xff] %vm12474, %v12467
      %12480 = vst.msk [vmem:[%s336 + $0x28] sm:$0xff] %vm12474, %v12469
      %12481 = vst.msk [vmem:[%s336 + $0x30] sm:$0xff] %vm12474, %v12471
      %12482 = vst.msk [vmem:[%s336 + $0x38] sm:$0xff] %vm12474, %v12473
      %s12483 = smul.u32 8, %s22
      %p12484 = scmp.lt.s32.totalorder %s12483, 15
      %s12485 = scalar_select %p12484, %s12483, 15
      %s12486 = smul.addr %s12485, 8
      %s12487 = scalar_lea.vmem %s9, %s12486
      // Predicated region
      $region57: #{_discriminator_forward_impl.1} parent=55 // pred_check
        %p12488 = pneg %p234
      $region58: #{_discriminator_forward_impl.1} parent=55 // pred_check_branch
        %12490 = sbr.rel (%p12488) target = $region60
      $region59: #{_discriminator_forward_impl.1} parent=55 // pred_region
        %s12491 = smul.u32 8, %s22
      $region60: #{_discriminator_forward_impl.1} parent=55 // pred_fallthru
        _
    $region56: #{_discriminator_forward_impl.1} parent=5 // pred_fallthru
      _
    %p12492 = scmp.le.s32.totalorder 2, %s17
    // Predicated region
    $region61: #{_discriminator_forward_impl.1} parent=5 // pred_check
      %p12493 = pneg %p12492
    $region62: #{_discriminator_forward_impl.1} parent=5 // pred_check_branch
      %12495 = sbr.rel (%p12493) target = $region64
    $region63: #{_discriminator_forward_impl.1} parent=5 // pred_region
      %s12496 = ssub.s32 %s17, 2
      // Predicated region
      $region65: #{_discriminator_forward_impl.1} parent=63 // pred_check
        %p12497 = pneg %p240
      $region66: #{_discriminator_forward_impl.1} parent=63 // pred_check_branch
        %12499 = sbr.rel (%p12497) target = $region68
      $region67: #{_discriminator_forward_impl.1} parent=63 // pred_region
        %s12500 = smul.u32 8, %s23
        %p12501 = scmp.lt.s32.totalorder %s12500, 15
        %s12502 = scalar_select %p12501, %s12500, 15
        %s12503 = smul.addr %s12502, 8
        %s12504 = scalar_lea.vmem %s9, %s12503
      $region68: #{_discriminator_forward_impl.1} parent=63 // pred_fallthru
        _
    $region64: #{_discriminator_forward_impl.1} parent=5 // pred_fallthru
      _
  $region6: #{_discriminator_forward_impl.1} parent=0 // loop_footer
    %s21 = sadd.s32 1, %s17
  $region7: #{_discriminator_forward_impl.1} parent=0 // loop_footer_branch
    %16 = sbr.rel target = $region3
  $region8: #{_discriminator_forward_impl.1} parent=0 // loop_exit
    _

</llo_original>
